<compile_context>
chip_gen: v6e
topology: v6e:2x2x1
jax: 0.10.0
libtpu: 0.0.40
codegen_flags: <defaults>
</compile_context>

<pallas_src>
import functools

import jax
import jax.numpy as jnp
from jax.experimental import pallas as pl
from jax.experimental.pallas import tpu as pltpu

_H1 = 80            # pi1 width
_H2 = 60            # pi2 / v2 width
_HMID_PAD = 128     # fused pi2|v2 rows, zero-padded 120 -> 128 (clean vregs, K=128 head)
_DEFAULT_BLOCK_B = 4096   # batch (lane) tile; fixed => one compile per 4096-batch bucket


def _round_up(n, m):
    return ((n + m - 1) // m) * m


def _net_fused_kernel(xt_ref, w1_ref, wh_ref, whead_ref, bias_ref, out_ref):
    """Whole fused forward pass for one batch tile (batch on lanes).

    Shapes (bb = batch tile):
      xt_ref    : (s_dim, bb)        observations, transposed
      w1_ref    : (80, s_dim)        layer-1 weight
      wh_ref    : (128, 80)          [W_pi2.T ; W_v2.T ; 0]  (rows 120:128 zero)
      whead_ref : (head_pad, 128)    block-diagonal [logits ; value ; 0] head
      bias_ref  : (128, 8)           col0 = b1, col1 = b_hidden, col2 = b_head
      out_ref   : (head_pad, bb)     packed [logits ; value ; 0] output slab
    """
    xt = xt_ref[...]                                        # (s_dim, bb)

    # Layer 1: pi1 = relu(W1 @ x + b1)                       -> (80, bb)
    b1 = bias_ref[0:_H1, 0:1]                                # (80, 1) lane-broadcast
    pi1 = jnp.dot(w1_ref[...], xt, preferred_element_type=jnp.float32)
    pi1 = jnp.maximum(pi1 + b1, 0.0)

    # Fused branch layer: [pi2 ; v2 ; 0] = relu(Wh @ pi1 + bh) -> (128, bb)
    wh = wh_ref[...]
    bh = bias_ref[0:wh_ref.shape[0], 1:2]                    # (128, 1)
    hid = jnp.dot(wh, pi1.astype(wh.dtype), preferred_element_type=jnp.float32)
    hid = jnp.maximum(hid + bh, 0.0)

    # Fused block-diagonal head: [logits ; value ; 0] = Whead @ hid + bo
    whead = whead_ref[...]
    bo = bias_ref[0:whead_ref.shape[0], 2:3]                 # (head_pad, 1)
    out = jnp.dot(whead, hid.astype(whead.dtype), preferred_element_type=jnp.float32)
    out_ref[...] = (out + bo).astype(out_ref.dtype)          # (head_pad, bb)


def pack_params(params, a_dim, *, compute_dtype=jnp.float32):
    """Pack the 10 per-layer tensors into 4 kernel operands (transposed layout).

    params: dict of (in, out) weights and (1, out) biases from init_params().
    compute_dtype: dtype for x/weights inside the kernel (f32 default; bf16 is
      an option mainly for v5e's lower HBM bandwidth — accumulation, biases and
      outputs stay f32, but loosen reference tolerances if you use it).
    """
    assert a_dim >= 1, "a_dim must be >= 1"
    s_dim = params["w_pi1"].shape[0]
    head_pad = _round_up(a_dim + 1, 8)          # logits rows + 1 value row, sublane-padded

    # Layer-1 weight, (out, in) orientation for the transposed dataflow.
    w1 = params["w_pi1"].T                                              # (80, s_dim)

    # Branch fusion: stack pi2 / v2 weights along the output (row) axis and
    # zero-pad 120 -> 128 rows so `hid` is a clean 128-sublane tile.
    wh = jnp.zeros((_HMID_PAD, _H1), jnp.float32)
    wh = wh.at[:_H2, :].set(params["w_pi2"].T)
    wh = wh.at[_H2:2 * _H2, :].set(params["w_v2"].T)

    # Head fusion: block-diagonal weight, K = 128.  Off-blocks are exact zeros
    # so logits / value never cross-contaminate; padded rows stay all-zero.
    whead = jnp.zeros((head_pad, _HMID_PAD), jnp.float32)
    whead = whead.at[:a_dim, :_H2].set(params["w_pi3"].T)
    whead = whead.at[a_dim, _H2:2 * _H2].set(params["w_v3"][:, 0])

    # All five biases packed into one small column buffer (kept f32).
    bias_rows = max(_H1, _HMID_PAD, head_pad)
    biases = jnp.zeros((bias_rows, 8), jnp.float32)
    biases = biases.at[:_H1, 0].set(params["b_pi1"][0])
    biases = biases.at[:2 * _H2, 1].set(
        jnp.concatenate([params["b_pi2"][0], params["b_v2"][0]]))
    biases = biases.at[:a_dim, 2].set(params["b_pi3"][0])
    biases = biases.at[a_dim, 2].set(params["b_v3"][0, 0])

    return {
        "w1": w1.astype(compute_dtype),
        "wh": wh.astype(compute_dtype),
        "whead": whead.astype(compute_dtype),
        "biases": biases,
        "a_dim": int(a_dim),
        "s_dim": int(s_dim),
        "head_pad": int(head_pad),
        "compute_dtype": compute_dtype,
    }


@functools.partial(jax.jit, static_argnames=("block_b",))
def _net_forward_padded(xt, w1, wh, whead, biases, *, block_b):
    """pallas_call over a batch-padded, transposed input.

    xt: (s_dim, Bp) with Bp a multiple of block_b.
    Returns the packed (head_pad, Bp) f32 slab [logits ; value ; zeros].
    """
    s_dim, Bp = xt.shape
    head_pad = whead.shape[0]
    grid = (Bp // block_b,)

    return pl.pallas_call(
        _net_fused_kernel,
        out_shape=jax.ShapeDtypeStruct((head_pad, Bp), jnp.float32),
        grid=grid,
        in_specs=[
            # Batch tile streams through VMEM; weights/biases use a constant
            # block index so they stay resident across the whole grid.
            pl.BlockSpec((s_dim, block_b), lambda i: (0, i)),
            pl.BlockSpec(w1.shape, lambda i: (0, 0)),
            pl.BlockSpec(wh.shape, lambda i: (0, 0)),
            pl.BlockSpec(whead.shape, lambda i: (0, 0)),
            pl.BlockSpec(biases.shape, lambda i: (0, 0)),
        ],
        out_specs=pl.BlockSpec((head_pad, block_b), lambda i: (0, i)),
        # "parallel" lets v7x shard batch tiles across its 2 TensorCores.
        # VMEM at block_b=4096 is ~5 MiB/step — well inside the 32 MiB default
        # scoped VMEM on v5e/v6e/v7x; set vmem_limit_bytes here only if
        # block_b is pushed past ~8192 (mind v7x's 64 MiB physical VMEM).
        compiler_params=pltpu.CompilerParams(
            dimension_semantics=("parallel",)),
    )(xt, w1, wh, whead, biases)


def net_forward(x, packed, *, block_b=_DEFAULT_BLOCK_B):
    """Run the A2C Net forward pass via a single fused Pallas call.

    Args:
      x: (B, s_dim) observations.
      packed: output of pack_params().
      block_b: fixed batch tile (lanes per grid step); multiple of 128.

    Returns:
      (logits, values): (B, a_dim) and (B, 1) float32.
    """
    assert block_b % 128 == 0 and block_b >= 128
    a_dim = packed["a_dim"]
    B = x.shape[0]

    # Transpose to batch-on-lanes and pad the batch up to a whole number of
    # fixed-size tiles.  Padded columns compute valid-but-discarded values;
    # the fixed tile means one Mosaic compile per block_b-sized batch bucket.
    xt = x.astype(packed["compute_dtype"]).T                  # (s_dim, B)
    Bp = _round_up(max(B, 1), block_b)
    if Bp != B:
        xt = jnp.pad(xt, ((0, 0), (0, Bp - B)))

    out = _net_forward_padded(
        xt, packed["w1"], packed["wh"], packed["whead"], packed["biases"],
        block_b=int(block_b))

    logits = out[:a_dim, :B].T                                # (B, a_dim)
    values = out[a_dim:a_dim + 1, :B].T                       # (B, 1)
    return logits, values


def init_params(key, s_dim, a_dim):
    """Deterministic Xavier-uniform-style init matching the PyTorch shapes.

    PyTorch nn.Linear stores weight as (out, in); we store the transpose
    (in, out) here (the reference computes `x @ W`); pack_params re-orients
    for the kernel.  Biases kept as (1, out).
    """
    gain = jnp.sqrt(2.0)  # nn.init.calculate_gain('relu')

    def xavier(key, fan_in, fan_out):
        bound = gain * jnp.sqrt(6.0 / (fan_in + fan_out))
        return jax.random.uniform(
            key, (fan_in, fan_out), jnp.float32, minval=-bound, maxval=bound
        )

    keys = jax.random.split(key, 10)
    dims = {
        "pi1": (s_dim, _H1),
        "pi2": (_H1, _H2),
        "pi3": (_H2, a_dim),
        "v2": (_H1, _H2),
        "v3": (_H2, 1),
    }
    params = {}
    for i, (name, (fi, fo)) in enumerate(dims.items()):
        params[f"w_{name}"] = xavier(keys[2 * i], fi, fo)
        bbound = gain * jnp.sqrt(6.0 / (1 + fo))
        params[f"b_{name}"] = jax.random.uniform(
            keys[2 * i + 1], (1, fo), jnp.float32, minval=-bbound, maxval=bbound
        )
    return params


def net_forward_ref(x, params):
    """Pure-JAX reference (unfused) for correctness checking."""
    pi1 = jax.nn.relu(x @ params["w_pi1"] + params["b_pi1"])
    pi2 = jax.nn.relu(pi1 @ params["w_pi2"] + params["b_pi2"])
    logits = pi2 @ params["w_pi3"] + params["b_pi3"]
    v2 = jax.nn.relu(pi1 @ params["w_v2"] + params["b_v2"])
    values = v2 @ params["w_v3"] + params["b_v3"]
    return logits, values


if __name__ == "__main__":
    s_dim, a_dim, batch = 4, 2, 8  # CartPole: 4-dim observation, 2 actions

    key = jax.random.PRNGKey(0)
    pkey, xkey = jax.random.split(key)
    params = init_params(pkey, s_dim, a_dim)
    packed = pack_params(params, a_dim)
    x = jax.random.normal(xkey, (batch, s_dim), jnp.float32)

    logits, values = net_forward(x, packed)
    jax.block_until_ready((logits, values))

    ref_logits, ref_values = net_forward_ref(x, params)
    assert logits.shape == (batch, a_dim) and values.shape == (batch, 1)
    assert jnp.allclose(logits, ref_logits, atol=1e-5, rtol=1e-5)
    assert jnp.allclose(values, ref_values, atol=1e-5, rtol=1e-5)

    print("KERNEL_OK")
</pallas_src>

<mosaic_0001>
module attributes {stable_mosaic.version = 11 : i64} {
  func.func @_net_fused_kernel(%arg0: i32, %arg1: memref<4x4096xf32, #tpu.memory_space<vmem>>, %arg2: memref<80x4xf32, #tpu.memory_space<vmem>>, %arg3: memref<128x80xf32, #tpu.memory_space<vmem>>, %arg4: memref<8x128xf32, #tpu.memory_space<vmem>>, %arg5: memref<128x8xf32, #tpu.memory_space<vmem>>, %arg6: memref<8x4096xf32, #tpu.memory_space<vmem>>) attributes {dimension_semantics = [#tpu.dimension_semantics<parallel>], iteration_bounds = array<i64: 1>, scalar_prefetch = 0 : i64, scratch_operands = 0 : i64, tpu.core_type = #tpu.core_type<tc>, window_params = [{transform_indices = @transform_0, window_bounds = array<i64: 4, 4096>}, {pipeline_mode = #tpu.pipeline_mode<synchronous>, transform_indices = @transform_1, window_bounds = array<i64: 80, 4>}, {pipeline_mode = #tpu.pipeline_mode<synchronous>, transform_indices = @transform_2, window_bounds = array<i64: 128, 80>}, {pipeline_mode = #tpu.pipeline_mode<synchronous>, transform_indices = @transform_3, window_bounds = array<i64: 8, 128>}, {pipeline_mode = #tpu.pipeline_mode<synchronous>, transform_indices = @transform_4, window_bounds = array<i64: 128, 8>}, {transform_indices = @transform_5, window_bounds = array<i64: 8, 4096>}]} {
    %c0 = arith.constant 0 : index
    %c0_0 = arith.constant 0 : index
    %0 = vector.load %arg1[%c0, %c0_0] : memref<4x4096xf32, #tpu.memory_space<vmem>>, vector<4x4096xf32>
    %c0_1 = arith.constant 0 : index
    %c0_2 = arith.constant 0 : index
    %1 = vector.load %arg5[%c0_1, %c0_2] : memref<128x8xf32, #tpu.memory_space<vmem>>, vector<80x1xf32>
    %c0_3 = arith.constant 0 : index
    %c0_4 = arith.constant 0 : index
    %2 = vector.load %arg2[%c0_3, %c0_4] : memref<80x4xf32, #tpu.memory_space<vmem>>, vector<80x4xf32>
    %cst = arith.constant dense<0.000000e+00> : vector<80x4096xf32>
    %3 = tpu.matmul %2, %0, %cst {dimension_numbers = #tpu.dot_dimension_numbers<[1], [0], [0], [1], [0, 0, 1, 1], [], []>} : vector<80x4xf32>, vector<4x4096xf32>, vector<80x4096xf32> -> vector<80x4096xf32>
    %4 = vector.broadcast %1 : vector<80x1xf32> to vector<80x4096xf32>
    %5 = arith.addf %3, %4 : vector<80x4096xf32>
    %cst_5 = arith.constant 0.000000e+00 : f32
    %6 = vector.broadcast %cst_5 : f32 to vector<80x4096xf32>
    %7 = arith.maximumf %5, %6 : vector<80x4096xf32>
    %c0_6 = arith.constant 0 : index
    %c0_7 = arith.constant 0 : index
    %8 = vector.load %arg3[%c0_6, %c0_7] : memref<128x80xf32, #tpu.memory_space<vmem>>, vector<128x80xf32>
    %c0_8 = arith.constant 0 : index
    %c1 = arith.constant 1 : index
    %9 = vector.load %arg5[%c0_8, %c1] : memref<128x8xf32, #tpu.memory_space<vmem>>, vector<128x1xf32>
    %cst_9 = arith.constant dense<0.000000e+00> : vector<128x4096xf32>
    %10 = tpu.matmul %8, %7, %cst_9 {dimension_numbers = #tpu.dot_dimension_numbers<[1], [0], [0], [1], [0, 0, 1, 1], [], []>} : vector<128x80xf32>, vector<80x4096xf32>, vector<128x4096xf32> -> vector<128x4096xf32>
    %11 = vector.broadcast %9 : vector<128x1xf32> to vector<128x4096xf32>
    %12 = arith.addf %10, %11 : vector<128x4096xf32>
    %cst_10 = arith.constant 0.000000e+00 : f32
    %13 = vector.broadcast %cst_10 : f32 to vector<128x4096xf32>
    %14 = arith.maximumf %12, %13 : vector<128x4096xf32>
    %c0_11 = arith.constant 0 : index
    %c0_12 = arith.constant 0 : index
    %15 = vector.load %arg4[%c0_11, %c0_12] : memref<8x128xf32, #tpu.memory_space<vmem>>, vector<8x128xf32>
    %c0_13 = arith.constant 0 : index
    %c2 = arith.constant 2 : index
    %16 = vector.load %arg5[%c0_13, %c2] : memref<128x8xf32, #tpu.memory_space<vmem>>, vector<8x1xf32>
    %cst_14 = arith.constant dense<0.000000e+00> : vector<8x4096xf32>
    %17 = tpu.matmul %15, %14, %cst_14 {dimension_numbers = #tpu.dot_dimension_numbers<[1], [0], [0], [1], [0, 0, 1, 1], [], []>} : vector<8x128xf32>, vector<128x4096xf32>, vector<8x4096xf32> -> vector<8x4096xf32>
    %18 = vector.broadcast %16 : vector<8x1xf32> to vector<8x4096xf32>
    %19 = arith.addf %17, %18 : vector<8x4096xf32>
    %c0_15 = arith.constant 0 : index
    %c0_16 = arith.constant 0 : index
    %20 = vector.load %arg6[%c0_15, %c0_16] : memref<8x4096xf32, #tpu.memory_space<vmem>>, vector<8x4096xf32>
    tpu.vector_store %arg6[%c0_15, %c0_16], %19 {strides = array<i32>} : memref<8x4096xf32, #tpu.memory_space<vmem>>, vector<8x4096xf32>,
    return
  }
  func.func @transform_0(%arg0: i32) -> (i32, i32) {
    %c0_i32 = arith.constant 0 : i32
    %c0_i32_0 = arith.constant 0 : i32
    return %c0_i32, %arg0 : i32, i32
  }
  func.func @transform_1(%arg0: i32) -> (i32, i32) {
    %c0_i32 = arith.constant 0 : i32
    %c0_i32_0 = arith.constant 0 : i32
    %c0_i32_1 = arith.constant 0 : i32
    return %c0_i32, %c0_i32_0 : i32, i32
  }
  func.func @transform_2(%arg0: i32) -> (i32, i32) {
    %c0_i32 = arith.constant 0 : i32
    %c0_i32_0 = arith.constant 0 : i32
    %c0_i32_1 = arith.constant 0 : i32
    return %c0_i32, %c0_i32_0 : i32, i32
  }
  func.func @transform_3(%arg0: i32) -> (i32, i32) {
    %c0_i32 = arith.constant 0 : i32
    %c0_i32_0 = arith.constant 0 : i32
    %c0_i32_1 = arith.constant 0 : i32
    return %c0_i32, %c0_i32_0 : i32, i32
  }
  func.func @transform_4(%arg0: i32) -> (i32, i32) {
    %c0_i32 = arith.constant 0 : i32
    %c0_i32_0 = arith.constant 0 : i32
    %c0_i32_1 = arith.constant 0 : i32
    return %c0_i32, %c0_i32_0 : i32, i32
  }
  func.func @transform_5(%arg0: i32) -> (i32, i32) {
    %c0_i32 = arith.constant 0 : i32
    %c0_i32_0 = arith.constant 0 : i32
    return %c0_i32, %arg0 : i32, i32
  }
}

</mosaic_0001>

<llo_original>
// kernel: _net_forward_padded.1
$region0: #{_net_forward_padded.1}
  #allocation0 [shape = 'u32[]', space=smem, size = 0x4, offset = 0x4, fixed_abs, tag = 'smem constant byte address 0x4 - core index']
  #allocation1 [shape = 'u32[144,128]{1,0:T(1,128)}', space=vmem, size = 0x12000, scoped, tag = 'internal scratch']
  %s0 = inlined_call_operand.vmem [shape: f32[4,4096], index: 0, kind: input, shape index: {}]
  %s1 = inlined_call_operand.vmem [shape: f32[80,4], index: 1, kind: input, shape index: {}]
  %s2 = inlined_call_operand.vmem [shape: f32[128,80], index: 2, kind: input, shape index: {}]
  %s3 = inlined_call_operand.vmem [shape: f32[8,128], index: 3, kind: input, shape index: {}]
  %s4 = inlined_call_operand.vmem [shape: f32[128,8], index: 4, kind: input, shape index: {}]
  %s5 = inlined_call_operand.hbm [shape: f32[8,4096], index: 5, kind: output, shape index: {}]
  %s6 = sld [smem:[#allocation0]]
  $region30: #{_net_forward_padded.1} parent=0
    _
  %s8 = ssub.s32 1, %s6
  %s9 = scalar_select 0, %s8, %s6
  $region1: #{_net_forward_padded.1} parent=0
    #allocation2 [shape = 'u8[131072]{0}', space=vmem, size = 0x20000, scoped, tag = 'output window, operand 0, single buffered']
    #allocation3 [shape = 's32[1]{0}', space=sflag, size = 0x4, scoped, tag = 'scoped memory for _net_forward_padded.1']
    %10 = vsyncpa [#allocation3], 0
    // Predicated region
    $region2: #{_net_forward_padded.1} parent=1 // pred_check
      _
    $region3: #{_net_forward_padded.1} parent=1 // pred_check_branch
      %12 = sbr.rel (0) target = $region5
    $region4: #{_net_forward_padded.1} parent=1 // pred_region
      _
    $region5: #{_net_forward_padded.1} parent=1 // pred_fallthru
      _
    // Predicated region
    $region6: #{_net_forward_padded.1} parent=1 // pred_check
      _
    $region7: #{_net_forward_padded.1} parent=1 // pred_check_branch
      %14 = sbr.rel (0) target = $region9
    $region8: #{_net_forward_padded.1} parent=1 // pred_region
      _
    $region9: #{_net_forward_padded.1} parent=1 // pred_fallthru
      _
    // Predicated region
    $region10: #{_net_forward_padded.1} parent=1 // pred_check
      _
    $region11: #{_net_forward_padded.1} parent=1 // pred_check_branch
      %16 = sbr.rel (0) target = $region13
    $region12: #{_net_forward_padded.1} parent=1 // pred_region
      _
    $region13: #{_net_forward_padded.1} parent=1 // pred_fallthru
      _
    // Predicated region
    $region14: #{_net_forward_padded.1} parent=1 // pred_check
      _
    $region15: #{_net_forward_padded.1} parent=1 // pred_check_branch
      %18 = sbr.rel (0) target = $region17
    $region16: #{_net_forward_padded.1} parent=1 // pred_region
      _
    $region17: #{_net_forward_padded.1} parent=1 // pred_fallthru
      _
    // Predicated region
    $region18: #{_net_forward_padded.1} parent=1 // pred_check
      _
    $region19: #{_net_forward_padded.1} parent=1 // pred_check_branch
      %20 = sbr.rel (0) target = $region21
    $region20: #{_net_forward_padded.1} parent=1 // pred_region
      _
    $region21: #{_net_forward_padded.1} parent=1 // pred_fallthru
      _
    %v21 = vld [vmem:[%s0] sm:$0xff]
    %v22 = vld [vmem:[%s0 + $0x8] sm:$0xff]
    %v23 = vld [vmem:[%s0 + $0x10] sm:$0xff]
    %v24 = vld [vmem:[%s0 + $0x18] sm:$0xff]
    %v25 = vld [vmem:[%s0 + $0x20] sm:$0xff]
    %v26 = vld [vmem:[%s0 + $0x28] sm:$0xff]
    %v27 = vld [vmem:[%s0 + $0x30] sm:$0xff]
    %v28 = vld [vmem:[%s0 + $0x38] sm:$0xff]
    %v29 = vld [vmem:[%s0 + $0x40] sm:$0xff]
    %v30 = vld [vmem:[%s0 + $0x48] sm:$0xff]
    %v31 = vld [vmem:[%s0 + $0x50] sm:$0xff]
    %v32 = vld [vmem:[%s0 + $0x58] sm:$0xff]
    %v33 = vld [vmem:[%s0 + $0x60] sm:$0xff]
    %v34 = vld [vmem:[%s0 + $0x68] sm:$0xff]
    %v35 = vld [vmem:[%s0 + $0x70] sm:$0xff]
    %v36 = vld [vmem:[%s0 + $0x78] sm:$0xff]
    %v37 = vld [vmem:[%s4] sm:$0xff]
    %v38 = vld [vmem:[%s4 + $0x8] sm:$0xff]
    %v39 = vld [vmem:[%s4 + $0x10] sm:$0xff]
    %v40 = vld [vmem:[%s4 + $0x18] sm:$0xff]
    %v41 = vld [vmem:[%s4 + $0x20] sm:$0xff]
    %v42 = vld [vmem:[%s4 + $0x28] sm:$0xff]
    %v43 = vld [vmem:[%s4 + $0x30] sm:$0xff]
    %v44 = vld [vmem:[%s4 + $0x38] sm:$0xff]
    %v45 = vld [vmem:[%s4 + $0x40] sm:$0xff]
    %v46 = vld [vmem:[%s4 + $0x48] sm:$0xff]
    %v47 = vld [vmem:[%s1] sm:$0xff]
    %v48 = vld [vmem:[%s1 + $0x8] sm:$0xff]
    %v49 = vld [vmem:[%s1 + $0x10] sm:$0xff]
    %v50 = vld [vmem:[%s1 + $0x18] sm:$0xff]
    %v51 = vld [vmem:[%s1 + $0x20] sm:$0xff]
    %v52 = vld [vmem:[%s1 + $0x28] sm:$0xff]
    %v53 = vld [vmem:[%s1 + $0x30] sm:$0xff]
    %v54 = vld [vmem:[%s1 + $0x38] sm:$0xff]
    %v55 = vld [vmem:[%s1 + $0x40] sm:$0xff]
    %v56 = vld [vmem:[%s1 + $0x48] sm:$0xff]
    %58 = vset.pattern.permute.xlu0 0
    %59 = vperm.xlu0 %58, %v37
    %v60 = vpop.permute.xlu0 %59
    %63 = vset.pattern.permute.xlu0 0
    %64 = vperm.xlu0 %63, %v38
    %v65 = vpop.permute.xlu0 %64
    %68 = vset.pattern.permute.xlu0 0
    %69 = vperm.xlu0 %68, %v39
    %v70 = vpop.permute.xlu0 %69
    %73 = vset.pattern.permute.xlu0 0
    %74 = vperm.xlu0 %73, %v40
    %v75 = vpop.permute.xlu0 %74
    %78 = vset.pattern.permute.xlu0 0
    %79 = vperm.xlu0 %78, %v41
    %v80 = vpop.permute.xlu0 %79
    %83 = vset.pattern.permute.xlu0 0
    %84 = vperm.xlu0 %83, %v42
    %v85 = vpop.permute.xlu0 %84
    %88 = vset.pattern.permute.xlu0 0
    %89 = vperm.xlu0 %88, %v43
    %v90 = vpop.permute.xlu0 %89
    %93 = vset.pattern.permute.xlu0 0
    %94 = vperm.xlu0 %93, %v44
    %v95 = vpop.permute.xlu0 %94
    %98 = vset.pattern.permute.xlu0 0
    %99 = vperm.xlu0 %98, %v45
    %v100 = vpop.permute.xlu0 %99
    %103 = vset.pattern.permute.xlu0 0
    %104 = vperm.xlu0 %103, %v46
    %v105 = vpop.permute.xlu0 %104
    %v123 = vcombine.high %v21, %v21
    %v124 = vcombine.high %v22, %v22
    %v125 = vcombine.high %v23, %v23
    %v126 = vcombine.high %v24, %v24
    %v127 = vcombine.high %v25, %v25
    %v128 = vcombine.high %v26, %v26
    %v129 = vcombine.high %v27, %v27
    %v130 = vcombine.high %v28, %v28
    %v131 = vcombine.high %v29, %v29
    %v132 = vcombine.high %v30, %v30
    %v133 = vcombine.high %v31, %v31
    %v134 = vcombine.high %v32, %v32
    %v135 = vcombine.high %v33, %v33
    %v136 = vcombine.high %v34, %v34
    %v137 = vcombine.high %v35, %v35
    %v138 = vcombine.high %v36, %v36
    %vm139 = vcmask 31744
    %v141 = vsel %vm139, %v47, 0
    %v144 = vsel %vm139, %v48, 0
    %v147 = vsel %vm139, %v49, 0
    %v150 = vsel %vm139, %v50, 0
    %v153 = vsel %vm139, %v51, 0
    %v156 = vsel %vm139, %v52, 0
    %v159 = vsel %vm139, %v53, 0
    %v162 = vsel %vm139, %v54, 0
    %v165 = vsel %vm139, %v55, 0
    %v168 = vsel %vm139, %v56, 0
    %vm170 = vcmask 1043456
    %v171 = vsel %vm170, %v21, 0
    %v173 = vsel %vm170, %v123, 0
    %v175 = vsel %vm170, %v22, 0
    %v177 = vsel %vm170, %v124, 0
    %v179 = vsel %vm170, %v23, 0
    %v181 = vsel %vm170, %v125, 0
    %v183 = vsel %vm170, %v24, 0
    %v185 = vsel %vm170, %v126, 0
    %v187 = vsel %vm170, %v25, 0
    %v189 = vsel %vm170, %v127, 0
    %v191 = vsel %vm170, %v26, 0
    %v193 = vsel %vm170, %v128, 0
    %v195 = vsel %vm170, %v27, 0
    %v197 = vsel %vm170, %v129, 0
    %v199 = vsel %vm170, %v28, 0
    %v201 = vsel %vm170, %v130, 0
    %v203 = vsel %vm170, %v29, 0
    %v205 = vsel %vm170, %v131, 0
    %v207 = vsel %vm170, %v30, 0
    %v209 = vsel %vm170, %v132, 0
    %v211 = vsel %vm170, %v31, 0
    %v213 = vsel %vm170, %v133, 0
    %v215 = vsel %vm170, %v32, 0
    %v217 = vsel %vm170, %v134, 0
    %v219 = vsel %vm170, %v33, 0
    %v221 = vsel %vm170, %v135, 0
    %v223 = vsel %vm170, %v34, 0
    %v225 = vsel %vm170, %v136, 0
    %v227 = vsel %vm170, %v35, 0
    %v229 = vsel %vm170, %v137, 0
    %v231 = vsel %vm170, %v36, 0
    %v233 = vsel %vm170, %v138, 0
    %235 = vmatprep.subr.mxu0 0.0
    %236 = vmatpush1.msra.mxu0 0.0
    %237 = vmatprep.subr.mxu0 0.0
    %238 = vmatpush1.msra.mxu0 0.0
    %239 = vmatprep.subr.mxu0 0.0
    %240 = vmatpush1.msra.mxu0 0.0
    %241 = vmatprep.subr.mxu0 0.0
    %242 = vmatpush1.msra.mxu0 0.0
    %243 = vmatprep.subr.mxu0 0.0
    %244 = vmatpush1.msra.mxu0 0.0
    %245 = vmatprep.subr.mxu0 0.0
    %246 = vmatpush1.msra.mxu0 0.0
    %247 = vmatprep.subr.mxu0 0.0
    %248 = vmatpush1.msra.mxu0 0.0
    %249 = vmatprep.subr.mxu0 0.0
    %250 = vmatpush1.msra.mxu0 0.0
    %251 = vmatprep.subr.mxu0 0.0
    %252 = vmatpush1.msra.mxu0 0.0
    %253 = vmatprep.subr.mxu0 0.0
    %254 = vmatpush1.msra.mxu0 0.0
    %255 = vmatprep.subr.mxu0 0.0
    %256 = vmatpush1.msra.mxu0 0.0
    %257 = vmatprep.subr.mxu0 0.0
    %258 = vmatpush1.msra.mxu0 0.0
    %259 = vmatprep.subr.mxu0 0.0
    %260 = vmatpush1.msra.mxu0 0.0
    %261 = vmatprep.subr.mxu0 0.0
    %262 = vmatpush1.msra.mxu0 0.0
    %263 = vmatprep.subr.mxu0 0.0
    %264 = vmatpush1.msra.mxu0 0.0
    %265 = vmatprep.subr.mxu0 %v173
    %266 = vmatpush1.msra.mxu0 %v171
    %267 = vmatprep.subr.mxu0 0.0
    %268 = vmatpush2.msra.mxu0 0.0
    %269 = vmatprep.subr.mxu0 0.0
    %270 = vmatpush2.msra.mxu0 0.0
    %271 = vmatprep.subr.mxu0 0.0
    %272 = vmatpush2.msra.mxu0 0.0
    %273 = vmatprep.subr.mxu0 0.0
    %274 = vmatpush2.msra.mxu0 0.0
    %275 = vmatprep.subr.mxu0 0.0
    %276 = vmatpush2.msra.mxu0 0.0
    %277 = vmatprep.subr.mxu0 0.0
    %278 = vmatpush2.msra.mxu0 0.0
    %279 = vmatprep.subr.mxu0 0.0
    %280 = vmatpush2.msra.mxu0 0.0
    %281 = vmatprep.subr.mxu0 0.0
    %282 = vmatpush2.msra.mxu0 0.0
    %283 = vmatprep.subr.mxu0 0.0
    %284 = vmatpush2.msra.mxu0 0.0
    %285 = vmatprep.subr.mxu0 0.0
    %286 = vmatpush2.msra.mxu0 0.0
    %287 = vmatprep.subr.mxu0 0.0
    %288 = vmatpush2.msra.mxu0 0.0
    %289 = vmatprep.subr.mxu0 0.0
    %290 = vmatpush2.msra.mxu0 0.0
    %291 = vmatprep.subr.mxu0 0.0
    %292 = vmatpush2.msra.mxu0 0.0
    %293 = vmatprep.subr.mxu0 0.0
    %294 = vmatpush2.msra.mxu0 0.0
    %295 = vmatprep.subr.mxu0 0.0
    %296 = vmatpush2.msra.mxu0 0.0
    %297 = vmatprep.subr.mxu0 0.0
    %298 = vmatpush2.msra.mxu0 0.0
    %299 = vmatprep.mubr.f32.mxu0 0.0
    %300 = vmatmul.mubr.f32.gmra.mxu0 %v141
    %v301 = vpop.f32.mrf.mxu0
    %v302 = vadd.f32 %v60, %v301
    %v303 = vpop.f32.mrf.mxu0
    %v304 = vadd.f32 %v60, %v303
    %305 = vmatprep.mubr.f32.mxu0 0.0
    %306 = vmatmul.mubr.f32.gmra.mxu0 %v144
    %v307 = vpop.f32.mrf.mxu0
    %v308 = vadd.f32 %v65, %v307
    %v309 = vpop.f32.mrf.mxu0
    %v310 = vadd.f32 %v65, %v309
    %311 = vmatprep.mubr.f32.mxu0 0.0
    %312 = vmatmul.mubr.f32.gmra.mxu0 %v147
    %v313 = vpop.f32.mrf.mxu0
    %v314 = vadd.f32 %v70, %v313
    %v315 = vpop.f32.mrf.mxu0
    %v316 = vadd.f32 %v70, %v315
    %317 = vmatprep.mubr.f32.mxu0 0.0
    %318 = vmatmul.mubr.f32.gmra.mxu0 %v150
    %v319 = vpop.f32.mrf.mxu0
    %v320 = vadd.f32 %v75, %v319
    %v321 = vpop.f32.mrf.mxu0
    %v322 = vadd.f32 %v75, %v321
    %323 = vmatprep.mubr.f32.mxu0 0.0
    %324 = vmatmul.mubr.f32.gmra.mxu0 %v153
    %v325 = vpop.f32.mrf.mxu0
    %v326 = vadd.f32 %v80, %v325
    %v327 = vpop.f32.mrf.mxu0
    %v328 = vadd.f32 %v80, %v327
    %329 = vmatprep.mubr.f32.mxu0 0.0
    %330 = vmatmul.mubr.f32.gmra.mxu0 %v156
    %v331 = vpop.f32.mrf.mxu0
    %v332 = vadd.f32 %v85, %v331
    %v333 = vpop.f32.mrf.mxu0
    %v334 = vadd.f32 %v85, %v333
    %335 = vmatprep.mubr.f32.mxu0 0.0
    %336 = vmatmul.mubr.f32.gmra.mxu0 %v159
    %v337 = vpop.f32.mrf.mxu0
    %v338 = vadd.f32 %v90, %v337
    %v339 = vpop.f32.mrf.mxu0
    %v340 = vadd.f32 %v90, %v339
    %341 = vmatprep.mubr.f32.mxu0 0.0
    %342 = vmatmul.mubr.f32.gmra.mxu0 %v162
    %v343 = vpop.f32.mrf.mxu0
    %v344 = vadd.f32 %v95, %v343
    %v345 = vpop.f32.mrf.mxu0
    %v346 = vadd.f32 %v95, %v345
    %347 = vmatprep.mubr.f32.mxu0 0.0
    %348 = vmatmul.mubr.f32.gmra.mxu0 %v165
    %v349 = vpop.f32.mrf.mxu0
    %v350 = vadd.f32 %v100, %v349
    %v351 = vpop.f32.mrf.mxu0
    %v352 = vadd.f32 %v100, %v351
    %353 = vmatprep.mubr.f32.mxu0 0.0
    %354 = vmatmul.mubr.f32.gmra.mxu0 %v168
    %v355 = vpop.f32.mrf.mxu0
    %v356 = vadd.f32 %v105, %v355
    %v357 = vpop.f32.mrf.mxu0
    %v358 = vadd.f32 %v105, %v357
    %359 = vdwg.mxu0
    %360 = vmatprep.subr.mxu0 0.0
    %361 = vmatpush1.msra.mxu0 0.0
    %362 = vmatprep.subr.mxu0 0.0
    %363 = vmatpush1.msra.mxu0 0.0
    %364 = vmatprep.subr.mxu0 0.0
    %365 = vmatpush1.msra.mxu0 0.0
    %366 = vmatprep.subr.mxu0 0.0
    %367 = vmatpush1.msra.mxu0 0.0
    %368 = vmatprep.subr.mxu0 0.0
    %369 = vmatpush1.msra.mxu0 0.0
    %370 = vmatprep.subr.mxu0 0.0
    %371 = vmatpush1.msra.mxu0 0.0
    %372 = vmatprep.subr.mxu0 0.0
    %373 = vmatpush1.msra.mxu0 0.0
    %374 = vmatprep.subr.mxu0 0.0
    %375 = vmatpush1.msra.mxu0 0.0
    %376 = vmatprep.subr.mxu0 0.0
    %377 = vmatpush1.msra.mxu0 0.0
    %378 = vmatprep.subr.mxu0 0.0
    %379 = vmatpush1.msra.mxu0 0.0
    %380 = vmatprep.subr.mxu0 0.0
    %381 = vmatpush1.msra.mxu0 0.0
    %382 = vmatprep.subr.mxu0 0.0
    %383 = vmatpush1.msra.mxu0 0.0
    %384 = vmatprep.subr.mxu0 0.0
    %385 = vmatpush1.msra.mxu0 0.0
    %386 = vmatprep.subr.mxu0 0.0
    %387 = vmatpush1.msra.mxu0 0.0
    %388 = vmatprep.subr.mxu0 0.0
    %389 = vmatpush1.msra.mxu0 0.0
    %390 = vmatprep.subr.mxu0 %v177
    %391 = vmatpush1.msra.mxu0 %v175
    %392 = vmatprep.subr.mxu0 0.0
    %393 = vmatpush2.msra.mxu0 0.0
    %394 = vmatprep.subr.mxu0 0.0
    %395 = vmatpush2.msra.mxu0 0.0
    %396 = vmatprep.subr.mxu0 0.0
    %397 = vmatpush2.msra.mxu0 0.0
    %398 = vmatprep.subr.mxu0 0.0
    %399 = vmatpush2.msra.mxu0 0.0
    %400 = vmatprep.subr.mxu0 0.0
    %401 = vmatpush2.msra.mxu0 0.0
    %402 = vmatprep.subr.mxu0 0.0
    %403 = vmatpush2.msra.mxu0 0.0
    %404 = vmatprep.subr.mxu0 0.0
    %405 = vmatpush2.msra.mxu0 0.0
    %406 = vmatprep.subr.mxu0 0.0
    %407 = vmatpush2.msra.mxu0 0.0
    %408 = vmatprep.subr.mxu0 0.0
    %409 = vmatpush2.msra.mxu0 0.0
    %410 = vmatprep.subr.mxu0 0.0
    %411 = vmatpush2.msra.mxu0 0.0
    %412 = vmatprep.subr.mxu0 0.0
    %413 = vmatpush2.msra.mxu0 0.0
    %414 = vmatprep.subr.mxu0 0.0
    %415 = vmatpush2.msra.mxu0 0.0
    %416 = vmatprep.subr.mxu0 0.0
    %417 = vmatpush2.msra.mxu0 0.0
    %418 = vmatprep.subr.mxu0 0.0
    %419 = vmatpush2.msra.mxu0 0.0
    %420 = vmatprep.subr.mxu0 0.0
    %421 = vmatpush2.msra.mxu0 0.0
    %422 = vmatprep.subr.mxu0 0.0
    %423 = vmatpush2.msra.mxu0 0.0
    %424 = vmatprep.mubr.f32.mxu0 0.0
    %425 = vmatmul.mubr.f32.gmra.mxu0 %v141
    %v426 = vpop.f32.mrf.mxu0
    %v427 = vadd.f32 %v60, %v426
    %v428 = vpop.f32.mrf.mxu0
    %v429 = vadd.f32 %v60, %v428
    %430 = vmatprep.mubr.f32.mxu0 0.0
    %431 = vmatmul.mubr.f32.gmra.mxu0 %v144
    %v432 = vpop.f32.mrf.mxu0
    %v433 = vadd.f32 %v65, %v432
    %v434 = vpop.f32.mrf.mxu0
    %v435 = vadd.f32 %v65, %v434
    %436 = vmatprep.mubr.f32.mxu0 0.0
    %437 = vmatmul.mubr.f32.gmra.mxu0 %v147
    %v438 = vpop.f32.mrf.mxu0
    %v439 = vadd.f32 %v70, %v438
    %v440 = vpop.f32.mrf.mxu0
    %v441 = vadd.f32 %v70, %v440
    %442 = vmatprep.mubr.f32.mxu0 0.0
    %443 = vmatmul.mubr.f32.gmra.mxu0 %v150
    %v444 = vpop.f32.mrf.mxu0
    %v445 = vadd.f32 %v75, %v444
    %v446 = vpop.f32.mrf.mxu0
    %v447 = vadd.f32 %v75, %v446
    %448 = vmatprep.mubr.f32.mxu0 0.0
    %449 = vmatmul.mubr.f32.gmra.mxu0 %v153
    %v450 = vpop.f32.mrf.mxu0
    %v451 = vadd.f32 %v80, %v450
    %v452 = vpop.f32.mrf.mxu0
    %v453 = vadd.f32 %v80, %v452
    %454 = vmatprep.mubr.f32.mxu0 0.0
    %455 = vmatmul.mubr.f32.gmra.mxu0 %v156
    %v456 = vpop.f32.mrf.mxu0
    %v457 = vadd.f32 %v85, %v456
    %v458 = vpop.f32.mrf.mxu0
    %v459 = vadd.f32 %v85, %v458
    %460 = vmatprep.mubr.f32.mxu0 0.0
    %461 = vmatmul.mubr.f32.gmra.mxu0 %v159
    %v462 = vpop.f32.mrf.mxu0
    %v463 = vadd.f32 %v90, %v462
    %v464 = vpop.f32.mrf.mxu0
    %v465 = vadd.f32 %v90, %v464
    %466 = vmatprep.mubr.f32.mxu0 0.0
    %467 = vmatmul.mubr.f32.gmra.mxu0 %v162
    %v468 = vpop.f32.mrf.mxu0
    %v469 = vadd.f32 %v95, %v468
    %v470 = vpop.f32.mrf.mxu0
    %v471 = vadd.f32 %v95, %v470
    %472 = vmatprep.mubr.f32.mxu0 0.0
    %473 = vmatmul.mubr.f32.gmra.mxu0 %v165
    %v474 = vpop.f32.mrf.mxu0
    %v475 = vadd.f32 %v100, %v474
    %v476 = vpop.f32.mrf.mxu0
    %v477 = vadd.f32 %v100, %v476
    %478 = vmatprep.mubr.f32.mxu0 0.0
    %479 = vmatmul.mubr.f32.gmra.mxu0 %v168
    %v480 = vpop.f32.mrf.mxu0
    %v481 = vadd.f32 %v105, %v480
    %v482 = vpop.f32.mrf.mxu0
    %v483 = vadd.f32 %v105, %v482
    %484 = vdwg.mxu0
    %485 = vmatprep.subr.mxu0 0.0
    %486 = vmatpush1.msra.mxu0 0.0
    %487 = vmatprep.subr.mxu0 0.0
    %488 = vmatpush1.msra.mxu0 0.0
    %489 = vmatprep.subr.mxu0 0.0
    %490 = vmatpush1.msra.mxu0 0.0
    %491 = vmatprep.subr.mxu0 0.0
    %492 = vmatpush1.msra.mxu0 0.0
    %493 = vmatprep.subr.mxu0 0.0
    %494 = vmatpush1.msra.mxu0 0.0
    %495 = vmatprep.subr.mxu0 0.0
    %496 = vmatpush1.msra.mxu0 0.0
    %497 = vmatprep.subr.mxu0 0.0
    %498 = vmatpush1.msra.mxu0 0.0
    %499 = vmatprep.subr.mxu0 0.0
    %500 = vmatpush1.msra.mxu0 0.0
    %501 = vmatprep.subr.mxu0 0.0
    %502 = vmatpush1.msra.mxu0 0.0
    %503 = vmatprep.subr.mxu0 0.0
    %504 = vmatpush1.msra.mxu0 0.0
    %505 = vmatprep.subr.mxu0 0.0
    %506 = vmatpush1.msra.mxu0 0.0
    %507 = vmatprep.subr.mxu0 0.0
    %508 = vmatpush1.msra.mxu0 0.0
    %509 = vmatprep.subr.mxu0 0.0
    %510 = vmatpush1.msra.mxu0 0.0
    %511 = vmatprep.subr.mxu0 0.0
    %512 = vmatpush1.msra.mxu0 0.0
    %513 = vmatprep.subr.mxu0 0.0
    %514 = vmatpush1.msra.mxu0 0.0
    %515 = vmatprep.subr.mxu0 %v181
    %516 = vmatpush1.msra.mxu0 %v179
    %517 = vmatprep.subr.mxu0 0.0
    %518 = vmatpush2.msra.mxu0 0.0
    %519 = vmatprep.subr.mxu0 0.0
    %520 = vmatpush2.msra.mxu0 0.0
    %521 = vmatprep.subr.mxu0 0.0
    %522 = vmatpush2.msra.mxu0 0.0
    %523 = vmatprep.subr.mxu0 0.0
    %524 = vmatpush2.msra.mxu0 0.0
    %525 = vmatprep.subr.mxu0 0.0
    %526 = vmatpush2.msra.mxu0 0.0
    %527 = vmatprep.subr.mxu0 0.0
    %528 = vmatpush2.msra.mxu0 0.0
    %529 = vmatprep.subr.mxu0 0.0
    %530 = vmatpush2.msra.mxu0 0.0
    %531 = vmatprep.subr.mxu0 0.0
    %532 = vmatpush2.msra.mxu0 0.0
    %533 = vmatprep.subr.mxu0 0.0
    %534 = vmatpush2.msra.mxu0 0.0
    %535 = vmatprep.subr.mxu0 0.0
    %536 = vmatpush2.msra.mxu0 0.0
    %537 = vmatprep.subr.mxu0 0.0
    %538 = vmatpush2.msra.mxu0 0.0
    %539 = vmatprep.subr.mxu0 0.0
    %540 = vmatpush2.msra.mxu0 0.0
    %541 = vmatprep.subr.mxu0 0.0
    %542 = vmatpush2.msra.mxu0 0.0
    %543 = vmatprep.subr.mxu0 0.0
    %544 = vmatpush2.msra.mxu0 0.0
    %545 = vmatprep.subr.mxu0 0.0
    %546 = vmatpush2.msra.mxu0 0.0
    %547 = vmatprep.subr.mxu0 0.0
    %548 = vmatpush2.msra.mxu0 0.0
    %549 = vmatprep.mubr.f32.mxu0 0.0
    %550 = vmatmul.mubr.f32.gmra.mxu0 %v141
    %v551 = vpop.f32.mrf.mxu0
    %v552 = vadd.f32 %v60, %v551
    %v553 = vpop.f32.mrf.mxu0
    %v554 = vadd.f32 %v60, %v553
    %555 = vmatprep.mubr.f32.mxu0 0.0
    %556 = vmatmul.mubr.f32.gmra.mxu0 %v144
    %v557 = vpop.f32.mrf.mxu0
    %v558 = vadd.f32 %v65, %v557
    %v559 = vpop.f32.mrf.mxu0
    %v560 = vadd.f32 %v65, %v559
    %561 = vmatprep.mubr.f32.mxu0 0.0
    %562 = vmatmul.mubr.f32.gmra.mxu0 %v147
    %v563 = vpop.f32.mrf.mxu0
    %v564 = vadd.f32 %v70, %v563
    %v565 = vpop.f32.mrf.mxu0
    %v566 = vadd.f32 %v70, %v565
    %567 = vmatprep.mubr.f32.mxu0 0.0
    %568 = vmatmul.mubr.f32.gmra.mxu0 %v150
    %v569 = vpop.f32.mrf.mxu0
    %v570 = vadd.f32 %v75, %v569
    %v571 = vpop.f32.mrf.mxu0
    %v572 = vadd.f32 %v75, %v571
    %573 = vmatprep.mubr.f32.mxu0 0.0
    %574 = vmatmul.mubr.f32.gmra.mxu0 %v153
    %v575 = vpop.f32.mrf.mxu0
    %v576 = vadd.f32 %v80, %v575
    %v577 = vpop.f32.mrf.mxu0
    %v578 = vadd.f32 %v80, %v577
    %579 = vmatprep.mubr.f32.mxu0 0.0
    %580 = vmatmul.mubr.f32.gmra.mxu0 %v156
    %v581 = vpop.f32.mrf.mxu0
    %v582 = vadd.f32 %v85, %v581
    %v583 = vpop.f32.mrf.mxu0
    %v584 = vadd.f32 %v85, %v583
    %585 = vmatprep.mubr.f32.mxu0 0.0
    %586 = vmatmul.mubr.f32.gmra.mxu0 %v159
    %v587 = vpop.f32.mrf.mxu0
    %v588 = vadd.f32 %v90, %v587
    %v589 = vpop.f32.mrf.mxu0
    %v590 = vadd.f32 %v90, %v589
    %591 = vmatprep.mubr.f32.mxu0 0.0
    %592 = vmatmul.mubr.f32.gmra.mxu0 %v162
    %v593 = vpop.f32.mrf.mxu0
    %v594 = vadd.f32 %v95, %v593
    %v595 = vpop.f32.mrf.mxu0
    %v596 = vadd.f32 %v95, %v595
    %597 = vmatprep.mubr.f32.mxu0 0.0
    %598 = vmatmul.mubr.f32.gmra.mxu0 %v165
    %v599 = vpop.f32.mrf.mxu0
    %v600 = vadd.f32 %v100, %v599
    %v601 = vpop.f32.mrf.mxu0
    %v602 = vadd.f32 %v100, %v601
    %603 = vmatprep.mubr.f32.mxu0 0.0
    %604 = vmatmul.mubr.f32.gmra.mxu0 %v168
    %v605 = vpop.f32.mrf.mxu0
    %v606 = vadd.f32 %v105, %v605
    %v607 = vpop.f32.mrf.mxu0
    %v608 = vadd.f32 %v105, %v607
    %609 = vdwg.mxu0
    %610 = vmatprep.subr.mxu0 0.0
    %611 = vmatpush1.msra.mxu0 0.0
    %612 = vmatprep.subr.mxu0 0.0
    %613 = vmatpush1.msra.mxu0 0.0
    %614 = vmatprep.subr.mxu0 0.0
    %615 = vmatpush1.msra.mxu0 0.0
    %616 = vmatprep.subr.mxu0 0.0
    %617 = vmatpush1.msra.mxu0 0.0
    %618 = vmatprep.subr.mxu0 0.0
    %619 = vmatpush1.msra.mxu0 0.0
    %620 = vmatprep.subr.mxu0 0.0
    %621 = vmatpush1.msra.mxu0 0.0
    %622 = vmatprep.subr.mxu0 0.0
    %623 = vmatpush1.msra.mxu0 0.0
    %624 = vmatprep.subr.mxu0 0.0
    %625 = vmatpush1.msra.mxu0 0.0
    %626 = vmatprep.subr.mxu0 0.0
    %627 = vmatpush1.msra.mxu0 0.0
    %628 = vmatprep.subr.mxu0 0.0
    %629 = vmatpush1.msra.mxu0 0.0
    %630 = vmatprep.subr.mxu0 0.0
    %631 = vmatpush1.msra.mxu0 0.0
    %632 = vmatprep.subr.mxu0 0.0
    %633 = vmatpush1.msra.mxu0 0.0
    %634 = vmatprep.subr.mxu0 0.0
    %635 = vmatpush1.msra.mxu0 0.0
    %636 = vmatprep.subr.mxu0 0.0
    %637 = vmatpush1.msra.mxu0 0.0
    %638 = vmatprep.subr.mxu0 0.0
    %639 = vmatpush1.msra.mxu0 0.0
    %640 = vmatprep.subr.mxu0 %v185
    %641 = vmatpush1.msra.mxu0 %v183
    %642 = vmatprep.subr.mxu0 0.0
    %643 = vmatpush2.msra.mxu0 0.0
    %644 = vmatprep.subr.mxu0 0.0
    %645 = vmatpush2.msra.mxu0 0.0
    %646 = vmatprep.subr.mxu0 0.0
    %647 = vmatpush2.msra.mxu0 0.0
    %648 = vmatprep.subr.mxu0 0.0
    %649 = vmatpush2.msra.mxu0 0.0
    %650 = vmatprep.subr.mxu0 0.0
    %651 = vmatpush2.msra.mxu0 0.0
    %652 = vmatprep.subr.mxu0 0.0
    %653 = vmatpush2.msra.mxu0 0.0
    %654 = vmatprep.subr.mxu0 0.0
    %655 = vmatpush2.msra.mxu0 0.0
    %656 = vmatprep.subr.mxu0 0.0
    %657 = vmatpush2.msra.mxu0 0.0
    %658 = vmatprep.subr.mxu0 0.0
    %659 = vmatpush2.msra.mxu0 0.0
    %660 = vmatprep.subr.mxu0 0.0
    %661 = vmatpush2.msra.mxu0 0.0
    %662 = vmatprep.subr.mxu0 0.0
    %663 = vmatpush2.msra.mxu0 0.0
    %664 = vmatprep.subr.mxu0 0.0
    %665 = vmatpush2.msra.mxu0 0.0
    %666 = vmatprep.subr.mxu0 0.0
    %667 = vmatpush2.msra.mxu0 0.0
    %668 = vmatprep.subr.mxu0 0.0
    %669 = vmatpush2.msra.mxu0 0.0
    %670 = vmatprep.subr.mxu0 0.0
    %671 = vmatpush2.msra.mxu0 0.0
    %672 = vmatprep.subr.mxu0 0.0
    %673 = vmatpush2.msra.mxu0 0.0
    %674 = vmatprep.mubr.f32.mxu0 0.0
    %675 = vmatmul.mubr.f32.gmra.mxu0 %v141
    %v676 = vpop.f32.mrf.mxu0
    %v677 = vadd.f32 %v60, %v676
    %v678 = vpop.f32.mrf.mxu0
    %v679 = vadd.f32 %v60, %v678
    %680 = vmatprep.mubr.f32.mxu0 0.0
    %681 = vmatmul.mubr.f32.gmra.mxu0 %v144
    %v682 = vpop.f32.mrf.mxu0
    %v683 = vadd.f32 %v65, %v682
    %v684 = vpop.f32.mrf.mxu0
    %v685 = vadd.f32 %v65, %v684
    %686 = vmatprep.mubr.f32.mxu0 0.0
    %687 = vmatmul.mubr.f32.gmra.mxu0 %v147
    %v688 = vpop.f32.mrf.mxu0
    %v689 = vadd.f32 %v70, %v688
    %v690 = vpop.f32.mrf.mxu0
    %v691 = vadd.f32 %v70, %v690
    %692 = vmatprep.mubr.f32.mxu0 0.0
    %693 = vmatmul.mubr.f32.gmra.mxu0 %v150
    %v694 = vpop.f32.mrf.mxu0
    %v695 = vadd.f32 %v75, %v694
    %v696 = vpop.f32.mrf.mxu0
    %v697 = vadd.f32 %v75, %v696
    %698 = vmatprep.mubr.f32.mxu0 0.0
    %699 = vmatmul.mubr.f32.gmra.mxu0 %v153
    %v700 = vpop.f32.mrf.mxu0
    %v701 = vadd.f32 %v80, %v700
    %v702 = vpop.f32.mrf.mxu0
    %v703 = vadd.f32 %v80, %v702
    %704 = vmatprep.mubr.f32.mxu0 0.0
    %705 = vmatmul.mubr.f32.gmra.mxu0 %v156
    %v706 = vpop.f32.mrf.mxu0
    %v707 = vadd.f32 %v85, %v706
    %v708 = vpop.f32.mrf.mxu0
    %v709 = vadd.f32 %v85, %v708
    %710 = vmatprep.mubr.f32.mxu0 0.0
    %711 = vmatmul.mubr.f32.gmra.mxu0 %v159
    %v712 = vpop.f32.mrf.mxu0
    %v713 = vadd.f32 %v90, %v712
    %v714 = vpop.f32.mrf.mxu0
    %v715 = vadd.f32 %v90, %v714
    %716 = vmatprep.mubr.f32.mxu0 0.0
    %717 = vmatmul.mubr.f32.gmra.mxu0 %v162
    %v718 = vpop.f32.mrf.mxu0
    %v719 = vadd.f32 %v95, %v718
    %v720 = vpop.f32.mrf.mxu0
    %v721 = vadd.f32 %v95, %v720
    %722 = vmatprep.mubr.f32.mxu0 0.0
    %723 = vmatmul.mubr.f32.gmra.mxu0 %v165
    %v724 = vpop.f32.mrf.mxu0
    %v725 = vadd.f32 %v100, %v724
    %v726 = vpop.f32.mrf.mxu0
    %v727 = vadd.f32 %v100, %v726
    %728 = vmatprep.mubr.f32.mxu0 0.0
    %729 = vmatmul.mubr.f32.gmra.mxu0 %v168
    %v730 = vpop.f32.mrf.mxu0
    %v731 = vadd.f32 %v105, %v730
    %v732 = vpop.f32.mrf.mxu0
    %v733 = vadd.f32 %v105, %v732
    %734 = vdwg.mxu0
    %735 = vmatprep.subr.mxu0 0.0
    %736 = vmatpush1.msra.mxu0 0.0
    %737 = vmatprep.subr.mxu0 0.0
    %738 = vmatpush1.msra.mxu0 0.0
    %739 = vmatprep.subr.mxu0 0.0
    %740 = vmatpush1.msra.mxu0 0.0
    %741 = vmatprep.subr.mxu0 0.0
    %742 = vmatpush1.msra.mxu0 0.0
    %743 = vmatprep.subr.mxu0 0.0
    %744 = vmatpush1.msra.mxu0 0.0
    %745 = vmatprep.subr.mxu0 0.0
    %746 = vmatpush1.msra.mxu0 0.0
    %747 = vmatprep.subr.mxu0 0.0
    %748 = vmatpush1.msra.mxu0 0.0
    %749 = vmatprep.subr.mxu0 0.0
    %750 = vmatpush1.msra.mxu0 0.0
    %751 = vmatprep.subr.mxu0 0.0
    %752 = vmatpush1.msra.mxu0 0.0
    %753 = vmatprep.subr.mxu0 0.0
    %754 = vmatpush1.msra.mxu0 0.0
    %755 = vmatprep.subr.mxu0 0.0
    %756 = vmatpush1.msra.mxu0 0.0
    %757 = vmatprep.subr.mxu0 0.0
    %758 = vmatpush1.msra.mxu0 0.0
    %759 = vmatprep.subr.mxu0 0.0
    %760 = vmatpush1.msra.mxu0 0.0
    %761 = vmatprep.subr.mxu0 0.0
    %762 = vmatpush1.msra.mxu0 0.0
    %763 = vmatprep.subr.mxu0 0.0
    %764 = vmatpush1.msra.mxu0 0.0
    %765 = vmatprep.subr.mxu0 %v189
    %766 = vmatpush1.msra.mxu0 %v187
    %767 = vmatprep.subr.mxu0 0.0
    %768 = vmatpush2.msra.mxu0 0.0
    %769 = vmatprep.subr.mxu0 0.0
    %770 = vmatpush2.msra.mxu0 0.0
    %771 = vmatprep.subr.mxu0 0.0
    %772 = vmatpush2.msra.mxu0 0.0
    %773 = vmatprep.subr.mxu0 0.0
    %774 = vmatpush2.msra.mxu0 0.0
    %775 = vmatprep.subr.mxu0 0.0
    %776 = vmatpush2.msra.mxu0 0.0
    %777 = vmatprep.subr.mxu0 0.0
    %778 = vmatpush2.msra.mxu0 0.0
    %779 = vmatprep.subr.mxu0 0.0
    %780 = vmatpush2.msra.mxu0 0.0
    %781 = vmatprep.subr.mxu0 0.0
    %782 = vmatpush2.msra.mxu0 0.0
    %783 = vmatprep.subr.mxu0 0.0
    %784 = vmatpush2.msra.mxu0 0.0
    %785 = vmatprep.subr.mxu0 0.0
    %786 = vmatpush2.msra.mxu0 0.0
    %787 = vmatprep.subr.mxu0 0.0
    %788 = vmatpush2.msra.mxu0 0.0
    %789 = vmatprep.subr.mxu0 0.0
    %790 = vmatpush2.msra.mxu0 0.0
    %791 = vmatprep.subr.mxu0 0.0
    %792 = vmatpush2.msra.mxu0 0.0
    %793 = vmatprep.subr.mxu0 0.0
    %794 = vmatpush2.msra.mxu0 0.0
    %795 = vmatprep.subr.mxu0 0.0
    %796 = vmatpush2.msra.mxu0 0.0
    %797 = vmatprep.subr.mxu0 0.0
    %798 = vmatpush2.msra.mxu0 0.0
    %799 = vmatprep.mubr.f32.mxu0 0.0
    %800 = vmatmul.mubr.f32.gmra.mxu0 %v141
    %v801 = vpop.f32.mrf.mxu0
    %v802 = vadd.f32 %v60, %v801
    %v803 = vpop.f32.mrf.mxu0
    %v804 = vadd.f32 %v60, %v803
    %805 = vmatprep.mubr.f32.mxu0 0.0
    %806 = vmatmul.mubr.f32.gmra.mxu0 %v144
    %v807 = vpop.f32.mrf.mxu0
    %v808 = vadd.f32 %v65, %v807
    %v809 = vpop.f32.mrf.mxu0
    %v810 = vadd.f32 %v65, %v809
    %811 = vmatprep.mubr.f32.mxu0 0.0
    %812 = vmatmul.mubr.f32.gmra.mxu0 %v147
    %v813 = vpop.f32.mrf.mxu0
    %v814 = vadd.f32 %v70, %v813
    %v815 = vpop.f32.mrf.mxu0
    %v816 = vadd.f32 %v70, %v815
    %817 = vmatprep.mubr.f32.mxu0 0.0
    %818 = vmatmul.mubr.f32.gmra.mxu0 %v150
    %v819 = vpop.f32.mrf.mxu0
    %v820 = vadd.f32 %v75, %v819
    %v821 = vpop.f32.mrf.mxu0
    %v822 = vadd.f32 %v75, %v821
    %823 = vmatprep.mubr.f32.mxu0 0.0
    %824 = vmatmul.mubr.f32.gmra.mxu0 %v153
    %v825 = vpop.f32.mrf.mxu0
    %v826 = vadd.f32 %v80, %v825
    %v827 = vpop.f32.mrf.mxu0
    %v828 = vadd.f32 %v80, %v827
    %829 = vmatprep.mubr.f32.mxu0 0.0
    %830 = vmatmul.mubr.f32.gmra.mxu0 %v156
    %v831 = vpop.f32.mrf.mxu0
    %v832 = vadd.f32 %v85, %v831
    %v833 = vpop.f32.mrf.mxu0
    %v834 = vadd.f32 %v85, %v833
    %835 = vmatprep.mubr.f32.mxu0 0.0
    %836 = vmatmul.mubr.f32.gmra.mxu0 %v159
    %v837 = vpop.f32.mrf.mxu0
    %v838 = vadd.f32 %v90, %v837
    %v839 = vpop.f32.mrf.mxu0
    %v840 = vadd.f32 %v90, %v839
    %841 = vmatprep.mubr.f32.mxu0 0.0
    %842 = vmatmul.mubr.f32.gmra.mxu0 %v162
    %v843 = vpop.f32.mrf.mxu0
    %v844 = vadd.f32 %v95, %v843
    %v845 = vpop.f32.mrf.mxu0
    %v846 = vadd.f32 %v95, %v845
    %847 = vmatprep.mubr.f32.mxu0 0.0
    %848 = vmatmul.mubr.f32.gmra.mxu0 %v165
    %v849 = vpop.f32.mrf.mxu0
    %v850 = vadd.f32 %v100, %v849
    %v851 = vpop.f32.mrf.mxu0
    %v852 = vadd.f32 %v100, %v851
    %853 = vmatprep.mubr.f32.mxu0 0.0
    %854 = vmatmul.mubr.f32.gmra.mxu0 %v168
    %v855 = vpop.f32.mrf.mxu0
    %v856 = vadd.f32 %v105, %v855
    %v857 = vpop.f32.mrf.mxu0
    %v858 = vadd.f32 %v105, %v857
    %859 = vdwg.mxu0
    %860 = vmatprep.subr.mxu0 0.0
    %861 = vmatpush1.msra.mxu0 0.0
    %862 = vmatprep.subr.mxu0 0.0
    %863 = vmatpush1.msra.mxu0 0.0
    %864 = vmatprep.subr.mxu0 0.0
    %865 = vmatpush1.msra.mxu0 0.0
    %866 = vmatprep.subr.mxu0 0.0
    %867 = vmatpush1.msra.mxu0 0.0
    %868 = vmatprep.subr.mxu0 0.0
    %869 = vmatpush1.msra.mxu0 0.0
    %870 = vmatprep.subr.mxu0 0.0
    %871 = vmatpush1.msra.mxu0 0.0
    %872 = vmatprep.subr.mxu0 0.0
    %873 = vmatpush1.msra.mxu0 0.0
    %874 = vmatprep.subr.mxu0 0.0
    %875 = vmatpush1.msra.mxu0 0.0
    %876 = vmatprep.subr.mxu0 0.0
    %877 = vmatpush1.msra.mxu0 0.0
    %878 = vmatprep.subr.mxu0 0.0
    %879 = vmatpush1.msra.mxu0 0.0
    %880 = vmatprep.subr.mxu0 0.0
    %881 = vmatpush1.msra.mxu0 0.0
    %882 = vmatprep.subr.mxu0 0.0
    %883 = vmatpush1.msra.mxu0 0.0
    %884 = vmatprep.subr.mxu0 0.0
    %885 = vmatpush1.msra.mxu0 0.0
    %886 = vmatprep.subr.mxu0 0.0
    %887 = vmatpush1.msra.mxu0 0.0
    %888 = vmatprep.subr.mxu0 0.0
    %889 = vmatpush1.msra.mxu0 0.0
    %890 = vmatprep.subr.mxu0 %v193
    %891 = vmatpush1.msra.mxu0 %v191
    %892 = vmatprep.subr.mxu0 0.0
    %893 = vmatpush2.msra.mxu0 0.0
    %894 = vmatprep.subr.mxu0 0.0
    %895 = vmatpush2.msra.mxu0 0.0
    %896 = vmatprep.subr.mxu0 0.0
    %897 = vmatpush2.msra.mxu0 0.0
    %898 = vmatprep.subr.mxu0 0.0
    %899 = vmatpush2.msra.mxu0 0.0
    %900 = vmatprep.subr.mxu0 0.0
    %901 = vmatpush2.msra.mxu0 0.0
    %902 = vmatprep.subr.mxu0 0.0
    %903 = vmatpush2.msra.mxu0 0.0
    %904 = vmatprep.subr.mxu0 0.0
    %905 = vmatpush2.msra.mxu0 0.0
    %906 = vmatprep.subr.mxu0 0.0
    %907 = vmatpush2.msra.mxu0 0.0
    %908 = vmatprep.subr.mxu0 0.0
    %909 = vmatpush2.msra.mxu0 0.0
    %910 = vmatprep.subr.mxu0 0.0
    %911 = vmatpush2.msra.mxu0 0.0
    %912 = vmatprep.subr.mxu0 0.0
    %913 = vmatpush2.msra.mxu0 0.0
    %914 = vmatprep.subr.mxu0 0.0
    %915 = vmatpush2.msra.mxu0 0.0
    %916 = vmatprep.subr.mxu0 0.0
    %917 = vmatpush2.msra.mxu0 0.0
    %918 = vmatprep.subr.mxu0 0.0
    %919 = vmatpush2.msra.mxu0 0.0
    %920 = vmatprep.subr.mxu0 0.0
    %921 = vmatpush2.msra.mxu0 0.0
    %922 = vmatprep.subr.mxu0 0.0
    %923 = vmatpush2.msra.mxu0 0.0
    %924 = vmatprep.mubr.f32.mxu0 0.0
    %925 = vmatmul.mubr.f32.gmra.mxu0 %v141
    %v926 = vpop.f32.mrf.mxu0
    %v927 = vadd.f32 %v60, %v926
    %v928 = vpop.f32.mrf.mxu0
    %v929 = vadd.f32 %v60, %v928
    %930 = vmatprep.mubr.f32.mxu0 0.0
    %931 = vmatmul.mubr.f32.gmra.mxu0 %v144
    %v932 = vpop.f32.mrf.mxu0
    %v933 = vadd.f32 %v65, %v932
    %v934 = vpop.f32.mrf.mxu0
    %v935 = vadd.f32 %v65, %v934
    %936 = vmatprep.mubr.f32.mxu0 0.0
    %937 = vmatmul.mubr.f32.gmra.mxu0 %v147
    %v938 = vpop.f32.mrf.mxu0
    %v939 = vadd.f32 %v70, %v938
    %v940 = vpop.f32.mrf.mxu0
    %v941 = vadd.f32 %v70, %v940
    %942 = vmatprep.mubr.f32.mxu0 0.0
    %943 = vmatmul.mubr.f32.gmra.mxu0 %v150
    %v944 = vpop.f32.mrf.mxu0
    %v945 = vadd.f32 %v75, %v944
    %v946 = vpop.f32.mrf.mxu0
    %v947 = vadd.f32 %v75, %v946
    %948 = vmatprep.mubr.f32.mxu0 0.0
    %949 = vmatmul.mubr.f32.gmra.mxu0 %v153
    %v950 = vpop.f32.mrf.mxu0
    %v951 = vadd.f32 %v80, %v950
    %v952 = vpop.f32.mrf.mxu0
    %v953 = vadd.f32 %v80, %v952
    %954 = vmatprep.mubr.f32.mxu0 0.0
    %955 = vmatmul.mubr.f32.gmra.mxu0 %v156
    %v956 = vpop.f32.mrf.mxu0
    %v957 = vadd.f32 %v85, %v956
    %v958 = vpop.f32.mrf.mxu0
    %v959 = vadd.f32 %v85, %v958
    %960 = vmatprep.mubr.f32.mxu0 0.0
    %961 = vmatmul.mubr.f32.gmra.mxu0 %v159
    %v962 = vpop.f32.mrf.mxu0
    %v963 = vadd.f32 %v90, %v962
    %v964 = vpop.f32.mrf.mxu0
    %v965 = vadd.f32 %v90, %v964
    %966 = vmatprep.mubr.f32.mxu0 0.0
    %967 = vmatmul.mubr.f32.gmra.mxu0 %v162
    %v968 = vpop.f32.mrf.mxu0
    %v969 = vadd.f32 %v95, %v968
    %v970 = vpop.f32.mrf.mxu0
    %v971 = vadd.f32 %v95, %v970
    %972 = vmatprep.mubr.f32.mxu0 0.0
    %973 = vmatmul.mubr.f32.gmra.mxu0 %v165
    %v974 = vpop.f32.mrf.mxu0
    %v975 = vadd.f32 %v100, %v974
    %v976 = vpop.f32.mrf.mxu0
    %v977 = vadd.f32 %v100, %v976
    %978 = vmatprep.mubr.f32.mxu0 0.0
    %979 = vmatmul.mubr.f32.gmra.mxu0 %v168
    %v980 = vpop.f32.mrf.mxu0
    %v981 = vadd.f32 %v105, %v980
    %v982 = vpop.f32.mrf.mxu0
    %v983 = vadd.f32 %v105, %v982
    %984 = vdwg.mxu0
    %985 = vmatprep.subr.mxu0 0.0
    %986 = vmatpush1.msra.mxu0 0.0
    %987 = vmatprep.subr.mxu0 0.0
    %988 = vmatpush1.msra.mxu0 0.0
    %989 = vmatprep.subr.mxu0 0.0
    %990 = vmatpush1.msra.mxu0 0.0
    %991 = vmatprep.subr.mxu0 0.0
    %992 = vmatpush1.msra.mxu0 0.0
    %993 = vmatprep.subr.mxu0 0.0
    %994 = vmatpush1.msra.mxu0 0.0
    %995 = vmatprep.subr.mxu0 0.0
    %996 = vmatpush1.msra.mxu0 0.0
    %997 = vmatprep.subr.mxu0 0.0
    %998 = vmatpush1.msra.mxu0 0.0
    %999 = vmatprep.subr.mxu0 0.0
    %1000 = vmatpush1.msra.mxu0 0.0
    %1001 = vmatprep.subr.mxu0 0.0
    %1002 = vmatpush1.msra.mxu0 0.0
    %1003 = vmatprep.subr.mxu0 0.0
    %1004 = vmatpush1.msra.mxu0 0.0
    %1005 = vmatprep.subr.mxu0 0.0
    %1006 = vmatpush1.msra.mxu0 0.0
    %1007 = vmatprep.subr.mxu0 0.0
    %1008 = vmatpush1.msra.mxu0 0.0
    %1009 = vmatprep.subr.mxu0 0.0
    %1010 = vmatpush1.msra.mxu0 0.0
    %1011 = vmatprep.subr.mxu0 0.0
    %1012 = vmatpush1.msra.mxu0 0.0
    %1013 = vmatprep.subr.mxu0 0.0
    %1014 = vmatpush1.msra.mxu0 0.0
    %1015 = vmatprep.subr.mxu0 %v197
    %1016 = vmatpush1.msra.mxu0 %v195
    %1017 = vmatprep.subr.mxu0 0.0
    %1018 = vmatpush2.msra.mxu0 0.0
    %1019 = vmatprep.subr.mxu0 0.0
    %1020 = vmatpush2.msra.mxu0 0.0
    %1021 = vmatprep.subr.mxu0 0.0
    %1022 = vmatpush2.msra.mxu0 0.0
    %1023 = vmatprep.subr.mxu0 0.0
    %1024 = vmatpush2.msra.mxu0 0.0
    %1025 = vmatprep.subr.mxu0 0.0
    %1026 = vmatpush2.msra.mxu0 0.0
    %1027 = vmatprep.subr.mxu0 0.0
    %1028 = vmatpush2.msra.mxu0 0.0
    %1029 = vmatprep.subr.mxu0 0.0
    %1030 = vmatpush2.msra.mxu0 0.0
    %1031 = vmatprep.subr.mxu0 0.0
    %1032 = vmatpush2.msra.mxu0 0.0
    %1033 = vmatprep.subr.mxu0 0.0
    %1034 = vmatpush2.msra.mxu0 0.0
    %1035 = vmatprep.subr.mxu0 0.0
    %1036 = vmatpush2.msra.mxu0 0.0
    %1037 = vmatprep.subr.mxu0 0.0
    %1038 = vmatpush2.msra.mxu0 0.0
    %1039 = vmatprep.subr.mxu0 0.0
    %1040 = vmatpush2.msra.mxu0 0.0
    %1041 = vmatprep.subr.mxu0 0.0
    %1042 = vmatpush2.msra.mxu0 0.0
    %1043 = vmatprep.subr.mxu0 0.0
    %1044 = vmatpush2.msra.mxu0 0.0
    %1045 = vmatprep.subr.mxu0 0.0
    %1046 = vmatpush2.msra.mxu0 0.0
    %1047 = vmatprep.subr.mxu0 0.0
    %1048 = vmatpush2.msra.mxu0 0.0
    %1049 = vmatprep.mubr.f32.mxu0 0.0
    %1050 = vmatmul.mubr.f32.gmra.mxu0 %v141
    %v1051 = vpop.f32.mrf.mxu0
    %v1052 = vadd.f32 %v60, %v1051
    %v1053 = vpop.f32.mrf.mxu0
    %v1054 = vadd.f32 %v60, %v1053
    %1055 = vmatprep.mubr.f32.mxu0 0.0
    %1056 = vmatmul.mubr.f32.gmra.mxu0 %v144
    %v1057 = vpop.f32.mrf.mxu0
    %v1058 = vadd.f32 %v65, %v1057
    %v1059 = vpop.f32.mrf.mxu0
    %v1060 = vadd.f32 %v65, %v1059
    %1061 = vmatprep.mubr.f32.mxu0 0.0
    %1062 = vmatmul.mubr.f32.gmra.mxu0 %v147
    %v1063 = vpop.f32.mrf.mxu0
    %v1064 = vadd.f32 %v70, %v1063
    %v1065 = vpop.f32.mrf.mxu0
    %v1066 = vadd.f32 %v70, %v1065
    %1067 = vmatprep.mubr.f32.mxu0 0.0
    %1068 = vmatmul.mubr.f32.gmra.mxu0 %v150
    %v1069 = vpop.f32.mrf.mxu0
    %v1070 = vadd.f32 %v75, %v1069
    %v1071 = vpop.f32.mrf.mxu0
    %v1072 = vadd.f32 %v75, %v1071
    %1073 = vmatprep.mubr.f32.mxu0 0.0
    %1074 = vmatmul.mubr.f32.gmra.mxu0 %v153
    %v1075 = vpop.f32.mrf.mxu0
    %v1076 = vadd.f32 %v80, %v1075
    %v1077 = vpop.f32.mrf.mxu0
    %v1078 = vadd.f32 %v80, %v1077
    %1079 = vmatprep.mubr.f32.mxu0 0.0
    %1080 = vmatmul.mubr.f32.gmra.mxu0 %v156
    %v1081 = vpop.f32.mrf.mxu0
    %v1082 = vadd.f32 %v85, %v1081
    %v1083 = vpop.f32.mrf.mxu0
    %v1084 = vadd.f32 %v85, %v1083
    %1085 = vmatprep.mubr.f32.mxu0 0.0
    %1086 = vmatmul.mubr.f32.gmra.mxu0 %v159
    %v1087 = vpop.f32.mrf.mxu0
    %v1088 = vadd.f32 %v90, %v1087
    %v1089 = vpop.f32.mrf.mxu0
    %v1090 = vadd.f32 %v90, %v1089
    %1091 = vmatprep.mubr.f32.mxu0 0.0
    %1092 = vmatmul.mubr.f32.gmra.mxu0 %v162
    %v1093 = vpop.f32.mrf.mxu0
    %v1094 = vadd.f32 %v95, %v1093
    %v1095 = vpop.f32.mrf.mxu0
    %v1096 = vadd.f32 %v95, %v1095
    %1097 = vmatprep.mubr.f32.mxu0 0.0
    %1098 = vmatmul.mubr.f32.gmra.mxu0 %v165
    %v1099 = vpop.f32.mrf.mxu0
    %v1100 = vadd.f32 %v100, %v1099
    %v1101 = vpop.f32.mrf.mxu0
    %v1102 = vadd.f32 %v100, %v1101
    %1103 = vmatprep.mubr.f32.mxu0 0.0
    %1104 = vmatmul.mubr.f32.gmra.mxu0 %v168
    %v1105 = vpop.f32.mrf.mxu0
    %v1106 = vadd.f32 %v105, %v1105
    %v1107 = vpop.f32.mrf.mxu0
    %v1108 = vadd.f32 %v105, %v1107
    %1109 = vdwg.mxu0
    %1110 = vmatprep.subr.mxu0 0.0
    %1111 = vmatpush1.msra.mxu0 0.0
    %1112 = vmatprep.subr.mxu0 0.0
    %1113 = vmatpush1.msra.mxu0 0.0
    %1114 = vmatprep.subr.mxu0 0.0
    %1115 = vmatpush1.msra.mxu0 0.0
    %1116 = vmatprep.subr.mxu0 0.0
    %1117 = vmatpush1.msra.mxu0 0.0
    %1118 = vmatprep.subr.mxu0 0.0
    %1119 = vmatpush1.msra.mxu0 0.0
    %1120 = vmatprep.subr.mxu0 0.0
    %1121 = vmatpush1.msra.mxu0 0.0
    %1122 = vmatprep.subr.mxu0 0.0
    %1123 = vmatpush1.msra.mxu0 0.0
    %1124 = vmatprep.subr.mxu0 0.0
    %1125 = vmatpush1.msra.mxu0 0.0
    %1126 = vmatprep.subr.mxu0 0.0
    %1127 = vmatpush1.msra.mxu0 0.0
    %1128 = vmatprep.subr.mxu0 0.0
    %1129 = vmatpush1.msra.mxu0 0.0
    %1130 = vmatprep.subr.mxu0 0.0
    %1131 = vmatpush1.msra.mxu0 0.0
    %1132 = vmatprep.subr.mxu0 0.0
    %1133 = vmatpush1.msra.mxu0 0.0
    %1134 = vmatprep.subr.mxu0 0.0
    %1135 = vmatpush1.msra.mxu0 0.0
    %1136 = vmatprep.subr.mxu0 0.0
    %1137 = vmatpush1.msra.mxu0 0.0
    %1138 = vmatprep.subr.mxu0 0.0
    %1139 = vmatpush1.msra.mxu0 0.0
    %1140 = vmatprep.subr.mxu0 %v201
    %1141 = vmatpush1.msra.mxu0 %v199
    %1142 = vmatprep.subr.mxu0 0.0
    %1143 = vmatpush2.msra.mxu0 0.0
    %1144 = vmatprep.subr.mxu0 0.0
    %1145 = vmatpush2.msra.mxu0 0.0
    %1146 = vmatprep.subr.mxu0 0.0
    %1147 = vmatpush2.msra.mxu0 0.0
    %1148 = vmatprep.subr.mxu0 0.0
    %1149 = vmatpush2.msra.mxu0 0.0
    %1150 = vmatprep.subr.mxu0 0.0
    %1151 = vmatpush2.msra.mxu0 0.0
    %1152 = vmatprep.subr.mxu0 0.0
    %1153 = vmatpush2.msra.mxu0 0.0
    %1154 = vmatprep.subr.mxu0 0.0
    %1155 = vmatpush2.msra.mxu0 0.0
    %1156 = vmatprep.subr.mxu0 0.0
    %1157 = vmatpush2.msra.mxu0 0.0
    %1158 = vmatprep.subr.mxu0 0.0
    %1159 = vmatpush2.msra.mxu0 0.0
    %1160 = vmatprep.subr.mxu0 0.0
    %1161 = vmatpush2.msra.mxu0 0.0
    %1162 = vmatprep.subr.mxu0 0.0
    %1163 = vmatpush2.msra.mxu0 0.0
    %1164 = vmatprep.subr.mxu0 0.0
    %1165 = vmatpush2.msra.mxu0 0.0
    %1166 = vmatprep.subr.mxu0 0.0
    %1167 = vmatpush2.msra.mxu0 0.0
    %1168 = vmatprep.subr.mxu0 0.0
    %1169 = vmatpush2.msra.mxu0 0.0
    %1170 = vmatprep.subr.mxu0 0.0
    %1171 = vmatpush2.msra.mxu0 0.0
    %1172 = vmatprep.subr.mxu0 0.0
    %1173 = vmatpush2.msra.mxu0 0.0
    %1174 = vmatprep.mubr.f32.mxu0 0.0
    %1175 = vmatmul.mubr.f32.gmra.mxu0 %v141
    %v1176 = vpop.f32.mrf.mxu0
    %v1177 = vadd.f32 %v60, %v1176
    %v1178 = vpop.f32.mrf.mxu0
    %v1179 = vadd.f32 %v60, %v1178
    %1180 = vmatprep.mubr.f32.mxu0 0.0
    %1181 = vmatmul.mubr.f32.gmra.mxu0 %v144
    %v1182 = vpop.f32.mrf.mxu0
    %v1183 = vadd.f32 %v65, %v1182
    %v1184 = vpop.f32.mrf.mxu0
    %v1185 = vadd.f32 %v65, %v1184
    %1186 = vmatprep.mubr.f32.mxu0 0.0
    %1187 = vmatmul.mubr.f32.gmra.mxu0 %v147
    %v1188 = vpop.f32.mrf.mxu0
    %v1189 = vadd.f32 %v70, %v1188
    %v1190 = vpop.f32.mrf.mxu0
    %v1191 = vadd.f32 %v70, %v1190
    %1192 = vmatprep.mubr.f32.mxu0 0.0
    %1193 = vmatmul.mubr.f32.gmra.mxu0 %v150
    %v1194 = vpop.f32.mrf.mxu0
    %v1195 = vadd.f32 %v75, %v1194
    %v1196 = vpop.f32.mrf.mxu0
    %v1197 = vadd.f32 %v75, %v1196
    %1198 = vmatprep.mubr.f32.mxu0 0.0
    %1199 = vmatmul.mubr.f32.gmra.mxu0 %v153
    %v1200 = vpop.f32.mrf.mxu0
    %v1201 = vadd.f32 %v80, %v1200
    %v1202 = vpop.f32.mrf.mxu0
    %v1203 = vadd.f32 %v80, %v1202
    %1204 = vmatprep.mubr.f32.mxu0 0.0
    %1205 = vmatmul.mubr.f32.gmra.mxu0 %v156
    %v1206 = vpop.f32.mrf.mxu0
    %v1207 = vadd.f32 %v85, %v1206
    %v1208 = vpop.f32.mrf.mxu0
    %v1209 = vadd.f32 %v85, %v1208
    %1210 = vmatprep.mubr.f32.mxu0 0.0
    %1211 = vmatmul.mubr.f32.gmra.mxu0 %v159
    %v1212 = vpop.f32.mrf.mxu0
    %v1213 = vadd.f32 %v90, %v1212
    %v1214 = vpop.f32.mrf.mxu0
    %v1215 = vadd.f32 %v90, %v1214
    %1216 = vmatprep.mubr.f32.mxu0 0.0
    %1217 = vmatmul.mubr.f32.gmra.mxu0 %v162
    %v1218 = vpop.f32.mrf.mxu0
    %v1219 = vadd.f32 %v95, %v1218
    %v1220 = vpop.f32.mrf.mxu0
    %v1221 = vadd.f32 %v95, %v1220
    %1222 = vmatprep.mubr.f32.mxu0 0.0
    %1223 = vmatmul.mubr.f32.gmra.mxu0 %v165
    %v1224 = vpop.f32.mrf.mxu0
    %v1225 = vadd.f32 %v100, %v1224
    %v1226 = vpop.f32.mrf.mxu0
    %v1227 = vadd.f32 %v100, %v1226
    %1228 = vmatprep.mubr.f32.mxu0 0.0
    %1229 = vmatmul.mubr.f32.gmra.mxu0 %v168
    %v1230 = vpop.f32.mrf.mxu0
    %v1231 = vadd.f32 %v105, %v1230
    %v1232 = vpop.f32.mrf.mxu0
    %v1233 = vadd.f32 %v105, %v1232
    %1234 = vdwg.mxu0
    %1235 = vmatprep.subr.mxu0 0.0
    %1236 = vmatpush1.msra.mxu0 0.0
    %1237 = vmatprep.subr.mxu0 0.0
    %1238 = vmatpush1.msra.mxu0 0.0
    %1239 = vmatprep.subr.mxu0 0.0
    %1240 = vmatpush1.msra.mxu0 0.0
    %1241 = vmatprep.subr.mxu0 0.0
    %1242 = vmatpush1.msra.mxu0 0.0
    %1243 = vmatprep.subr.mxu0 0.0
    %1244 = vmatpush1.msra.mxu0 0.0
    %1245 = vmatprep.subr.mxu0 0.0
    %1246 = vmatpush1.msra.mxu0 0.0
    %1247 = vmatprep.subr.mxu0 0.0
    %1248 = vmatpush1.msra.mxu0 0.0
    %1249 = vmatprep.subr.mxu0 0.0
    %1250 = vmatpush1.msra.mxu0 0.0
    %1251 = vmatprep.subr.mxu0 0.0
    %1252 = vmatpush1.msra.mxu0 0.0
    %1253 = vmatprep.subr.mxu0 0.0
    %1254 = vmatpush1.msra.mxu0 0.0
    %1255 = vmatprep.subr.mxu0 0.0
    %1256 = vmatpush1.msra.mxu0 0.0
    %1257 = vmatprep.subr.mxu0 0.0
    %1258 = vmatpush1.msra.mxu0 0.0
    %1259 = vmatprep.subr.mxu0 0.0
    %1260 = vmatpush1.msra.mxu0 0.0
    %1261 = vmatprep.subr.mxu0 0.0
    %1262 = vmatpush1.msra.mxu0 0.0
    %1263 = vmatprep.subr.mxu0 0.0
    %1264 = vmatpush1.msra.mxu0 0.0
    %1265 = vmatprep.subr.mxu0 %v205
    %1266 = vmatpush1.msra.mxu0 %v203
    %1267 = vmatprep.subr.mxu0 0.0
    %1268 = vmatpush2.msra.mxu0 0.0
    %1269 = vmatprep.subr.mxu0 0.0
    %1270 = vmatpush2.msra.mxu0 0.0
    %1271 = vmatprep.subr.mxu0 0.0
    %1272 = vmatpush2.msra.mxu0 0.0
    %1273 = vmatprep.subr.mxu0 0.0
    %1274 = vmatpush2.msra.mxu0 0.0
    %1275 = vmatprep.subr.mxu0 0.0
    %1276 = vmatpush2.msra.mxu0 0.0
    %1277 = vmatprep.subr.mxu0 0.0
    %1278 = vmatpush2.msra.mxu0 0.0
    %1279 = vmatprep.subr.mxu0 0.0
    %1280 = vmatpush2.msra.mxu0 0.0
    %1281 = vmatprep.subr.mxu0 0.0
    %1282 = vmatpush2.msra.mxu0 0.0
    %1283 = vmatprep.subr.mxu0 0.0
    %1284 = vmatpush2.msra.mxu0 0.0
    %1285 = vmatprep.subr.mxu0 0.0
    %1286 = vmatpush2.msra.mxu0 0.0
    %1287 = vmatprep.subr.mxu0 0.0
    %1288 = vmatpush2.msra.mxu0 0.0
    %1289 = vmatprep.subr.mxu0 0.0
    %1290 = vmatpush2.msra.mxu0 0.0
    %1291 = vmatprep.subr.mxu0 0.0
    %1292 = vmatpush2.msra.mxu0 0.0
    %1293 = vmatprep.subr.mxu0 0.0
    %1294 = vmatpush2.msra.mxu0 0.0
    %1295 = vmatprep.subr.mxu0 0.0
    %1296 = vmatpush2.msra.mxu0 0.0
    %1297 = vmatprep.subr.mxu0 0.0
    %1298 = vmatpush2.msra.mxu0 0.0
    %1299 = vmatprep.mubr.f32.mxu0 0.0
    %1300 = vmatmul.mubr.f32.gmra.mxu0 %v141
    %v1301 = vpop.f32.mrf.mxu0
    %v1302 = vadd.f32 %v60, %v1301
    %v1303 = vpop.f32.mrf.mxu0
    %v1304 = vadd.f32 %v60, %v1303
    %1305 = vmatprep.mubr.f32.mxu0 0.0
    %1306 = vmatmul.mubr.f32.gmra.mxu0 %v144
    %v1307 = vpop.f32.mrf.mxu0
    %v1308 = vadd.f32 %v65, %v1307
    %v1309 = vpop.f32.mrf.mxu0
    %v1310 = vadd.f32 %v65, %v1309
    %1311 = vmatprep.mubr.f32.mxu0 0.0
    %1312 = vmatmul.mubr.f32.gmra.mxu0 %v147
    %v1313 = vpop.f32.mrf.mxu0
    %v1314 = vadd.f32 %v70, %v1313
    %v1315 = vpop.f32.mrf.mxu0
    %v1316 = vadd.f32 %v70, %v1315
    %1317 = vmatprep.mubr.f32.mxu0 0.0
    %1318 = vmatmul.mubr.f32.gmra.mxu0 %v150
    %v1319 = vpop.f32.mrf.mxu0
    %v1320 = vadd.f32 %v75, %v1319
    %v1321 = vpop.f32.mrf.mxu0
    %v1322 = vadd.f32 %v75, %v1321
    %1323 = vmatprep.mubr.f32.mxu0 0.0
    %1324 = vmatmul.mubr.f32.gmra.mxu0 %v153
    %v1325 = vpop.f32.mrf.mxu0
    %v1326 = vadd.f32 %v80, %v1325
    %v1327 = vpop.f32.mrf.mxu0
    %v1328 = vadd.f32 %v80, %v1327
    %1329 = vmatprep.mubr.f32.mxu0 0.0
    %1330 = vmatmul.mubr.f32.gmra.mxu0 %v156
    %v1331 = vpop.f32.mrf.mxu0
    %v1332 = vadd.f32 %v85, %v1331
    %v1333 = vpop.f32.mrf.mxu0
    %v1334 = vadd.f32 %v85, %v1333
    %1335 = vmatprep.mubr.f32.mxu0 0.0
    %1336 = vmatmul.mubr.f32.gmra.mxu0 %v159
    %v1337 = vpop.f32.mrf.mxu0
    %v1338 = vadd.f32 %v90, %v1337
    %v1339 = vpop.f32.mrf.mxu0
    %v1340 = vadd.f32 %v90, %v1339
    %1341 = vmatprep.mubr.f32.mxu0 0.0
    %1342 = vmatmul.mubr.f32.gmra.mxu0 %v162
    %v1343 = vpop.f32.mrf.mxu0
    %v1344 = vadd.f32 %v95, %v1343
    %v1345 = vpop.f32.mrf.mxu0
    %v1346 = vadd.f32 %v95, %v1345
    %1347 = vmatprep.mubr.f32.mxu0 0.0
    %1348 = vmatmul.mubr.f32.gmra.mxu0 %v165
    %v1349 = vpop.f32.mrf.mxu0
    %v1350 = vadd.f32 %v100, %v1349
    %v1351 = vpop.f32.mrf.mxu0
    %v1352 = vadd.f32 %v100, %v1351
    %1353 = vmatprep.mubr.f32.mxu0 0.0
    %1354 = vmatmul.mubr.f32.gmra.mxu0 %v168
    %v1355 = vpop.f32.mrf.mxu0
    %v1356 = vadd.f32 %v105, %v1355
    %v1357 = vpop.f32.mrf.mxu0
    %v1358 = vadd.f32 %v105, %v1357
    %1359 = vdwg.mxu0
    %1360 = vmatprep.subr.mxu0 0.0
    %1361 = vmatpush1.msra.mxu0 0.0
    %1362 = vmatprep.subr.mxu0 0.0
    %1363 = vmatpush1.msra.mxu0 0.0
    %1364 = vmatprep.subr.mxu0 0.0
    %1365 = vmatpush1.msra.mxu0 0.0
    %1366 = vmatprep.subr.mxu0 0.0
    %1367 = vmatpush1.msra.mxu0 0.0
    %1368 = vmatprep.subr.mxu0 0.0
    %1369 = vmatpush1.msra.mxu0 0.0
    %1370 = vmatprep.subr.mxu0 0.0
    %1371 = vmatpush1.msra.mxu0 0.0
    %1372 = vmatprep.subr.mxu0 0.0
    %1373 = vmatpush1.msra.mxu0 0.0
    %1374 = vmatprep.subr.mxu0 0.0
    %1375 = vmatpush1.msra.mxu0 0.0
    %1376 = vmatprep.subr.mxu0 0.0
    %1377 = vmatpush1.msra.mxu0 0.0
    %1378 = vmatprep.subr.mxu0 0.0
    %1379 = vmatpush1.msra.mxu0 0.0
    %1380 = vmatprep.subr.mxu0 0.0
    %1381 = vmatpush1.msra.mxu0 0.0
    %1382 = vmatprep.subr.mxu0 0.0
    %1383 = vmatpush1.msra.mxu0 0.0
    %1384 = vmatprep.subr.mxu0 0.0
    %1385 = vmatpush1.msra.mxu0 0.0
    %1386 = vmatprep.subr.mxu0 0.0
    %1387 = vmatpush1.msra.mxu0 0.0
    %1388 = vmatprep.subr.mxu0 0.0
    %1389 = vmatpush1.msra.mxu0 0.0
    %1390 = vmatprep.subr.mxu0 %v209
    %1391 = vmatpush1.msra.mxu0 %v207
    %1392 = vmatprep.subr.mxu0 0.0
    %1393 = vmatpush2.msra.mxu0 0.0
    %1394 = vmatprep.subr.mxu0 0.0
    %1395 = vmatpush2.msra.mxu0 0.0
    %1396 = vmatprep.subr.mxu0 0.0
    %1397 = vmatpush2.msra.mxu0 0.0
    %1398 = vmatprep.subr.mxu0 0.0
    %1399 = vmatpush2.msra.mxu0 0.0
    %1400 = vmatprep.subr.mxu0 0.0
    %1401 = vmatpush2.msra.mxu0 0.0
    %1402 = vmatprep.subr.mxu0 0.0
    %1403 = vmatpush2.msra.mxu0 0.0
    %1404 = vmatprep.subr.mxu0 0.0
    %1405 = vmatpush2.msra.mxu0 0.0
    %1406 = vmatprep.subr.mxu0 0.0
    %1407 = vmatpush2.msra.mxu0 0.0
    %1408 = vmatprep.subr.mxu0 0.0
    %1409 = vmatpush2.msra.mxu0 0.0
    %1410 = vmatprep.subr.mxu0 0.0
    %1411 = vmatpush2.msra.mxu0 0.0
    %1412 = vmatprep.subr.mxu0 0.0
    %1413 = vmatpush2.msra.mxu0 0.0
    %1414 = vmatprep.subr.mxu0 0.0
    %1415 = vmatpush2.msra.mxu0 0.0
    %1416 = vmatprep.subr.mxu0 0.0
    %1417 = vmatpush2.msra.mxu0 0.0
    %1418 = vmatprep.subr.mxu0 0.0
    %1419 = vmatpush2.msra.mxu0 0.0
    %1420 = vmatprep.subr.mxu0 0.0
    %1421 = vmatpush2.msra.mxu0 0.0
    %1422 = vmatprep.subr.mxu0 0.0
    %1423 = vmatpush2.msra.mxu0 0.0
    %1424 = vmatprep.mubr.f32.mxu0 0.0
    %1425 = vmatmul.mubr.f32.gmra.mxu0 %v141
    %v1426 = vpop.f32.mrf.mxu0
    %v1427 = vadd.f32 %v60, %v1426
    %v1428 = vpop.f32.mrf.mxu0
    %v1429 = vadd.f32 %v60, %v1428
    %1430 = vmatprep.mubr.f32.mxu0 0.0
    %1431 = vmatmul.mubr.f32.gmra.mxu0 %v144
    %v1432 = vpop.f32.mrf.mxu0
    %v1433 = vadd.f32 %v65, %v1432
    %v1434 = vpop.f32.mrf.mxu0
    %v1435 = vadd.f32 %v65, %v1434
    %1436 = vmatprep.mubr.f32.mxu0 0.0
    %1437 = vmatmul.mubr.f32.gmra.mxu0 %v147
    %v1438 = vpop.f32.mrf.mxu0
    %v1439 = vadd.f32 %v70, %v1438
    %v1440 = vpop.f32.mrf.mxu0
    %v1441 = vadd.f32 %v70, %v1440
    %1442 = vmatprep.mubr.f32.mxu0 0.0
    %1443 = vmatmul.mubr.f32.gmra.mxu0 %v150
    %v1444 = vpop.f32.mrf.mxu0
    %v1445 = vadd.f32 %v75, %v1444
    %v1446 = vpop.f32.mrf.mxu0
    %v1447 = vadd.f32 %v75, %v1446
    %1448 = vmatprep.mubr.f32.mxu0 0.0
    %1449 = vmatmul.mubr.f32.gmra.mxu0 %v153
    %v1450 = vpop.f32.mrf.mxu0
    %v1451 = vadd.f32 %v80, %v1450
    %v1452 = vpop.f32.mrf.mxu0
    %v1453 = vadd.f32 %v80, %v1452
    %1454 = vmatprep.mubr.f32.mxu0 0.0
    %1455 = vmatmul.mubr.f32.gmra.mxu0 %v156
    %v1456 = vpop.f32.mrf.mxu0
    %v1457 = vadd.f32 %v85, %v1456
    %v1458 = vpop.f32.mrf.mxu0
    %v1459 = vadd.f32 %v85, %v1458
    %1460 = vmatprep.mubr.f32.mxu0 0.0
    %1461 = vmatmul.mubr.f32.gmra.mxu0 %v159
    %v1462 = vpop.f32.mrf.mxu0
    %v1463 = vadd.f32 %v90, %v1462
    %v1464 = vpop.f32.mrf.mxu0
    %v1465 = vadd.f32 %v90, %v1464
    %1466 = vmatprep.mubr.f32.mxu0 0.0
    %1467 = vmatmul.mubr.f32.gmra.mxu0 %v162
    %v1468 = vpop.f32.mrf.mxu0
    %v1469 = vadd.f32 %v95, %v1468
    %v1470 = vpop.f32.mrf.mxu0
    %v1471 = vadd.f32 %v95, %v1470
    %1472 = vmatprep.mubr.f32.mxu0 0.0
    %1473 = vmatmul.mubr.f32.gmra.mxu0 %v165
    %v1474 = vpop.f32.mrf.mxu0
    %v1475 = vadd.f32 %v100, %v1474
    %v1476 = vpop.f32.mrf.mxu0
    %v1477 = vadd.f32 %v100, %v1476
    %1478 = vmatprep.mubr.f32.mxu0 0.0
    %1479 = vmatmul.mubr.f32.gmra.mxu0 %v168
    %v1480 = vpop.f32.mrf.mxu0
    %v1481 = vadd.f32 %v105, %v1480
    %v1482 = vpop.f32.mrf.mxu0
    %v1483 = vadd.f32 %v105, %v1482
    %1484 = vdwg.mxu0
    %1485 = vmatprep.subr.mxu0 0.0
    %1486 = vmatpush1.msra.mxu0 0.0
    %1487 = vmatprep.subr.mxu0 0.0
    %1488 = vmatpush1.msra.mxu0 0.0
    %1489 = vmatprep.subr.mxu0 0.0
    %1490 = vmatpush1.msra.mxu0 0.0
    %1491 = vmatprep.subr.mxu0 0.0
    %1492 = vmatpush1.msra.mxu0 0.0
    %1493 = vmatprep.subr.mxu0 0.0
    %1494 = vmatpush1.msra.mxu0 0.0
    %1495 = vmatprep.subr.mxu0 0.0
    %1496 = vmatpush1.msra.mxu0 0.0
    %1497 = vmatprep.subr.mxu0 0.0
    %1498 = vmatpush1.msra.mxu0 0.0
    %1499 = vmatprep.subr.mxu0 0.0
    %1500 = vmatpush1.msra.mxu0 0.0
    %1501 = vmatprep.subr.mxu0 0.0
    %1502 = vmatpush1.msra.mxu0 0.0
    %1503 = vmatprep.subr.mxu0 0.0
    %1504 = vmatpush1.msra.mxu0 0.0
    %1505 = vmatprep.subr.mxu0 0.0
    %1506 = vmatpush1.msra.mxu0 0.0
    %1507 = vmatprep.subr.mxu0 0.0
    %1508 = vmatpush1.msra.mxu0 0.0
    %1509 = vmatprep.subr.mxu0 0.0
    %1510 = vmatpush1.msra.mxu0 0.0
    %1511 = vmatprep.subr.mxu0 0.0
    %1512 = vmatpush1.msra.mxu0 0.0
    %1513 = vmatprep.subr.mxu0 0.0
    %1514 = vmatpush1.msra.mxu0 0.0
    %1515 = vmatprep.subr.mxu0 %v213
    %1516 = vmatpush1.msra.mxu0 %v211
    %1517 = vmatprep.subr.mxu0 0.0
    %1518 = vmatpush2.msra.mxu0 0.0
    %1519 = vmatprep.subr.mxu0 0.0
    %1520 = vmatpush2.msra.mxu0 0.0
    %1521 = vmatprep.subr.mxu0 0.0
    %1522 = vmatpush2.msra.mxu0 0.0
    %1523 = vmatprep.subr.mxu0 0.0
    %1524 = vmatpush2.msra.mxu0 0.0
    %1525 = vmatprep.subr.mxu0 0.0
    %1526 = vmatpush2.msra.mxu0 0.0
    %1527 = vmatprep.subr.mxu0 0.0
    %1528 = vmatpush2.msra.mxu0 0.0
    %1529 = vmatprep.subr.mxu0 0.0
    %1530 = vmatpush2.msra.mxu0 0.0
    %1531 = vmatprep.subr.mxu0 0.0
    %1532 = vmatpush2.msra.mxu0 0.0
    %1533 = vmatprep.subr.mxu0 0.0
    %1534 = vmatpush2.msra.mxu0 0.0
    %1535 = vmatprep.subr.mxu0 0.0
    %1536 = vmatpush2.msra.mxu0 0.0
    %1537 = vmatprep.subr.mxu0 0.0
    %1538 = vmatpush2.msra.mxu0 0.0
    %1539 = vmatprep.subr.mxu0 0.0
    %1540 = vmatpush2.msra.mxu0 0.0
    %1541 = vmatprep.subr.mxu0 0.0
    %1542 = vmatpush2.msra.mxu0 0.0
    %1543 = vmatprep.subr.mxu0 0.0
    %1544 = vmatpush2.msra.mxu0 0.0
    %1545 = vmatprep.subr.mxu0 0.0
    %1546 = vmatpush2.msra.mxu0 0.0
    %1547 = vmatprep.subr.mxu0 0.0
    %1548 = vmatpush2.msra.mxu0 0.0
    %1549 = vmatprep.mubr.f32.mxu0 0.0
    %1550 = vmatmul.mubr.f32.gmra.mxu0 %v141
    %v1551 = vpop.f32.mrf.mxu0
    %v1552 = vadd.f32 %v60, %v1551
    %v1553 = vpop.f32.mrf.mxu0
    %v1554 = vadd.f32 %v60, %v1553
    %1555 = vmatprep.mubr.f32.mxu0 0.0
    %1556 = vmatmul.mubr.f32.gmra.mxu0 %v144
    %v1557 = vpop.f32.mrf.mxu0
    %v1558 = vadd.f32 %v65, %v1557
    %v1559 = vpop.f32.mrf.mxu0
    %v1560 = vadd.f32 %v65, %v1559
    %1561 = vmatprep.mubr.f32.mxu0 0.0
    %1562 = vmatmul.mubr.f32.gmra.mxu0 %v147
    %v1563 = vpop.f32.mrf.mxu0
    %v1564 = vadd.f32 %v70, %v1563
    %v1565 = vpop.f32.mrf.mxu0
    %v1566 = vadd.f32 %v70, %v1565
    %1567 = vmatprep.mubr.f32.mxu0 0.0
    %1568 = vmatmul.mubr.f32.gmra.mxu0 %v150
    %v1569 = vpop.f32.mrf.mxu0
    %v1570 = vadd.f32 %v75, %v1569
    %v1571 = vpop.f32.mrf.mxu0
    %v1572 = vadd.f32 %v75, %v1571
    %1573 = vmatprep.mubr.f32.mxu0 0.0
    %1574 = vmatmul.mubr.f32.gmra.mxu0 %v153
    %v1575 = vpop.f32.mrf.mxu0
    %v1576 = vadd.f32 %v80, %v1575
    %v1577 = vpop.f32.mrf.mxu0
    %v1578 = vadd.f32 %v80, %v1577
    %1579 = vmatprep.mubr.f32.mxu0 0.0
    %1580 = vmatmul.mubr.f32.gmra.mxu0 %v156
    %v1581 = vpop.f32.mrf.mxu0
    %v1582 = vadd.f32 %v85, %v1581
    %v1583 = vpop.f32.mrf.mxu0
    %v1584 = vadd.f32 %v85, %v1583
    %1585 = vmatprep.mubr.f32.mxu0 0.0
    %1586 = vmatmul.mubr.f32.gmra.mxu0 %v159
    %v1587 = vpop.f32.mrf.mxu0
    %v1588 = vadd.f32 %v90, %v1587
    %v1589 = vpop.f32.mrf.mxu0
    %v1590 = vadd.f32 %v90, %v1589
    %1591 = vmatprep.mubr.f32.mxu0 0.0
    %1592 = vmatmul.mubr.f32.gmra.mxu0 %v162
    %v1593 = vpop.f32.mrf.mxu0
    %v1594 = vadd.f32 %v95, %v1593
    %v1595 = vpop.f32.mrf.mxu0
    %v1596 = vadd.f32 %v95, %v1595
    %1597 = vmatprep.mubr.f32.mxu0 0.0
    %1598 = vmatmul.mubr.f32.gmra.mxu0 %v165
    %v1599 = vpop.f32.mrf.mxu0
    %v1600 = vadd.f32 %v100, %v1599
    %v1601 = vpop.f32.mrf.mxu0
    %v1602 = vadd.f32 %v100, %v1601
    %1603 = vmatprep.mubr.f32.mxu0 0.0
    %1604 = vmatmul.mubr.f32.gmra.mxu0 %v168
    %v1605 = vpop.f32.mrf.mxu0
    %v1606 = vadd.f32 %v105, %v1605
    %v1607 = vpop.f32.mrf.mxu0
    %v1608 = vadd.f32 %v105, %v1607
    %1609 = vdwg.mxu0
    %1610 = vmatprep.subr.mxu0 0.0
    %1611 = vmatpush1.msra.mxu0 0.0
    %1612 = vmatprep.subr.mxu0 0.0
    %1613 = vmatpush1.msra.mxu0 0.0
    %1614 = vmatprep.subr.mxu0 0.0
    %1615 = vmatpush1.msra.mxu0 0.0
    %1616 = vmatprep.subr.mxu0 0.0
    %1617 = vmatpush1.msra.mxu0 0.0
    %1618 = vmatprep.subr.mxu0 0.0
    %1619 = vmatpush1.msra.mxu0 0.0
    %1620 = vmatprep.subr.mxu0 0.0
    %1621 = vmatpush1.msra.mxu0 0.0
    %1622 = vmatprep.subr.mxu0 0.0
    %1623 = vmatpush1.msra.mxu0 0.0
    %1624 = vmatprep.subr.mxu0 0.0
    %1625 = vmatpush1.msra.mxu0 0.0
    %1626 = vmatprep.subr.mxu0 0.0
    %1627 = vmatpush1.msra.mxu0 0.0
    %1628 = vmatprep.subr.mxu0 0.0
    %1629 = vmatpush1.msra.mxu0 0.0
    %1630 = vmatprep.subr.mxu0 0.0
    %1631 = vmatpush1.msra.mxu0 0.0
    %1632 = vmatprep.subr.mxu0 0.0
    %1633 = vmatpush1.msra.mxu0 0.0
    %1634 = vmatprep.subr.mxu0 0.0
    %1635 = vmatpush1.msra.mxu0 0.0
    %1636 = vmatprep.subr.mxu0 0.0
    %1637 = vmatpush1.msra.mxu0 0.0
    %1638 = vmatprep.subr.mxu0 0.0
    %1639 = vmatpush1.msra.mxu0 0.0
    %1640 = vmatprep.subr.mxu0 %v217
    %1641 = vmatpush1.msra.mxu0 %v215
    %1642 = vmatprep.subr.mxu0 0.0
    %1643 = vmatpush2.msra.mxu0 0.0
    %1644 = vmatprep.subr.mxu0 0.0
    %1645 = vmatpush2.msra.mxu0 0.0
    %1646 = vmatprep.subr.mxu0 0.0
    %1647 = vmatpush2.msra.mxu0 0.0
    %1648 = vmatprep.subr.mxu0 0.0
    %1649 = vmatpush2.msra.mxu0 0.0
    %1650 = vmatprep.subr.mxu0 0.0
    %1651 = vmatpush2.msra.mxu0 0.0
    %1652 = vmatprep.subr.mxu0 0.0
    %1653 = vmatpush2.msra.mxu0 0.0
    %1654 = vmatprep.subr.mxu0 0.0
    %1655 = vmatpush2.msra.mxu0 0.0
    %1656 = vmatprep.subr.mxu0 0.0
    %1657 = vmatpush2.msra.mxu0 0.0
    %1658 = vmatprep.subr.mxu0 0.0
    %1659 = vmatpush2.msra.mxu0 0.0
    %1660 = vmatprep.subr.mxu0 0.0
    %1661 = vmatpush2.msra.mxu0 0.0
    %1662 = vmatprep.subr.mxu0 0.0
    %1663 = vmatpush2.msra.mxu0 0.0
    %1664 = vmatprep.subr.mxu0 0.0
    %1665 = vmatpush2.msra.mxu0 0.0
    %1666 = vmatprep.subr.mxu0 0.0
    %1667 = vmatpush2.msra.mxu0 0.0
    %1668 = vmatprep.subr.mxu0 0.0
    %1669 = vmatpush2.msra.mxu0 0.0
    %1670 = vmatprep.subr.mxu0 0.0
    %1671 = vmatpush2.msra.mxu0 0.0
    %1672 = vmatprep.subr.mxu0 0.0
    %1673 = vmatpush2.msra.mxu0 0.0
    %1674 = vmatprep.mubr.f32.mxu0 0.0
    %1675 = vmatmul.mubr.f32.gmra.mxu0 %v141
    %v1676 = vpop.f32.mrf.mxu0
    %v1677 = vadd.f32 %v60, %v1676
    %v1678 = vpop.f32.mrf.mxu0
    %v1679 = vadd.f32 %v60, %v1678
    %1680 = vmatprep.mubr.f32.mxu0 0.0
    %1681 = vmatmul.mubr.f32.gmra.mxu0 %v144
    %v1682 = vpop.f32.mrf.mxu0
    %v1683 = vadd.f32 %v65, %v1682
    %v1684 = vpop.f32.mrf.mxu0
    %v1685 = vadd.f32 %v65, %v1684
    %1686 = vmatprep.mubr.f32.mxu0 0.0
    %1687 = vmatmul.mubr.f32.gmra.mxu0 %v147
    %v1688 = vpop.f32.mrf.mxu0
    %v1689 = vadd.f32 %v70, %v1688
    %v1690 = vpop.f32.mrf.mxu0
    %v1691 = vadd.f32 %v70, %v1690
    %1692 = vmatprep.mubr.f32.mxu0 0.0
    %1693 = vmatmul.mubr.f32.gmra.mxu0 %v150
    %v1694 = vpop.f32.mrf.mxu0
    %v1695 = vadd.f32 %v75, %v1694
    %v1696 = vpop.f32.mrf.mxu0
    %v1697 = vadd.f32 %v75, %v1696
    %1698 = vmatprep.mubr.f32.mxu0 0.0
    %1699 = vmatmul.mubr.f32.gmra.mxu0 %v153
    %v1700 = vpop.f32.mrf.mxu0
    %v1701 = vadd.f32 %v80, %v1700
    %v1702 = vpop.f32.mrf.mxu0
    %v1703 = vadd.f32 %v80, %v1702
    %1704 = vmatprep.mubr.f32.mxu0 0.0
    %1705 = vmatmul.mubr.f32.gmra.mxu0 %v156
    %v1706 = vpop.f32.mrf.mxu0
    %v1707 = vadd.f32 %v85, %v1706
    %v1708 = vpop.f32.mrf.mxu0
    %v1709 = vadd.f32 %v85, %v1708
    %1710 = vmatprep.mubr.f32.mxu0 0.0
    %1711 = vmatmul.mubr.f32.gmra.mxu0 %v159
    %v1712 = vpop.f32.mrf.mxu0
    %v1713 = vadd.f32 %v90, %v1712
    %v1714 = vpop.f32.mrf.mxu0
    %v1715 = vadd.f32 %v90, %v1714
    %1716 = vmatprep.mubr.f32.mxu0 0.0
    %1717 = vmatmul.mubr.f32.gmra.mxu0 %v162
    %v1718 = vpop.f32.mrf.mxu0
    %v1719 = vadd.f32 %v95, %v1718
    %v1720 = vpop.f32.mrf.mxu0
    %v1721 = vadd.f32 %v95, %v1720
    %1722 = vmatprep.mubr.f32.mxu0 0.0
    %1723 = vmatmul.mubr.f32.gmra.mxu0 %v165
    %v1724 = vpop.f32.mrf.mxu0
    %v1725 = vadd.f32 %v100, %v1724
    %v1726 = vpop.f32.mrf.mxu0
    %v1727 = vadd.f32 %v100, %v1726
    %1728 = vmatprep.mubr.f32.mxu0 0.0
    %1729 = vmatmul.mubr.f32.gmra.mxu0 %v168
    %v1730 = vpop.f32.mrf.mxu0
    %v1731 = vadd.f32 %v105, %v1730
    %v1732 = vpop.f32.mrf.mxu0
    %v1733 = vadd.f32 %v105, %v1732
    %1734 = vdwg.mxu0
    %1735 = vmatprep.subr.mxu0 0.0
    %1736 = vmatpush1.msra.mxu0 0.0
    %1737 = vmatprep.subr.mxu0 0.0
    %1738 = vmatpush1.msra.mxu0 0.0
    %1739 = vmatprep.subr.mxu0 0.0
    %1740 = vmatpush1.msra.mxu0 0.0
    %1741 = vmatprep.subr.mxu0 0.0
    %1742 = vmatpush1.msra.mxu0 0.0
    %1743 = vmatprep.subr.mxu0 0.0
    %1744 = vmatpush1.msra.mxu0 0.0
    %1745 = vmatprep.subr.mxu0 0.0
    %1746 = vmatpush1.msra.mxu0 0.0
    %1747 = vmatprep.subr.mxu0 0.0
    %1748 = vmatpush1.msra.mxu0 0.0
    %1749 = vmatprep.subr.mxu0 0.0
    %1750 = vmatpush1.msra.mxu0 0.0
    %1751 = vmatprep.subr.mxu0 0.0
    %1752 = vmatpush1.msra.mxu0 0.0
    %1753 = vmatprep.subr.mxu0 0.0
    %1754 = vmatpush1.msra.mxu0 0.0
    %1755 = vmatprep.subr.mxu0 0.0
    %1756 = vmatpush1.msra.mxu0 0.0
    %1757 = vmatprep.subr.mxu0 0.0
    %1758 = vmatpush1.msra.mxu0 0.0
    %1759 = vmatprep.subr.mxu0 0.0
    %1760 = vmatpush1.msra.mxu0 0.0
    %1761 = vmatprep.subr.mxu0 0.0
    %1762 = vmatpush1.msra.mxu0 0.0
    %1763 = vmatprep.subr.mxu0 0.0
    %1764 = vmatpush1.msra.mxu0 0.0
    %1765 = vmatprep.subr.mxu0 %v221
    %1766 = vmatpush1.msra.mxu0 %v219
    %1767 = vmatprep.subr.mxu0 0.0
    %1768 = vmatpush2.msra.mxu0 0.0
    %1769 = vmatprep.subr.mxu0 0.0
    %1770 = vmatpush2.msra.mxu0 0.0
    %1771 = vmatprep.subr.mxu0 0.0
    %1772 = vmatpush2.msra.mxu0 0.0
    %1773 = vmatprep.subr.mxu0 0.0
    %1774 = vmatpush2.msra.mxu0 0.0
    %1775 = vmatprep.subr.mxu0 0.0
    %1776 = vmatpush2.msra.mxu0 0.0
    %1777 = vmatprep.subr.mxu0 0.0
    %1778 = vmatpush2.msra.mxu0 0.0
    %1779 = vmatprep.subr.mxu0 0.0
    %1780 = vmatpush2.msra.mxu0 0.0
    %1781 = vmatprep.subr.mxu0 0.0
    %1782 = vmatpush2.msra.mxu0 0.0
    %1783 = vmatprep.subr.mxu0 0.0
    %1784 = vmatpush2.msra.mxu0 0.0
    %1785 = vmatprep.subr.mxu0 0.0
    %1786 = vmatpush2.msra.mxu0 0.0
    %1787 = vmatprep.subr.mxu0 0.0
    %1788 = vmatpush2.msra.mxu0 0.0
    %1789 = vmatprep.subr.mxu0 0.0
    %1790 = vmatpush2.msra.mxu0 0.0
    %1791 = vmatprep.subr.mxu0 0.0
    %1792 = vmatpush2.msra.mxu0 0.0
    %1793 = vmatprep.subr.mxu0 0.0
    %1794 = vmatpush2.msra.mxu0 0.0
    %1795 = vmatprep.subr.mxu0 0.0
    %1796 = vmatpush2.msra.mxu0 0.0
    %1797 = vmatprep.subr.mxu0 0.0
    %1798 = vmatpush2.msra.mxu0 0.0
    %1799 = vmatprep.mubr.f32.mxu0 0.0
    %1800 = vmatmul.mubr.f32.gmra.mxu0 %v141
    %v1801 = vpop.f32.mrf.mxu0
    %v1802 = vadd.f32 %v60, %v1801
    %v1803 = vpop.f32.mrf.mxu0
    %v1804 = vadd.f32 %v60, %v1803
    %1805 = vmatprep.mubr.f32.mxu0 0.0
    %1806 = vmatmul.mubr.f32.gmra.mxu0 %v144
    %v1807 = vpop.f32.mrf.mxu0
    %v1808 = vadd.f32 %v65, %v1807
    %v1809 = vpop.f32.mrf.mxu0
    %v1810 = vadd.f32 %v65, %v1809
    %1811 = vmatprep.mubr.f32.mxu0 0.0
    %1812 = vmatmul.mubr.f32.gmra.mxu0 %v147
    %v1813 = vpop.f32.mrf.mxu0
    %v1814 = vadd.f32 %v70, %v1813
    %v1815 = vpop.f32.mrf.mxu0
    %v1816 = vadd.f32 %v70, %v1815
    %1817 = vmatprep.mubr.f32.mxu0 0.0
    %1818 = vmatmul.mubr.f32.gmra.mxu0 %v150
    %v1819 = vpop.f32.mrf.mxu0
    %v1820 = vadd.f32 %v75, %v1819
    %v1821 = vpop.f32.mrf.mxu0
    %v1822 = vadd.f32 %v75, %v1821
    %1823 = vmatprep.mubr.f32.mxu0 0.0
    %1824 = vmatmul.mubr.f32.gmra.mxu0 %v153
    %v1825 = vpop.f32.mrf.mxu0
    %v1826 = vadd.f32 %v80, %v1825
    %v1827 = vpop.f32.mrf.mxu0
    %v1828 = vadd.f32 %v80, %v1827
    %1829 = vmatprep.mubr.f32.mxu0 0.0
    %1830 = vmatmul.mubr.f32.gmra.mxu0 %v156
    %v1831 = vpop.f32.mrf.mxu0
    %v1832 = vadd.f32 %v85, %v1831
    %v1833 = vpop.f32.mrf.mxu0
    %v1834 = vadd.f32 %v85, %v1833
    %1835 = vmatprep.mubr.f32.mxu0 0.0
    %1836 = vmatmul.mubr.f32.gmra.mxu0 %v159
    %v1837 = vpop.f32.mrf.mxu0
    %v1838 = vadd.f32 %v90, %v1837
    %v1839 = vpop.f32.mrf.mxu0
    %v1840 = vadd.f32 %v90, %v1839
    %1841 = vmatprep.mubr.f32.mxu0 0.0
    %1842 = vmatmul.mubr.f32.gmra.mxu0 %v162
    %v1843 = vpop.f32.mrf.mxu0
    %v1844 = vadd.f32 %v95, %v1843
    %v1845 = vpop.f32.mrf.mxu0
    %v1846 = vadd.f32 %v95, %v1845
    %1847 = vmatprep.mubr.f32.mxu0 0.0
    %1848 = vmatmul.mubr.f32.gmra.mxu0 %v165
    %v1849 = vpop.f32.mrf.mxu0
    %v1850 = vadd.f32 %v100, %v1849
    %v1851 = vpop.f32.mrf.mxu0
    %v1852 = vadd.f32 %v100, %v1851
    %1853 = vmatprep.mubr.f32.mxu0 0.0
    %1854 = vmatmul.mubr.f32.gmra.mxu0 %v168
    %v1855 = vpop.f32.mrf.mxu0
    %v1856 = vadd.f32 %v105, %v1855
    %v1857 = vpop.f32.mrf.mxu0
    %v1858 = vadd.f32 %v105, %v1857
    %1859 = vdwg.mxu0
    %1860 = vmatprep.subr.mxu0 0.0
    %1861 = vmatpush1.msra.mxu0 0.0
    %1862 = vmatprep.subr.mxu0 0.0
    %1863 = vmatpush1.msra.mxu0 0.0
    %1864 = vmatprep.subr.mxu0 0.0
    %1865 = vmatpush1.msra.mxu0 0.0
    %1866 = vmatprep.subr.mxu0 0.0
    %1867 = vmatpush1.msra.mxu0 0.0
    %1868 = vmatprep.subr.mxu0 0.0
    %1869 = vmatpush1.msra.mxu0 0.0
    %1870 = vmatprep.subr.mxu0 0.0
    %1871 = vmatpush1.msra.mxu0 0.0
    %1872 = vmatprep.subr.mxu0 0.0
    %1873 = vmatpush1.msra.mxu0 0.0
    %1874 = vmatprep.subr.mxu0 0.0
    %1875 = vmatpush1.msra.mxu0 0.0
    %1876 = vmatprep.subr.mxu0 0.0
    %1877 = vmatpush1.msra.mxu0 0.0
    %1878 = vmatprep.subr.mxu0 0.0
    %1879 = vmatpush1.msra.mxu0 0.0
    %1880 = vmatprep.subr.mxu0 0.0
    %1881 = vmatpush1.msra.mxu0 0.0
    %1882 = vmatprep.subr.mxu0 0.0
    %1883 = vmatpush1.msra.mxu0 0.0
    %1884 = vmatprep.subr.mxu0 0.0
    %1885 = vmatpush1.msra.mxu0 0.0
    %1886 = vmatprep.subr.mxu0 0.0
    %1887 = vmatpush1.msra.mxu0 0.0
    %1888 = vmatprep.subr.mxu0 0.0
    %1889 = vmatpush1.msra.mxu0 0.0
    %1890 = vmatprep.subr.mxu0 %v225
    %1891 = vmatpush1.msra.mxu0 %v223
    %1892 = vmatprep.subr.mxu0 0.0
    %1893 = vmatpush2.msra.mxu0 0.0
    %1894 = vmatprep.subr.mxu0 0.0
    %1895 = vmatpush2.msra.mxu0 0.0
    %1896 = vmatprep.subr.mxu0 0.0
    %1897 = vmatpush2.msra.mxu0 0.0
    %1898 = vmatprep.subr.mxu0 0.0
    %1899 = vmatpush2.msra.mxu0 0.0
    %1900 = vmatprep.subr.mxu0 0.0
    %1901 = vmatpush2.msra.mxu0 0.0
    %1902 = vmatprep.subr.mxu0 0.0
    %1903 = vmatpush2.msra.mxu0 0.0
    %1904 = vmatprep.subr.mxu0 0.0
    %1905 = vmatpush2.msra.mxu0 0.0
    %1906 = vmatprep.subr.mxu0 0.0
    %1907 = vmatpush2.msra.mxu0 0.0
    %1908 = vmatprep.subr.mxu0 0.0
    %1909 = vmatpush2.msra.mxu0 0.0
    %1910 = vmatprep.subr.mxu0 0.0
    %1911 = vmatpush2.msra.mxu0 0.0
    %1912 = vmatprep.subr.mxu0 0.0
    %1913 = vmatpush2.msra.mxu0 0.0
    %1914 = vmatprep.subr.mxu0 0.0
    %1915 = vmatpush2.msra.mxu0 0.0
    %1916 = vmatprep.subr.mxu0 0.0
    %1917 = vmatpush2.msra.mxu0 0.0
    %1918 = vmatprep.subr.mxu0 0.0
    %1919 = vmatpush2.msra.mxu0 0.0
    %1920 = vmatprep.subr.mxu0 0.0
    %1921 = vmatpush2.msra.mxu0 0.0
    %1922 = vmatprep.subr.mxu0 0.0
    %1923 = vmatpush2.msra.mxu0 0.0
    %1924 = vmatprep.mubr.f32.mxu0 0.0
    %1925 = vmatmul.mubr.f32.gmra.mxu0 %v141
    %v1926 = vpop.f32.mrf.mxu0
    %v1927 = vadd.f32 %v60, %v1926
    %v1928 = vpop.f32.mrf.mxu0
    %v1929 = vadd.f32 %v60, %v1928
    %1930 = vmatprep.mubr.f32.mxu0 0.0
    %1931 = vmatmul.mubr.f32.gmra.mxu0 %v144
    %v1932 = vpop.f32.mrf.mxu0
    %v1933 = vadd.f32 %v65, %v1932
    %v1934 = vpop.f32.mrf.mxu0
    %v1935 = vadd.f32 %v65, %v1934
    %1936 = vmatprep.mubr.f32.mxu0 0.0
    %1937 = vmatmul.mubr.f32.gmra.mxu0 %v147
    %v1938 = vpop.f32.mrf.mxu0
    %v1939 = vadd.f32 %v70, %v1938
    %v1940 = vpop.f32.mrf.mxu0
    %v1941 = vadd.f32 %v70, %v1940
    %1942 = vmatprep.mubr.f32.mxu0 0.0
    %1943 = vmatmul.mubr.f32.gmra.mxu0 %v150
    %v1944 = vpop.f32.mrf.mxu0
    %v1945 = vadd.f32 %v75, %v1944
    %v1946 = vpop.f32.mrf.mxu0
    %v1947 = vadd.f32 %v75, %v1946
    %1948 = vmatprep.mubr.f32.mxu0 0.0
    %1949 = vmatmul.mubr.f32.gmra.mxu0 %v153
    %v1950 = vpop.f32.mrf.mxu0
    %v1951 = vadd.f32 %v80, %v1950
    %v1952 = vpop.f32.mrf.mxu0
    %v1953 = vadd.f32 %v80, %v1952
    %1954 = vmatprep.mubr.f32.mxu0 0.0
    %1955 = vmatmul.mubr.f32.gmra.mxu0 %v156
    %v1956 = vpop.f32.mrf.mxu0
    %v1957 = vadd.f32 %v85, %v1956
    %v1958 = vpop.f32.mrf.mxu0
    %v1959 = vadd.f32 %v85, %v1958
    %1960 = vmatprep.mubr.f32.mxu0 0.0
    %1961 = vmatmul.mubr.f32.gmra.mxu0 %v159
    %v1962 = vpop.f32.mrf.mxu0
    %v1963 = vadd.f32 %v90, %v1962
    %v1964 = vpop.f32.mrf.mxu0
    %v1965 = vadd.f32 %v90, %v1964
    %1966 = vmatprep.mubr.f32.mxu0 0.0
    %1967 = vmatmul.mubr.f32.gmra.mxu0 %v162
    %v1968 = vpop.f32.mrf.mxu0
    %v1969 = vadd.f32 %v95, %v1968
    %v1970 = vpop.f32.mrf.mxu0
    %v1971 = vadd.f32 %v95, %v1970
    %1972 = vmatprep.mubr.f32.mxu0 0.0
    %1973 = vmatmul.mubr.f32.gmra.mxu0 %v165
    %v1974 = vpop.f32.mrf.mxu0
    %v1975 = vadd.f32 %v100, %v1974
    %v1976 = vpop.f32.mrf.mxu0
    %v1977 = vadd.f32 %v100, %v1976
    %1978 = vmatprep.mubr.f32.mxu0 0.0
    %1979 = vmatmul.mubr.f32.gmra.mxu0 %v168
    %v1980 = vpop.f32.mrf.mxu0
    %v1981 = vadd.f32 %v105, %v1980
    %v1982 = vpop.f32.mrf.mxu0
    %v1983 = vadd.f32 %v105, %v1982
    %1984 = vdwg.mxu0
    %1985 = vmatprep.subr.mxu0 0.0
    %1986 = vmatpush1.msra.mxu0 0.0
    %1987 = vmatprep.subr.mxu0 0.0
    %1988 = vmatpush1.msra.mxu0 0.0
    %1989 = vmatprep.subr.mxu0 0.0
    %1990 = vmatpush1.msra.mxu0 0.0
    %1991 = vmatprep.subr.mxu0 0.0
    %1992 = vmatpush1.msra.mxu0 0.0
    %1993 = vmatprep.subr.mxu0 0.0
    %1994 = vmatpush1.msra.mxu0 0.0
    %1995 = vmatprep.subr.mxu0 0.0
    %1996 = vmatpush1.msra.mxu0 0.0
    %1997 = vmatprep.subr.mxu0 0.0
    %1998 = vmatpush1.msra.mxu0 0.0
    %1999 = vmatprep.subr.mxu0 0.0
    %2000 = vmatpush1.msra.mxu0 0.0
    %2001 = vmatprep.subr.mxu0 0.0
    %2002 = vmatpush1.msra.mxu0 0.0
    %2003 = vmatprep.subr.mxu0 0.0
    %2004 = vmatpush1.msra.mxu0 0.0
    %2005 = vmatprep.subr.mxu0 0.0
    %2006 = vmatpush1.msra.mxu0 0.0
    %2007 = vmatprep.subr.mxu0 0.0
    %2008 = vmatpush1.msra.mxu0 0.0
    %2009 = vmatprep.subr.mxu0 0.0
    %2010 = vmatpush1.msra.mxu0 0.0
    %2011 = vmatprep.subr.mxu0 0.0
    %2012 = vmatpush1.msra.mxu0 0.0
    %2013 = vmatprep.subr.mxu0 0.0
    %2014 = vmatpush1.msra.mxu0 0.0
    %2015 = vmatprep.subr.mxu0 %v229
    %2016 = vmatpush1.msra.mxu0 %v227
    %2017 = vmatprep.subr.mxu0 0.0
    %2018 = vmatpush2.msra.mxu0 0.0
    %2019 = vmatprep.subr.mxu0 0.0
    %2020 = vmatpush2.msra.mxu0 0.0
    %2021 = vmatprep.subr.mxu0 0.0
    %2022 = vmatpush2.msra.mxu0 0.0
    %2023 = vmatprep.subr.mxu0 0.0
    %2024 = vmatpush2.msra.mxu0 0.0
    %2025 = vmatprep.subr.mxu0 0.0
    %2026 = vmatpush2.msra.mxu0 0.0
    %2027 = vmatprep.subr.mxu0 0.0
    %2028 = vmatpush2.msra.mxu0 0.0
    %2029 = vmatprep.subr.mxu0 0.0
    %2030 = vmatpush2.msra.mxu0 0.0
    %2031 = vmatprep.subr.mxu0 0.0
    %2032 = vmatpush2.msra.mxu0 0.0
    %2033 = vmatprep.subr.mxu0 0.0
    %2034 = vmatpush2.msra.mxu0 0.0
    %2035 = vmatprep.subr.mxu0 0.0
    %2036 = vmatpush2.msra.mxu0 0.0
    %2037 = vmatprep.subr.mxu0 0.0
    %2038 = vmatpush2.msra.mxu0 0.0
    %2039 = vmatprep.subr.mxu0 0.0
    %2040 = vmatpush2.msra.mxu0 0.0
    %2041 = vmatprep.subr.mxu0 0.0
    %2042 = vmatpush2.msra.mxu0 0.0
    %2043 = vmatprep.subr.mxu0 0.0
    %2044 = vmatpush2.msra.mxu0 0.0
    %2045 = vmatprep.subr.mxu0 0.0
    %2046 = vmatpush2.msra.mxu0 0.0
    %2047 = vmatprep.subr.mxu0 0.0
    %2048 = vmatpush2.msra.mxu0 0.0
    %2049 = vmatprep.mubr.f32.mxu0 0.0
    %2050 = vmatmul.mubr.f32.gmra.mxu0 %v141
    %v2051 = vpop.f32.mrf.mxu0
    %v2052 = vadd.f32 %v60, %v2051
    %v2053 = vpop.f32.mrf.mxu0
    %v2054 = vadd.f32 %v60, %v2053
    %2055 = vmatprep.mubr.f32.mxu0 0.0
    %2056 = vmatmul.mubr.f32.gmra.mxu0 %v144
    %v2057 = vpop.f32.mrf.mxu0
    %v2058 = vadd.f32 %v65, %v2057
    %v2059 = vpop.f32.mrf.mxu0
    %v2060 = vadd.f32 %v65, %v2059
    %2061 = vmatprep.mubr.f32.mxu0 0.0
    %2062 = vmatmul.mubr.f32.gmra.mxu0 %v147
    %v2063 = vpop.f32.mrf.mxu0
    %v2064 = vadd.f32 %v70, %v2063
    %v2065 = vpop.f32.mrf.mxu0
    %v2066 = vadd.f32 %v70, %v2065
    %2067 = vmatprep.mubr.f32.mxu0 0.0
    %2068 = vmatmul.mubr.f32.gmra.mxu0 %v150
    %v2069 = vpop.f32.mrf.mxu0
    %v2070 = vadd.f32 %v75, %v2069
    %v2071 = vpop.f32.mrf.mxu0
    %v2072 = vadd.f32 %v75, %v2071
    %2073 = vmatprep.mubr.f32.mxu0 0.0
    %2074 = vmatmul.mubr.f32.gmra.mxu0 %v153
    %v2075 = vpop.f32.mrf.mxu0
    %v2076 = vadd.f32 %v80, %v2075
    %v2077 = vpop.f32.mrf.mxu0
    %v2078 = vadd.f32 %v80, %v2077
    %2079 = vmatprep.mubr.f32.mxu0 0.0
    %2080 = vmatmul.mubr.f32.gmra.mxu0 %v156
    %v2081 = vpop.f32.mrf.mxu0
    %v2082 = vadd.f32 %v85, %v2081
    %v2083 = vpop.f32.mrf.mxu0
    %v2084 = vadd.f32 %v85, %v2083
    %2085 = vmatprep.mubr.f32.mxu0 0.0
    %2086 = vmatmul.mubr.f32.gmra.mxu0 %v159
    %v2087 = vpop.f32.mrf.mxu0
    %v2088 = vadd.f32 %v90, %v2087
    %v2089 = vpop.f32.mrf.mxu0
    %v2090 = vadd.f32 %v90, %v2089
    %2091 = vmatprep.mubr.f32.mxu0 0.0
    %2092 = vmatmul.mubr.f32.gmra.mxu0 %v162
    %v2093 = vpop.f32.mrf.mxu0
    %v2094 = vadd.f32 %v95, %v2093
    %v2095 = vpop.f32.mrf.mxu0
    %v2096 = vadd.f32 %v95, %v2095
    %2097 = vmatprep.mubr.f32.mxu0 0.0
    %2098 = vmatmul.mubr.f32.gmra.mxu0 %v165
    %v2099 = vpop.f32.mrf.mxu0
    %v2100 = vadd.f32 %v100, %v2099
    %v2101 = vpop.f32.mrf.mxu0
    %v2102 = vadd.f32 %v100, %v2101
    %2103 = vmatprep.mubr.f32.mxu0 0.0
    %2104 = vmatmul.mubr.f32.gmra.mxu0 %v168
    %v2105 = vpop.f32.mrf.mxu0
    %v2106 = vadd.f32 %v105, %v2105
    %v2107 = vpop.f32.mrf.mxu0
    %v2108 = vadd.f32 %v105, %v2107
    %2109 = vdwg.mxu0
    %2110 = vmatprep.subr.mxu0 0.0
    %2111 = vmatpush1.msra.mxu0 0.0
    %2112 = vmatprep.subr.mxu0 0.0
    %2113 = vmatpush1.msra.mxu0 0.0
    %2114 = vmatprep.subr.mxu0 0.0
    %2115 = vmatpush1.msra.mxu0 0.0
    %2116 = vmatprep.subr.mxu0 0.0
    %2117 = vmatpush1.msra.mxu0 0.0
    %2118 = vmatprep.subr.mxu0 0.0
    %2119 = vmatpush1.msra.mxu0 0.0
    %2120 = vmatprep.subr.mxu0 0.0
    %2121 = vmatpush1.msra.mxu0 0.0
    %2122 = vmatprep.subr.mxu0 0.0
    %2123 = vmatpush1.msra.mxu0 0.0
    %2124 = vmatprep.subr.mxu0 0.0
    %2125 = vmatpush1.msra.mxu0 0.0
    %2126 = vmatprep.subr.mxu0 0.0
    %2127 = vmatpush1.msra.mxu0 0.0
    %2128 = vmatprep.subr.mxu0 0.0
    %2129 = vmatpush1.msra.mxu0 0.0
    %2130 = vmatprep.subr.mxu0 0.0
    %2131 = vmatpush1.msra.mxu0 0.0
    %2132 = vmatprep.subr.mxu0 0.0
    %2133 = vmatpush1.msra.mxu0 0.0
    %2134 = vmatprep.subr.mxu0 0.0
    %2135 = vmatpush1.msra.mxu0 0.0
    %2136 = vmatprep.subr.mxu0 0.0
    %2137 = vmatpush1.msra.mxu0 0.0
    %2138 = vmatprep.subr.mxu0 0.0
    %2139 = vmatpush1.msra.mxu0 0.0
    %2140 = vmatprep.subr.mxu0 %v233
    %2141 = vmatpush1.msra.mxu0 %v231
    %2142 = vmatprep.subr.mxu0 0.0
    %2143 = vmatpush2.msra.mxu0 0.0
    %2144 = vmatprep.subr.mxu0 0.0
    %2145 = vmatpush2.msra.mxu0 0.0
    %2146 = vmatprep.subr.mxu0 0.0
    %2147 = vmatpush2.msra.mxu0 0.0
    %2148 = vmatprep.subr.mxu0 0.0
    %2149 = vmatpush2.msra.mxu0 0.0
    %2150 = vmatprep.subr.mxu0 0.0
    %2151 = vmatpush2.msra.mxu0 0.0
    %2152 = vmatprep.subr.mxu0 0.0
    %2153 = vmatpush2.msra.mxu0 0.0
    %2154 = vmatprep.subr.mxu0 0.0
    %2155 = vmatpush2.msra.mxu0 0.0
    %2156 = vmatprep.subr.mxu0 0.0
    %2157 = vmatpush2.msra.mxu0 0.0
    %2158 = vmatprep.subr.mxu0 0.0
    %2159 = vmatpush2.msra.mxu0 0.0
    %2160 = vmatprep.subr.mxu0 0.0
    %2161 = vmatpush2.msra.mxu0 0.0
    %2162 = vmatprep.subr.mxu0 0.0
    %2163 = vmatpush2.msra.mxu0 0.0
    %2164 = vmatprep.subr.mxu0 0.0
    %2165 = vmatpush2.msra.mxu0 0.0
    %2166 = vmatprep.subr.mxu0 0.0
    %2167 = vmatpush2.msra.mxu0 0.0
    %2168 = vmatprep.subr.mxu0 0.0
    %2169 = vmatpush2.msra.mxu0 0.0
    %2170 = vmatprep.subr.mxu0 0.0
    %2171 = vmatpush2.msra.mxu0 0.0
    %2172 = vmatprep.subr.mxu0 0.0
    %2173 = vmatpush2.msra.mxu0 0.0
    %2174 = vmatprep.mubr.f32.mxu0 0.0
    %2175 = vmatmul.mubr.f32.gmra.mxu0 %v141
    %v2176 = vpop.f32.mrf.mxu0
    %v2177 = vadd.f32 %v60, %v2176
    %v2178 = vpop.f32.mrf.mxu0
    %v2179 = vadd.f32 %v60, %v2178
    %2180 = vmatprep.mubr.f32.mxu0 0.0
    %2181 = vmatmul.mubr.f32.gmra.mxu0 %v144
    %v2182 = vpop.f32.mrf.mxu0
    %v2183 = vadd.f32 %v65, %v2182
    %v2184 = vpop.f32.mrf.mxu0
    %v2185 = vadd.f32 %v65, %v2184
    %2186 = vmatprep.mubr.f32.mxu0 0.0
    %2187 = vmatmul.mubr.f32.gmra.mxu0 %v147
    %v2188 = vpop.f32.mrf.mxu0
    %v2189 = vadd.f32 %v70, %v2188
    %v2190 = vpop.f32.mrf.mxu0
    %v2191 = vadd.f32 %v70, %v2190
    %2192 = vmatprep.mubr.f32.mxu0 0.0
    %2193 = vmatmul.mubr.f32.gmra.mxu0 %v150
    %v2194 = vpop.f32.mrf.mxu0
    %v2195 = vadd.f32 %v75, %v2194
    %v2196 = vpop.f32.mrf.mxu0
    %v2197 = vadd.f32 %v75, %v2196
    %2198 = vmatprep.mubr.f32.mxu0 0.0
    %2199 = vmatmul.mubr.f32.gmra.mxu0 %v153
    %v2200 = vpop.f32.mrf.mxu0
    %v2201 = vadd.f32 %v80, %v2200
    %v2202 = vpop.f32.mrf.mxu0
    %v2203 = vadd.f32 %v80, %v2202
    %2204 = vmatprep.mubr.f32.mxu0 0.0
    %2205 = vmatmul.mubr.f32.gmra.mxu0 %v156
    %v2206 = vpop.f32.mrf.mxu0
    %v2207 = vadd.f32 %v85, %v2206
    %v2208 = vpop.f32.mrf.mxu0
    %v2209 = vadd.f32 %v85, %v2208
    %2210 = vmatprep.mubr.f32.mxu0 0.0
    %2211 = vmatmul.mubr.f32.gmra.mxu0 %v159
    %v2212 = vpop.f32.mrf.mxu0
    %v2213 = vadd.f32 %v90, %v2212
    %v2214 = vpop.f32.mrf.mxu0
    %v2215 = vadd.f32 %v90, %v2214
    %2216 = vmatprep.mubr.f32.mxu0 0.0
    %2217 = vmatmul.mubr.f32.gmra.mxu0 %v162
    %v2218 = vpop.f32.mrf.mxu0
    %v2219 = vadd.f32 %v95, %v2218
    %v2220 = vpop.f32.mrf.mxu0
    %v2221 = vadd.f32 %v95, %v2220
    %2222 = vmatprep.mubr.f32.mxu0 0.0
    %2223 = vmatmul.mubr.f32.gmra.mxu0 %v165
    %v2224 = vpop.f32.mrf.mxu0
    %v2225 = vadd.f32 %v100, %v2224
    %v2226 = vpop.f32.mrf.mxu0
    %v2227 = vadd.f32 %v100, %v2226
    %2228 = vmatprep.mubr.f32.mxu0 0.0
    %2229 = vmatmul.mubr.f32.gmra.mxu0 %v168
    %v2230 = vpop.f32.mrf.mxu0
    %v2231 = vadd.f32 %v105, %v2230
    %v2232 = vpop.f32.mrf.mxu0
    %v2233 = vadd.f32 %v105, %v2232
    %2234 = vdwg.mxu0
    %v2235 = vmax.f32 %v302, 0.0
    %v2236 = vmax.f32 %v304, 0.0
    %v2237 = vmax.f32 %v427, 0.0
    %v2238 = vmax.f32 %v429, 0.0
    %v2239 = vmax.f32 %v552, 0.0
    %v2240 = vmax.f32 %v554, 0.0
    %v2241 = vmax.f32 %v677, 0.0
    %v2242 = vmax.f32 %v679, 0.0
    %v2243 = vmax.f32 %v802, 0.0
    %v2244 = vmax.f32 %v804, 0.0
    %v2245 = vmax.f32 %v927, 0.0
    %v2246 = vmax.f32 %v929, 0.0
    %v2247 = vmax.f32 %v1052, 0.0
    %v2248 = vmax.f32 %v1054, 0.0
    %v2249 = vmax.f32 %v1177, 0.0
    %v2250 = vmax.f32 %v1179, 0.0
    %v2251 = vmax.f32 %v1302, 0.0
    %v2252 = vmax.f32 %v1304, 0.0
    %v2253 = vmax.f32 %v1427, 0.0
    %v2254 = vmax.f32 %v1429, 0.0
    %v2255 = vmax.f32 %v1552, 0.0
    %v2256 = vmax.f32 %v1554, 0.0
    %v2257 = vmax.f32 %v1677, 0.0
    %v2258 = vmax.f32 %v1679, 0.0
    %v2259 = vmax.f32 %v1802, 0.0
    %v2260 = vmax.f32 %v1804, 0.0
    %v2261 = vmax.f32 %v1927, 0.0
    %v2262 = vmax.f32 %v1929, 0.0
    %v2263 = vmax.f32 %v2052, 0.0
    %v2264 = vmax.f32 %v2054, 0.0
    %v2265 = vmax.f32 %v2177, 0.0
    %v2266 = vmax.f32 %v2179, 0.0
    %v2267 = vmax.f32 %v308, 0.0
    %v2268 = vmax.f32 %v310, 0.0
    %v2269 = vmax.f32 %v433, 0.0
    %v2270 = vmax.f32 %v435, 0.0
    %v2271 = vmax.f32 %v558, 0.0
    %v2272 = vmax.f32 %v560, 0.0
    %v2273 = vmax.f32 %v683, 0.0
    %v2274 = vmax.f32 %v685, 0.0
    %v2275 = vmax.f32 %v808, 0.0
    %v2276 = vmax.f32 %v810, 0.0
    %v2277 = vmax.f32 %v933, 0.0
    %v2278 = vmax.f32 %v935, 0.0
    %v2279 = vmax.f32 %v1058, 0.0
    %v2280 = vmax.f32 %v1060, 0.0
    %v2281 = vmax.f32 %v1183, 0.0
    %v2282 = vmax.f32 %v1185, 0.0
    %v2283 = vmax.f32 %v1308, 0.0
    %v2284 = vmax.f32 %v1310, 0.0
    %v2285 = vmax.f32 %v1433, 0.0
    %v2286 = vmax.f32 %v1435, 0.0
    %v2287 = vmax.f32 %v1558, 0.0
    %v2288 = vmax.f32 %v1560, 0.0
    %v2289 = vmax.f32 %v1683, 0.0
    %v2290 = vmax.f32 %v1685, 0.0
    %v2291 = vmax.f32 %v1808, 0.0
    %v2292 = vmax.f32 %v1810, 0.0
    %v2293 = vmax.f32 %v1933, 0.0
    %v2294 = vmax.f32 %v1935, 0.0
    %v2295 = vmax.f32 %v2058, 0.0
    %v2296 = vmax.f32 %v2060, 0.0
    %v2297 = vmax.f32 %v2183, 0.0
    %v2298 = vmax.f32 %v2185, 0.0
    %v2299 = vmax.f32 %v314, 0.0
    %v2300 = vmax.f32 %v316, 0.0
    %v2301 = vmax.f32 %v439, 0.0
    %v2302 = vmax.f32 %v441, 0.0
    %v2303 = vmax.f32 %v564, 0.0
    %v2304 = vmax.f32 %v566, 0.0
    %v2305 = vmax.f32 %v689, 0.0
    %v2306 = vmax.f32 %v691, 0.0
    %v2307 = vmax.f32 %v814, 0.0
    %v2308 = vmax.f32 %v816, 0.0
    %v2309 = vmax.f32 %v939, 0.0
    %v2310 = vmax.f32 %v941, 0.0
    %v2311 = vmax.f32 %v1064, 0.0
    %v2312 = vmax.f32 %v1066, 0.0
    %v2313 = vmax.f32 %v1189, 0.0
    %v2314 = vmax.f32 %v1191, 0.0
    %v2315 = vmax.f32 %v1314, 0.0
    %v2316 = vmax.f32 %v1316, 0.0
    %v2317 = vmax.f32 %v1439, 0.0
    %v2318 = vmax.f32 %v1441, 0.0
    %v2319 = vmax.f32 %v1564, 0.0
    %v2320 = vmax.f32 %v1566, 0.0
    %v2321 = vmax.f32 %v1689, 0.0
    %v2322 = vmax.f32 %v1691, 0.0
    %v2323 = vmax.f32 %v1814, 0.0
    %v2324 = vmax.f32 %v1816, 0.0
    %v2325 = vmax.f32 %v1939, 0.0
    %v2326 = vmax.f32 %v1941, 0.0
    %v2327 = vmax.f32 %v2064, 0.0
    %v2328 = vmax.f32 %v2066, 0.0
    %v2329 = vmax.f32 %v2189, 0.0
    %v2330 = vmax.f32 %v2191, 0.0
    %v2331 = vmax.f32 %v320, 0.0
    %v2332 = vmax.f32 %v322, 0.0
    %v2333 = vmax.f32 %v445, 0.0
    %v2334 = vmax.f32 %v447, 0.0
    %v2335 = vmax.f32 %v570, 0.0
    %v2336 = vmax.f32 %v572, 0.0
    %v2337 = vmax.f32 %v695, 0.0
    %v2338 = vmax.f32 %v697, 0.0
    %v2339 = vmax.f32 %v820, 0.0
    %v2340 = vmax.f32 %v822, 0.0
    %v2341 = vmax.f32 %v945, 0.0
    %v2342 = vmax.f32 %v947, 0.0
    %v2343 = vmax.f32 %v1070, 0.0
    %v2344 = vmax.f32 %v1072, 0.0
    %v2345 = vmax.f32 %v1195, 0.0
    %v2346 = vmax.f32 %v1197, 0.0
    %v2347 = vmax.f32 %v1320, 0.0
    %v2348 = vmax.f32 %v1322, 0.0
    %v2349 = vmax.f32 %v1445, 0.0
    %v2350 = vmax.f32 %v1447, 0.0
    %v2351 = vmax.f32 %v1570, 0.0
    %v2352 = vmax.f32 %v1572, 0.0
    %v2353 = vmax.f32 %v1695, 0.0
    %v2354 = vmax.f32 %v1697, 0.0
    %v2355 = vmax.f32 %v1820, 0.0
    %v2356 = vmax.f32 %v1822, 0.0
    %v2357 = vmax.f32 %v1945, 0.0
    %v2358 = vmax.f32 %v1947, 0.0
    %v2359 = vmax.f32 %v2070, 0.0
    %v2360 = vmax.f32 %v2072, 0.0
    %v2361 = vmax.f32 %v2195, 0.0
    %v2362 = vmax.f32 %v2197, 0.0
    %v2363 = vmax.f32 %v326, 0.0
    %v2364 = vmax.f32 %v328, 0.0
    %v2365 = vmax.f32 %v451, 0.0
    %v2366 = vmax.f32 %v453, 0.0
    %v2367 = vmax.f32 %v576, 0.0
    %v2368 = vmax.f32 %v578, 0.0
    %v2369 = vmax.f32 %v701, 0.0
    %v2370 = vmax.f32 %v703, 0.0
    %v2371 = vmax.f32 %v826, 0.0
    %v2372 = vmax.f32 %v828, 0.0
    %v2373 = vmax.f32 %v951, 0.0
    %v2374 = vmax.f32 %v953, 0.0
    %v2375 = vmax.f32 %v1076, 0.0
    %v2376 = vmax.f32 %v1078, 0.0
    %v2377 = vmax.f32 %v1201, 0.0
    %v2378 = vmax.f32 %v1203, 0.0
    %v2379 = vmax.f32 %v1326, 0.0
    %v2380 = vmax.f32 %v1328, 0.0
    %v2381 = vmax.f32 %v1451, 0.0
    %v2382 = vmax.f32 %v1453, 0.0
    %v2383 = vmax.f32 %v1576, 0.0
    %v2384 = vmax.f32 %v1578, 0.0
    %v2385 = vmax.f32 %v1701, 0.0
    %v2386 = vmax.f32 %v1703, 0.0
    %v2387 = vmax.f32 %v1826, 0.0
    %v2388 = vmax.f32 %v1828, 0.0
    %v2389 = vmax.f32 %v1951, 0.0
    %v2390 = vmax.f32 %v1953, 0.0
    %v2391 = vmax.f32 %v2076, 0.0
    %v2392 = vmax.f32 %v2078, 0.0
    %v2393 = vmax.f32 %v2201, 0.0
    %v2394 = vmax.f32 %v2203, 0.0
    %v2395 = vmax.f32 %v332, 0.0
    %v2396 = vmax.f32 %v334, 0.0
    %v2397 = vmax.f32 %v457, 0.0
    %v2398 = vmax.f32 %v459, 0.0
    %v2399 = vmax.f32 %v582, 0.0
    %v2400 = vmax.f32 %v584, 0.0
    %v2401 = vmax.f32 %v707, 0.0
    %v2402 = vmax.f32 %v709, 0.0
    %v2403 = vmax.f32 %v832, 0.0
    %v2404 = vmax.f32 %v834, 0.0
    %v2405 = vmax.f32 %v957, 0.0
    %v2406 = vmax.f32 %v959, 0.0
    %v2407 = vmax.f32 %v1082, 0.0
    %v2408 = vmax.f32 %v1084, 0.0
    %v2409 = vmax.f32 %v1207, 0.0
    %v2410 = vmax.f32 %v1209, 0.0
    %v2411 = vmax.f32 %v1332, 0.0
    %v2412 = vmax.f32 %v1334, 0.0
    %v2413 = vmax.f32 %v1457, 0.0
    %v2414 = vmax.f32 %v1459, 0.0
    %v2415 = vmax.f32 %v1582, 0.0
    %v2416 = vmax.f32 %v1584, 0.0
    %v2417 = vmax.f32 %v1707, 0.0
    %v2418 = vmax.f32 %v1709, 0.0
    %v2419 = vmax.f32 %v1832, 0.0
    %v2420 = vmax.f32 %v1834, 0.0
    %v2421 = vmax.f32 %v1957, 0.0
    %v2422 = vmax.f32 %v1959, 0.0
    %v2423 = vmax.f32 %v2082, 0.0
    %v2424 = vmax.f32 %v2084, 0.0
    %v2425 = vmax.f32 %v2207, 0.0
    %v2426 = vmax.f32 %v2209, 0.0
    %v2427 = vmax.f32 %v338, 0.0
    %v2428 = vmax.f32 %v340, 0.0
    %v2429 = vmax.f32 %v463, 0.0
    %v2430 = vmax.f32 %v465, 0.0
    %v2431 = vmax.f32 %v588, 0.0
    %v2432 = vmax.f32 %v590, 0.0
    %v2433 = vmax.f32 %v713, 0.0
    %v2434 = vmax.f32 %v715, 0.0
    %v2435 = vmax.f32 %v838, 0.0
    %v2436 = vmax.f32 %v840, 0.0
    %v2437 = vmax.f32 %v963, 0.0
    %v2438 = vmax.f32 %v965, 0.0
    %v2439 = vmax.f32 %v1088, 0.0
    %v2440 = vmax.f32 %v1090, 0.0
    %v2441 = vmax.f32 %v1213, 0.0
    %v2442 = vmax.f32 %v1215, 0.0
    %v2443 = vmax.f32 %v1338, 0.0
    %v2444 = vmax.f32 %v1340, 0.0
    %v2445 = vmax.f32 %v1463, 0.0
    %v2446 = vmax.f32 %v1465, 0.0
    %v2447 = vmax.f32 %v1588, 0.0
    %v2448 = vmax.f32 %v1590, 0.0
    %v2449 = vmax.f32 %v1713, 0.0
    %v2450 = vmax.f32 %v1715, 0.0
    %v2451 = vmax.f32 %v1838, 0.0
    %v2452 = vmax.f32 %v1840, 0.0
    %v2453 = vmax.f32 %v1963, 0.0
    %v2454 = vmax.f32 %v1965, 0.0
    %v2455 = vmax.f32 %v2088, 0.0
    %v2456 = vmax.f32 %v2090, 0.0
    %v2457 = vmax.f32 %v2213, 0.0
    %v2458 = vmax.f32 %v2215, 0.0
    %v2459 = vmax.f32 %v344, 0.0
    %v2460 = vmax.f32 %v346, 0.0
    %v2461 = vmax.f32 %v469, 0.0
    %v2462 = vmax.f32 %v471, 0.0
    %v2463 = vmax.f32 %v594, 0.0
    %v2464 = vmax.f32 %v596, 0.0
    %v2465 = vmax.f32 %v719, 0.0
    %v2466 = vmax.f32 %v721, 0.0
    %v2467 = vmax.f32 %v844, 0.0
    %v2468 = vmax.f32 %v846, 0.0
    %v2469 = vmax.f32 %v969, 0.0
    %v2470 = vmax.f32 %v971, 0.0
    %v2471 = vmax.f32 %v1094, 0.0
    %v2472 = vmax.f32 %v1096, 0.0
    %v2473 = vmax.f32 %v1219, 0.0
    %v2474 = vmax.f32 %v1221, 0.0
    %v2475 = vmax.f32 %v1344, 0.0
    %v2476 = vmax.f32 %v1346, 0.0
    %v2477 = vmax.f32 %v1469, 0.0
    %v2478 = vmax.f32 %v1471, 0.0
    %v2479 = vmax.f32 %v1594, 0.0
    %v2480 = vmax.f32 %v1596, 0.0
    %v2481 = vmax.f32 %v1719, 0.0
    %v2482 = vmax.f32 %v1721, 0.0
    %v2483 = vmax.f32 %v1844, 0.0
    %v2484 = vmax.f32 %v1846, 0.0
    %v2485 = vmax.f32 %v1969, 0.0
    %v2486 = vmax.f32 %v1971, 0.0
    %v2487 = vmax.f32 %v2094, 0.0
    %v2488 = vmax.f32 %v2096, 0.0
    %v2489 = vmax.f32 %v2219, 0.0
    %v2490 = vmax.f32 %v2221, 0.0
    %v2491 = vmax.f32 %v350, 0.0
    %v2492 = vmax.f32 %v352, 0.0
    %v2493 = vmax.f32 %v475, 0.0
    %v2494 = vmax.f32 %v477, 0.0
    %v2495 = vmax.f32 %v600, 0.0
    %v2496 = vmax.f32 %v602, 0.0
    %v2497 = vmax.f32 %v725, 0.0
    %v2498 = vmax.f32 %v727, 0.0
    %v2499 = vmax.f32 %v850, 0.0
    %v2500 = vmax.f32 %v852, 0.0
    %v2501 = vmax.f32 %v975, 0.0
    %v2502 = vmax.f32 %v977, 0.0
    %v2503 = vmax.f32 %v1100, 0.0
    %v2504 = vmax.f32 %v1102, 0.0
    %v2505 = vmax.f32 %v1225, 0.0
    %v2506 = vmax.f32 %v1227, 0.0
    %v2507 = vmax.f32 %v1350, 0.0
    %v2508 = vmax.f32 %v1352, 0.0
    %v2509 = vmax.f32 %v1475, 0.0
    %v2510 = vmax.f32 %v1477, 0.0
    %v2511 = vmax.f32 %v1600, 0.0
    %v2512 = vmax.f32 %v1602, 0.0
    %v2513 = vmax.f32 %v1725, 0.0
    %v2514 = vmax.f32 %v1727, 0.0
    %v2515 = vmax.f32 %v1850, 0.0
    %v2516 = vmax.f32 %v1852, 0.0
    %v2517 = vmax.f32 %v1975, 0.0
    %v2518 = vmax.f32 %v1977, 0.0
    %v2519 = vmax.f32 %v2100, 0.0
    %v2520 = vmax.f32 %v2102, 0.0
    %v2521 = vmax.f32 %v2225, 0.0
    %v2522 = vmax.f32 %v2227, 0.0
    %v2523 = vmax.f32 %v356, 0.0
    %v2524 = vmax.f32 %v358, 0.0
    %v2525 = vmax.f32 %v481, 0.0
    %v2526 = vmax.f32 %v483, 0.0
    %v2527 = vmax.f32 %v606, 0.0
    %v2528 = vmax.f32 %v608, 0.0
    %v2529 = vmax.f32 %v731, 0.0
    %v2530 = vmax.f32 %v733, 0.0
    %v2531 = vmax.f32 %v856, 0.0
    %v2532 = vmax.f32 %v858, 0.0
    %v2533 = vmax.f32 %v981, 0.0
    %v2534 = vmax.f32 %v983, 0.0
    %v2535 = vmax.f32 %v1106, 0.0
    %v2536 = vmax.f32 %v1108, 0.0
    %v2537 = vmax.f32 %v1231, 0.0
    %v2538 = vmax.f32 %v1233, 0.0
    %v2539 = vmax.f32 %v1356, 0.0
    %v2540 = vmax.f32 %v1358, 0.0
    %v2541 = vmax.f32 %v1481, 0.0
    %v2542 = vmax.f32 %v1483, 0.0
    %v2543 = vmax.f32 %v1606, 0.0
    %v2544 = vmax.f32 %v1608, 0.0
    %v2545 = vmax.f32 %v1731, 0.0
    %v2546 = vmax.f32 %v1733, 0.0
    %v2547 = vmax.f32 %v1856, 0.0
    %v2548 = vmax.f32 %v1858, 0.0
    %v2549 = vmax.f32 %v1981, 0.0
    %v2550 = vmax.f32 %v1983, 0.0
    %v2551 = vmax.f32 %v2106, 0.0
    %v2552 = vmax.f32 %v2108, 0.0
    %v2553 = vmax.f32 %v2231, 0.0
    %v2554 = vmax.f32 %v2233, 0.0
    %v2555 = vld [vmem:[%s2] sm:$0xff]
    %v2556 = vld [vmem:[%s2 + $0x8] sm:$0xff]
    %v2557 = vld [vmem:[%s2 + $0x10] sm:$0xff]
    %v2558 = vld [vmem:[%s2 + $0x18] sm:$0xff]
    %v2559 = vld [vmem:[%s2 + $0x20] sm:$0xff]
    %v2560 = vld [vmem:[%s2 + $0x28] sm:$0xff]
    %v2561 = vld [vmem:[%s2 + $0x30] sm:$0xff]
    %v2562 = vld [vmem:[%s2 + $0x38] sm:$0xff]
    %v2563 = vld [vmem:[%s2 + $0x40] sm:$0xff]
    %v2564 = vld [vmem:[%s2 + $0x48] sm:$0xff]
    %v2565 = vld [vmem:[%s2 + $0x50] sm:$0xff]
    %v2566 = vld [vmem:[%s2 + $0x58] sm:$0xff]
    %v2567 = vld [vmem:[%s2 + $0x60] sm:$0xff]
    %v2568 = vld [vmem:[%s2 + $0x68] sm:$0xff]
    %v2569 = vld [vmem:[%s2 + $0x70] sm:$0xff]
    %v2570 = vld [vmem:[%s2 + $0x78] sm:$0xff]
    %v2571 = vld [vmem:[%s4] sm:$0xff]
    %v2572 = vld [vmem:[%s4 + $0x8] sm:$0xff]
    %v2573 = vld [vmem:[%s4 + $0x10] sm:$0xff]
    %v2574 = vld [vmem:[%s4 + $0x18] sm:$0xff]
    %v2575 = vld [vmem:[%s4 + $0x20] sm:$0xff]
    %v2576 = vld [vmem:[%s4 + $0x28] sm:$0xff]
    %v2577 = vld [vmem:[%s4 + $0x30] sm:$0xff]
    %v2578 = vld [vmem:[%s4 + $0x38] sm:$0xff]
    %v2579 = vld [vmem:[%s4 + $0x40] sm:$0xff]
    %v2580 = vld [vmem:[%s4 + $0x48] sm:$0xff]
    %v2581 = vld [vmem:[%s4 + $0x50] sm:$0xff]
    %v2582 = vld [vmem:[%s4 + $0x58] sm:$0xff]
    %v2583 = vld [vmem:[%s4 + $0x60] sm:$0xff]
    %v2584 = vld [vmem:[%s4 + $0x68] sm:$0xff]
    %v2585 = vld [vmem:[%s4 + $0x70] sm:$0xff]
    %v2586 = vld [vmem:[%s4 + $0x78] sm:$0xff]
    %2588 = vset.pattern.permute.xlu0 1
    %2589 = vperm.xlu0 %2588, %v2571
    %v2590 = vpop.permute.xlu0 %2589
    %2593 = vset.pattern.permute.xlu0 1
    %2594 = vperm.xlu0 %2593, %v2572
    %v2595 = vpop.permute.xlu0 %2594
    %2598 = vset.pattern.permute.xlu0 1
    %2599 = vperm.xlu0 %2598, %v2573
    %v2600 = vpop.permute.xlu0 %2599
    %2603 = vset.pattern.permute.xlu0 1
    %2604 = vperm.xlu0 %2603, %v2574
    %v2605 = vpop.permute.xlu0 %2604
    %2608 = vset.pattern.permute.xlu0 1
    %2609 = vperm.xlu0 %2608, %v2575
    %v2610 = vpop.permute.xlu0 %2609
    %2613 = vset.pattern.permute.xlu0 1
    %2614 = vperm.xlu0 %2613, %v2576
    %v2615 = vpop.permute.xlu0 %2614
    %2618 = vset.pattern.permute.xlu0 1
    %2619 = vperm.xlu0 %2618, %v2577
    %v2620 = vpop.permute.xlu0 %2619
    %2623 = vset.pattern.permute.xlu0 1
    %2624 = vperm.xlu0 %2623, %v2578
    %v2625 = vpop.permute.xlu0 %2624
    %2628 = vset.pattern.permute.xlu0 1
    %2629 = vperm.xlu0 %2628, %v2579
    %v2630 = vpop.permute.xlu0 %2629
    %2633 = vset.pattern.permute.xlu0 1
    %2634 = vperm.xlu0 %2633, %v2580
    %v2635 = vpop.permute.xlu0 %2634
    %2638 = vset.pattern.permute.xlu0 1
    %2639 = vperm.xlu0 %2638, %v2581
    %v2640 = vpop.permute.xlu0 %2639
    %2643 = vset.pattern.permute.xlu0 1
    %2644 = vperm.xlu0 %2643, %v2582
    %v2645 = vpop.permute.xlu0 %2644
    %2648 = vset.pattern.permute.xlu0 1
    %2649 = vperm.xlu0 %2648, %v2583
    %v2650 = vpop.permute.xlu0 %2649
    %2653 = vset.pattern.permute.xlu0 1
    %2654 = vperm.xlu0 %2653, %v2584
    %v2655 = vpop.permute.xlu0 %2654
    %2658 = vset.pattern.permute.xlu0 1
    %2659 = vperm.xlu0 %2658, %v2585
    %v2660 = vpop.permute.xlu0 %2659
    %2663 = vset.pattern.permute.xlu0 1
    %2664 = vperm.xlu0 %2663, %v2586
    %v2665 = vpop.permute.xlu0 %2664
    %vm2667 = vcmask 654336
    %v2669 = vsel %vm2667, %v2555, 0
    %v2672 = vsel %vm2667, %v2556, 0
    %v2675 = vsel %vm2667, %v2557, 0
    %v2678 = vsel %vm2667, %v2558, 0
    %v2681 = vsel %vm2667, %v2559, 0
    %v2684 = vsel %vm2667, %v2560, 0
    %v2687 = vsel %vm2667, %v2561, 0
    %v2690 = vsel %vm2667, %v2562, 0
    %v2693 = vsel %vm2667, %v2563, 0
    %v2696 = vsel %vm2667, %v2564, 0
    %v2699 = vsel %vm2667, %v2565, 0
    %v2702 = vsel %vm2667, %v2566, 0
    %v2705 = vsel %vm2667, %v2567, 0
    %v2708 = vsel %vm2667, %v2568, 0
    %v2711 = vsel %vm2667, %v2569, 0
    %v2714 = vsel %vm2667, %v2570, 0
    %2716 = vmatprep.subr.mxu0 0.0
    %2717 = vmatpush1.msra.mxu0 0.0
    %2718 = vmatprep.subr.mxu0 0.0
    %2719 = vmatpush1.msra.mxu0 0.0
    %2720 = vmatprep.subr.mxu0 0.0
    %2721 = vmatpush1.msra.mxu0 0.0
    %2722 = vmatprep.subr.mxu0 0.0
    %2723 = vmatpush1.msra.mxu0 0.0
    %2724 = vmatprep.subr.mxu0 0.0
    %2725 = vmatpush1.msra.mxu0 0.0
    %2726 = vmatprep.subr.mxu0 0.0
    %2727 = vmatpush1.msra.mxu0 0.0
    %2728 = vmatprep.subr.mxu0 %v2524
    %2729 = vmatpush1.msra.mxu0 %v2523
    %2730 = vmatprep.subr.mxu0 %v2492
    %2731 = vmatpush1.msra.mxu0 %v2491
    %2732 = vmatprep.subr.mxu0 %v2460
    %2733 = vmatpush1.msra.mxu0 %v2459
    %2734 = vmatprep.subr.mxu0 %v2428
    %2735 = vmatpush1.msra.mxu0 %v2427
    %2736 = vmatprep.subr.mxu0 %v2396
    %2737 = vmatpush1.msra.mxu0 %v2395
    %2738 = vmatprep.subr.mxu0 %v2364
    %2739 = vmatpush1.msra.mxu0 %v2363
    %2740 = vmatprep.subr.mxu0 %v2332
    %2741 = vmatpush1.msra.mxu0 %v2331
    %2742 = vmatprep.subr.mxu0 %v2300
    %2743 = vmatpush1.msra.mxu0 %v2299
    %2744 = vmatprep.subr.mxu0 %v2268
    %2745 = vmatpush1.msra.mxu0 %v2267
    %2746 = vmatprep.subr.mxu0 %v2236
    %2747 = vmatpush1.msra.mxu0 %v2235
    %2748 = vmatprep.subr.mxu0 0.0
    %2749 = vmatpush2.msra.mxu0 0.0
    %2750 = vmatprep.subr.mxu0 0.0
    %2751 = vmatpush2.msra.mxu0 0.0
    %2752 = vmatprep.subr.mxu0 0.0
    %2753 = vmatpush2.msra.mxu0 0.0
    %2754 = vmatprep.subr.mxu0 0.0
    %2755 = vmatpush2.msra.mxu0 0.0
    %2756 = vmatprep.subr.mxu0 0.0
    %2757 = vmatpush2.msra.mxu0 0.0
    %2758 = vmatprep.subr.mxu0 0.0
    %2759 = vmatpush2.msra.mxu0 0.0
    %2760 = vmatprep.subr.mxu0 0.0
    %2761 = vmatpush2.msra.mxu0 0.0
    %2762 = vmatprep.subr.mxu0 0.0
    %2763 = vmatpush2.msra.mxu0 0.0
    %2764 = vmatprep.subr.mxu0 0.0
    %2765 = vmatpush2.msra.mxu0 0.0
    %2766 = vmatprep.subr.mxu0 0.0
    %2767 = vmatpush2.msra.mxu0 0.0
    %2768 = vmatprep.subr.mxu0 0.0
    %2769 = vmatpush2.msra.mxu0 0.0
    %2770 = vmatprep.subr.mxu0 0.0
    %2771 = vmatpush2.msra.mxu0 0.0
    %2772 = vmatprep.subr.mxu0 0.0
    %2773 = vmatpush2.msra.mxu0 0.0
    %2774 = vmatprep.subr.mxu0 0.0
    %2775 = vmatpush2.msra.mxu0 0.0
    %2776 = vmatprep.subr.mxu0 0.0
    %2777 = vmatpush2.msra.mxu0 0.0
    %2778 = vmatprep.subr.mxu0 0.0
    %2779 = vmatpush2.msra.mxu0 0.0
    %2780 = vmatprep.mubr.f32.mxu0 0.0
    %2781 = vmatmul.mubr.f32.gmra.mxu0 %v2669
    %v2782 = vpop.f32.mrf.mxu0
    %v2783 = vadd.f32 %v2590, %v2782
    %v2784 = vpop.f32.mrf.mxu0
    %v2785 = vadd.f32 %v2590, %v2784
    %2786 = vmatprep.mubr.f32.mxu0 0.0
    %2787 = vmatmul.mubr.f32.gmra.mxu0 %v2672
    %v2788 = vpop.f32.mrf.mxu0
    %v2789 = vadd.f32 %v2595, %v2788
    %v2790 = vpop.f32.mrf.mxu0
    %v2791 = vadd.f32 %v2595, %v2790
    %2792 = vmatprep.mubr.f32.mxu0 0.0
    %2793 = vmatmul.mubr.f32.gmra.mxu0 %v2675
    %v2794 = vpop.f32.mrf.mxu0
    %v2795 = vadd.f32 %v2600, %v2794
    %v2796 = vpop.f32.mrf.mxu0
    %v2797 = vadd.f32 %v2600, %v2796
    %2798 = vmatprep.mubr.f32.mxu0 0.0
    %2799 = vmatmul.mubr.f32.gmra.mxu0 %v2678
    %v2800 = vpop.f32.mrf.mxu0
    %v2801 = vadd.f32 %v2605, %v2800
    %v2802 = vpop.f32.mrf.mxu0
    %v2803 = vadd.f32 %v2605, %v2802
    %2804 = vmatprep.mubr.f32.mxu0 0.0
    %2805 = vmatmul.mubr.f32.gmra.mxu0 %v2681
    %v2806 = vpop.f32.mrf.mxu0
    %v2807 = vadd.f32 %v2610, %v2806
    %v2808 = vpop.f32.mrf.mxu0
    %v2809 = vadd.f32 %v2610, %v2808
    %2810 = vmatprep.mubr.f32.mxu0 0.0
    %2811 = vmatmul.mubr.f32.gmra.mxu0 %v2684
    %v2812 = vpop.f32.mrf.mxu0
    %v2813 = vadd.f32 %v2615, %v2812
    %v2814 = vpop.f32.mrf.mxu0
    %v2815 = vadd.f32 %v2615, %v2814
    %2816 = vmatprep.mubr.f32.mxu0 0.0
    %2817 = vmatmul.mubr.f32.gmra.mxu0 %v2687
    %v2818 = vpop.f32.mrf.mxu0
    %v2819 = vadd.f32 %v2620, %v2818
    %v2820 = vpop.f32.mrf.mxu0
    %v2821 = vadd.f32 %v2620, %v2820
    %2822 = vmatprep.mubr.f32.mxu0 0.0
    %2823 = vmatmul.mubr.f32.gmra.mxu0 %v2690
    %v2824 = vpop.f32.mrf.mxu0
    %v2825 = vadd.f32 %v2625, %v2824
    %v2826 = vpop.f32.mrf.mxu0
    %v2827 = vadd.f32 %v2625, %v2826
    %2828 = vmatprep.mubr.f32.mxu0 0.0
    %2829 = vmatmul.mubr.f32.gmra.mxu0 %v2693
    %v2830 = vpop.f32.mrf.mxu0
    %v2831 = vadd.f32 %v2630, %v2830
    %v2832 = vpop.f32.mrf.mxu0
    %v2833 = vadd.f32 %v2630, %v2832
    %2834 = vmatprep.mubr.f32.mxu0 0.0
    %2835 = vmatmul.mubr.f32.gmra.mxu0 %v2696
    %v2836 = vpop.f32.mrf.mxu0
    %v2837 = vadd.f32 %v2635, %v2836
    %v2838 = vpop.f32.mrf.mxu0
    %v2839 = vadd.f32 %v2635, %v2838
    %2840 = vmatprep.mubr.f32.mxu0 0.0
    %2841 = vmatmul.mubr.f32.gmra.mxu0 %v2699
    %v2842 = vpop.f32.mrf.mxu0
    %v2843 = vadd.f32 %v2640, %v2842
    %v2844 = vpop.f32.mrf.mxu0
    %v2845 = vadd.f32 %v2640, %v2844
    %2846 = vmatprep.mubr.f32.mxu0 0.0
    %2847 = vmatmul.mubr.f32.gmra.mxu0 %v2702
    %v2848 = vpop.f32.mrf.mxu0
    %v2849 = vadd.f32 %v2645, %v2848
    %v2850 = vpop.f32.mrf.mxu0
    %v2851 = vadd.f32 %v2645, %v2850
    %2852 = vmatprep.mubr.f32.mxu0 0.0
    %2853 = vmatmul.mubr.f32.gmra.mxu0 %v2705
    %v2854 = vpop.f32.mrf.mxu0
    %v2855 = vadd.f32 %v2650, %v2854
    %v2856 = vpop.f32.mrf.mxu0
    %v2857 = vadd.f32 %v2650, %v2856
    %2858 = vmatprep.mubr.f32.mxu0 0.0
    %2859 = vmatmul.mubr.f32.gmra.mxu0 %v2708
    %v2860 = vpop.f32.mrf.mxu0
    %v2861 = vadd.f32 %v2655, %v2860
    %v2862 = vpop.f32.mrf.mxu0
    %v2863 = vadd.f32 %v2655, %v2862
    %2864 = vmatprep.mubr.f32.mxu0 0.0
    %2865 = vmatmul.mubr.f32.gmra.mxu0 %v2711
    %v2866 = vpop.f32.mrf.mxu0
    %v2867 = vadd.f32 %v2660, %v2866
    %v2868 = vpop.f32.mrf.mxu0
    %v2869 = vadd.f32 %v2660, %v2868
    %2870 = vmatprep.mubr.f32.mxu0 0.0
    %2871 = vmatmul.mubr.f32.gmra.mxu0 %v2714
    %v2872 = vpop.f32.mrf.mxu0
    %v2873 = vadd.f32 %v2665, %v2872
    %v2874 = vpop.f32.mrf.mxu0
    %v2875 = vadd.f32 %v2665, %v2874
    %2876 = vdwg.mxu0
    %2877 = vmatprep.subr.mxu0 0.0
    %2878 = vmatpush1.msra.mxu0 0.0
    %2879 = vmatprep.subr.mxu0 0.0
    %2880 = vmatpush1.msra.mxu0 0.0
    %2881 = vmatprep.subr.mxu0 0.0
    %2882 = vmatpush1.msra.mxu0 0.0
    %2883 = vmatprep.subr.mxu0 0.0
    %2884 = vmatpush1.msra.mxu0 0.0
    %2885 = vmatprep.subr.mxu0 0.0
    %2886 = vmatpush1.msra.mxu0 0.0
    %2887 = vmatprep.subr.mxu0 0.0
    %2888 = vmatpush1.msra.mxu0 0.0
    %2889 = vmatprep.subr.mxu0 %v2526
    %2890 = vmatpush1.msra.mxu0 %v2525
    %2891 = vmatprep.subr.mxu0 %v2494
    %2892 = vmatpush1.msra.mxu0 %v2493
    %2893 = vmatprep.subr.mxu0 %v2462
    %2894 = vmatpush1.msra.mxu0 %v2461
    %2895 = vmatprep.subr.mxu0 %v2430
    %2896 = vmatpush1.msra.mxu0 %v2429
    %2897 = vmatprep.subr.mxu0 %v2398
    %2898 = vmatpush1.msra.mxu0 %v2397
    %2899 = vmatprep.subr.mxu0 %v2366
    %2900 = vmatpush1.msra.mxu0 %v2365
    %2901 = vmatprep.subr.mxu0 %v2334
    %2902 = vmatpush1.msra.mxu0 %v2333
    %2903 = vmatprep.subr.mxu0 %v2302
    %2904 = vmatpush1.msra.mxu0 %v2301
    %2905 = vmatprep.subr.mxu0 %v2270
    %2906 = vmatpush1.msra.mxu0 %v2269
    %2907 = vmatprep.subr.mxu0 %v2238
    %2908 = vmatpush1.msra.mxu0 %v2237
    %2909 = vmatprep.subr.mxu0 0.0
    %2910 = vmatpush2.msra.mxu0 0.0
    %2911 = vmatprep.subr.mxu0 0.0
    %2912 = vmatpush2.msra.mxu0 0.0
    %2913 = vmatprep.subr.mxu0 0.0
    %2914 = vmatpush2.msra.mxu0 0.0
    %2915 = vmatprep.subr.mxu0 0.0
    %2916 = vmatpush2.msra.mxu0 0.0
    %2917 = vmatprep.subr.mxu0 0.0
    %2918 = vmatpush2.msra.mxu0 0.0
    %2919 = vmatprep.subr.mxu0 0.0
    %2920 = vmatpush2.msra.mxu0 0.0
    %2921 = vmatprep.subr.mxu0 0.0
    %2922 = vmatpush2.msra.mxu0 0.0
    %2923 = vmatprep.subr.mxu0 0.0
    %2924 = vmatpush2.msra.mxu0 0.0
    %2925 = vmatprep.subr.mxu0 0.0
    %2926 = vmatpush2.msra.mxu0 0.0
    %2927 = vmatprep.subr.mxu0 0.0
    %2928 = vmatpush2.msra.mxu0 0.0
    %2929 = vmatprep.subr.mxu0 0.0
    %2930 = vmatpush2.msra.mxu0 0.0
    %2931 = vmatprep.subr.mxu0 0.0
    %2932 = vmatpush2.msra.mxu0 0.0
    %2933 = vmatprep.subr.mxu0 0.0
    %2934 = vmatpush2.msra.mxu0 0.0
    %2935 = vmatprep.subr.mxu0 0.0
    %2936 = vmatpush2.msra.mxu0 0.0
    %2937 = vmatprep.subr.mxu0 0.0
    %2938 = vmatpush2.msra.mxu0 0.0
    %2939 = vmatprep.subr.mxu0 0.0
    %2940 = vmatpush2.msra.mxu0 0.0
    %2941 = vmatprep.mubr.f32.mxu0 0.0
    %2942 = vmatmul.mubr.f32.gmra.mxu0 %v2669
    %v2943 = vpop.f32.mrf.mxu0
    %v2944 = vadd.f32 %v2590, %v2943
    %v2945 = vpop.f32.mrf.mxu0
    %v2946 = vadd.f32 %v2590, %v2945
    %2947 = vmatprep.mubr.f32.mxu0 0.0
    %2948 = vmatmul.mubr.f32.gmra.mxu0 %v2672
    %v2949 = vpop.f32.mrf.mxu0
    %v2950 = vadd.f32 %v2595, %v2949
    %v2951 = vpop.f32.mrf.mxu0
    %v2952 = vadd.f32 %v2595, %v2951
    %2953 = vmatprep.mubr.f32.mxu0 0.0
    %2954 = vmatmul.mubr.f32.gmra.mxu0 %v2675
    %v2955 = vpop.f32.mrf.mxu0
    %v2956 = vadd.f32 %v2600, %v2955
    %v2957 = vpop.f32.mrf.mxu0
    %v2958 = vadd.f32 %v2600, %v2957
    %2959 = vmatprep.mubr.f32.mxu0 0.0
    %2960 = vmatmul.mubr.f32.gmra.mxu0 %v2678
    %v2961 = vpop.f32.mrf.mxu0
    %v2962 = vadd.f32 %v2605, %v2961
    %v2963 = vpop.f32.mrf.mxu0
    %v2964 = vadd.f32 %v2605, %v2963
    %2965 = vmatprep.mubr.f32.mxu0 0.0
    %2966 = vmatmul.mubr.f32.gmra.mxu0 %v2681
    %v2967 = vpop.f32.mrf.mxu0
    %v2968 = vadd.f32 %v2610, %v2967
    %v2969 = vpop.f32.mrf.mxu0
    %v2970 = vadd.f32 %v2610, %v2969
    %2971 = vmatprep.mubr.f32.mxu0 0.0
    %2972 = vmatmul.mubr.f32.gmra.mxu0 %v2684
    %v2973 = vpop.f32.mrf.mxu0
    %v2974 = vadd.f32 %v2615, %v2973
    %v2975 = vpop.f32.mrf.mxu0
    %v2976 = vadd.f32 %v2615, %v2975
    %2977 = vmatprep.mubr.f32.mxu0 0.0
    %2978 = vmatmul.mubr.f32.gmra.mxu0 %v2687
    %v2979 = vpop.f32.mrf.mxu0
    %v2980 = vadd.f32 %v2620, %v2979
    %v2981 = vpop.f32.mrf.mxu0
    %v2982 = vadd.f32 %v2620, %v2981
    %2983 = vmatprep.mubr.f32.mxu0 0.0
    %2984 = vmatmul.mubr.f32.gmra.mxu0 %v2690
    %v2985 = vpop.f32.mrf.mxu0
    %v2986 = vadd.f32 %v2625, %v2985
    %v2987 = vpop.f32.mrf.mxu0
    %v2988 = vadd.f32 %v2625, %v2987
    %2989 = vmatprep.mubr.f32.mxu0 0.0
    %2990 = vmatmul.mubr.f32.gmra.mxu0 %v2693
    %v2991 = vpop.f32.mrf.mxu0
    %v2992 = vadd.f32 %v2630, %v2991
    %v2993 = vpop.f32.mrf.mxu0
    %v2994 = vadd.f32 %v2630, %v2993
    %2995 = vmatprep.mubr.f32.mxu0 0.0
    %2996 = vmatmul.mubr.f32.gmra.mxu0 %v2696
    %v2997 = vpop.f32.mrf.mxu0
    %v2998 = vadd.f32 %v2635, %v2997
    %v2999 = vpop.f32.mrf.mxu0
    %v3000 = vadd.f32 %v2635, %v2999
    %3001 = vmatprep.mubr.f32.mxu0 0.0
    %3002 = vmatmul.mubr.f32.gmra.mxu0 %v2699
    %v3003 = vpop.f32.mrf.mxu0
    %v3004 = vadd.f32 %v2640, %v3003
    %v3005 = vpop.f32.mrf.mxu0
    %v3006 = vadd.f32 %v2640, %v3005
    %3007 = vmatprep.mubr.f32.mxu0 0.0
    %3008 = vmatmul.mubr.f32.gmra.mxu0 %v2702
    %v3009 = vpop.f32.mrf.mxu0
    %v3010 = vadd.f32 %v2645, %v3009
    %v3011 = vpop.f32.mrf.mxu0
    %v3012 = vadd.f32 %v2645, %v3011
    %3013 = vmatprep.mubr.f32.mxu0 0.0
    %3014 = vmatmul.mubr.f32.gmra.mxu0 %v2705
    %v3015 = vpop.f32.mrf.mxu0
    %v3016 = vadd.f32 %v2650, %v3015
    %v3017 = vpop.f32.mrf.mxu0
    %v3018 = vadd.f32 %v2650, %v3017
    %3019 = vmatprep.mubr.f32.mxu0 0.0
    %3020 = vmatmul.mubr.f32.gmra.mxu0 %v2708
    %v3021 = vpop.f32.mrf.mxu0
    %v3022 = vadd.f32 %v2655, %v3021
    %v3023 = vpop.f32.mrf.mxu0
    %v3024 = vadd.f32 %v2655, %v3023
    %3025 = vmatprep.mubr.f32.mxu0 0.0
    %3026 = vmatmul.mubr.f32.gmra.mxu0 %v2711
    %v3027 = vpop.f32.mrf.mxu0
    %v3028 = vadd.f32 %v2660, %v3027
    %v3029 = vpop.f32.mrf.mxu0
    %v3030 = vadd.f32 %v2660, %v3029
    %3031 = vmatprep.mubr.f32.mxu0 0.0
    %3032 = vmatmul.mubr.f32.gmra.mxu0 %v2714
    %v3033 = vpop.f32.mrf.mxu0
    %v3034 = vadd.f32 %v2665, %v3033
    %v3035 = vpop.f32.mrf.mxu0
    %v3036 = vadd.f32 %v2665, %v3035
    %3037 = vdwg.mxu0
    %3038 = vmatprep.subr.mxu0 0.0
    %3039 = vmatpush1.msra.mxu0 0.0
    %3040 = vmatprep.subr.mxu0 0.0
    %3041 = vmatpush1.msra.mxu0 0.0
    %3042 = vmatprep.subr.mxu0 0.0
    %3043 = vmatpush1.msra.mxu0 0.0
    %3044 = vmatprep.subr.mxu0 0.0
    %3045 = vmatpush1.msra.mxu0 0.0
    %3046 = vmatprep.subr.mxu0 0.0
    %3047 = vmatpush1.msra.mxu0 0.0
    %3048 = vmatprep.subr.mxu0 0.0
    %3049 = vmatpush1.msra.mxu0 0.0
    %3050 = vmatprep.subr.mxu0 %v2528
    %3051 = vmatpush1.msra.mxu0 %v2527
    %3052 = vmatprep.subr.mxu0 %v2496
    %3053 = vmatpush1.msra.mxu0 %v2495
    %3054 = vmatprep.subr.mxu0 %v2464
    %3055 = vmatpush1.msra.mxu0 %v2463
    %3056 = vmatprep.subr.mxu0 %v2432
    %3057 = vmatpush1.msra.mxu0 %v2431
    %3058 = vmatprep.subr.mxu0 %v2400
    %3059 = vmatpush1.msra.mxu0 %v2399
    %3060 = vmatprep.subr.mxu0 %v2368
    %3061 = vmatpush1.msra.mxu0 %v2367
    %3062 = vmatprep.subr.mxu0 %v2336
    %3063 = vmatpush1.msra.mxu0 %v2335
    %3064 = vmatprep.subr.mxu0 %v2304
    %3065 = vmatpush1.msra.mxu0 %v2303
    %3066 = vmatprep.subr.mxu0 %v2272
    %3067 = vmatpush1.msra.mxu0 %v2271
    %3068 = vmatprep.subr.mxu0 %v2240
    %3069 = vmatpush1.msra.mxu0 %v2239
    %3070 = vmatprep.subr.mxu0 0.0
    %3071 = vmatpush2.msra.mxu0 0.0
    %3072 = vmatprep.subr.mxu0 0.0
    %3073 = vmatpush2.msra.mxu0 0.0
    %3074 = vmatprep.subr.mxu0 0.0
    %3075 = vmatpush2.msra.mxu0 0.0
    %3076 = vmatprep.subr.mxu0 0.0
    %3077 = vmatpush2.msra.mxu0 0.0
    %3078 = vmatprep.subr.mxu0 0.0
    %3079 = vmatpush2.msra.mxu0 0.0
    %3080 = vmatprep.subr.mxu0 0.0
    %3081 = vmatpush2.msra.mxu0 0.0
    %3082 = vmatprep.subr.mxu0 0.0
    %3083 = vmatpush2.msra.mxu0 0.0
    %3084 = vmatprep.subr.mxu0 0.0
    %3085 = vmatpush2.msra.mxu0 0.0
    %3086 = vmatprep.subr.mxu0 0.0
    %3087 = vmatpush2.msra.mxu0 0.0
    %3088 = vmatprep.subr.mxu0 0.0
    %3089 = vmatpush2.msra.mxu0 0.0
    %3090 = vmatprep.subr.mxu0 0.0
    %3091 = vmatpush2.msra.mxu0 0.0
    %3092 = vmatprep.subr.mxu0 0.0
    %3093 = vmatpush2.msra.mxu0 0.0
    %3094 = vmatprep.subr.mxu0 0.0
    %3095 = vmatpush2.msra.mxu0 0.0
    %3096 = vmatprep.subr.mxu0 0.0
    %3097 = vmatpush2.msra.mxu0 0.0
    %3098 = vmatprep.subr.mxu0 0.0
    %3099 = vmatpush2.msra.mxu0 0.0
    %3100 = vmatprep.subr.mxu0 0.0
    %3101 = vmatpush2.msra.mxu0 0.0
    %3102 = vmatprep.mubr.f32.mxu0 0.0
    %3103 = vmatmul.mubr.f32.gmra.mxu0 %v2669
    %v3104 = vpop.f32.mrf.mxu0
    %v3105 = vadd.f32 %v2590, %v3104
    %v3106 = vpop.f32.mrf.mxu0
    %v3107 = vadd.f32 %v2590, %v3106
    %3108 = vmatprep.mubr.f32.mxu0 0.0
    %3109 = vmatmul.mubr.f32.gmra.mxu0 %v2672
    %v3110 = vpop.f32.mrf.mxu0
    %v3111 = vadd.f32 %v2595, %v3110
    %v3112 = vpop.f32.mrf.mxu0
    %v3113 = vadd.f32 %v2595, %v3112
    %3114 = vmatprep.mubr.f32.mxu0 0.0
    %3115 = vmatmul.mubr.f32.gmra.mxu0 %v2675
    %v3116 = vpop.f32.mrf.mxu0
    %v3117 = vadd.f32 %v2600, %v3116
    %v3118 = vpop.f32.mrf.mxu0
    %v3119 = vadd.f32 %v2600, %v3118
    %3120 = vmatprep.mubr.f32.mxu0 0.0
    %3121 = vmatmul.mubr.f32.gmra.mxu0 %v2678
    %v3122 = vpop.f32.mrf.mxu0
    %v3123 = vadd.f32 %v2605, %v3122
    %v3124 = vpop.f32.mrf.mxu0
    %v3125 = vadd.f32 %v2605, %v3124
    %3126 = vmatprep.mubr.f32.mxu0 0.0
    %3127 = vmatmul.mubr.f32.gmra.mxu0 %v2681
    %v3128 = vpop.f32.mrf.mxu0
    %v3129 = vadd.f32 %v2610, %v3128
    %v3130 = vpop.f32.mrf.mxu0
    %v3131 = vadd.f32 %v2610, %v3130
    %3132 = vmatprep.mubr.f32.mxu0 0.0
    %3133 = vmatmul.mubr.f32.gmra.mxu0 %v2684
    %v3134 = vpop.f32.mrf.mxu0
    %v3135 = vadd.f32 %v2615, %v3134
    %v3136 = vpop.f32.mrf.mxu0
    %v3137 = vadd.f32 %v2615, %v3136
    %3138 = vmatprep.mubr.f32.mxu0 0.0
    %3139 = vmatmul.mubr.f32.gmra.mxu0 %v2687
    %v3140 = vpop.f32.mrf.mxu0
    %v3141 = vadd.f32 %v2620, %v3140
    %v3142 = vpop.f32.mrf.mxu0
    %v3143 = vadd.f32 %v2620, %v3142
    %3144 = vmatprep.mubr.f32.mxu0 0.0
    %3145 = vmatmul.mubr.f32.gmra.mxu0 %v2690
    %v3146 = vpop.f32.mrf.mxu0
    %v3147 = vadd.f32 %v2625, %v3146
    %v3148 = vpop.f32.mrf.mxu0
    %v3149 = vadd.f32 %v2625, %v3148
    %3150 = vmatprep.mubr.f32.mxu0 0.0
    %3151 = vmatmul.mubr.f32.gmra.mxu0 %v2693
    %v3152 = vpop.f32.mrf.mxu0
    %v3153 = vadd.f32 %v2630, %v3152
    %v3154 = vpop.f32.mrf.mxu0
    %v3155 = vadd.f32 %v2630, %v3154
    %3156 = vmatprep.mubr.f32.mxu0 0.0
    %3157 = vmatmul.mubr.f32.gmra.mxu0 %v2696
    %v3158 = vpop.f32.mrf.mxu0
    %v3159 = vadd.f32 %v2635, %v3158
    %v3160 = vpop.f32.mrf.mxu0
    %v3161 = vadd.f32 %v2635, %v3160
    %3162 = vmatprep.mubr.f32.mxu0 0.0
    %3163 = vmatmul.mubr.f32.gmra.mxu0 %v2699
    %v3164 = vpop.f32.mrf.mxu0
    %v3165 = vadd.f32 %v2640, %v3164
    %v3166 = vpop.f32.mrf.mxu0
    %v3167 = vadd.f32 %v2640, %v3166
    %3168 = vmatprep.mubr.f32.mxu0 0.0
    %3169 = vmatmul.mubr.f32.gmra.mxu0 %v2702
    %v3170 = vpop.f32.mrf.mxu0
    %v3171 = vadd.f32 %v2645, %v3170
    %v3172 = vpop.f32.mrf.mxu0
    %v3173 = vadd.f32 %v2645, %v3172
    %3174 = vmatprep.mubr.f32.mxu0 0.0
    %3175 = vmatmul.mubr.f32.gmra.mxu0 %v2705
    %v3176 = vpop.f32.mrf.mxu0
    %v3177 = vadd.f32 %v2650, %v3176
    %v3178 = vpop.f32.mrf.mxu0
    %v3179 = vadd.f32 %v2650, %v3178
    %3180 = vmatprep.mubr.f32.mxu0 0.0
    %3181 = vmatmul.mubr.f32.gmra.mxu0 %v2708
    %v3182 = vpop.f32.mrf.mxu0
    %v3183 = vadd.f32 %v2655, %v3182
    %v3184 = vpop.f32.mrf.mxu0
    %v3185 = vadd.f32 %v2655, %v3184
    %3186 = vmatprep.mubr.f32.mxu0 0.0
    %3187 = vmatmul.mubr.f32.gmra.mxu0 %v2711
    %v3188 = vpop.f32.mrf.mxu0
    %v3189 = vadd.f32 %v2660, %v3188
    %v3190 = vpop.f32.mrf.mxu0
    %v3191 = vadd.f32 %v2660, %v3190
    %3192 = vmatprep.mubr.f32.mxu0 0.0
    %3193 = vmatmul.mubr.f32.gmra.mxu0 %v2714
    %v3194 = vpop.f32.mrf.mxu0
    %v3195 = vadd.f32 %v2665, %v3194
    %v3196 = vpop.f32.mrf.mxu0
    %v3197 = vadd.f32 %v2665, %v3196
    %3198 = vdwg.mxu0
    %3199 = vmatprep.subr.mxu0 0.0
    %3200 = vmatpush1.msra.mxu0 0.0
    %3201 = vmatprep.subr.mxu0 0.0
    %3202 = vmatpush1.msra.mxu0 0.0
    %3203 = vmatprep.subr.mxu0 0.0
    %3204 = vmatpush1.msra.mxu0 0.0
    %3205 = vmatprep.subr.mxu0 0.0
    %3206 = vmatpush1.msra.mxu0 0.0
    %3207 = vmatprep.subr.mxu0 0.0
    %3208 = vmatpush1.msra.mxu0 0.0
    %3209 = vmatprep.subr.mxu0 0.0
    %3210 = vmatpush1.msra.mxu0 0.0
    %3211 = vmatprep.subr.mxu0 %v2530
    %3212 = vmatpush1.msra.mxu0 %v2529
    %3213 = vmatprep.subr.mxu0 %v2498
    %3214 = vmatpush1.msra.mxu0 %v2497
    %3215 = vmatprep.subr.mxu0 %v2466
    %3216 = vmatpush1.msra.mxu0 %v2465
    %3217 = vmatprep.subr.mxu0 %v2434
    %3218 = vmatpush1.msra.mxu0 %v2433
    %3219 = vmatprep.subr.mxu0 %v2402
    %3220 = vmatpush1.msra.mxu0 %v2401
    %3221 = vmatprep.subr.mxu0 %v2370
    %3222 = vmatpush1.msra.mxu0 %v2369
    %3223 = vmatprep.subr.mxu0 %v2338
    %3224 = vmatpush1.msra.mxu0 %v2337
    %3225 = vmatprep.subr.mxu0 %v2306
    %3226 = vmatpush1.msra.mxu0 %v2305
    %3227 = vmatprep.subr.mxu0 %v2274
    %3228 = vmatpush1.msra.mxu0 %v2273
    %3229 = vmatprep.subr.mxu0 %v2242
    %3230 = vmatpush1.msra.mxu0 %v2241
    %3231 = vmatprep.subr.mxu0 0.0
    %3232 = vmatpush2.msra.mxu0 0.0
    %3233 = vmatprep.subr.mxu0 0.0
    %3234 = vmatpush2.msra.mxu0 0.0
    %3235 = vmatprep.subr.mxu0 0.0
    %3236 = vmatpush2.msra.mxu0 0.0
    %3237 = vmatprep.subr.mxu0 0.0
    %3238 = vmatpush2.msra.mxu0 0.0
    %3239 = vmatprep.subr.mxu0 0.0
    %3240 = vmatpush2.msra.mxu0 0.0
    %3241 = vmatprep.subr.mxu0 0.0
    %3242 = vmatpush2.msra.mxu0 0.0
    %3243 = vmatprep.subr.mxu0 0.0
    %3244 = vmatpush2.msra.mxu0 0.0
    %3245 = vmatprep.subr.mxu0 0.0
    %3246 = vmatpush2.msra.mxu0 0.0
    %3247 = vmatprep.subr.mxu0 0.0
    %3248 = vmatpush2.msra.mxu0 0.0
    %3249 = vmatprep.subr.mxu0 0.0
    %3250 = vmatpush2.msra.mxu0 0.0
    %3251 = vmatprep.subr.mxu0 0.0
    %3252 = vmatpush2.msra.mxu0 0.0
    %3253 = vmatprep.subr.mxu0 0.0
    %3254 = vmatpush2.msra.mxu0 0.0
    %3255 = vmatprep.subr.mxu0 0.0
    %3256 = vmatpush2.msra.mxu0 0.0
    %3257 = vmatprep.subr.mxu0 0.0
    %3258 = vmatpush2.msra.mxu0 0.0
    %3259 = vmatprep.subr.mxu0 0.0
    %3260 = vmatpush2.msra.mxu0 0.0
    %3261 = vmatprep.subr.mxu0 0.0
    %3262 = vmatpush2.msra.mxu0 0.0
    %3263 = vmatprep.mubr.f32.mxu0 0.0
    %3264 = vmatmul.mubr.f32.gmra.mxu0 %v2669
    %v3265 = vpop.f32.mrf.mxu0
    %v3266 = vadd.f32 %v2590, %v3265
    %v3267 = vpop.f32.mrf.mxu0
    %v3268 = vadd.f32 %v2590, %v3267
    %3269 = vmatprep.mubr.f32.mxu0 0.0
    %3270 = vmatmul.mubr.f32.gmra.mxu0 %v2672
    %v3271 = vpop.f32.mrf.mxu0
    %v3272 = vadd.f32 %v2595, %v3271
    %v3273 = vpop.f32.mrf.mxu0
    %v3274 = vadd.f32 %v2595, %v3273
    %3275 = vmatprep.mubr.f32.mxu0 0.0
    %3276 = vmatmul.mubr.f32.gmra.mxu0 %v2675
    %v3277 = vpop.f32.mrf.mxu0
    %v3278 = vadd.f32 %v2600, %v3277
    %v3279 = vpop.f32.mrf.mxu0
    %v3280 = vadd.f32 %v2600, %v3279
    %3281 = vmatprep.mubr.f32.mxu0 0.0
    %3282 = vmatmul.mubr.f32.gmra.mxu0 %v2678
    %v3283 = vpop.f32.mrf.mxu0
    %v3284 = vadd.f32 %v2605, %v3283
    %v3285 = vpop.f32.mrf.mxu0
    %v3286 = vadd.f32 %v2605, %v3285
    %3287 = vmatprep.mubr.f32.mxu0 0.0
    %3288 = vmatmul.mubr.f32.gmra.mxu0 %v2681
    %v3289 = vpop.f32.mrf.mxu0
    %v3290 = vadd.f32 %v2610, %v3289
    %v3291 = vpop.f32.mrf.mxu0
    %v3292 = vadd.f32 %v2610, %v3291
    %3293 = vmatprep.mubr.f32.mxu0 0.0
    %3294 = vmatmul.mubr.f32.gmra.mxu0 %v2684
    %v3295 = vpop.f32.mrf.mxu0
    %v3296 = vadd.f32 %v2615, %v3295
    %v3297 = vpop.f32.mrf.mxu0
    %v3298 = vadd.f32 %v2615, %v3297
    %3299 = vmatprep.mubr.f32.mxu0 0.0
    %3300 = vmatmul.mubr.f32.gmra.mxu0 %v2687
    %v3301 = vpop.f32.mrf.mxu0
    %v3302 = vadd.f32 %v2620, %v3301
    %v3303 = vpop.f32.mrf.mxu0
    %v3304 = vadd.f32 %v2620, %v3303
    %3305 = vmatprep.mubr.f32.mxu0 0.0
    %3306 = vmatmul.mubr.f32.gmra.mxu0 %v2690
    %v3307 = vpop.f32.mrf.mxu0
    %v3308 = vadd.f32 %v2625, %v3307
    %v3309 = vpop.f32.mrf.mxu0
    %v3310 = vadd.f32 %v2625, %v3309
    %3311 = vmatprep.mubr.f32.mxu0 0.0
    %3312 = vmatmul.mubr.f32.gmra.mxu0 %v2693
    %v3313 = vpop.f32.mrf.mxu0
    %v3314 = vadd.f32 %v2630, %v3313
    %v3315 = vpop.f32.mrf.mxu0
    %v3316 = vadd.f32 %v2630, %v3315
    %3317 = vmatprep.mubr.f32.mxu0 0.0
    %3318 = vmatmul.mubr.f32.gmra.mxu0 %v2696
    %v3319 = vpop.f32.mrf.mxu0
    %v3320 = vadd.f32 %v2635, %v3319
    %v3321 = vpop.f32.mrf.mxu0
    %v3322 = vadd.f32 %v2635, %v3321
    %3323 = vmatprep.mubr.f32.mxu0 0.0
    %3324 = vmatmul.mubr.f32.gmra.mxu0 %v2699
    %v3325 = vpop.f32.mrf.mxu0
    %v3326 = vadd.f32 %v2640, %v3325
    %v3327 = vpop.f32.mrf.mxu0
    %v3328 = vadd.f32 %v2640, %v3327
    %3329 = vmatprep.mubr.f32.mxu0 0.0
    %3330 = vmatmul.mubr.f32.gmra.mxu0 %v2702
    %v3331 = vpop.f32.mrf.mxu0
    %v3332 = vadd.f32 %v2645, %v3331
    %v3333 = vpop.f32.mrf.mxu0
    %v3334 = vadd.f32 %v2645, %v3333
    %3335 = vmatprep.mubr.f32.mxu0 0.0
    %3336 = vmatmul.mubr.f32.gmra.mxu0 %v2705
    %v3337 = vpop.f32.mrf.mxu0
    %v3338 = vadd.f32 %v2650, %v3337
    %v3339 = vpop.f32.mrf.mxu0
    %v3340 = vadd.f32 %v2650, %v3339
    %3341 = vmatprep.mubr.f32.mxu0 0.0
    %3342 = vmatmul.mubr.f32.gmra.mxu0 %v2708
    %v3343 = vpop.f32.mrf.mxu0
    %v3344 = vadd.f32 %v2655, %v3343
    %v3345 = vpop.f32.mrf.mxu0
    %v3346 = vadd.f32 %v2655, %v3345
    %3347 = vmatprep.mubr.f32.mxu0 0.0
    %3348 = vmatmul.mubr.f32.gmra.mxu0 %v2711
    %v3349 = vpop.f32.mrf.mxu0
    %v3350 = vadd.f32 %v2660, %v3349
    %v3351 = vpop.f32.mrf.mxu0
    %v3352 = vadd.f32 %v2660, %v3351
    %3353 = vmatprep.mubr.f32.mxu0 0.0
    %3354 = vmatmul.mubr.f32.gmra.mxu0 %v2714
    %v3355 = vpop.f32.mrf.mxu0
    %v3356 = vadd.f32 %v2665, %v3355
    %v3357 = vpop.f32.mrf.mxu0
    %v3358 = vadd.f32 %v2665, %v3357
    %3359 = vdwg.mxu0
    %3360 = vmatprep.subr.mxu0 0.0
    %3361 = vmatpush1.msra.mxu0 0.0
    %3362 = vmatprep.subr.mxu0 0.0
    %3363 = vmatpush1.msra.mxu0 0.0
    %3364 = vmatprep.subr.mxu0 0.0
    %3365 = vmatpush1.msra.mxu0 0.0
    %3366 = vmatprep.subr.mxu0 0.0
    %3367 = vmatpush1.msra.mxu0 0.0
    %3368 = vmatprep.subr.mxu0 0.0
    %3369 = vmatpush1.msra.mxu0 0.0
    %3370 = vmatprep.subr.mxu0 0.0
    %3371 = vmatpush1.msra.mxu0 0.0
    %3372 = vmatprep.subr.mxu0 %v2532
    %3373 = vmatpush1.msra.mxu0 %v2531
    %3374 = vmatprep.subr.mxu0 %v2500
    %3375 = vmatpush1.msra.mxu0 %v2499
    %3376 = vmatprep.subr.mxu0 %v2468
    %3377 = vmatpush1.msra.mxu0 %v2467
    %3378 = vmatprep.subr.mxu0 %v2436
    %3379 = vmatpush1.msra.mxu0 %v2435
    %3380 = vmatprep.subr.mxu0 %v2404
    %3381 = vmatpush1.msra.mxu0 %v2403
    %3382 = vmatprep.subr.mxu0 %v2372
    %3383 = vmatpush1.msra.mxu0 %v2371
    %3384 = vmatprep.subr.mxu0 %v2340
    %3385 = vmatpush1.msra.mxu0 %v2339
    %3386 = vmatprep.subr.mxu0 %v2308
    %3387 = vmatpush1.msra.mxu0 %v2307
    %3388 = vmatprep.subr.mxu0 %v2276
    %3389 = vmatpush1.msra.mxu0 %v2275
    %3390 = vmatprep.subr.mxu0 %v2244
    %3391 = vmatpush1.msra.mxu0 %v2243
    %3392 = vmatprep.subr.mxu0 0.0
    %3393 = vmatpush2.msra.mxu0 0.0
    %3394 = vmatprep.subr.mxu0 0.0
    %3395 = vmatpush2.msra.mxu0 0.0
    %3396 = vmatprep.subr.mxu0 0.0
    %3397 = vmatpush2.msra.mxu0 0.0
    %3398 = vmatprep.subr.mxu0 0.0
    %3399 = vmatpush2.msra.mxu0 0.0
    %3400 = vmatprep.subr.mxu0 0.0
    %3401 = vmatpush2.msra.mxu0 0.0
    %3402 = vmatprep.subr.mxu0 0.0
    %3403 = vmatpush2.msra.mxu0 0.0
    %3404 = vmatprep.subr.mxu0 0.0
    %3405 = vmatpush2.msra.mxu0 0.0
    %3406 = vmatprep.subr.mxu0 0.0
    %3407 = vmatpush2.msra.mxu0 0.0
    %3408 = vmatprep.subr.mxu0 0.0
    %3409 = vmatpush2.msra.mxu0 0.0
    %3410 = vmatprep.subr.mxu0 0.0
    %3411 = vmatpush2.msra.mxu0 0.0
    %3412 = vmatprep.subr.mxu0 0.0
    %3413 = vmatpush2.msra.mxu0 0.0
    %3414 = vmatprep.subr.mxu0 0.0
    %3415 = vmatpush2.msra.mxu0 0.0
    %3416 = vmatprep.subr.mxu0 0.0
    %3417 = vmatpush2.msra.mxu0 0.0
    %3418 = vmatprep.subr.mxu0 0.0
    %3419 = vmatpush2.msra.mxu0 0.0
    %3420 = vmatprep.subr.mxu0 0.0
    %3421 = vmatpush2.msra.mxu0 0.0
    %3422 = vmatprep.subr.mxu0 0.0
    %3423 = vmatpush2.msra.mxu0 0.0
    %3424 = vmatprep.mubr.f32.mxu0 0.0
    %3425 = vmatmul.mubr.f32.gmra.mxu0 %v2669
    %v3426 = vpop.f32.mrf.mxu0
    %v3427 = vadd.f32 %v2590, %v3426
    %v3428 = vpop.f32.mrf.mxu0
    %v3429 = vadd.f32 %v2590, %v3428
    %3430 = vmatprep.mubr.f32.mxu0 0.0
    %3431 = vmatmul.mubr.f32.gmra.mxu0 %v2672
    %v3432 = vpop.f32.mrf.mxu0
    %v3433 = vadd.f32 %v2595, %v3432
    %v3434 = vpop.f32.mrf.mxu0
    %v3435 = vadd.f32 %v2595, %v3434
    %3436 = vmatprep.mubr.f32.mxu0 0.0
    %3437 = vmatmul.mubr.f32.gmra.mxu0 %v2675
    %v3438 = vpop.f32.mrf.mxu0
    %v3439 = vadd.f32 %v2600, %v3438
    %v3440 = vpop.f32.mrf.mxu0
    %v3441 = vadd.f32 %v2600, %v3440
    %3442 = vmatprep.mubr.f32.mxu0 0.0
    %3443 = vmatmul.mubr.f32.gmra.mxu0 %v2678
    %v3444 = vpop.f32.mrf.mxu0
    %v3445 = vadd.f32 %v2605, %v3444
    %v3446 = vpop.f32.mrf.mxu0
    %v3447 = vadd.f32 %v2605, %v3446
    %3448 = vmatprep.mubr.f32.mxu0 0.0
    %3449 = vmatmul.mubr.f32.gmra.mxu0 %v2681
    %v3450 = vpop.f32.mrf.mxu0
    %v3451 = vadd.f32 %v2610, %v3450
    %v3452 = vpop.f32.mrf.mxu0
    %v3453 = vadd.f32 %v2610, %v3452
    %3454 = vmatprep.mubr.f32.mxu0 0.0
    %3455 = vmatmul.mubr.f32.gmra.mxu0 %v2684
    %v3456 = vpop.f32.mrf.mxu0
    %v3457 = vadd.f32 %v2615, %v3456
    %v3458 = vpop.f32.mrf.mxu0
    %v3459 = vadd.f32 %v2615, %v3458
    %3460 = vmatprep.mubr.f32.mxu0 0.0
    %3461 = vmatmul.mubr.f32.gmra.mxu0 %v2687
    %v3462 = vpop.f32.mrf.mxu0
    %v3463 = vadd.f32 %v2620, %v3462
    %v3464 = vpop.f32.mrf.mxu0
    %v3465 = vadd.f32 %v2620, %v3464
    %3466 = vmatprep.mubr.f32.mxu0 0.0
    %3467 = vmatmul.mubr.f32.gmra.mxu0 %v2690
    %v3468 = vpop.f32.mrf.mxu0
    %v3469 = vadd.f32 %v2625, %v3468
    %v3470 = vpop.f32.mrf.mxu0
    %v3471 = vadd.f32 %v2625, %v3470
    %3472 = vmatprep.mubr.f32.mxu0 0.0
    %3473 = vmatmul.mubr.f32.gmra.mxu0 %v2693
    %v3474 = vpop.f32.mrf.mxu0
    %v3475 = vadd.f32 %v2630, %v3474
    %v3476 = vpop.f32.mrf.mxu0
    %v3477 = vadd.f32 %v2630, %v3476
    %3478 = vmatprep.mubr.f32.mxu0 0.0
    %3479 = vmatmul.mubr.f32.gmra.mxu0 %v2696
    %v3480 = vpop.f32.mrf.mxu0
    %v3481 = vadd.f32 %v2635, %v3480
    %v3482 = vpop.f32.mrf.mxu0
    %v3483 = vadd.f32 %v2635, %v3482
    %3484 = vmatprep.mubr.f32.mxu0 0.0
    %3485 = vmatmul.mubr.f32.gmra.mxu0 %v2699
    %v3486 = vpop.f32.mrf.mxu0
    %v3487 = vadd.f32 %v2640, %v3486
    %v3488 = vpop.f32.mrf.mxu0
    %v3489 = vadd.f32 %v2640, %v3488
    %3490 = vmatprep.mubr.f32.mxu0 0.0
    %3491 = vmatmul.mubr.f32.gmra.mxu0 %v2702
    %v3492 = vpop.f32.mrf.mxu0
    %v3493 = vadd.f32 %v2645, %v3492
    %v3494 = vpop.f32.mrf.mxu0
    %v3495 = vadd.f32 %v2645, %v3494
    %3496 = vmatprep.mubr.f32.mxu0 0.0
    %3497 = vmatmul.mubr.f32.gmra.mxu0 %v2705
    %v3498 = vpop.f32.mrf.mxu0
    %v3499 = vadd.f32 %v2650, %v3498
    %v3500 = vpop.f32.mrf.mxu0
    %v3501 = vadd.f32 %v2650, %v3500
    %3502 = vmatprep.mubr.f32.mxu0 0.0
    %3503 = vmatmul.mubr.f32.gmra.mxu0 %v2708
    %v3504 = vpop.f32.mrf.mxu0
    %v3505 = vadd.f32 %v2655, %v3504
    %v3506 = vpop.f32.mrf.mxu0
    %v3507 = vadd.f32 %v2655, %v3506
    %3508 = vmatprep.mubr.f32.mxu0 0.0
    %3509 = vmatmul.mubr.f32.gmra.mxu0 %v2711
    %v3510 = vpop.f32.mrf.mxu0
    %v3511 = vadd.f32 %v2660, %v3510
    %v3512 = vpop.f32.mrf.mxu0
    %v3513 = vadd.f32 %v2660, %v3512
    %3514 = vmatprep.mubr.f32.mxu0 0.0
    %3515 = vmatmul.mubr.f32.gmra.mxu0 %v2714
    %v3516 = vpop.f32.mrf.mxu0
    %v3517 = vadd.f32 %v2665, %v3516
    %v3518 = vpop.f32.mrf.mxu0
    %v3519 = vadd.f32 %v2665, %v3518
    %3520 = vdwg.mxu0
    %3521 = vmatprep.subr.mxu0 0.0
    %3522 = vmatpush1.msra.mxu0 0.0
    %3523 = vmatprep.subr.mxu0 0.0
    %3524 = vmatpush1.msra.mxu0 0.0
    %3525 = vmatprep.subr.mxu0 0.0
    %3526 = vmatpush1.msra.mxu0 0.0
    %3527 = vmatprep.subr.mxu0 0.0
    %3528 = vmatpush1.msra.mxu0 0.0
    %3529 = vmatprep.subr.mxu0 0.0
    %3530 = vmatpush1.msra.mxu0 0.0
    %3531 = vmatprep.subr.mxu0 0.0
    %3532 = vmatpush1.msra.mxu0 0.0
    %3533 = vmatprep.subr.mxu0 %v2534
    %3534 = vmatpush1.msra.mxu0 %v2533
    %3535 = vmatprep.subr.mxu0 %v2502
    %3536 = vmatpush1.msra.mxu0 %v2501
    %3537 = vmatprep.subr.mxu0 %v2470
    %3538 = vmatpush1.msra.mxu0 %v2469
    %3539 = vmatprep.subr.mxu0 %v2438
    %3540 = vmatpush1.msra.mxu0 %v2437
    %3541 = vmatprep.subr.mxu0 %v2406
    %3542 = vmatpush1.msra.mxu0 %v2405
    %3543 = vmatprep.subr.mxu0 %v2374
    %3544 = vmatpush1.msra.mxu0 %v2373
    %3545 = vmatprep.subr.mxu0 %v2342
    %3546 = vmatpush1.msra.mxu0 %v2341
    %3547 = vmatprep.subr.mxu0 %v2310
    %3548 = vmatpush1.msra.mxu0 %v2309
    %3549 = vmatprep.subr.mxu0 %v2278
    %3550 = vmatpush1.msra.mxu0 %v2277
    %3551 = vmatprep.subr.mxu0 %v2246
    %3552 = vmatpush1.msra.mxu0 %v2245
    %3553 = vmatprep.subr.mxu0 0.0
    %3554 = vmatpush2.msra.mxu0 0.0
    %3555 = vmatprep.subr.mxu0 0.0
    %3556 = vmatpush2.msra.mxu0 0.0
    %3557 = vmatprep.subr.mxu0 0.0
    %3558 = vmatpush2.msra.mxu0 0.0
    %3559 = vmatprep.subr.mxu0 0.0
    %3560 = vmatpush2.msra.mxu0 0.0
    %3561 = vmatprep.subr.mxu0 0.0
    %3562 = vmatpush2.msra.mxu0 0.0
    %3563 = vmatprep.subr.mxu0 0.0
    %3564 = vmatpush2.msra.mxu0 0.0
    %3565 = vmatprep.subr.mxu0 0.0
    %3566 = vmatpush2.msra.mxu0 0.0
    %3567 = vmatprep.subr.mxu0 0.0
    %3568 = vmatpush2.msra.mxu0 0.0
    %3569 = vmatprep.subr.mxu0 0.0
    %3570 = vmatpush2.msra.mxu0 0.0
    %3571 = vmatprep.subr.mxu0 0.0
    %3572 = vmatpush2.msra.mxu0 0.0
    %3573 = vmatprep.subr.mxu0 0.0
    %3574 = vmatpush2.msra.mxu0 0.0
    %3575 = vmatprep.subr.mxu0 0.0
    %3576 = vmatpush2.msra.mxu0 0.0
    %3577 = vmatprep.subr.mxu0 0.0
    %3578 = vmatpush2.msra.mxu0 0.0
    %3579 = vmatprep.subr.mxu0 0.0
    %3580 = vmatpush2.msra.mxu0 0.0
    %3581 = vmatprep.subr.mxu0 0.0
    %3582 = vmatpush2.msra.mxu0 0.0
    %3583 = vmatprep.subr.mxu0 0.0
    %3584 = vmatpush2.msra.mxu0 0.0
    %3585 = vmatprep.mubr.f32.mxu0 0.0
    %3586 = vmatmul.mubr.f32.gmra.mxu0 %v2669
    %v3587 = vpop.f32.mrf.mxu0
    %v3588 = vadd.f32 %v2590, %v3587
    %v3589 = vpop.f32.mrf.mxu0
    %v3590 = vadd.f32 %v2590, %v3589
    %3591 = vmatprep.mubr.f32.mxu0 0.0
    %3592 = vmatmul.mubr.f32.gmra.mxu0 %v2672
    %v3593 = vpop.f32.mrf.mxu0
    %v3594 = vadd.f32 %v2595, %v3593
    %v3595 = vpop.f32.mrf.mxu0
    %v3596 = vadd.f32 %v2595, %v3595
    %3597 = vmatprep.mubr.f32.mxu0 0.0
    %3598 = vmatmul.mubr.f32.gmra.mxu0 %v2675
    %v3599 = vpop.f32.mrf.mxu0
    %v3600 = vadd.f32 %v2600, %v3599
    %v3601 = vpop.f32.mrf.mxu0
    %v3602 = vadd.f32 %v2600, %v3601
    %3603 = vmatprep.mubr.f32.mxu0 0.0
    %3604 = vmatmul.mubr.f32.gmra.mxu0 %v2678
    %v3605 = vpop.f32.mrf.mxu0
    %v3606 = vadd.f32 %v2605, %v3605
    %v3607 = vpop.f32.mrf.mxu0
    %v3608 = vadd.f32 %v2605, %v3607
    %3609 = vmatprep.mubr.f32.mxu0 0.0
    %3610 = vmatmul.mubr.f32.gmra.mxu0 %v2681
    %v3611 = vpop.f32.mrf.mxu0
    %v3612 = vadd.f32 %v2610, %v3611
    %v3613 = vpop.f32.mrf.mxu0
    %v3614 = vadd.f32 %v2610, %v3613
    %3615 = vmatprep.mubr.f32.mxu0 0.0
    %3616 = vmatmul.mubr.f32.gmra.mxu0 %v2684
    %v3617 = vpop.f32.mrf.mxu0
    %v3618 = vadd.f32 %v2615, %v3617
    %v3619 = vpop.f32.mrf.mxu0
    %v3620 = vadd.f32 %v2615, %v3619
    %3621 = vmatprep.mubr.f32.mxu0 0.0
    %3622 = vmatmul.mubr.f32.gmra.mxu0 %v2687
    %v3623 = vpop.f32.mrf.mxu0
    %v3624 = vadd.f32 %v2620, %v3623
    %v3625 = vpop.f32.mrf.mxu0
    %v3626 = vadd.f32 %v2620, %v3625
    %3627 = vmatprep.mubr.f32.mxu0 0.0
    %3628 = vmatmul.mubr.f32.gmra.mxu0 %v2690
    %v3629 = vpop.f32.mrf.mxu0
    %v3630 = vadd.f32 %v2625, %v3629
    %v3631 = vpop.f32.mrf.mxu0
    %v3632 = vadd.f32 %v2625, %v3631
    %3633 = vmatprep.mubr.f32.mxu0 0.0
    %3634 = vmatmul.mubr.f32.gmra.mxu0 %v2693
    %v3635 = vpop.f32.mrf.mxu0
    %v3636 = vadd.f32 %v2630, %v3635
    %v3637 = vpop.f32.mrf.mxu0
    %v3638 = vadd.f32 %v2630, %v3637
    %3639 = vmatprep.mubr.f32.mxu0 0.0
    %3640 = vmatmul.mubr.f32.gmra.mxu0 %v2696
    %v3641 = vpop.f32.mrf.mxu0
    %v3642 = vadd.f32 %v2635, %v3641
    %v3643 = vpop.f32.mrf.mxu0
    %v3644 = vadd.f32 %v2635, %v3643
    %3645 = vmatprep.mubr.f32.mxu0 0.0
    %3646 = vmatmul.mubr.f32.gmra.mxu0 %v2699
    %v3647 = vpop.f32.mrf.mxu0
    %v3648 = vadd.f32 %v2640, %v3647
    %v3649 = vpop.f32.mrf.mxu0
    %v3650 = vadd.f32 %v2640, %v3649
    %3651 = vmatprep.mubr.f32.mxu0 0.0
    %3652 = vmatmul.mubr.f32.gmra.mxu0 %v2702
    %v3653 = vpop.f32.mrf.mxu0
    %v3654 = vadd.f32 %v2645, %v3653
    %v3655 = vpop.f32.mrf.mxu0
    %v3656 = vadd.f32 %v2645, %v3655
    %3657 = vmatprep.mubr.f32.mxu0 0.0
    %3658 = vmatmul.mubr.f32.gmra.mxu0 %v2705
    %v3659 = vpop.f32.mrf.mxu0
    %v3660 = vadd.f32 %v2650, %v3659
    %v3661 = vpop.f32.mrf.mxu0
    %v3662 = vadd.f32 %v2650, %v3661
    %3663 = vmatprep.mubr.f32.mxu0 0.0
    %3664 = vmatmul.mubr.f32.gmra.mxu0 %v2708
    %v3665 = vpop.f32.mrf.mxu0
    %v3666 = vadd.f32 %v2655, %v3665
    %v3667 = vpop.f32.mrf.mxu0
    %v3668 = vadd.f32 %v2655, %v3667
    %3669 = vmatprep.mubr.f32.mxu0 0.0
    %3670 = vmatmul.mubr.f32.gmra.mxu0 %v2711
    %v3671 = vpop.f32.mrf.mxu0
    %v3672 = vadd.f32 %v2660, %v3671
    %v3673 = vpop.f32.mrf.mxu0
    %v3674 = vadd.f32 %v2660, %v3673
    %3675 = vmatprep.mubr.f32.mxu0 0.0
    %3676 = vmatmul.mubr.f32.gmra.mxu0 %v2714
    %v3677 = vpop.f32.mrf.mxu0
    %v3678 = vadd.f32 %v2665, %v3677
    %v3679 = vpop.f32.mrf.mxu0
    %v3680 = vadd.f32 %v2665, %v3679
    %3681 = vdwg.mxu0
    %3682 = vmatprep.subr.mxu0 0.0
    %3683 = vmatpush1.msra.mxu0 0.0
    %3684 = vmatprep.subr.mxu0 0.0
    %3685 = vmatpush1.msra.mxu0 0.0
    %3686 = vmatprep.subr.mxu0 0.0
    %3687 = vmatpush1.msra.mxu0 0.0
    %3688 = vmatprep.subr.mxu0 0.0
    %3689 = vmatpush1.msra.mxu0 0.0
    %3690 = vmatprep.subr.mxu0 0.0
    %3691 = vmatpush1.msra.mxu0 0.0
    %3692 = vmatprep.subr.mxu0 0.0
    %3693 = vmatpush1.msra.mxu0 0.0
    %3694 = vmatprep.subr.mxu0 %v2536
    %3695 = vmatpush1.msra.mxu0 %v2535
    %3696 = vmatprep.subr.mxu0 %v2504
    %3697 = vmatpush1.msra.mxu0 %v2503
    %3698 = vmatprep.subr.mxu0 %v2472
    %3699 = vmatpush1.msra.mxu0 %v2471
    %3700 = vmatprep.subr.mxu0 %v2440
    %3701 = vmatpush1.msra.mxu0 %v2439
    %3702 = vmatprep.subr.mxu0 %v2408
    %3703 = vmatpush1.msra.mxu0 %v2407
    %3704 = vmatprep.subr.mxu0 %v2376
    %3705 = vmatpush1.msra.mxu0 %v2375
    %3706 = vmatprep.subr.mxu0 %v2344
    %3707 = vmatpush1.msra.mxu0 %v2343
    %3708 = vmatprep.subr.mxu0 %v2312
    %3709 = vmatpush1.msra.mxu0 %v2311
    %3710 = vmatprep.subr.mxu0 %v2280
    %3711 = vmatpush1.msra.mxu0 %v2279
    %3712 = vmatprep.subr.mxu0 %v2248
    %3713 = vmatpush1.msra.mxu0 %v2247
    %3714 = vmatprep.subr.mxu0 0.0
    %3715 = vmatpush2.msra.mxu0 0.0
    %3716 = vmatprep.subr.mxu0 0.0
    %3717 = vmatpush2.msra.mxu0 0.0
    %3718 = vmatprep.subr.mxu0 0.0
    %3719 = vmatpush2.msra.mxu0 0.0
    %3720 = vmatprep.subr.mxu0 0.0
    %3721 = vmatpush2.msra.mxu0 0.0
    %3722 = vmatprep.subr.mxu0 0.0
    %3723 = vmatpush2.msra.mxu0 0.0
    %3724 = vmatprep.subr.mxu0 0.0
    %3725 = vmatpush2.msra.mxu0 0.0
    %3726 = vmatprep.subr.mxu0 0.0
    %3727 = vmatpush2.msra.mxu0 0.0
    %3728 = vmatprep.subr.mxu0 0.0
    %3729 = vmatpush2.msra.mxu0 0.0
    %3730 = vmatprep.subr.mxu0 0.0
    %3731 = vmatpush2.msra.mxu0 0.0
    %3732 = vmatprep.subr.mxu0 0.0
    %3733 = vmatpush2.msra.mxu0 0.0
    %3734 = vmatprep.subr.mxu0 0.0
    %3735 = vmatpush2.msra.mxu0 0.0
    %3736 = vmatprep.subr.mxu0 0.0
    %3737 = vmatpush2.msra.mxu0 0.0
    %3738 = vmatprep.subr.mxu0 0.0
    %3739 = vmatpush2.msra.mxu0 0.0
    %3740 = vmatprep.subr.mxu0 0.0
    %3741 = vmatpush2.msra.mxu0 0.0
    %3742 = vmatprep.subr.mxu0 0.0
    %3743 = vmatpush2.msra.mxu0 0.0
    %3744 = vmatprep.subr.mxu0 0.0
    %3745 = vmatpush2.msra.mxu0 0.0
    %3746 = vmatprep.mubr.f32.mxu0 0.0
    %3747 = vmatmul.mubr.f32.gmra.mxu0 %v2669
    %v3748 = vpop.f32.mrf.mxu0
    %v3749 = vadd.f32 %v2590, %v3748
    %v3750 = vpop.f32.mrf.mxu0
    %v3751 = vadd.f32 %v2590, %v3750
    %3752 = vmatprep.mubr.f32.mxu0 0.0
    %3753 = vmatmul.mubr.f32.gmra.mxu0 %v2672
    %v3754 = vpop.f32.mrf.mxu0
    %v3755 = vadd.f32 %v2595, %v3754
    %v3756 = vpop.f32.mrf.mxu0
    %v3757 = vadd.f32 %v2595, %v3756
    %3758 = vmatprep.mubr.f32.mxu0 0.0
    %3759 = vmatmul.mubr.f32.gmra.mxu0 %v2675
    %v3760 = vpop.f32.mrf.mxu0
    %v3761 = vadd.f32 %v2600, %v3760
    %v3762 = vpop.f32.mrf.mxu0
    %v3763 = vadd.f32 %v2600, %v3762
    %3764 = vmatprep.mubr.f32.mxu0 0.0
    %3765 = vmatmul.mubr.f32.gmra.mxu0 %v2678
    %v3766 = vpop.f32.mrf.mxu0
    %v3767 = vadd.f32 %v2605, %v3766
    %v3768 = vpop.f32.mrf.mxu0
    %v3769 = vadd.f32 %v2605, %v3768
    %3770 = vmatprep.mubr.f32.mxu0 0.0
    %3771 = vmatmul.mubr.f32.gmra.mxu0 %v2681
    %v3772 = vpop.f32.mrf.mxu0
    %v3773 = vadd.f32 %v2610, %v3772
    %v3774 = vpop.f32.mrf.mxu0
    %v3775 = vadd.f32 %v2610, %v3774
    %3776 = vmatprep.mubr.f32.mxu0 0.0
    %3777 = vmatmul.mubr.f32.gmra.mxu0 %v2684
    %v3778 = vpop.f32.mrf.mxu0
    %v3779 = vadd.f32 %v2615, %v3778
    %v3780 = vpop.f32.mrf.mxu0
    %v3781 = vadd.f32 %v2615, %v3780
    %3782 = vmatprep.mubr.f32.mxu0 0.0
    %3783 = vmatmul.mubr.f32.gmra.mxu0 %v2687
    %v3784 = vpop.f32.mrf.mxu0
    %v3785 = vadd.f32 %v2620, %v3784
    %v3786 = vpop.f32.mrf.mxu0
    %v3787 = vadd.f32 %v2620, %v3786
    %3788 = vmatprep.mubr.f32.mxu0 0.0
    %3789 = vmatmul.mubr.f32.gmra.mxu0 %v2690
    %v3790 = vpop.f32.mrf.mxu0
    %v3791 = vadd.f32 %v2625, %v3790
    %v3792 = vpop.f32.mrf.mxu0
    %v3793 = vadd.f32 %v2625, %v3792
    %3794 = vmatprep.mubr.f32.mxu0 0.0
    %3795 = vmatmul.mubr.f32.gmra.mxu0 %v2693
    %v3796 = vpop.f32.mrf.mxu0
    %v3797 = vadd.f32 %v2630, %v3796
    %v3798 = vpop.f32.mrf.mxu0
    %v3799 = vadd.f32 %v2630, %v3798
    %3800 = vmatprep.mubr.f32.mxu0 0.0
    %3801 = vmatmul.mubr.f32.gmra.mxu0 %v2696
    %v3802 = vpop.f32.mrf.mxu0
    %v3803 = vadd.f32 %v2635, %v3802
    %v3804 = vpop.f32.mrf.mxu0
    %v3805 = vadd.f32 %v2635, %v3804
    %3806 = vmatprep.mubr.f32.mxu0 0.0
    %3807 = vmatmul.mubr.f32.gmra.mxu0 %v2699
    %v3808 = vpop.f32.mrf.mxu0
    %v3809 = vadd.f32 %v2640, %v3808
    %v3810 = vpop.f32.mrf.mxu0
    %v3811 = vadd.f32 %v2640, %v3810
    %3812 = vmatprep.mubr.f32.mxu0 0.0
    %3813 = vmatmul.mubr.f32.gmra.mxu0 %v2702
    %v3814 = vpop.f32.mrf.mxu0
    %v3815 = vadd.f32 %v2645, %v3814
    %v3816 = vpop.f32.mrf.mxu0
    %v3817 = vadd.f32 %v2645, %v3816
    %3818 = vmatprep.mubr.f32.mxu0 0.0
    %3819 = vmatmul.mubr.f32.gmra.mxu0 %v2705
    %v3820 = vpop.f32.mrf.mxu0
    %v3821 = vadd.f32 %v2650, %v3820
    %v3822 = vpop.f32.mrf.mxu0
    %v3823 = vadd.f32 %v2650, %v3822
    %3824 = vmatprep.mubr.f32.mxu0 0.0
    %3825 = vmatmul.mubr.f32.gmra.mxu0 %v2708
    %v3826 = vpop.f32.mrf.mxu0
    %v3827 = vadd.f32 %v2655, %v3826
    %v3828 = vpop.f32.mrf.mxu0
    %v3829 = vadd.f32 %v2655, %v3828
    %3830 = vmatprep.mubr.f32.mxu0 0.0
    %3831 = vmatmul.mubr.f32.gmra.mxu0 %v2711
    %v3832 = vpop.f32.mrf.mxu0
    %v3833 = vadd.f32 %v2660, %v3832
    %v3834 = vpop.f32.mrf.mxu0
    %v3835 = vadd.f32 %v2660, %v3834
    %3836 = vmatprep.mubr.f32.mxu0 0.0
    %3837 = vmatmul.mubr.f32.gmra.mxu0 %v2714
    %v3838 = vpop.f32.mrf.mxu0
    %v3839 = vadd.f32 %v2665, %v3838
    %v3840 = vpop.f32.mrf.mxu0
    %v3841 = vadd.f32 %v2665, %v3840
    %3842 = vdwg.mxu0
    %3843 = vmatprep.subr.mxu0 0.0
    %3844 = vmatpush1.msra.mxu0 0.0
    %3845 = vmatprep.subr.mxu0 0.0
    %3846 = vmatpush1.msra.mxu0 0.0
    %3847 = vmatprep.subr.mxu0 0.0
    %3848 = vmatpush1.msra.mxu0 0.0
    %3849 = vmatprep.subr.mxu0 0.0
    %3850 = vmatpush1.msra.mxu0 0.0
    %3851 = vmatprep.subr.mxu0 0.0
    %3852 = vmatpush1.msra.mxu0 0.0
    %3853 = vmatprep.subr.mxu0 0.0
    %3854 = vmatpush1.msra.mxu0 0.0
    %3855 = vmatprep.subr.mxu0 %v2538
    %3856 = vmatpush1.msra.mxu0 %v2537
    %3857 = vmatprep.subr.mxu0 %v2506
    %3858 = vmatpush1.msra.mxu0 %v2505
    %3859 = vmatprep.subr.mxu0 %v2474
    %3860 = vmatpush1.msra.mxu0 %v2473
    %3861 = vmatprep.subr.mxu0 %v2442
    %3862 = vmatpush1.msra.mxu0 %v2441
    %3863 = vmatprep.subr.mxu0 %v2410
    %3864 = vmatpush1.msra.mxu0 %v2409
    %3865 = vmatprep.subr.mxu0 %v2378
    %3866 = vmatpush1.msra.mxu0 %v2377
    %3867 = vmatprep.subr.mxu0 %v2346
    %3868 = vmatpush1.msra.mxu0 %v2345
    %3869 = vmatprep.subr.mxu0 %v2314
    %3870 = vmatpush1.msra.mxu0 %v2313
    %3871 = vmatprep.subr.mxu0 %v2282
    %3872 = vmatpush1.msra.mxu0 %v2281
    %3873 = vmatprep.subr.mxu0 %v2250
    %3874 = vmatpush1.msra.mxu0 %v2249
    %3875 = vmatprep.subr.mxu0 0.0
    %3876 = vmatpush2.msra.mxu0 0.0
    %3877 = vmatprep.subr.mxu0 0.0
    %3878 = vmatpush2.msra.mxu0 0.0
    %3879 = vmatprep.subr.mxu0 0.0
    %3880 = vmatpush2.msra.mxu0 0.0
    %3881 = vmatprep.subr.mxu0 0.0
    %3882 = vmatpush2.msra.mxu0 0.0
    %3883 = vmatprep.subr.mxu0 0.0
    %3884 = vmatpush2.msra.mxu0 0.0
    %3885 = vmatprep.subr.mxu0 0.0
    %3886 = vmatpush2.msra.mxu0 0.0
    %3887 = vmatprep.subr.mxu0 0.0
    %3888 = vmatpush2.msra.mxu0 0.0
    %3889 = vmatprep.subr.mxu0 0.0
    %3890 = vmatpush2.msra.mxu0 0.0
    %3891 = vmatprep.subr.mxu0 0.0
    %3892 = vmatpush2.msra.mxu0 0.0
    %3893 = vmatprep.subr.mxu0 0.0
    %3894 = vmatpush2.msra.mxu0 0.0
    %3895 = vmatprep.subr.mxu0 0.0
    %3896 = vmatpush2.msra.mxu0 0.0
    %3897 = vmatprep.subr.mxu0 0.0
    %3898 = vmatpush2.msra.mxu0 0.0
    %3899 = vmatprep.subr.mxu0 0.0
    %3900 = vmatpush2.msra.mxu0 0.0
    %3901 = vmatprep.subr.mxu0 0.0
    %3902 = vmatpush2.msra.mxu0 0.0
    %3903 = vmatprep.subr.mxu0 0.0
    %3904 = vmatpush2.msra.mxu0 0.0
    %3905 = vmatprep.subr.mxu0 0.0
    %3906 = vmatpush2.msra.mxu0 0.0
    %3907 = vmatprep.mubr.f32.mxu0 0.0
    %3908 = vmatmul.mubr.f32.gmra.mxu0 %v2669
    %v3909 = vpop.f32.mrf.mxu0
    %v3910 = vadd.f32 %v2590, %v3909
    %v3911 = vpop.f32.mrf.mxu0
    %v3912 = vadd.f32 %v2590, %v3911
    %3913 = vmatprep.mubr.f32.mxu0 0.0
    %3914 = vmatmul.mubr.f32.gmra.mxu0 %v2672
    %v3915 = vpop.f32.mrf.mxu0
    %v3916 = vadd.f32 %v2595, %v3915
    %v3917 = vpop.f32.mrf.mxu0
    %v3918 = vadd.f32 %v2595, %v3917
    %3919 = vmatprep.mubr.f32.mxu0 0.0
    %3920 = vmatmul.mubr.f32.gmra.mxu0 %v2675
    %v3921 = vpop.f32.mrf.mxu0
    %v3922 = vadd.f32 %v2600, %v3921
    %v3923 = vpop.f32.mrf.mxu0
    %v3924 = vadd.f32 %v2600, %v3923
    %3925 = vmatprep.mubr.f32.mxu0 0.0
    %3926 = vmatmul.mubr.f32.gmra.mxu0 %v2678
    %v3927 = vpop.f32.mrf.mxu0
    %v3928 = vadd.f32 %v2605, %v3927
    %v3929 = vpop.f32.mrf.mxu0
    %v3930 = vadd.f32 %v2605, %v3929
    %3931 = vmatprep.mubr.f32.mxu0 0.0
    %3932 = vmatmul.mubr.f32.gmra.mxu0 %v2681
    %v3933 = vpop.f32.mrf.mxu0
    %v3934 = vadd.f32 %v2610, %v3933
    %v3935 = vpop.f32.mrf.mxu0
    %v3936 = vadd.f32 %v2610, %v3935
    %3937 = vmatprep.mubr.f32.mxu0 0.0
    %3938 = vmatmul.mubr.f32.gmra.mxu0 %v2684
    %v3939 = vpop.f32.mrf.mxu0
    %v3940 = vadd.f32 %v2615, %v3939
    %v3941 = vpop.f32.mrf.mxu0
    %v3942 = vadd.f32 %v2615, %v3941
    %3943 = vmatprep.mubr.f32.mxu0 0.0
    %3944 = vmatmul.mubr.f32.gmra.mxu0 %v2687
    %v3945 = vpop.f32.mrf.mxu0
    %v3946 = vadd.f32 %v2620, %v3945
    %v3947 = vpop.f32.mrf.mxu0
    %v3948 = vadd.f32 %v2620, %v3947
    %3949 = vmatprep.mubr.f32.mxu0 0.0
    %3950 = vmatmul.mubr.f32.gmra.mxu0 %v2690
    %v3951 = vpop.f32.mrf.mxu0
    %v3952 = vadd.f32 %v2625, %v3951
    %v3953 = vpop.f32.mrf.mxu0
    %v3954 = vadd.f32 %v2625, %v3953
    %3955 = vmatprep.mubr.f32.mxu0 0.0
    %3956 = vmatmul.mubr.f32.gmra.mxu0 %v2693
    %v3957 = vpop.f32.mrf.mxu0
    %v3958 = vadd.f32 %v2630, %v3957
    %v3959 = vpop.f32.mrf.mxu0
    %v3960 = vadd.f32 %v2630, %v3959
    %3961 = vmatprep.mubr.f32.mxu0 0.0
    %3962 = vmatmul.mubr.f32.gmra.mxu0 %v2696
    %v3963 = vpop.f32.mrf.mxu0
    %v3964 = vadd.f32 %v2635, %v3963
    %v3965 = vpop.f32.mrf.mxu0
    %v3966 = vadd.f32 %v2635, %v3965
    %3967 = vmatprep.mubr.f32.mxu0 0.0
    %3968 = vmatmul.mubr.f32.gmra.mxu0 %v2699
    %v3969 = vpop.f32.mrf.mxu0
    %v3970 = vadd.f32 %v2640, %v3969
    %v3971 = vpop.f32.mrf.mxu0
    %v3972 = vadd.f32 %v2640, %v3971
    %3973 = vmatprep.mubr.f32.mxu0 0.0
    %3974 = vmatmul.mubr.f32.gmra.mxu0 %v2702
    %v3975 = vpop.f32.mrf.mxu0
    %v3976 = vadd.f32 %v2645, %v3975
    %v3977 = vpop.f32.mrf.mxu0
    %v3978 = vadd.f32 %v2645, %v3977
    %3979 = vmatprep.mubr.f32.mxu0 0.0
    %3980 = vmatmul.mubr.f32.gmra.mxu0 %v2705
    %v3981 = vpop.f32.mrf.mxu0
    %v3982 = vadd.f32 %v2650, %v3981
    %v3983 = vpop.f32.mrf.mxu0
    %v3984 = vadd.f32 %v2650, %v3983
    %3985 = vmatprep.mubr.f32.mxu0 0.0
    %3986 = vmatmul.mubr.f32.gmra.mxu0 %v2708
    %v3987 = vpop.f32.mrf.mxu0
    %v3988 = vadd.f32 %v2655, %v3987
    %v3989 = vpop.f32.mrf.mxu0
    %v3990 = vadd.f32 %v2655, %v3989
    %3991 = vmatprep.mubr.f32.mxu0 0.0
    %3992 = vmatmul.mubr.f32.gmra.mxu0 %v2711
    %v3993 = vpop.f32.mrf.mxu0
    %v3994 = vadd.f32 %v2660, %v3993
    %v3995 = vpop.f32.mrf.mxu0
    %v3996 = vadd.f32 %v2660, %v3995
    %3997 = vmatprep.mubr.f32.mxu0 0.0
    %3998 = vmatmul.mubr.f32.gmra.mxu0 %v2714
    %v3999 = vpop.f32.mrf.mxu0
    %v4000 = vadd.f32 %v2665, %v3999
    %v4001 = vpop.f32.mrf.mxu0
    %v4002 = vadd.f32 %v2665, %v4001
    %4003 = vdwg.mxu0
    %4004 = vmatprep.subr.mxu0 0.0
    %4005 = vmatpush1.msra.mxu0 0.0
    %4006 = vmatprep.subr.mxu0 0.0
    %4007 = vmatpush1.msra.mxu0 0.0
    %4008 = vmatprep.subr.mxu0 0.0
    %4009 = vmatpush1.msra.mxu0 0.0
    %4010 = vmatprep.subr.mxu0 0.0
    %4011 = vmatpush1.msra.mxu0 0.0
    %4012 = vmatprep.subr.mxu0 0.0
    %4013 = vmatpush1.msra.mxu0 0.0
    %4014 = vmatprep.subr.mxu0 0.0
    %4015 = vmatpush1.msra.mxu0 0.0
    %4016 = vmatprep.subr.mxu0 %v2540
    %4017 = vmatpush1.msra.mxu0 %v2539
    %4018 = vmatprep.subr.mxu0 %v2508
    %4019 = vmatpush1.msra.mxu0 %v2507
    %4020 = vmatprep.subr.mxu0 %v2476
    %4021 = vmatpush1.msra.mxu0 %v2475
    %4022 = vmatprep.subr.mxu0 %v2444
    %4023 = vmatpush1.msra.mxu0 %v2443
    %4024 = vmatprep.subr.mxu0 %v2412
    %4025 = vmatpush1.msra.mxu0 %v2411
    %4026 = vmatprep.subr.mxu0 %v2380
    %4027 = vmatpush1.msra.mxu0 %v2379
    %4028 = vmatprep.subr.mxu0 %v2348
    %4029 = vmatpush1.msra.mxu0 %v2347
    %4030 = vmatprep.subr.mxu0 %v2316
    %4031 = vmatpush1.msra.mxu0 %v2315
    %4032 = vmatprep.subr.mxu0 %v2284
    %4033 = vmatpush1.msra.mxu0 %v2283
    %4034 = vmatprep.subr.mxu0 %v2252
    %4035 = vmatpush1.msra.mxu0 %v2251
    %4036 = vmatprep.subr.mxu0 0.0
    %4037 = vmatpush2.msra.mxu0 0.0
    %4038 = vmatprep.subr.mxu0 0.0
    %4039 = vmatpush2.msra.mxu0 0.0
    %4040 = vmatprep.subr.mxu0 0.0
    %4041 = vmatpush2.msra.mxu0 0.0
    %4042 = vmatprep.subr.mxu0 0.0
    %4043 = vmatpush2.msra.mxu0 0.0
    %4044 = vmatprep.subr.mxu0 0.0
    %4045 = vmatpush2.msra.mxu0 0.0
    %4046 = vmatprep.subr.mxu0 0.0
    %4047 = vmatpush2.msra.mxu0 0.0
    %4048 = vmatprep.subr.mxu0 0.0
    %4049 = vmatpush2.msra.mxu0 0.0
    %4050 = vmatprep.subr.mxu0 0.0
    %4051 = vmatpush2.msra.mxu0 0.0
    %4052 = vmatprep.subr.mxu0 0.0
    %4053 = vmatpush2.msra.mxu0 0.0
    %4054 = vmatprep.subr.mxu0 0.0
    %4055 = vmatpush2.msra.mxu0 0.0
    %4056 = vmatprep.subr.mxu0 0.0
    %4057 = vmatpush2.msra.mxu0 0.0
    %4058 = vmatprep.subr.mxu0 0.0
    %4059 = vmatpush2.msra.mxu0 0.0
    %4060 = vmatprep.subr.mxu0 0.0
    %4061 = vmatpush2.msra.mxu0 0.0
    %4062 = vmatprep.subr.mxu0 0.0
    %4063 = vmatpush2.msra.mxu0 0.0
    %4064 = vmatprep.subr.mxu0 0.0
    %4065 = vmatpush2.msra.mxu0 0.0
    %4066 = vmatprep.subr.mxu0 0.0
    %4067 = vmatpush2.msra.mxu0 0.0
    %4068 = vmatprep.mubr.f32.mxu0 0.0
    %4069 = vmatmul.mubr.f32.gmra.mxu0 %v2669
    %v4070 = vpop.f32.mrf.mxu0
    %v4071 = vadd.f32 %v2590, %v4070
    %v4072 = vpop.f32.mrf.mxu0
    %v4073 = vadd.f32 %v2590, %v4072
    %4074 = vmatprep.mubr.f32.mxu0 0.0
    %4075 = vmatmul.mubr.f32.gmra.mxu0 %v2672
    %v4076 = vpop.f32.mrf.mxu0
    %v4077 = vadd.f32 %v2595, %v4076
    %v4078 = vpop.f32.mrf.mxu0
    %v4079 = vadd.f32 %v2595, %v4078
    %4080 = vmatprep.mubr.f32.mxu0 0.0
    %4081 = vmatmul.mubr.f32.gmra.mxu0 %v2675
    %v4082 = vpop.f32.mrf.mxu0
    %v4083 = vadd.f32 %v2600, %v4082
    %v4084 = vpop.f32.mrf.mxu0
    %v4085 = vadd.f32 %v2600, %v4084
    %4086 = vmatprep.mubr.f32.mxu0 0.0
    %4087 = vmatmul.mubr.f32.gmra.mxu0 %v2678
    %v4088 = vpop.f32.mrf.mxu0
    %v4089 = vadd.f32 %v2605, %v4088
    %v4090 = vpop.f32.mrf.mxu0
    %v4091 = vadd.f32 %v2605, %v4090
    %4092 = vmatprep.mubr.f32.mxu0 0.0
    %4093 = vmatmul.mubr.f32.gmra.mxu0 %v2681
    %v4094 = vpop.f32.mrf.mxu0
    %v4095 = vadd.f32 %v2610, %v4094
    %v4096 = vpop.f32.mrf.mxu0
    %v4097 = vadd.f32 %v2610, %v4096
    %4098 = vmatprep.mubr.f32.mxu0 0.0
    %4099 = vmatmul.mubr.f32.gmra.mxu0 %v2684
    %v4100 = vpop.f32.mrf.mxu0
    %v4101 = vadd.f32 %v2615, %v4100
    %v4102 = vpop.f32.mrf.mxu0
    %v4103 = vadd.f32 %v2615, %v4102
    %4104 = vmatprep.mubr.f32.mxu0 0.0
    %4105 = vmatmul.mubr.f32.gmra.mxu0 %v2687
    %v4106 = vpop.f32.mrf.mxu0
    %v4107 = vadd.f32 %v2620, %v4106
    %v4108 = vpop.f32.mrf.mxu0
    %v4109 = vadd.f32 %v2620, %v4108
    %4110 = vmatprep.mubr.f32.mxu0 0.0
    %4111 = vmatmul.mubr.f32.gmra.mxu0 %v2690
    %v4112 = vpop.f32.mrf.mxu0
    %v4113 = vadd.f32 %v2625, %v4112
    %v4114 = vpop.f32.mrf.mxu0
    %v4115 = vadd.f32 %v2625, %v4114
    %4116 = vmatprep.mubr.f32.mxu0 0.0
    %4117 = vmatmul.mubr.f32.gmra.mxu0 %v2693
    %v4118 = vpop.f32.mrf.mxu0
    %v4119 = vadd.f32 %v2630, %v4118
    %v4120 = vpop.f32.mrf.mxu0
    %v4121 = vadd.f32 %v2630, %v4120
    %4122 = vmatprep.mubr.f32.mxu0 0.0
    %4123 = vmatmul.mubr.f32.gmra.mxu0 %v2696
    %v4124 = vpop.f32.mrf.mxu0
    %v4125 = vadd.f32 %v2635, %v4124
    %v4126 = vpop.f32.mrf.mxu0
    %v4127 = vadd.f32 %v2635, %v4126
    %4128 = vmatprep.mubr.f32.mxu0 0.0
    %4129 = vmatmul.mubr.f32.gmra.mxu0 %v2699
    %v4130 = vpop.f32.mrf.mxu0
    %v4131 = vadd.f32 %v2640, %v4130
    %v4132 = vpop.f32.mrf.mxu0
    %v4133 = vadd.f32 %v2640, %v4132
    %4134 = vmatprep.mubr.f32.mxu0 0.0
    %4135 = vmatmul.mubr.f32.gmra.mxu0 %v2702
    %v4136 = vpop.f32.mrf.mxu0
    %v4137 = vadd.f32 %v2645, %v4136
    %v4138 = vpop.f32.mrf.mxu0
    %v4139 = vadd.f32 %v2645, %v4138
    %4140 = vmatprep.mubr.f32.mxu0 0.0
    %4141 = vmatmul.mubr.f32.gmra.mxu0 %v2705
    %v4142 = vpop.f32.mrf.mxu0
    %v4143 = vadd.f32 %v2650, %v4142
    %v4144 = vpop.f32.mrf.mxu0
    %v4145 = vadd.f32 %v2650, %v4144
    %4146 = vmatprep.mubr.f32.mxu0 0.0
    %4147 = vmatmul.mubr.f32.gmra.mxu0 %v2708
    %v4148 = vpop.f32.mrf.mxu0
    %v4149 = vadd.f32 %v2655, %v4148
    %v4150 = vpop.f32.mrf.mxu0
    %v4151 = vadd.f32 %v2655, %v4150
    %4152 = vmatprep.mubr.f32.mxu0 0.0
    %4153 = vmatmul.mubr.f32.gmra.mxu0 %v2711
    %v4154 = vpop.f32.mrf.mxu0
    %v4155 = vadd.f32 %v2660, %v4154
    %v4156 = vpop.f32.mrf.mxu0
    %v4157 = vadd.f32 %v2660, %v4156
    %4158 = vmatprep.mubr.f32.mxu0 0.0
    %4159 = vmatmul.mubr.f32.gmra.mxu0 %v2714
    %v4160 = vpop.f32.mrf.mxu0
    %v4161 = vadd.f32 %v2665, %v4160
    %v4162 = vpop.f32.mrf.mxu0
    %v4163 = vadd.f32 %v2665, %v4162
    %4164 = vdwg.mxu0
    %4165 = vmatprep.subr.mxu0 0.0
    %4166 = vmatpush1.msra.mxu0 0.0
    %4167 = vmatprep.subr.mxu0 0.0
    %4168 = vmatpush1.msra.mxu0 0.0
    %4169 = vmatprep.subr.mxu0 0.0
    %4170 = vmatpush1.msra.mxu0 0.0
    %4171 = vmatprep.subr.mxu0 0.0
    %4172 = vmatpush1.msra.mxu0 0.0
    %4173 = vmatprep.subr.mxu0 0.0
    %4174 = vmatpush1.msra.mxu0 0.0
    %4175 = vmatprep.subr.mxu0 0.0
    %4176 = vmatpush1.msra.mxu0 0.0
    %4177 = vmatprep.subr.mxu0 %v2542
    %4178 = vmatpush1.msra.mxu0 %v2541
    %4179 = vmatprep.subr.mxu0 %v2510
    %4180 = vmatpush1.msra.mxu0 %v2509
    %4181 = vmatprep.subr.mxu0 %v2478
    %4182 = vmatpush1.msra.mxu0 %v2477
    %4183 = vmatprep.subr.mxu0 %v2446
    %4184 = vmatpush1.msra.mxu0 %v2445
    %4185 = vmatprep.subr.mxu0 %v2414
    %4186 = vmatpush1.msra.mxu0 %v2413
    %4187 = vmatprep.subr.mxu0 %v2382
    %4188 = vmatpush1.msra.mxu0 %v2381
    %4189 = vmatprep.subr.mxu0 %v2350
    %4190 = vmatpush1.msra.mxu0 %v2349
    %4191 = vmatprep.subr.mxu0 %v2318
    %4192 = vmatpush1.msra.mxu0 %v2317
    %4193 = vmatprep.subr.mxu0 %v2286
    %4194 = vmatpush1.msra.mxu0 %v2285
    %4195 = vmatprep.subr.mxu0 %v2254
    %4196 = vmatpush1.msra.mxu0 %v2253
    %4197 = vmatprep.subr.mxu0 0.0
    %4198 = vmatpush2.msra.mxu0 0.0
    %4199 = vmatprep.subr.mxu0 0.0
    %4200 = vmatpush2.msra.mxu0 0.0
    %4201 = vmatprep.subr.mxu0 0.0
    %4202 = vmatpush2.msra.mxu0 0.0
    %4203 = vmatprep.subr.mxu0 0.0
    %4204 = vmatpush2.msra.mxu0 0.0
    %4205 = vmatprep.subr.mxu0 0.0
    %4206 = vmatpush2.msra.mxu0 0.0
    %4207 = vmatprep.subr.mxu0 0.0
    %4208 = vmatpush2.msra.mxu0 0.0
    %4209 = vmatprep.subr.mxu0 0.0
    %4210 = vmatpush2.msra.mxu0 0.0
    %4211 = vmatprep.subr.mxu0 0.0
    %4212 = vmatpush2.msra.mxu0 0.0
    %4213 = vmatprep.subr.mxu0 0.0
    %4214 = vmatpush2.msra.mxu0 0.0
    %4215 = vmatprep.subr.mxu0 0.0
    %4216 = vmatpush2.msra.mxu0 0.0
    %4217 = vmatprep.subr.mxu0 0.0
    %4218 = vmatpush2.msra.mxu0 0.0
    %4219 = vmatprep.subr.mxu0 0.0
    %4220 = vmatpush2.msra.mxu0 0.0
    %4221 = vmatprep.subr.mxu0 0.0
    %4222 = vmatpush2.msra.mxu0 0.0
    %4223 = vmatprep.subr.mxu0 0.0
    %4224 = vmatpush2.msra.mxu0 0.0
    %4225 = vmatprep.subr.mxu0 0.0
    %4226 = vmatpush2.msra.mxu0 0.0
    %4227 = vmatprep.subr.mxu0 0.0
    %4228 = vmatpush2.msra.mxu0 0.0
    %4229 = vmatprep.mubr.f32.mxu0 0.0
    %4230 = vmatmul.mubr.f32.gmra.mxu0 %v2669
    %v4231 = vpop.f32.mrf.mxu0
    %v4232 = vadd.f32 %v2590, %v4231
    %v4233 = vpop.f32.mrf.mxu0
    %v4234 = vadd.f32 %v2590, %v4233
    %4235 = vmatprep.mubr.f32.mxu0 0.0
    %4236 = vmatmul.mubr.f32.gmra.mxu0 %v2672
    %v4237 = vpop.f32.mrf.mxu0
    %v4238 = vadd.f32 %v2595, %v4237
    %v4239 = vpop.f32.mrf.mxu0
    %v4240 = vadd.f32 %v2595, %v4239
    %4241 = vmatprep.mubr.f32.mxu0 0.0
    %4242 = vmatmul.mubr.f32.gmra.mxu0 %v2675
    %v4243 = vpop.f32.mrf.mxu0
    %v4244 = vadd.f32 %v2600, %v4243
    %v4245 = vpop.f32.mrf.mxu0
    %v4246 = vadd.f32 %v2600, %v4245
    %4247 = vmatprep.mubr.f32.mxu0 0.0
    %4248 = vmatmul.mubr.f32.gmra.mxu0 %v2678
    %v4249 = vpop.f32.mrf.mxu0
    %v4250 = vadd.f32 %v2605, %v4249
    %v4251 = vpop.f32.mrf.mxu0
    %v4252 = vadd.f32 %v2605, %v4251
    %4253 = vmatprep.mubr.f32.mxu0 0.0
    %4254 = vmatmul.mubr.f32.gmra.mxu0 %v2681
    %v4255 = vpop.f32.mrf.mxu0
    %v4256 = vadd.f32 %v2610, %v4255
    %v4257 = vpop.f32.mrf.mxu0
    %v4258 = vadd.f32 %v2610, %v4257
    %4259 = vmatprep.mubr.f32.mxu0 0.0
    %4260 = vmatmul.mubr.f32.gmra.mxu0 %v2684
    %v4261 = vpop.f32.mrf.mxu0
    %v4262 = vadd.f32 %v2615, %v4261
    %v4263 = vpop.f32.mrf.mxu0
    %v4264 = vadd.f32 %v2615, %v4263
    %4265 = vmatprep.mubr.f32.mxu0 0.0
    %4266 = vmatmul.mubr.f32.gmra.mxu0 %v2687
    %v4267 = vpop.f32.mrf.mxu0
    %v4268 = vadd.f32 %v2620, %v4267
    %v4269 = vpop.f32.mrf.mxu0
    %v4270 = vadd.f32 %v2620, %v4269
    %4271 = vmatprep.mubr.f32.mxu0 0.0
    %4272 = vmatmul.mubr.f32.gmra.mxu0 %v2690
    %v4273 = vpop.f32.mrf.mxu0
    %v4274 = vadd.f32 %v2625, %v4273
    %v4275 = vpop.f32.mrf.mxu0
    %v4276 = vadd.f32 %v2625, %v4275
    %4277 = vmatprep.mubr.f32.mxu0 0.0
    %4278 = vmatmul.mubr.f32.gmra.mxu0 %v2693
    %v4279 = vpop.f32.mrf.mxu0
    %v4280 = vadd.f32 %v2630, %v4279
    %v4281 = vpop.f32.mrf.mxu0
    %v4282 = vadd.f32 %v2630, %v4281
    %4283 = vmatprep.mubr.f32.mxu0 0.0
    %4284 = vmatmul.mubr.f32.gmra.mxu0 %v2696
    %v4285 = vpop.f32.mrf.mxu0
    %v4286 = vadd.f32 %v2635, %v4285
    %v4287 = vpop.f32.mrf.mxu0
    %v4288 = vadd.f32 %v2635, %v4287
    %4289 = vmatprep.mubr.f32.mxu0 0.0
    %4290 = vmatmul.mubr.f32.gmra.mxu0 %v2699
    %v4291 = vpop.f32.mrf.mxu0
    %v4292 = vadd.f32 %v2640, %v4291
    %v4293 = vpop.f32.mrf.mxu0
    %v4294 = vadd.f32 %v2640, %v4293
    %4295 = vmatprep.mubr.f32.mxu0 0.0
    %4296 = vmatmul.mubr.f32.gmra.mxu0 %v2702
    %v4297 = vpop.f32.mrf.mxu0
    %v4298 = vadd.f32 %v2645, %v4297
    %v4299 = vpop.f32.mrf.mxu0
    %v4300 = vadd.f32 %v2645, %v4299
    %4301 = vmatprep.mubr.f32.mxu0 0.0
    %4302 = vmatmul.mubr.f32.gmra.mxu0 %v2705
    %v4303 = vpop.f32.mrf.mxu0
    %v4304 = vadd.f32 %v2650, %v4303
    %v4305 = vpop.f32.mrf.mxu0
    %v4306 = vadd.f32 %v2650, %v4305
    %4307 = vmatprep.mubr.f32.mxu0 0.0
    %4308 = vmatmul.mubr.f32.gmra.mxu0 %v2708
    %v4309 = vpop.f32.mrf.mxu0
    %v4310 = vadd.f32 %v2655, %v4309
    %v4311 = vpop.f32.mrf.mxu0
    %v4312 = vadd.f32 %v2655, %v4311
    %4313 = vmatprep.mubr.f32.mxu0 0.0
    %4314 = vmatmul.mubr.f32.gmra.mxu0 %v2711
    %v4315 = vpop.f32.mrf.mxu0
    %v4316 = vadd.f32 %v2660, %v4315
    %v4317 = vpop.f32.mrf.mxu0
    %v4318 = vadd.f32 %v2660, %v4317
    %4319 = vmatprep.mubr.f32.mxu0 0.0
    %4320 = vmatmul.mubr.f32.gmra.mxu0 %v2714
    %v4321 = vpop.f32.mrf.mxu0
    %v4322 = vadd.f32 %v2665, %v4321
    %v4323 = vpop.f32.mrf.mxu0
    %v4324 = vadd.f32 %v2665, %v4323
    %4325 = vdwg.mxu0
    %4326 = vmatprep.subr.mxu0 0.0
    %4327 = vmatpush1.msra.mxu0 0.0
    %4328 = vmatprep.subr.mxu0 0.0
    %4329 = vmatpush1.msra.mxu0 0.0
    %4330 = vmatprep.subr.mxu0 0.0
    %4331 = vmatpush1.msra.mxu0 0.0
    %4332 = vmatprep.subr.mxu0 0.0
    %4333 = vmatpush1.msra.mxu0 0.0
    %4334 = vmatprep.subr.mxu0 0.0
    %4335 = vmatpush1.msra.mxu0 0.0
    %4336 = vmatprep.subr.mxu0 0.0
    %4337 = vmatpush1.msra.mxu0 0.0
    %4338 = vmatprep.subr.mxu0 %v2544
    %4339 = vmatpush1.msra.mxu0 %v2543
    %4340 = vmatprep.subr.mxu0 %v2512
    %4341 = vmatpush1.msra.mxu0 %v2511
    %4342 = vmatprep.subr.mxu0 %v2480
    %4343 = vmatpush1.msra.mxu0 %v2479
    %4344 = vmatprep.subr.mxu0 %v2448
    %4345 = vmatpush1.msra.mxu0 %v2447
    %4346 = vmatprep.subr.mxu0 %v2416
    %4347 = vmatpush1.msra.mxu0 %v2415
    %4348 = vmatprep.subr.mxu0 %v2384
    %4349 = vmatpush1.msra.mxu0 %v2383
    %4350 = vmatprep.subr.mxu0 %v2352
    %4351 = vmatpush1.msra.mxu0 %v2351
    %4352 = vmatprep.subr.mxu0 %v2320
    %4353 = vmatpush1.msra.mxu0 %v2319
    %4354 = vmatprep.subr.mxu0 %v2288
    %4355 = vmatpush1.msra.mxu0 %v2287
    %4356 = vmatprep.subr.mxu0 %v2256
    %4357 = vmatpush1.msra.mxu0 %v2255
    %4358 = vmatprep.subr.mxu0 0.0
    %4359 = vmatpush2.msra.mxu0 0.0
    %4360 = vmatprep.subr.mxu0 0.0
    %4361 = vmatpush2.msra.mxu0 0.0
    %4362 = vmatprep.subr.mxu0 0.0
    %4363 = vmatpush2.msra.mxu0 0.0
    %4364 = vmatprep.subr.mxu0 0.0
    %4365 = vmatpush2.msra.mxu0 0.0
    %4366 = vmatprep.subr.mxu0 0.0
    %4367 = vmatpush2.msra.mxu0 0.0
    %4368 = vmatprep.subr.mxu0 0.0
    %4369 = vmatpush2.msra.mxu0 0.0
    %4370 = vmatprep.subr.mxu0 0.0
    %4371 = vmatpush2.msra.mxu0 0.0
    %4372 = vmatprep.subr.mxu0 0.0
    %4373 = vmatpush2.msra.mxu0 0.0
    %4374 = vmatprep.subr.mxu0 0.0
    %4375 = vmatpush2.msra.mxu0 0.0
    %4376 = vmatprep.subr.mxu0 0.0
    %4377 = vmatpush2.msra.mxu0 0.0
    %4378 = vmatprep.subr.mxu0 0.0
    %4379 = vmatpush2.msra.mxu0 0.0
    %4380 = vmatprep.subr.mxu0 0.0
    %4381 = vmatpush2.msra.mxu0 0.0
    %4382 = vmatprep.subr.mxu0 0.0
    %4383 = vmatpush2.msra.mxu0 0.0
    %4384 = vmatprep.subr.mxu0 0.0
    %4385 = vmatpush2.msra.mxu0 0.0
    %4386 = vmatprep.subr.mxu0 0.0
    %4387 = vmatpush2.msra.mxu0 0.0
    %4388 = vmatprep.subr.mxu0 0.0
    %4389 = vmatpush2.msra.mxu0 0.0
    %4390 = vmatprep.mubr.f32.mxu0 0.0
    %4391 = vmatmul.mubr.f32.gmra.mxu0 %v2669
    %v4392 = vpop.f32.mrf.mxu0
    %v4393 = vadd.f32 %v2590, %v4392
    %v4394 = vpop.f32.mrf.mxu0
    %v4395 = vadd.f32 %v2590, %v4394
    %4396 = vmatprep.mubr.f32.mxu0 0.0
    %4397 = vmatmul.mubr.f32.gmra.mxu0 %v2672
    %v4398 = vpop.f32.mrf.mxu0
    %v4399 = vadd.f32 %v2595, %v4398
    %v4400 = vpop.f32.mrf.mxu0
    %v4401 = vadd.f32 %v2595, %v4400
    %4402 = vmatprep.mubr.f32.mxu0 0.0
    %4403 = vmatmul.mubr.f32.gmra.mxu0 %v2675
    %v4404 = vpop.f32.mrf.mxu0
    %v4405 = vadd.f32 %v2600, %v4404
    %v4406 = vpop.f32.mrf.mxu0
    %v4407 = vadd.f32 %v2600, %v4406
    %4408 = vmatprep.mubr.f32.mxu0 0.0
    %4409 = vmatmul.mubr.f32.gmra.mxu0 %v2678
    %v4410 = vpop.f32.mrf.mxu0
    %v4411 = vadd.f32 %v2605, %v4410
    %v4412 = vpop.f32.mrf.mxu0
    %v4413 = vadd.f32 %v2605, %v4412
    %4414 = vmatprep.mubr.f32.mxu0 0.0
    %4415 = vmatmul.mubr.f32.gmra.mxu0 %v2681
    %v4416 = vpop.f32.mrf.mxu0
    %v4417 = vadd.f32 %v2610, %v4416
    %v4418 = vpop.f32.mrf.mxu0
    %v4419 = vadd.f32 %v2610, %v4418
    %4420 = vmatprep.mubr.f32.mxu0 0.0
    %4421 = vmatmul.mubr.f32.gmra.mxu0 %v2684
    %v4422 = vpop.f32.mrf.mxu0
    %v4423 = vadd.f32 %v2615, %v4422
    %v4424 = vpop.f32.mrf.mxu0
    %v4425 = vadd.f32 %v2615, %v4424
    %4426 = vmatprep.mubr.f32.mxu0 0.0
    %4427 = vmatmul.mubr.f32.gmra.mxu0 %v2687
    %v4428 = vpop.f32.mrf.mxu0
    %v4429 = vadd.f32 %v2620, %v4428
    %v4430 = vpop.f32.mrf.mxu0
    %v4431 = vadd.f32 %v2620, %v4430
    %4432 = vmatprep.mubr.f32.mxu0 0.0
    %4433 = vmatmul.mubr.f32.gmra.mxu0 %v2690
    %v4434 = vpop.f32.mrf.mxu0
    %v4435 = vadd.f32 %v2625, %v4434
    %v4436 = vpop.f32.mrf.mxu0
    %v4437 = vadd.f32 %v2625, %v4436
    %4438 = vmatprep.mubr.f32.mxu0 0.0
    %4439 = vmatmul.mubr.f32.gmra.mxu0 %v2693
    %v4440 = vpop.f32.mrf.mxu0
    %v4441 = vadd.f32 %v2630, %v4440
    %v4442 = vpop.f32.mrf.mxu0
    %v4443 = vadd.f32 %v2630, %v4442
    %4444 = vmatprep.mubr.f32.mxu0 0.0
    %4445 = vmatmul.mubr.f32.gmra.mxu0 %v2696
    %v4446 = vpop.f32.mrf.mxu0
    %v4447 = vadd.f32 %v2635, %v4446
    %v4448 = vpop.f32.mrf.mxu0
    %v4449 = vadd.f32 %v2635, %v4448
    %4450 = vmatprep.mubr.f32.mxu0 0.0
    %4451 = vmatmul.mubr.f32.gmra.mxu0 %v2699
    %v4452 = vpop.f32.mrf.mxu0
    %v4453 = vadd.f32 %v2640, %v4452
    %v4454 = vpop.f32.mrf.mxu0
    %v4455 = vadd.f32 %v2640, %v4454
    %4456 = vmatprep.mubr.f32.mxu0 0.0
    %4457 = vmatmul.mubr.f32.gmra.mxu0 %v2702
    %v4458 = vpop.f32.mrf.mxu0
    %v4459 = vadd.f32 %v2645, %v4458
    %v4460 = vpop.f32.mrf.mxu0
    %v4461 = vadd.f32 %v2645, %v4460
    %4462 = vmatprep.mubr.f32.mxu0 0.0
    %4463 = vmatmul.mubr.f32.gmra.mxu0 %v2705
    %v4464 = vpop.f32.mrf.mxu0
    %v4465 = vadd.f32 %v2650, %v4464
    %v4466 = vpop.f32.mrf.mxu0
    %v4467 = vadd.f32 %v2650, %v4466
    %4468 = vmatprep.mubr.f32.mxu0 0.0
    %4469 = vmatmul.mubr.f32.gmra.mxu0 %v2708
    %v4470 = vpop.f32.mrf.mxu0
    %v4471 = vadd.f32 %v2655, %v4470
    %v4472 = vpop.f32.mrf.mxu0
    %v4473 = vadd.f32 %v2655, %v4472
    %4474 = vmatprep.mubr.f32.mxu0 0.0
    %4475 = vmatmul.mubr.f32.gmra.mxu0 %v2711
    %v4476 = vpop.f32.mrf.mxu0
    %v4477 = vadd.f32 %v2660, %v4476
    %v4478 = vpop.f32.mrf.mxu0
    %v4479 = vadd.f32 %v2660, %v4478
    %4480 = vmatprep.mubr.f32.mxu0 0.0
    %4481 = vmatmul.mubr.f32.gmra.mxu0 %v2714
    %v4482 = vpop.f32.mrf.mxu0
    %v4483 = vadd.f32 %v2665, %v4482
    %v4484 = vpop.f32.mrf.mxu0
    %v4485 = vadd.f32 %v2665, %v4484
    %4486 = vdwg.mxu0
    %4487 = vmatprep.subr.mxu0 0.0
    %4488 = vmatpush1.msra.mxu0 0.0
    %4489 = vmatprep.subr.mxu0 0.0
    %4490 = vmatpush1.msra.mxu0 0.0
    %4491 = vmatprep.subr.mxu0 0.0
    %4492 = vmatpush1.msra.mxu0 0.0
    %4493 = vmatprep.subr.mxu0 0.0
    %4494 = vmatpush1.msra.mxu0 0.0
    %4495 = vmatprep.subr.mxu0 0.0
    %4496 = vmatpush1.msra.mxu0 0.0
    %4497 = vmatprep.subr.mxu0 0.0
    %4498 = vmatpush1.msra.mxu0 0.0
    %4499 = vmatprep.subr.mxu0 %v2546
    %4500 = vmatpush1.msra.mxu0 %v2545
    %4501 = vmatprep.subr.mxu0 %v2514
    %4502 = vmatpush1.msra.mxu0 %v2513
    %4503 = vmatprep.subr.mxu0 %v2482
    %4504 = vmatpush1.msra.mxu0 %v2481
    %4505 = vmatprep.subr.mxu0 %v2450
    %4506 = vmatpush1.msra.mxu0 %v2449
    %4507 = vmatprep.subr.mxu0 %v2418
    %4508 = vmatpush1.msra.mxu0 %v2417
    %4509 = vmatprep.subr.mxu0 %v2386
    %4510 = vmatpush1.msra.mxu0 %v2385
    %4511 = vmatprep.subr.mxu0 %v2354
    %4512 = vmatpush1.msra.mxu0 %v2353
    %4513 = vmatprep.subr.mxu0 %v2322
    %4514 = vmatpush1.msra.mxu0 %v2321
    %4515 = vmatprep.subr.mxu0 %v2290
    %4516 = vmatpush1.msra.mxu0 %v2289
    %4517 = vmatprep.subr.mxu0 %v2258
    %4518 = vmatpush1.msra.mxu0 %v2257
    %4519 = vmatprep.subr.mxu0 0.0
    %4520 = vmatpush2.msra.mxu0 0.0
    %4521 = vmatprep.subr.mxu0 0.0
    %4522 = vmatpush2.msra.mxu0 0.0
    %4523 = vmatprep.subr.mxu0 0.0
    %4524 = vmatpush2.msra.mxu0 0.0
    %4525 = vmatprep.subr.mxu0 0.0
    %4526 = vmatpush2.msra.mxu0 0.0
    %4527 = vmatprep.subr.mxu0 0.0
    %4528 = vmatpush2.msra.mxu0 0.0
    %4529 = vmatprep.subr.mxu0 0.0
    %4530 = vmatpush2.msra.mxu0 0.0
    %4531 = vmatprep.subr.mxu0 0.0
    %4532 = vmatpush2.msra.mxu0 0.0
    %4533 = vmatprep.subr.mxu0 0.0
    %4534 = vmatpush2.msra.mxu0 0.0
    %4535 = vmatprep.subr.mxu0 0.0
    %4536 = vmatpush2.msra.mxu0 0.0
    %4537 = vmatprep.subr.mxu0 0.0
    %4538 = vmatpush2.msra.mxu0 0.0
    %4539 = vmatprep.subr.mxu0 0.0
    %4540 = vmatpush2.msra.mxu0 0.0
    %4541 = vmatprep.subr.mxu0 0.0
    %4542 = vmatpush2.msra.mxu0 0.0
    %4543 = vmatprep.subr.mxu0 0.0
    %4544 = vmatpush2.msra.mxu0 0.0
    %4545 = vmatprep.subr.mxu0 0.0
    %4546 = vmatpush2.msra.mxu0 0.0
    %4547 = vmatprep.subr.mxu0 0.0
    %4548 = vmatpush2.msra.mxu0 0.0
    %4549 = vmatprep.subr.mxu0 0.0
    %4550 = vmatpush2.msra.mxu0 0.0
    %4551 = vmatprep.mubr.f32.mxu0 0.0
    %4552 = vmatmul.mubr.f32.gmra.mxu0 %v2669
    %v4553 = vpop.f32.mrf.mxu0
    %v4554 = vadd.f32 %v2590, %v4553
    %v4555 = vpop.f32.mrf.mxu0
    %v4556 = vadd.f32 %v2590, %v4555
    %4557 = vmatprep.mubr.f32.mxu0 0.0
    %4558 = vmatmul.mubr.f32.gmra.mxu0 %v2672
    %v4559 = vpop.f32.mrf.mxu0
    %v4560 = vadd.f32 %v2595, %v4559
    %v4561 = vpop.f32.mrf.mxu0
    %v4562 = vadd.f32 %v2595, %v4561
    %4563 = vmatprep.mubr.f32.mxu0 0.0
    %4564 = vmatmul.mubr.f32.gmra.mxu0 %v2675
    %v4565 = vpop.f32.mrf.mxu0
    %v4566 = vadd.f32 %v2600, %v4565
    %v4567 = vpop.f32.mrf.mxu0
    %v4568 = vadd.f32 %v2600, %v4567
    %4569 = vmatprep.mubr.f32.mxu0 0.0
    %4570 = vmatmul.mubr.f32.gmra.mxu0 %v2678
    %v4571 = vpop.f32.mrf.mxu0
    %v4572 = vadd.f32 %v2605, %v4571
    %v4573 = vpop.f32.mrf.mxu0
    %v4574 = vadd.f32 %v2605, %v4573
    %4575 = vmatprep.mubr.f32.mxu0 0.0
    %4576 = vmatmul.mubr.f32.gmra.mxu0 %v2681
    %v4577 = vpop.f32.mrf.mxu0
    %v4578 = vadd.f32 %v2610, %v4577
    %v4579 = vpop.f32.mrf.mxu0
    %v4580 = vadd.f32 %v2610, %v4579
    %4581 = vmatprep.mubr.f32.mxu0 0.0
    %4582 = vmatmul.mubr.f32.gmra.mxu0 %v2684
    %v4583 = vpop.f32.mrf.mxu0
    %v4584 = vadd.f32 %v2615, %v4583
    %v4585 = vpop.f32.mrf.mxu0
    %v4586 = vadd.f32 %v2615, %v4585
    %4587 = vmatprep.mubr.f32.mxu0 0.0
    %4588 = vmatmul.mubr.f32.gmra.mxu0 %v2687
    %v4589 = vpop.f32.mrf.mxu0
    %v4590 = vadd.f32 %v2620, %v4589
    %v4591 = vpop.f32.mrf.mxu0
    %v4592 = vadd.f32 %v2620, %v4591
    %4593 = vmatprep.mubr.f32.mxu0 0.0
    %4594 = vmatmul.mubr.f32.gmra.mxu0 %v2690
    %v4595 = vpop.f32.mrf.mxu0
    %v4596 = vadd.f32 %v2625, %v4595
    %v4597 = vpop.f32.mrf.mxu0
    %v4598 = vadd.f32 %v2625, %v4597
    %4599 = vmatprep.mubr.f32.mxu0 0.0
    %4600 = vmatmul.mubr.f32.gmra.mxu0 %v2693
    %v4601 = vpop.f32.mrf.mxu0
    %v4602 = vadd.f32 %v2630, %v4601
    %v4603 = vpop.f32.mrf.mxu0
    %v4604 = vadd.f32 %v2630, %v4603
    %4605 = vmatprep.mubr.f32.mxu0 0.0
    %4606 = vmatmul.mubr.f32.gmra.mxu0 %v2696
    %v4607 = vpop.f32.mrf.mxu0
    %v4608 = vadd.f32 %v2635, %v4607
    %v4609 = vpop.f32.mrf.mxu0
    %v4610 = vadd.f32 %v2635, %v4609
    %4611 = vmatprep.mubr.f32.mxu0 0.0
    %4612 = vmatmul.mubr.f32.gmra.mxu0 %v2699
    %v4613 = vpop.f32.mrf.mxu0
    %v4614 = vadd.f32 %v2640, %v4613
    %v4615 = vpop.f32.mrf.mxu0
    %v4616 = vadd.f32 %v2640, %v4615
    %4617 = vmatprep.mubr.f32.mxu0 0.0
    %4618 = vmatmul.mubr.f32.gmra.mxu0 %v2702
    %v4619 = vpop.f32.mrf.mxu0
    %v4620 = vadd.f32 %v2645, %v4619
    %v4621 = vpop.f32.mrf.mxu0
    %v4622 = vadd.f32 %v2645, %v4621
    %4623 = vmatprep.mubr.f32.mxu0 0.0
    %4624 = vmatmul.mubr.f32.gmra.mxu0 %v2705
    %v4625 = vpop.f32.mrf.mxu0
    %v4626 = vadd.f32 %v2650, %v4625
    %v4627 = vpop.f32.mrf.mxu0
    %v4628 = vadd.f32 %v2650, %v4627
    %4629 = vmatprep.mubr.f32.mxu0 0.0
    %4630 = vmatmul.mubr.f32.gmra.mxu0 %v2708
    %v4631 = vpop.f32.mrf.mxu0
    %v4632 = vadd.f32 %v2655, %v4631
    %v4633 = vpop.f32.mrf.mxu0
    %v4634 = vadd.f32 %v2655, %v4633
    %4635 = vmatprep.mubr.f32.mxu0 0.0
    %4636 = vmatmul.mubr.f32.gmra.mxu0 %v2711
    %v4637 = vpop.f32.mrf.mxu0
    %v4638 = vadd.f32 %v2660, %v4637
    %v4639 = vpop.f32.mrf.mxu0
    %v4640 = vadd.f32 %v2660, %v4639
    %4641 = vmatprep.mubr.f32.mxu0 0.0
    %4642 = vmatmul.mubr.f32.gmra.mxu0 %v2714
    %v4643 = vpop.f32.mrf.mxu0
    %v4644 = vadd.f32 %v2665, %v4643
    %v4645 = vpop.f32.mrf.mxu0
    %v4646 = vadd.f32 %v2665, %v4645
    %4647 = vdwg.mxu0
    %4648 = vmatprep.subr.mxu0 0.0
    %4649 = vmatpush1.msra.mxu0 0.0
    %4650 = vmatprep.subr.mxu0 0.0
    %4651 = vmatpush1.msra.mxu0 0.0
    %4652 = vmatprep.subr.mxu0 0.0
    %4653 = vmatpush1.msra.mxu0 0.0
    %4654 = vmatprep.subr.mxu0 0.0
    %4655 = vmatpush1.msra.mxu0 0.0
    %4656 = vmatprep.subr.mxu0 0.0
    %4657 = vmatpush1.msra.mxu0 0.0
    %4658 = vmatprep.subr.mxu0 0.0
    %4659 = vmatpush1.msra.mxu0 0.0
    %4660 = vmatprep.subr.mxu0 %v2548
    %4661 = vmatpush1.msra.mxu0 %v2547
    %4662 = vmatprep.subr.mxu0 %v2516
    %4663 = vmatpush1.msra.mxu0 %v2515
    %4664 = vmatprep.subr.mxu0 %v2484
    %4665 = vmatpush1.msra.mxu0 %v2483
    %4666 = vmatprep.subr.mxu0 %v2452
    %4667 = vmatpush1.msra.mxu0 %v2451
    %4668 = vmatprep.subr.mxu0 %v2420
    %4669 = vmatpush1.msra.mxu0 %v2419
    %4670 = vmatprep.subr.mxu0 %v2388
    %4671 = vmatpush1.msra.mxu0 %v2387
    %4672 = vmatprep.subr.mxu0 %v2356
    %4673 = vmatpush1.msra.mxu0 %v2355
    %4674 = vmatprep.subr.mxu0 %v2324
    %4675 = vmatpush1.msra.mxu0 %v2323
    %4676 = vmatprep.subr.mxu0 %v2292
    %4677 = vmatpush1.msra.mxu0 %v2291
    %4678 = vmatprep.subr.mxu0 %v2260
    %4679 = vmatpush1.msra.mxu0 %v2259
    %4680 = vmatprep.subr.mxu0 0.0
    %4681 = vmatpush2.msra.mxu0 0.0
    %4682 = vmatprep.subr.mxu0 0.0
    %4683 = vmatpush2.msra.mxu0 0.0
    %4684 = vmatprep.subr.mxu0 0.0
    %4685 = vmatpush2.msra.mxu0 0.0
    %4686 = vmatprep.subr.mxu0 0.0
    %4687 = vmatpush2.msra.mxu0 0.0
    %4688 = vmatprep.subr.mxu0 0.0
    %4689 = vmatpush2.msra.mxu0 0.0
    %4690 = vmatprep.subr.mxu0 0.0
    %4691 = vmatpush2.msra.mxu0 0.0
    %4692 = vmatprep.subr.mxu0 0.0
    %4693 = vmatpush2.msra.mxu0 0.0
    %4694 = vmatprep.subr.mxu0 0.0
    %4695 = vmatpush2.msra.mxu0 0.0
    %4696 = vmatprep.subr.mxu0 0.0
    %4697 = vmatpush2.msra.mxu0 0.0
    %4698 = vmatprep.subr.mxu0 0.0
    %4699 = vmatpush2.msra.mxu0 0.0
    %4700 = vmatprep.subr.mxu0 0.0
    %4701 = vmatpush2.msra.mxu0 0.0
    %4702 = vmatprep.subr.mxu0 0.0
    %4703 = vmatpush2.msra.mxu0 0.0
    %4704 = vmatprep.subr.mxu0 0.0
    %4705 = vmatpush2.msra.mxu0 0.0
    %4706 = vmatprep.subr.mxu0 0.0
    %4707 = vmatpush2.msra.mxu0 0.0
    %4708 = vmatprep.subr.mxu0 0.0
    %4709 = vmatpush2.msra.mxu0 0.0
    %4710 = vmatprep.subr.mxu0 0.0
    %4711 = vmatpush2.msra.mxu0 0.0
    %4712 = vmatprep.mubr.f32.mxu0 0.0
    %4713 = vmatmul.mubr.f32.gmra.mxu0 %v2669
    %v4714 = vpop.f32.mrf.mxu0
    %v4715 = vadd.f32 %v2590, %v4714
    %v4716 = vpop.f32.mrf.mxu0
    %v4717 = vadd.f32 %v2590, %v4716
    %4718 = vmatprep.mubr.f32.mxu0 0.0
    %4719 = vmatmul.mubr.f32.gmra.mxu0 %v2672
    %v4720 = vpop.f32.mrf.mxu0
    %v4721 = vadd.f32 %v2595, %v4720
    %v4722 = vpop.f32.mrf.mxu0
    %v4723 = vadd.f32 %v2595, %v4722
    %4724 = vmatprep.mubr.f32.mxu0 0.0
    %4725 = vmatmul.mubr.f32.gmra.mxu0 %v2675
    %v4726 = vpop.f32.mrf.mxu0
    %v4727 = vadd.f32 %v2600, %v4726
    %v4728 = vpop.f32.mrf.mxu0
    %v4729 = vadd.f32 %v2600, %v4728
    %4730 = vmatprep.mubr.f32.mxu0 0.0
    %4731 = vmatmul.mubr.f32.gmra.mxu0 %v2678
    %v4732 = vpop.f32.mrf.mxu0
    %v4733 = vadd.f32 %v2605, %v4732
    %v4734 = vpop.f32.mrf.mxu0
    %v4735 = vadd.f32 %v2605, %v4734
    %4736 = vmatprep.mubr.f32.mxu0 0.0
    %4737 = vmatmul.mubr.f32.gmra.mxu0 %v2681
    %v4738 = vpop.f32.mrf.mxu0
    %v4739 = vadd.f32 %v2610, %v4738
    %v4740 = vpop.f32.mrf.mxu0
    %v4741 = vadd.f32 %v2610, %v4740
    %4742 = vmatprep.mubr.f32.mxu0 0.0
    %4743 = vmatmul.mubr.f32.gmra.mxu0 %v2684
    %v4744 = vpop.f32.mrf.mxu0
    %v4745 = vadd.f32 %v2615, %v4744
    %v4746 = vpop.f32.mrf.mxu0
    %v4747 = vadd.f32 %v2615, %v4746
    %4748 = vmatprep.mubr.f32.mxu0 0.0
    %4749 = vmatmul.mubr.f32.gmra.mxu0 %v2687
    %v4750 = vpop.f32.mrf.mxu0
    %v4751 = vadd.f32 %v2620, %v4750
    %v4752 = vpop.f32.mrf.mxu0
    %v4753 = vadd.f32 %v2620, %v4752
    %4754 = vmatprep.mubr.f32.mxu0 0.0
    %4755 = vmatmul.mubr.f32.gmra.mxu0 %v2690
    %v4756 = vpop.f32.mrf.mxu0
    %v4757 = vadd.f32 %v2625, %v4756
    %v4758 = vpop.f32.mrf.mxu0
    %v4759 = vadd.f32 %v2625, %v4758
    %4760 = vmatprep.mubr.f32.mxu0 0.0
    %4761 = vmatmul.mubr.f32.gmra.mxu0 %v2693
    %v4762 = vpop.f32.mrf.mxu0
    %v4763 = vadd.f32 %v2630, %v4762
    %v4764 = vpop.f32.mrf.mxu0
    %v4765 = vadd.f32 %v2630, %v4764
    %4766 = vmatprep.mubr.f32.mxu0 0.0
    %4767 = vmatmul.mubr.f32.gmra.mxu0 %v2696
    %v4768 = vpop.f32.mrf.mxu0
    %v4769 = vadd.f32 %v2635, %v4768
    %v4770 = vpop.f32.mrf.mxu0
    %v4771 = vadd.f32 %v2635, %v4770
    %4772 = vmatprep.mubr.f32.mxu0 0.0
    %4773 = vmatmul.mubr.f32.gmra.mxu0 %v2699
    %v4774 = vpop.f32.mrf.mxu0
    %v4775 = vadd.f32 %v2640, %v4774
    %v4776 = vpop.f32.mrf.mxu0
    %v4777 = vadd.f32 %v2640, %v4776
    %4778 = vmatprep.mubr.f32.mxu0 0.0
    %4779 = vmatmul.mubr.f32.gmra.mxu0 %v2702
    %v4780 = vpop.f32.mrf.mxu0
    %v4781 = vadd.f32 %v2645, %v4780
    %v4782 = vpop.f32.mrf.mxu0
    %v4783 = vadd.f32 %v2645, %v4782
    %4784 = vmatprep.mubr.f32.mxu0 0.0
    %4785 = vmatmul.mubr.f32.gmra.mxu0 %v2705
    %v4786 = vpop.f32.mrf.mxu0
    %v4787 = vadd.f32 %v2650, %v4786
    %v4788 = vpop.f32.mrf.mxu0
    %v4789 = vadd.f32 %v2650, %v4788
    %4790 = vmatprep.mubr.f32.mxu0 0.0
    %4791 = vmatmul.mubr.f32.gmra.mxu0 %v2708
    %v4792 = vpop.f32.mrf.mxu0
    %v4793 = vadd.f32 %v2655, %v4792
    %v4794 = vpop.f32.mrf.mxu0
    %v4795 = vadd.f32 %v2655, %v4794
    %4796 = vmatprep.mubr.f32.mxu0 0.0
    %4797 = vmatmul.mubr.f32.gmra.mxu0 %v2711
    %v4798 = vpop.f32.mrf.mxu0
    %v4799 = vadd.f32 %v2660, %v4798
    %v4800 = vpop.f32.mrf.mxu0
    %v4801 = vadd.f32 %v2660, %v4800
    %4802 = vmatprep.mubr.f32.mxu0 0.0
    %4803 = vmatmul.mubr.f32.gmra.mxu0 %v2714
    %v4804 = vpop.f32.mrf.mxu0
    %v4805 = vadd.f32 %v2665, %v4804
    %v4806 = vpop.f32.mrf.mxu0
    %v4807 = vadd.f32 %v2665, %v4806
    %4808 = vdwg.mxu0
    %4809 = vmatprep.subr.mxu0 0.0
    %4810 = vmatpush1.msra.mxu0 0.0
    %4811 = vmatprep.subr.mxu0 0.0
    %4812 = vmatpush1.msra.mxu0 0.0
    %4813 = vmatprep.subr.mxu0 0.0
    %4814 = vmatpush1.msra.mxu0 0.0
    %4815 = vmatprep.subr.mxu0 0.0
    %4816 = vmatpush1.msra.mxu0 0.0
    %4817 = vmatprep.subr.mxu0 0.0
    %4818 = vmatpush1.msra.mxu0 0.0
    %4819 = vmatprep.subr.mxu0 0.0
    %4820 = vmatpush1.msra.mxu0 0.0
    %4821 = vmatprep.subr.mxu0 %v2550
    %4822 = vmatpush1.msra.mxu0 %v2549
    %4823 = vmatprep.subr.mxu0 %v2518
    %4824 = vmatpush1.msra.mxu0 %v2517
    %4825 = vmatprep.subr.mxu0 %v2486
    %4826 = vmatpush1.msra.mxu0 %v2485
    %4827 = vmatprep.subr.mxu0 %v2454
    %4828 = vmatpush1.msra.mxu0 %v2453
    %4829 = vmatprep.subr.mxu0 %v2422
    %4830 = vmatpush1.msra.mxu0 %v2421
    %4831 = vmatprep.subr.mxu0 %v2390
    %4832 = vmatpush1.msra.mxu0 %v2389
    %4833 = vmatprep.subr.mxu0 %v2358
    %4834 = vmatpush1.msra.mxu0 %v2357
    %4835 = vmatprep.subr.mxu0 %v2326
    %4836 = vmatpush1.msra.mxu0 %v2325
    %4837 = vmatprep.subr.mxu0 %v2294
    %4838 = vmatpush1.msra.mxu0 %v2293
    %4839 = vmatprep.subr.mxu0 %v2262
    %4840 = vmatpush1.msra.mxu0 %v2261
    %4841 = vmatprep.subr.mxu0 0.0
    %4842 = vmatpush2.msra.mxu0 0.0
    %4843 = vmatprep.subr.mxu0 0.0
    %4844 = vmatpush2.msra.mxu0 0.0
    %4845 = vmatprep.subr.mxu0 0.0
    %4846 = vmatpush2.msra.mxu0 0.0
    %4847 = vmatprep.subr.mxu0 0.0
    %4848 = vmatpush2.msra.mxu0 0.0
    %4849 = vmatprep.subr.mxu0 0.0
    %4850 = vmatpush2.msra.mxu0 0.0
    %4851 = vmatprep.subr.mxu0 0.0
    %4852 = vmatpush2.msra.mxu0 0.0
    %4853 = vmatprep.subr.mxu0 0.0
    %4854 = vmatpush2.msra.mxu0 0.0
    %4855 = vmatprep.subr.mxu0 0.0
    %4856 = vmatpush2.msra.mxu0 0.0
    %4857 = vmatprep.subr.mxu0 0.0
    %4858 = vmatpush2.msra.mxu0 0.0
    %4859 = vmatprep.subr.mxu0 0.0
    %4860 = vmatpush2.msra.mxu0 0.0
    %4861 = vmatprep.subr.mxu0 0.0
    %4862 = vmatpush2.msra.mxu0 0.0
    %4863 = vmatprep.subr.mxu0 0.0
    %4864 = vmatpush2.msra.mxu0 0.0
    %4865 = vmatprep.subr.mxu0 0.0
    %4866 = vmatpush2.msra.mxu0 0.0
    %4867 = vmatprep.subr.mxu0 0.0
    %4868 = vmatpush2.msra.mxu0 0.0
    %4869 = vmatprep.subr.mxu0 0.0
    %4870 = vmatpush2.msra.mxu0 0.0
    %4871 = vmatprep.subr.mxu0 0.0
    %4872 = vmatpush2.msra.mxu0 0.0
    %4873 = vmatprep.mubr.f32.mxu0 0.0
    %4874 = vmatmul.mubr.f32.gmra.mxu0 %v2669
    %v4875 = vpop.f32.mrf.mxu0
    %v4876 = vadd.f32 %v2590, %v4875
    %v4877 = vpop.f32.mrf.mxu0
    %v4878 = vadd.f32 %v2590, %v4877
    %4879 = vmatprep.mubr.f32.mxu0 0.0
    %4880 = vmatmul.mubr.f32.gmra.mxu0 %v2672
    %v4881 = vpop.f32.mrf.mxu0
    %v4882 = vadd.f32 %v2595, %v4881
    %v4883 = vpop.f32.mrf.mxu0
    %v4884 = vadd.f32 %v2595, %v4883
    %4885 = vmatprep.mubr.f32.mxu0 0.0
    %4886 = vmatmul.mubr.f32.gmra.mxu0 %v2675
    %v4887 = vpop.f32.mrf.mxu0
    %v4888 = vadd.f32 %v2600, %v4887
    %v4889 = vpop.f32.mrf.mxu0
    %v4890 = vadd.f32 %v2600, %v4889
    %4891 = vmatprep.mubr.f32.mxu0 0.0
    %4892 = vmatmul.mubr.f32.gmra.mxu0 %v2678
    %v4893 = vpop.f32.mrf.mxu0
    %v4894 = vadd.f32 %v2605, %v4893
    %v4895 = vpop.f32.mrf.mxu0
    %v4896 = vadd.f32 %v2605, %v4895
    %4897 = vmatprep.mubr.f32.mxu0 0.0
    %4898 = vmatmul.mubr.f32.gmra.mxu0 %v2681
    %v4899 = vpop.f32.mrf.mxu0
    %v4900 = vadd.f32 %v2610, %v4899
    %v4901 = vpop.f32.mrf.mxu0
    %v4902 = vadd.f32 %v2610, %v4901
    %4903 = vmatprep.mubr.f32.mxu0 0.0
    %4904 = vmatmul.mubr.f32.gmra.mxu0 %v2684
    %v4905 = vpop.f32.mrf.mxu0
    %v4906 = vadd.f32 %v2615, %v4905
    %v4907 = vpop.f32.mrf.mxu0
    %v4908 = vadd.f32 %v2615, %v4907
    %4909 = vmatprep.mubr.f32.mxu0 0.0
    %4910 = vmatmul.mubr.f32.gmra.mxu0 %v2687
    %v4911 = vpop.f32.mrf.mxu0
    %v4912 = vadd.f32 %v2620, %v4911
    %v4913 = vpop.f32.mrf.mxu0
    %v4914 = vadd.f32 %v2620, %v4913
    %4915 = vmatprep.mubr.f32.mxu0 0.0
    %4916 = vmatmul.mubr.f32.gmra.mxu0 %v2690
    %v4917 = vpop.f32.mrf.mxu0
    %v4918 = vadd.f32 %v2625, %v4917
    %v4919 = vpop.f32.mrf.mxu0
    %v4920 = vadd.f32 %v2625, %v4919
    %4921 = vmatprep.mubr.f32.mxu0 0.0
    %4922 = vmatmul.mubr.f32.gmra.mxu0 %v2693
    %v4923 = vpop.f32.mrf.mxu0
    %v4924 = vadd.f32 %v2630, %v4923
    %v4925 = vpop.f32.mrf.mxu0
    %v4926 = vadd.f32 %v2630, %v4925
    %4927 = vmatprep.mubr.f32.mxu0 0.0
    %4928 = vmatmul.mubr.f32.gmra.mxu0 %v2696
    %v4929 = vpop.f32.mrf.mxu0
    %v4930 = vadd.f32 %v2635, %v4929
    %v4931 = vpop.f32.mrf.mxu0
    %v4932 = vadd.f32 %v2635, %v4931
    %4933 = vmatprep.mubr.f32.mxu0 0.0
    %4934 = vmatmul.mubr.f32.gmra.mxu0 %v2699
    %v4935 = vpop.f32.mrf.mxu0
    %v4936 = vadd.f32 %v2640, %v4935
    %v4937 = vpop.f32.mrf.mxu0
    %v4938 = vadd.f32 %v2640, %v4937
    %4939 = vmatprep.mubr.f32.mxu0 0.0
    %4940 = vmatmul.mubr.f32.gmra.mxu0 %v2702
    %v4941 = vpop.f32.mrf.mxu0
    %v4942 = vadd.f32 %v2645, %v4941
    %v4943 = vpop.f32.mrf.mxu0
    %v4944 = vadd.f32 %v2645, %v4943
    %4945 = vmatprep.mubr.f32.mxu0 0.0
    %4946 = vmatmul.mubr.f32.gmra.mxu0 %v2705
    %v4947 = vpop.f32.mrf.mxu0
    %v4948 = vadd.f32 %v2650, %v4947
    %v4949 = vpop.f32.mrf.mxu0
    %v4950 = vadd.f32 %v2650, %v4949
    %4951 = vmatprep.mubr.f32.mxu0 0.0
    %4952 = vmatmul.mubr.f32.gmra.mxu0 %v2708
    %v4953 = vpop.f32.mrf.mxu0
    %v4954 = vadd.f32 %v2655, %v4953
    %v4955 = vpop.f32.mrf.mxu0
    %v4956 = vadd.f32 %v2655, %v4955
    %4957 = vmatprep.mubr.f32.mxu0 0.0
    %4958 = vmatmul.mubr.f32.gmra.mxu0 %v2711
    %v4959 = vpop.f32.mrf.mxu0
    %v4960 = vadd.f32 %v2660, %v4959
    %v4961 = vpop.f32.mrf.mxu0
    %v4962 = vadd.f32 %v2660, %v4961
    %4963 = vmatprep.mubr.f32.mxu0 0.0
    %4964 = vmatmul.mubr.f32.gmra.mxu0 %v2714
    %v4965 = vpop.f32.mrf.mxu0
    %v4966 = vadd.f32 %v2665, %v4965
    %v4967 = vpop.f32.mrf.mxu0
    %v4968 = vadd.f32 %v2665, %v4967
    %4969 = vdwg.mxu0
    %4970 = vmatprep.subr.mxu0 0.0
    %4971 = vmatpush1.msra.mxu0 0.0
    %4972 = vmatprep.subr.mxu0 0.0
    %4973 = vmatpush1.msra.mxu0 0.0
    %4974 = vmatprep.subr.mxu0 0.0
    %4975 = vmatpush1.msra.mxu0 0.0
    %4976 = vmatprep.subr.mxu0 0.0
    %4977 = vmatpush1.msra.mxu0 0.0
    %4978 = vmatprep.subr.mxu0 0.0
    %4979 = vmatpush1.msra.mxu0 0.0
    %4980 = vmatprep.subr.mxu0 0.0
    %4981 = vmatpush1.msra.mxu0 0.0
    %4982 = vmatprep.subr.mxu0 %v2552
    %4983 = vmatpush1.msra.mxu0 %v2551
    %4984 = vmatprep.subr.mxu0 %v2520
    %4985 = vmatpush1.msra.mxu0 %v2519
    %4986 = vmatprep.subr.mxu0 %v2488
    %4987 = vmatpush1.msra.mxu0 %v2487
    %4988 = vmatprep.subr.mxu0 %v2456
    %4989 = vmatpush1.msra.mxu0 %v2455
    %4990 = vmatprep.subr.mxu0 %v2424
    %4991 = vmatpush1.msra.mxu0 %v2423
    %4992 = vmatprep.subr.mxu0 %v2392
    %4993 = vmatpush1.msra.mxu0 %v2391
    %4994 = vmatprep.subr.mxu0 %v2360
    %4995 = vmatpush1.msra.mxu0 %v2359
    %4996 = vmatprep.subr.mxu0 %v2328
    %4997 = vmatpush1.msra.mxu0 %v2327
    %4998 = vmatprep.subr.mxu0 %v2296
    %4999 = vmatpush1.msra.mxu0 %v2295
    %5000 = vmatprep.subr.mxu0 %v2264
    %5001 = vmatpush1.msra.mxu0 %v2263
    %5002 = vmatprep.subr.mxu0 0.0
    %5003 = vmatpush2.msra.mxu0 0.0
    %5004 = vmatprep.subr.mxu0 0.0
    %5005 = vmatpush2.msra.mxu0 0.0
    %5006 = vmatprep.subr.mxu0 0.0
    %5007 = vmatpush2.msra.mxu0 0.0
    %5008 = vmatprep.subr.mxu0 0.0
    %5009 = vmatpush2.msra.mxu0 0.0
    %5010 = vmatprep.subr.mxu0 0.0
    %5011 = vmatpush2.msra.mxu0 0.0
    %5012 = vmatprep.subr.mxu0 0.0
    %5013 = vmatpush2.msra.mxu0 0.0
    %5014 = vmatprep.subr.mxu0 0.0
    %5015 = vmatpush2.msra.mxu0 0.0
    %5016 = vmatprep.subr.mxu0 0.0
    %5017 = vmatpush2.msra.mxu0 0.0
    %5018 = vmatprep.subr.mxu0 0.0
    %5019 = vmatpush2.msra.mxu0 0.0
    %5020 = vmatprep.subr.mxu0 0.0
    %5021 = vmatpush2.msra.mxu0 0.0
    %5022 = vmatprep.subr.mxu0 0.0
    %5023 = vmatpush2.msra.mxu0 0.0
    %5024 = vmatprep.subr.mxu0 0.0
    %5025 = vmatpush2.msra.mxu0 0.0
    %5026 = vmatprep.subr.mxu0 0.0
    %5027 = vmatpush2.msra.mxu0 0.0
    %5028 = vmatprep.subr.mxu0 0.0
    %5029 = vmatpush2.msra.mxu0 0.0
    %5030 = vmatprep.subr.mxu0 0.0
    %5031 = vmatpush2.msra.mxu0 0.0
    %5032 = vmatprep.subr.mxu0 0.0
    %5033 = vmatpush2.msra.mxu0 0.0
    %5034 = vmatprep.mubr.f32.mxu0 0.0
    %5035 = vmatmul.mubr.f32.gmra.mxu0 %v2669
    %v5036 = vpop.f32.mrf.mxu0
    %v5037 = vadd.f32 %v2590, %v5036
    %v5038 = vpop.f32.mrf.mxu0
    %v5039 = vadd.f32 %v2590, %v5038
    %5040 = vmatprep.mubr.f32.mxu0 0.0
    %5041 = vmatmul.mubr.f32.gmra.mxu0 %v2672
    %v5042 = vpop.f32.mrf.mxu0
    %v5043 = vadd.f32 %v2595, %v5042
    %v5044 = vpop.f32.mrf.mxu0
    %v5045 = vadd.f32 %v2595, %v5044
    %5046 = vmatprep.mubr.f32.mxu0 0.0
    %5047 = vmatmul.mubr.f32.gmra.mxu0 %v2675
    %v5048 = vpop.f32.mrf.mxu0
    %v5049 = vadd.f32 %v2600, %v5048
    %v5050 = vpop.f32.mrf.mxu0
    %v5051 = vadd.f32 %v2600, %v5050
    %5052 = vmatprep.mubr.f32.mxu0 0.0
    %5053 = vmatmul.mubr.f32.gmra.mxu0 %v2678
    %v5054 = vpop.f32.mrf.mxu0
    %v5055 = vadd.f32 %v2605, %v5054
    %v5056 = vpop.f32.mrf.mxu0
    %v5057 = vadd.f32 %v2605, %v5056
    %5058 = vmatprep.mubr.f32.mxu0 0.0
    %5059 = vmatmul.mubr.f32.gmra.mxu0 %v2681
    %v5060 = vpop.f32.mrf.mxu0
    %v5061 = vadd.f32 %v2610, %v5060
    %v5062 = vpop.f32.mrf.mxu0
    %v5063 = vadd.f32 %v2610, %v5062
    %5064 = vmatprep.mubr.f32.mxu0 0.0
    %5065 = vmatmul.mubr.f32.gmra.mxu0 %v2684
    %v5066 = vpop.f32.mrf.mxu0
    %v5067 = vadd.f32 %v2615, %v5066
    %v5068 = vpop.f32.mrf.mxu0
    %v5069 = vadd.f32 %v2615, %v5068
    %5070 = vmatprep.mubr.f32.mxu0 0.0
    %5071 = vmatmul.mubr.f32.gmra.mxu0 %v2687
    %v5072 = vpop.f32.mrf.mxu0
    %v5073 = vadd.f32 %v2620, %v5072
    %v5074 = vpop.f32.mrf.mxu0
    %v5075 = vadd.f32 %v2620, %v5074
    %5076 = vmatprep.mubr.f32.mxu0 0.0
    %5077 = vmatmul.mubr.f32.gmra.mxu0 %v2690
    %v5078 = vpop.f32.mrf.mxu0
    %v5079 = vadd.f32 %v2625, %v5078
    %v5080 = vpop.f32.mrf.mxu0
    %v5081 = vadd.f32 %v2625, %v5080
    %5082 = vmatprep.mubr.f32.mxu0 0.0
    %5083 = vmatmul.mubr.f32.gmra.mxu0 %v2693
    %v5084 = vpop.f32.mrf.mxu0
    %v5085 = vadd.f32 %v2630, %v5084
    %v5086 = vpop.f32.mrf.mxu0
    %v5087 = vadd.f32 %v2630, %v5086
    %5088 = vmatprep.mubr.f32.mxu0 0.0
    %5089 = vmatmul.mubr.f32.gmra.mxu0 %v2696
    %v5090 = vpop.f32.mrf.mxu0
    %v5091 = vadd.f32 %v2635, %v5090
    %v5092 = vpop.f32.mrf.mxu0
    %v5093 = vadd.f32 %v2635, %v5092
    %5094 = vmatprep.mubr.f32.mxu0 0.0
    %5095 = vmatmul.mubr.f32.gmra.mxu0 %v2699
    %v5096 = vpop.f32.mrf.mxu0
    %v5097 = vadd.f32 %v2640, %v5096
    %v5098 = vpop.f32.mrf.mxu0
    %v5099 = vadd.f32 %v2640, %v5098
    %5100 = vmatprep.mubr.f32.mxu0 0.0
    %5101 = vmatmul.mubr.f32.gmra.mxu0 %v2702
    %v5102 = vpop.f32.mrf.mxu0
    %v5103 = vadd.f32 %v2645, %v5102
    %v5104 = vpop.f32.mrf.mxu0
    %v5105 = vadd.f32 %v2645, %v5104
    %5106 = vmatprep.mubr.f32.mxu0 0.0
    %5107 = vmatmul.mubr.f32.gmra.mxu0 %v2705
    %v5108 = vpop.f32.mrf.mxu0
    %v5109 = vadd.f32 %v2650, %v5108
    %v5110 = vpop.f32.mrf.mxu0
    %v5111 = vadd.f32 %v2650, %v5110
    %5112 = vmatprep.mubr.f32.mxu0 0.0
    %5113 = vmatmul.mubr.f32.gmra.mxu0 %v2708
    %v5114 = vpop.f32.mrf.mxu0
    %v5115 = vadd.f32 %v2655, %v5114
    %v5116 = vpop.f32.mrf.mxu0
    %v5117 = vadd.f32 %v2655, %v5116
    %5118 = vmatprep.mubr.f32.mxu0 0.0
    %5119 = vmatmul.mubr.f32.gmra.mxu0 %v2711
    %v5120 = vpop.f32.mrf.mxu0
    %v5121 = vadd.f32 %v2660, %v5120
    %v5122 = vpop.f32.mrf.mxu0
    %v5123 = vadd.f32 %v2660, %v5122
    %5124 = vmatprep.mubr.f32.mxu0 0.0
    %5125 = vmatmul.mubr.f32.gmra.mxu0 %v2714
    %v5126 = vpop.f32.mrf.mxu0
    %v5127 = vadd.f32 %v2665, %v5126
    %v5128 = vpop.f32.mrf.mxu0
    %v5129 = vadd.f32 %v2665, %v5128
    %5130 = vdwg.mxu0
    %5131 = vmatprep.subr.mxu0 0.0
    %5132 = vmatpush1.msra.mxu0 0.0
    %5133 = vmatprep.subr.mxu0 0.0
    %5134 = vmatpush1.msra.mxu0 0.0
    %5135 = vmatprep.subr.mxu0 0.0
    %5136 = vmatpush1.msra.mxu0 0.0
    %5137 = vmatprep.subr.mxu0 0.0
    %5138 = vmatpush1.msra.mxu0 0.0
    %5139 = vmatprep.subr.mxu0 0.0
    %5140 = vmatpush1.msra.mxu0 0.0
    %5141 = vmatprep.subr.mxu0 0.0
    %5142 = vmatpush1.msra.mxu0 0.0
    %5143 = vmatprep.subr.mxu0 %v2554
    %5144 = vmatpush1.msra.mxu0 %v2553
    %5145 = vmatprep.subr.mxu0 %v2522
    %5146 = vmatpush1.msra.mxu0 %v2521
    %5147 = vmatprep.subr.mxu0 %v2490
    %5148 = vmatpush1.msra.mxu0 %v2489
    %5149 = vmatprep.subr.mxu0 %v2458
    %5150 = vmatpush1.msra.mxu0 %v2457
    %5151 = vmatprep.subr.mxu0 %v2426
    %5152 = vmatpush1.msra.mxu0 %v2425
    %5153 = vmatprep.subr.mxu0 %v2394
    %5154 = vmatpush1.msra.mxu0 %v2393
    %5155 = vmatprep.subr.mxu0 %v2362
    %5156 = vmatpush1.msra.mxu0 %v2361
    %5157 = vmatprep.subr.mxu0 %v2330
    %5158 = vmatpush1.msra.mxu0 %v2329
    %5159 = vmatprep.subr.mxu0 %v2298
    %5160 = vmatpush1.msra.mxu0 %v2297
    %5161 = vmatprep.subr.mxu0 %v2266
    %5162 = vmatpush1.msra.mxu0 %v2265
    %5163 = vmatprep.subr.mxu0 0.0
    %5164 = vmatpush2.msra.mxu0 0.0
    %5165 = vmatprep.subr.mxu0 0.0
    %5166 = vmatpush2.msra.mxu0 0.0
    %5167 = vmatprep.subr.mxu0 0.0
    %5168 = vmatpush2.msra.mxu0 0.0
    %5169 = vmatprep.subr.mxu0 0.0
    %5170 = vmatpush2.msra.mxu0 0.0
    %5171 = vmatprep.subr.mxu0 0.0
    %5172 = vmatpush2.msra.mxu0 0.0
    %5173 = vmatprep.subr.mxu0 0.0
    %5174 = vmatpush2.msra.mxu0 0.0
    %5175 = vmatprep.subr.mxu0 0.0
    %5176 = vmatpush2.msra.mxu0 0.0
    %5177 = vmatprep.subr.mxu0 0.0
    %5178 = vmatpush2.msra.mxu0 0.0
    %5179 = vmatprep.subr.mxu0 0.0
    %5180 = vmatpush2.msra.mxu0 0.0
    %5181 = vmatprep.subr.mxu0 0.0
    %5182 = vmatpush2.msra.mxu0 0.0
    %5183 = vmatprep.subr.mxu0 0.0
    %5184 = vmatpush2.msra.mxu0 0.0
    %5185 = vmatprep.subr.mxu0 0.0
    %5186 = vmatpush2.msra.mxu0 0.0
    %5187 = vmatprep.subr.mxu0 0.0
    %5188 = vmatpush2.msra.mxu0 0.0
    %5189 = vmatprep.subr.mxu0 0.0
    %5190 = vmatpush2.msra.mxu0 0.0
    %5191 = vmatprep.subr.mxu0 0.0
    %5192 = vmatpush2.msra.mxu0 0.0
    %5193 = vmatprep.subr.mxu0 0.0
    %5194 = vmatpush2.msra.mxu0 0.0
    %5195 = vmatprep.mubr.f32.mxu0 0.0
    %5196 = vmatmul.mubr.f32.gmra.mxu0 %v2669
    %v5197 = vpop.f32.mrf.mxu0
    %v5198 = vadd.f32 %v2590, %v5197
    %v5199 = vpop.f32.mrf.mxu0
    %v5200 = vadd.f32 %v2590, %v5199
    %5201 = vmatprep.mubr.f32.mxu0 0.0
    %5202 = vmatmul.mubr.f32.gmra.mxu0 %v2672
    %v5203 = vpop.f32.mrf.mxu0
    %v5204 = vadd.f32 %v2595, %v5203
    %v5205 = vpop.f32.mrf.mxu0
    %v5206 = vadd.f32 %v2595, %v5205
    %5207 = vmatprep.mubr.f32.mxu0 0.0
    %5208 = vmatmul.mubr.f32.gmra.mxu0 %v2675
    %v5209 = vpop.f32.mrf.mxu0
    %v5210 = vadd.f32 %v2600, %v5209
    %v5211 = vpop.f32.mrf.mxu0
    %v5212 = vadd.f32 %v2600, %v5211
    %5213 = vmatprep.mubr.f32.mxu0 0.0
    %5214 = vmatmul.mubr.f32.gmra.mxu0 %v2678
    %v5215 = vpop.f32.mrf.mxu0
    %v5216 = vadd.f32 %v2605, %v5215
    %v5217 = vpop.f32.mrf.mxu0
    %v5218 = vadd.f32 %v2605, %v5217
    %5219 = vmatprep.mubr.f32.mxu0 0.0
    %5220 = vmatmul.mubr.f32.gmra.mxu0 %v2681
    %v5221 = vpop.f32.mrf.mxu0
    %v5222 = vadd.f32 %v2610, %v5221
    %v5223 = vpop.f32.mrf.mxu0
    %v5224 = vadd.f32 %v2610, %v5223
    %5225 = vmatprep.mubr.f32.mxu0 0.0
    %5226 = vmatmul.mubr.f32.gmra.mxu0 %v2684
    %v5227 = vpop.f32.mrf.mxu0
    %v5228 = vadd.f32 %v2615, %v5227
    %v5229 = vpop.f32.mrf.mxu0
    %v5230 = vadd.f32 %v2615, %v5229
    %5231 = vmatprep.mubr.f32.mxu0 0.0
    %5232 = vmatmul.mubr.f32.gmra.mxu0 %v2687
    %v5233 = vpop.f32.mrf.mxu0
    %v5234 = vadd.f32 %v2620, %v5233
    %v5235 = vpop.f32.mrf.mxu0
    %v5236 = vadd.f32 %v2620, %v5235
    %5237 = vmatprep.mubr.f32.mxu0 0.0
    %5238 = vmatmul.mubr.f32.gmra.mxu0 %v2690
    %v5239 = vpop.f32.mrf.mxu0
    %v5240 = vadd.f32 %v2625, %v5239
    %v5241 = vpop.f32.mrf.mxu0
    %v5242 = vadd.f32 %v2625, %v5241
    %5243 = vmatprep.mubr.f32.mxu0 0.0
    %5244 = vmatmul.mubr.f32.gmra.mxu0 %v2693
    %v5245 = vpop.f32.mrf.mxu0
    %v5246 = vadd.f32 %v2630, %v5245
    %v5247 = vpop.f32.mrf.mxu0
    %v5248 = vadd.f32 %v2630, %v5247
    %5249 = vmatprep.mubr.f32.mxu0 0.0
    %5250 = vmatmul.mubr.f32.gmra.mxu0 %v2696
    %v5251 = vpop.f32.mrf.mxu0
    %v5252 = vadd.f32 %v2635, %v5251
    %v5253 = vpop.f32.mrf.mxu0
    %v5254 = vadd.f32 %v2635, %v5253
    %5255 = vmatprep.mubr.f32.mxu0 0.0
    %5256 = vmatmul.mubr.f32.gmra.mxu0 %v2699
    %v5257 = vpop.f32.mrf.mxu0
    %v5258 = vadd.f32 %v2640, %v5257
    %v5259 = vpop.f32.mrf.mxu0
    %v5260 = vadd.f32 %v2640, %v5259
    %5261 = vmatprep.mubr.f32.mxu0 0.0
    %5262 = vmatmul.mubr.f32.gmra.mxu0 %v2702
    %v5263 = vpop.f32.mrf.mxu0
    %v5264 = vadd.f32 %v2645, %v5263
    %v5265 = vpop.f32.mrf.mxu0
    %v5266 = vadd.f32 %v2645, %v5265
    %5267 = vmatprep.mubr.f32.mxu0 0.0
    %5268 = vmatmul.mubr.f32.gmra.mxu0 %v2705
    %v5269 = vpop.f32.mrf.mxu0
    %v5270 = vadd.f32 %v2650, %v5269
    %v5271 = vpop.f32.mrf.mxu0
    %v5272 = vadd.f32 %v2650, %v5271
    %5273 = vmatprep.mubr.f32.mxu0 0.0
    %5274 = vmatmul.mubr.f32.gmra.mxu0 %v2708
    %v5275 = vpop.f32.mrf.mxu0
    %v5276 = vadd.f32 %v2655, %v5275
    %v5277 = vpop.f32.mrf.mxu0
    %v5278 = vadd.f32 %v2655, %v5277
    %5279 = vmatprep.mubr.f32.mxu0 0.0
    %5280 = vmatmul.mubr.f32.gmra.mxu0 %v2711
    %v5281 = vpop.f32.mrf.mxu0
    %v5282 = vadd.f32 %v2660, %v5281
    %v5283 = vpop.f32.mrf.mxu0
    %v5284 = vadd.f32 %v2660, %v5283
    %5285 = vmatprep.mubr.f32.mxu0 0.0
    %5286 = vmatmul.mubr.f32.gmra.mxu0 %v2714
    %v5287 = vpop.f32.mrf.mxu0
    %v5288 = vadd.f32 %v2665, %v5287
    %v5289 = vpop.f32.mrf.mxu0
    %v5290 = vadd.f32 %v2665, %v5289
    %5291 = vdwg.mxu0
    %v5292 = vmax.f32 %v2783, 0.0
    %v5293 = vmax.f32 %v2785, 0.0
    %v5294 = vmax.f32 %v2944, 0.0
    %v5295 = vmax.f32 %v2946, 0.0
    %v5296 = vmax.f32 %v3105, 0.0
    %v5297 = vmax.f32 %v3107, 0.0
    %v5298 = vmax.f32 %v3266, 0.0
    %v5299 = vmax.f32 %v3268, 0.0
    %v5300 = vmax.f32 %v3427, 0.0
    %v5301 = vmax.f32 %v3429, 0.0
    %v5302 = vmax.f32 %v3588, 0.0
    %v5303 = vmax.f32 %v3590, 0.0
    %v5304 = vmax.f32 %v3749, 0.0
    %v5305 = vmax.f32 %v3751, 0.0
    %v5306 = vmax.f32 %v3910, 0.0
    %v5307 = vmax.f32 %v3912, 0.0
    %v5308 = vmax.f32 %v4071, 0.0
    %v5309 = vmax.f32 %v4073, 0.0
    %v5310 = vmax.f32 %v4232, 0.0
    %v5311 = vmax.f32 %v4234, 0.0
    %v5312 = vmax.f32 %v4393, 0.0
    %v5313 = vmax.f32 %v4395, 0.0
    %v5314 = vmax.f32 %v4554, 0.0
    %v5315 = vmax.f32 %v4556, 0.0
    %v5316 = vmax.f32 %v4715, 0.0
    %v5317 = vmax.f32 %v4717, 0.0
    %v5318 = vmax.f32 %v4876, 0.0
    %v5319 = vmax.f32 %v4878, 0.0
    %v5320 = vmax.f32 %v5037, 0.0
    %v5321 = vmax.f32 %v5039, 0.0
    %v5322 = vmax.f32 %v5198, 0.0
    %v5323 = vmax.f32 %v5200, 0.0
    %v5324 = vmax.f32 %v2789, 0.0
    %v5325 = vmax.f32 %v2791, 0.0
    %v5326 = vmax.f32 %v2950, 0.0
    %v5327 = vmax.f32 %v2952, 0.0
    %v5328 = vmax.f32 %v3111, 0.0
    %v5329 = vmax.f32 %v3113, 0.0
    %v5330 = vmax.f32 %v3272, 0.0
    %v5331 = vmax.f32 %v3274, 0.0
    %v5332 = vmax.f32 %v3433, 0.0
    %v5333 = vmax.f32 %v3435, 0.0
    %v5334 = vmax.f32 %v3594, 0.0
    %v5335 = vmax.f32 %v3596, 0.0
    %v5336 = vmax.f32 %v3755, 0.0
    %v5337 = vmax.f32 %v3757, 0.0
    %v5338 = vmax.f32 %v3916, 0.0
    %v5339 = vmax.f32 %v3918, 0.0
    %v5340 = vmax.f32 %v4077, 0.0
    %v5341 = vmax.f32 %v4079, 0.0
    %v5342 = vmax.f32 %v4238, 0.0
    %v5343 = vmax.f32 %v4240, 0.0
    %v5344 = vmax.f32 %v4399, 0.0
    %v5345 = vmax.f32 %v4401, 0.0
    %v5346 = vmax.f32 %v4560, 0.0
    %v5347 = vmax.f32 %v4562, 0.0
    %v5348 = vmax.f32 %v4721, 0.0
    %v5349 = vmax.f32 %v4723, 0.0
    %v5350 = vmax.f32 %v4882, 0.0
    %v5351 = vmax.f32 %v4884, 0.0
    %v5352 = vmax.f32 %v5043, 0.0
    %v5353 = vmax.f32 %v5045, 0.0
    %v5354 = vmax.f32 %v5204, 0.0
    %v5355 = vmax.f32 %v5206, 0.0
    %v5356 = vmax.f32 %v2795, 0.0
    %v5357 = vmax.f32 %v2797, 0.0
    %v5358 = vmax.f32 %v2956, 0.0
    %v5359 = vmax.f32 %v2958, 0.0
    %v5360 = vmax.f32 %v3117, 0.0
    %v5361 = vmax.f32 %v3119, 0.0
    %v5362 = vmax.f32 %v3278, 0.0
    %v5363 = vmax.f32 %v3280, 0.0
    %v5364 = vmax.f32 %v3439, 0.0
    %v5365 = vmax.f32 %v3441, 0.0
    %v5366 = vmax.f32 %v3600, 0.0
    %v5367 = vmax.f32 %v3602, 0.0
    %v5368 = vmax.f32 %v3761, 0.0
    %v5369 = vmax.f32 %v3763, 0.0
    %v5370 = vmax.f32 %v3922, 0.0
    %v5371 = vmax.f32 %v3924, 0.0
    %v5372 = vmax.f32 %v4083, 0.0
    %v5373 = vmax.f32 %v4085, 0.0
    %v5374 = vmax.f32 %v4244, 0.0
    %v5375 = vmax.f32 %v4246, 0.0
    %v5376 = vmax.f32 %v4405, 0.0
    %v5377 = vmax.f32 %v4407, 0.0
    %v5378 = vmax.f32 %v4566, 0.0
    %v5379 = vmax.f32 %v4568, 0.0
    %v5380 = vmax.f32 %v4727, 0.0
    %v5381 = vmax.f32 %v4729, 0.0
    %v5382 = vmax.f32 %v4888, 0.0
    %v5383 = vmax.f32 %v4890, 0.0
    %v5384 = vmax.f32 %v5049, 0.0
    %v5385 = vmax.f32 %v5051, 0.0
    %v5386 = vmax.f32 %v5210, 0.0
    %v5387 = vmax.f32 %v5212, 0.0
    %v5388 = vmax.f32 %v2801, 0.0
    %v5389 = vmax.f32 %v2803, 0.0
    %v5390 = vmax.f32 %v2962, 0.0
    %v5391 = vmax.f32 %v2964, 0.0
    %v5392 = vmax.f32 %v3123, 0.0
    %v5393 = vmax.f32 %v3125, 0.0
    %v5394 = vmax.f32 %v3284, 0.0
    %v5395 = vmax.f32 %v3286, 0.0
    %v5396 = vmax.f32 %v3445, 0.0
    %v5397 = vmax.f32 %v3447, 0.0
    %v5398 = vmax.f32 %v3606, 0.0
    %v5399 = vmax.f32 %v3608, 0.0
    %v5400 = vmax.f32 %v3767, 0.0
    %v5401 = vmax.f32 %v3769, 0.0
    %v5402 = vmax.f32 %v3928, 0.0
    %v5403 = vmax.f32 %v3930, 0.0
    %v5404 = vmax.f32 %v4089, 0.0
    %v5405 = vmax.f32 %v4091, 0.0
    %v5406 = vmax.f32 %v4250, 0.0
    %v5407 = vmax.f32 %v4252, 0.0
    %v5408 = vmax.f32 %v4411, 0.0
    %v5409 = vmax.f32 %v4413, 0.0
    %v5410 = vmax.f32 %v4572, 0.0
    %v5411 = vmax.f32 %v4574, 0.0
    %v5412 = vmax.f32 %v4733, 0.0
    %v5413 = vmax.f32 %v4735, 0.0
    %v5414 = vmax.f32 %v4894, 0.0
    %v5415 = vmax.f32 %v4896, 0.0
    %v5416 = vmax.f32 %v5055, 0.0
    %v5417 = vmax.f32 %v5057, 0.0
    %v5418 = vmax.f32 %v5216, 0.0
    %v5419 = vmax.f32 %v5218, 0.0
    %v5420 = vmax.f32 %v2807, 0.0
    %v5421 = vmax.f32 %v2809, 0.0
    %v5422 = vmax.f32 %v2968, 0.0
    %v5423 = vmax.f32 %v2970, 0.0
    %v5424 = vmax.f32 %v3129, 0.0
    %v5425 = vmax.f32 %v3131, 0.0
    %v5426 = vmax.f32 %v3290, 0.0
    %v5427 = vmax.f32 %v3292, 0.0
    %v5428 = vmax.f32 %v3451, 0.0
    %v5429 = vmax.f32 %v3453, 0.0
    %v5430 = vmax.f32 %v3612, 0.0
    %v5431 = vmax.f32 %v3614, 0.0
    %v5432 = vmax.f32 %v3773, 0.0
    %v5433 = vmax.f32 %v3775, 0.0
    %v5434 = vmax.f32 %v3934, 0.0
    %v5435 = vmax.f32 %v3936, 0.0
    %v5436 = vmax.f32 %v4095, 0.0
    %v5437 = vmax.f32 %v4097, 0.0
    %v5438 = vmax.f32 %v4256, 0.0
    %v5439 = vmax.f32 %v4258, 0.0
    %v5440 = vmax.f32 %v4417, 0.0
    %v5441 = vmax.f32 %v4419, 0.0
    %v5442 = vmax.f32 %v4578, 0.0
    %v5443 = vmax.f32 %v4580, 0.0
    %v5444 = vmax.f32 %v4739, 0.0
    %v5445 = vmax.f32 %v4741, 0.0
    %v5446 = vmax.f32 %v4900, 0.0
    %v5447 = vmax.f32 %v4902, 0.0
    %v5448 = vmax.f32 %v5061, 0.0
    %v5449 = vmax.f32 %v5063, 0.0
    %v5450 = vmax.f32 %v5222, 0.0
    %v5451 = vmax.f32 %v5224, 0.0
    %v5452 = vmax.f32 %v2813, 0.0
    %v5453 = vmax.f32 %v2815, 0.0
    %v5454 = vmax.f32 %v2974, 0.0
    %v5455 = vmax.f32 %v2976, 0.0
    %v5456 = vmax.f32 %v3135, 0.0
    %v5457 = vmax.f32 %v3137, 0.0
    %v5458 = vmax.f32 %v3296, 0.0
    %v5459 = vmax.f32 %v3298, 0.0
    %v5460 = vmax.f32 %v3457, 0.0
    %v5461 = vmax.f32 %v3459, 0.0
    %v5462 = vmax.f32 %v3618, 0.0
    %v5463 = vmax.f32 %v3620, 0.0
    %v5464 = vmax.f32 %v3779, 0.0
    %v5465 = vmax.f32 %v3781, 0.0
    %v5466 = vmax.f32 %v3940, 0.0
    %v5467 = vmax.f32 %v3942, 0.0
    %v5468 = vmax.f32 %v4101, 0.0
    %v5469 = vmax.f32 %v4103, 0.0
    %v5470 = vmax.f32 %v4262, 0.0
    %v5471 = vmax.f32 %v4264, 0.0
    %v5472 = vmax.f32 %v4423, 0.0
    %v5473 = vmax.f32 %v4425, 0.0
    %v5474 = vmax.f32 %v4584, 0.0
    %v5475 = vmax.f32 %v4586, 0.0
    %v5476 = vmax.f32 %v4745, 0.0
    %v5477 = vmax.f32 %v4747, 0.0
    %v5478 = vmax.f32 %v4906, 0.0
    %v5479 = vmax.f32 %v4908, 0.0
    %v5480 = vmax.f32 %v5067, 0.0
    %v5481 = vmax.f32 %v5069, 0.0
    %v5482 = vmax.f32 %v5228, 0.0
    %v5483 = vmax.f32 %v5230, 0.0
    %v5484 = vmax.f32 %v2819, 0.0
    %v5485 = vmax.f32 %v2821, 0.0
    %v5486 = vmax.f32 %v2980, 0.0
    %v5487 = vmax.f32 %v2982, 0.0
    %v5488 = vmax.f32 %v3141, 0.0
    %v5489 = vmax.f32 %v3143, 0.0
    %v5490 = vmax.f32 %v3302, 0.0
    %v5491 = vmax.f32 %v3304, 0.0
    %v5492 = vmax.f32 %v3463, 0.0
    %v5493 = vmax.f32 %v3465, 0.0
    %v5494 = vmax.f32 %v3624, 0.0
    %v5495 = vmax.f32 %v3626, 0.0
    %v5496 = vmax.f32 %v3785, 0.0
    %v5497 = vmax.f32 %v3787, 0.0
    %v5498 = vmax.f32 %v3946, 0.0
    %v5499 = vmax.f32 %v3948, 0.0
    %v5500 = vmax.f32 %v4107, 0.0
    %v5501 = vmax.f32 %v4109, 0.0
    %v5502 = vmax.f32 %v4268, 0.0
    %v5503 = vmax.f32 %v4270, 0.0
    %v5504 = vmax.f32 %v4429, 0.0
    %v5505 = vmax.f32 %v4431, 0.0
    %v5506 = vmax.f32 %v4590, 0.0
    %v5507 = vmax.f32 %v4592, 0.0
    %v5508 = vmax.f32 %v4751, 0.0
    %v5509 = vmax.f32 %v4753, 0.0
    %v5510 = vmax.f32 %v4912, 0.0
    %v5511 = vmax.f32 %v4914, 0.0
    %v5512 = vmax.f32 %v5073, 0.0
    %v5513 = vmax.f32 %v5075, 0.0
    %v5514 = vmax.f32 %v5234, 0.0
    %v5515 = vmax.f32 %v5236, 0.0
    %v5516 = vmax.f32 %v2825, 0.0
    %v5517 = vmax.f32 %v2827, 0.0
    %v5518 = vmax.f32 %v2986, 0.0
    %v5519 = vmax.f32 %v2988, 0.0
    %v5520 = vmax.f32 %v3147, 0.0
    %v5521 = vmax.f32 %v3149, 0.0
    %v5522 = vmax.f32 %v3308, 0.0
    %v5523 = vmax.f32 %v3310, 0.0
    %v5524 = vmax.f32 %v3469, 0.0
    %v5525 = vmax.f32 %v3471, 0.0
    %v5526 = vmax.f32 %v3630, 0.0
    %v5527 = vmax.f32 %v3632, 0.0
    %v5528 = vmax.f32 %v3791, 0.0
    %v5529 = vmax.f32 %v3793, 0.0
    %v5530 = vmax.f32 %v3952, 0.0
    %v5531 = vmax.f32 %v3954, 0.0
    %v5532 = vmax.f32 %v4113, 0.0
    %v5533 = vmax.f32 %v4115, 0.0
    %v5534 = vmax.f32 %v4274, 0.0
    %v5535 = vmax.f32 %v4276, 0.0
    %v5536 = vmax.f32 %v4435, 0.0
    %v5537 = vmax.f32 %v4437, 0.0
    %v5538 = vmax.f32 %v4596, 0.0
    %v5539 = vmax.f32 %v4598, 0.0
    %v5540 = vmax.f32 %v4757, 0.0
    %v5541 = vmax.f32 %v4759, 0.0
    %v5542 = vmax.f32 %v4918, 0.0
    %v5543 = vmax.f32 %v4920, 0.0
    %v5544 = vmax.f32 %v5079, 0.0
    %v5545 = vmax.f32 %v5081, 0.0
    %v5546 = vmax.f32 %v5240, 0.0
    %v5547 = vmax.f32 %v5242, 0.0
    %v5548 = vmax.f32 %v2831, 0.0
    %v5549 = vmax.f32 %v2833, 0.0
    %v5550 = vmax.f32 %v2992, 0.0
    %v5551 = vmax.f32 %v2994, 0.0
    %v5552 = vmax.f32 %v3153, 0.0
    %v5553 = vmax.f32 %v3155, 0.0
    %v5554 = vmax.f32 %v3314, 0.0
    %v5555 = vmax.f32 %v3316, 0.0
    %v5556 = vmax.f32 %v3475, 0.0
    %v5557 = vmax.f32 %v3477, 0.0
    %v5558 = vmax.f32 %v3636, 0.0
    %v5559 = vmax.f32 %v3638, 0.0
    %v5560 = vmax.f32 %v3797, 0.0
    %v5561 = vmax.f32 %v3799, 0.0
    %v5562 = vmax.f32 %v3958, 0.0
    %v5563 = vmax.f32 %v3960, 0.0
    %v5564 = vmax.f32 %v4119, 0.0
    %v5565 = vmax.f32 %v4121, 0.0
    %v5566 = vmax.f32 %v4280, 0.0
    %v5567 = vmax.f32 %v4282, 0.0
    %v5568 = vmax.f32 %v4441, 0.0
    %v5569 = vmax.f32 %v4443, 0.0
    %v5570 = vmax.f32 %v4602, 0.0
    %v5571 = vmax.f32 %v4604, 0.0
    %v5572 = vmax.f32 %v4763, 0.0
    %v5573 = vmax.f32 %v4765, 0.0
    %v5574 = vmax.f32 %v4924, 0.0
    %v5575 = vmax.f32 %v4926, 0.0
    %v5576 = vmax.f32 %v5085, 0.0
    %v5577 = vmax.f32 %v5087, 0.0
    %v5578 = vmax.f32 %v5246, 0.0
    %v5579 = vmax.f32 %v5248, 0.0
    %v5580 = vmax.f32 %v2837, 0.0
    %v5581 = vmax.f32 %v2839, 0.0
    %v5582 = vmax.f32 %v2998, 0.0
    %v5583 = vmax.f32 %v3000, 0.0
    %v5584 = vmax.f32 %v3159, 0.0
    %v5585 = vmax.f32 %v3161, 0.0
    %v5586 = vmax.f32 %v3320, 0.0
    %v5587 = vmax.f32 %v3322, 0.0
    %v5588 = vmax.f32 %v3481, 0.0
    %v5589 = vmax.f32 %v3483, 0.0
    %v5590 = vmax.f32 %v3642, 0.0
    %v5591 = vmax.f32 %v3644, 0.0
    %v5592 = vmax.f32 %v3803, 0.0
    %v5593 = vmax.f32 %v3805, 0.0
    %v5594 = vmax.f32 %v3964, 0.0
    %v5595 = vmax.f32 %v3966, 0.0
    %v5596 = vmax.f32 %v4125, 0.0
    %v5597 = vmax.f32 %v4127, 0.0
    %v5598 = vmax.f32 %v4286, 0.0
    %v5599 = vmax.f32 %v4288, 0.0
    %v5600 = vmax.f32 %v4447, 0.0
    %v5601 = vmax.f32 %v4449, 0.0
    %v5602 = vmax.f32 %v4608, 0.0
    %v5603 = vmax.f32 %v4610, 0.0
    %v5604 = vmax.f32 %v4769, 0.0
    %v5605 = vmax.f32 %v4771, 0.0
    %v5606 = vmax.f32 %v4930, 0.0
    %v5607 = vmax.f32 %v4932, 0.0
    %v5608 = vmax.f32 %v5091, 0.0
    %v5609 = vmax.f32 %v5093, 0.0
    %v5610 = vmax.f32 %v5252, 0.0
    %v5611 = vmax.f32 %v5254, 0.0
    %v5612 = vmax.f32 %v2843, 0.0
    %v5613 = vmax.f32 %v2845, 0.0
    %v5614 = vmax.f32 %v3004, 0.0
    %v5615 = vmax.f32 %v3006, 0.0
    %v5616 = vmax.f32 %v3165, 0.0
    %v5617 = vmax.f32 %v3167, 0.0
    %v5618 = vmax.f32 %v3326, 0.0
    %v5619 = vmax.f32 %v3328, 0.0
    %v5620 = vmax.f32 %v3487, 0.0
    %v5621 = vmax.f32 %v3489, 0.0
    %v5622 = vmax.f32 %v3648, 0.0
    %v5623 = vmax.f32 %v3650, 0.0
    %v5624 = vmax.f32 %v3809, 0.0
    %v5625 = vmax.f32 %v3811, 0.0
    %v5626 = vmax.f32 %v3970, 0.0
    %v5627 = vmax.f32 %v3972, 0.0
    %v5628 = vmax.f32 %v4131, 0.0
    %v5629 = vmax.f32 %v4133, 0.0
    %v5630 = vmax.f32 %v4292, 0.0
    %v5631 = vmax.f32 %v4294, 0.0
    %v5632 = vmax.f32 %v4453, 0.0
    %v5633 = vmax.f32 %v4455, 0.0
    %v5634 = vmax.f32 %v4614, 0.0
    %v5635 = vmax.f32 %v4616, 0.0
    %v5636 = vmax.f32 %v4775, 0.0
    %v5637 = vmax.f32 %v4777, 0.0
    %v5638 = vmax.f32 %v4936, 0.0
    %v5639 = vmax.f32 %v4938, 0.0
    %v5640 = vmax.f32 %v5097, 0.0
    %v5641 = vmax.f32 %v5099, 0.0
    %v5642 = vmax.f32 %v5258, 0.0
    %v5643 = vmax.f32 %v5260, 0.0
    %v5644 = vmax.f32 %v2849, 0.0
    %v5645 = vmax.f32 %v2851, 0.0
    %v5646 = vmax.f32 %v3010, 0.0
    %v5647 = vmax.f32 %v3012, 0.0
    %v5648 = vmax.f32 %v3171, 0.0
    %v5649 = vmax.f32 %v3173, 0.0
    %v5650 = vmax.f32 %v3332, 0.0
    %v5651 = vmax.f32 %v3334, 0.0
    %v5652 = vmax.f32 %v3493, 0.0
    %v5653 = vmax.f32 %v3495, 0.0
    %v5654 = vmax.f32 %v3654, 0.0
    %v5655 = vmax.f32 %v3656, 0.0
    %v5656 = vmax.f32 %v3815, 0.0
    %v5657 = vmax.f32 %v3817, 0.0
    %v5658 = vmax.f32 %v3976, 0.0
    %v5659 = vmax.f32 %v3978, 0.0
    %v5660 = vmax.f32 %v4137, 0.0
    %v5661 = vmax.f32 %v4139, 0.0
    %v5662 = vmax.f32 %v4298, 0.0
    %v5663 = vmax.f32 %v4300, 0.0
    %v5664 = vmax.f32 %v4459, 0.0
    %v5665 = vmax.f32 %v4461, 0.0
    %v5666 = vmax.f32 %v4620, 0.0
    %v5667 = vmax.f32 %v4622, 0.0
    %v5668 = vmax.f32 %v4781, 0.0
    %v5669 = vmax.f32 %v4783, 0.0
    %v5670 = vmax.f32 %v4942, 0.0
    %v5671 = vmax.f32 %v4944, 0.0
    %v5672 = vmax.f32 %v5103, 0.0
    %v5673 = vmax.f32 %v5105, 0.0
    %v5674 = vmax.f32 %v5264, 0.0
    %v5675 = vmax.f32 %v5266, 0.0
    %v5676 = vmax.f32 %v2855, 0.0
    %v5677 = vmax.f32 %v2857, 0.0
    %v5678 = vmax.f32 %v3016, 0.0
    %v5679 = vmax.f32 %v3018, 0.0
    %v5680 = vmax.f32 %v3177, 0.0
    %v5681 = vmax.f32 %v3179, 0.0
    %v5682 = vmax.f32 %v3338, 0.0
    %v5683 = vmax.f32 %v3340, 0.0
    %v5684 = vmax.f32 %v3499, 0.0
    %v5685 = vmax.f32 %v3501, 0.0
    %v5686 = vmax.f32 %v3660, 0.0
    %v5687 = vmax.f32 %v3662, 0.0
    %v5688 = vmax.f32 %v3821, 0.0
    %v5689 = vmax.f32 %v3823, 0.0
    %v5690 = vmax.f32 %v3982, 0.0
    %v5691 = vmax.f32 %v3984, 0.0
    %v5692 = vmax.f32 %v4143, 0.0
    %v5693 = vmax.f32 %v4145, 0.0
    %v5694 = vmax.f32 %v4304, 0.0
    %v5695 = vmax.f32 %v4306, 0.0
    %v5696 = vmax.f32 %v4465, 0.0
    %v5697 = vmax.f32 %v4467, 0.0
    %v5698 = vmax.f32 %v4626, 0.0
    %v5699 = vmax.f32 %v4628, 0.0
    %v5700 = vmax.f32 %v4787, 0.0
    %v5701 = vmax.f32 %v4789, 0.0
    %v5702 = vmax.f32 %v4948, 0.0
    %v5703 = vmax.f32 %v4950, 0.0
    %v5704 = vmax.f32 %v5109, 0.0
    %v5705 = vmax.f32 %v5111, 0.0
    %v5706 = vmax.f32 %v5270, 0.0
    %v5707 = vmax.f32 %v5272, 0.0
    %v5708 = vmax.f32 %v2861, 0.0
    %v5709 = vmax.f32 %v2863, 0.0
    %v5710 = vmax.f32 %v3022, 0.0
    %v5711 = vmax.f32 %v3024, 0.0
    %v5712 = vmax.f32 %v3183, 0.0
    %v5713 = vmax.f32 %v3185, 0.0
    %v5714 = vmax.f32 %v3344, 0.0
    %v5715 = vmax.f32 %v3346, 0.0
    %v5716 = vmax.f32 %v3505, 0.0
    %v5717 = vmax.f32 %v3507, 0.0
    %v5718 = vmax.f32 %v3666, 0.0
    %v5719 = vmax.f32 %v3668, 0.0
    %v5720 = vmax.f32 %v3827, 0.0
    %v5721 = vmax.f32 %v3829, 0.0
    %v5722 = vmax.f32 %v3988, 0.0
    %v5723 = vmax.f32 %v3990, 0.0
    %v5724 = vmax.f32 %v4149, 0.0
    %v5725 = vmax.f32 %v4151, 0.0
    %v5726 = vmax.f32 %v4310, 0.0
    %v5727 = vmax.f32 %v4312, 0.0
    %v5728 = vmax.f32 %v4471, 0.0
    %v5729 = vmax.f32 %v4473, 0.0
    %v5730 = vmax.f32 %v4632, 0.0
    %v5731 = vmax.f32 %v4634, 0.0
    %v5732 = vmax.f32 %v4793, 0.0
    %v5733 = vmax.f32 %v4795, 0.0
    %v5734 = vmax.f32 %v4954, 0.0
    %v5735 = vmax.f32 %v4956, 0.0
    %v5736 = vmax.f32 %v5115, 0.0
    %v5737 = vmax.f32 %v5117, 0.0
    %v5738 = vmax.f32 %v5276, 0.0
    %v5739 = vmax.f32 %v5278, 0.0
    %v5740 = vmax.f32 %v2867, 0.0
    %v5741 = vmax.f32 %v2869, 0.0
    %v5742 = vmax.f32 %v3028, 0.0
    %v5743 = vmax.f32 %v3030, 0.0
    %v5744 = vmax.f32 %v3189, 0.0
    %v5745 = vmax.f32 %v3191, 0.0
    %v5746 = vmax.f32 %v3350, 0.0
    %v5747 = vmax.f32 %v3352, 0.0
    %v5748 = vmax.f32 %v3511, 0.0
    %v5749 = vmax.f32 %v3513, 0.0
    %v5750 = vmax.f32 %v3672, 0.0
    %v5751 = vmax.f32 %v3674, 0.0
    %v5752 = vmax.f32 %v3833, 0.0
    %v5753 = vmax.f32 %v3835, 0.0
    %v5754 = vmax.f32 %v3994, 0.0
    %v5755 = vmax.f32 %v3996, 0.0
    %v5756 = vmax.f32 %v4155, 0.0
    %v5757 = vmax.f32 %v4157, 0.0
    %v5758 = vmax.f32 %v4316, 0.0
    %v5759 = vmax.f32 %v4318, 0.0
    %v5760 = vmax.f32 %v4477, 0.0
    %v5761 = vmax.f32 %v4479, 0.0
    %v5762 = vmax.f32 %v4638, 0.0
    %v5763 = vmax.f32 %v4640, 0.0
    %v5764 = vmax.f32 %v4799, 0.0
    %v5765 = vmax.f32 %v4801, 0.0
    %v5766 = vmax.f32 %v4960, 0.0
    %v5767 = vmax.f32 %v4962, 0.0
    %v5768 = vmax.f32 %v5121, 0.0
    %v5769 = vmax.f32 %v5123, 0.0
    %v5770 = vmax.f32 %v5282, 0.0
    %v5771 = vmax.f32 %v5284, 0.0
    %v5772 = vmax.f32 %v2873, 0.0
    %v5773 = vmax.f32 %v2875, 0.0
    %v5774 = vmax.f32 %v3034, 0.0
    %v5775 = vmax.f32 %v3036, 0.0
    %v5776 = vmax.f32 %v3195, 0.0
    %v5777 = vmax.f32 %v3197, 0.0
    %v5778 = vmax.f32 %v3356, 0.0
    %v5779 = vmax.f32 %v3358, 0.0
    %v5780 = vmax.f32 %v3517, 0.0
    %v5781 = vmax.f32 %v3519, 0.0
    %v5782 = vmax.f32 %v3678, 0.0
    %v5783 = vmax.f32 %v3680, 0.0
    %v5784 = vmax.f32 %v3839, 0.0
    %v5785 = vmax.f32 %v3841, 0.0
    %v5786 = vmax.f32 %v4000, 0.0
    %v5787 = vmax.f32 %v4002, 0.0
    %v5788 = vmax.f32 %v4161, 0.0
    %v5789 = vmax.f32 %v4163, 0.0
    %v5790 = vmax.f32 %v4322, 0.0
    %v5791 = vmax.f32 %v4324, 0.0
    %v5792 = vmax.f32 %v4483, 0.0
    %v5793 = vmax.f32 %v4485, 0.0
    %v5794 = vmax.f32 %v4644, 0.0
    %v5795 = vmax.f32 %v4646, 0.0
    %v5796 = vmax.f32 %v4805, 0.0
    %v5797 = vmax.f32 %v4807, 0.0
    %v5798 = vmax.f32 %v4966, 0.0
    %v5799 = vmax.f32 %v4968, 0.0
    %v5800 = vmax.f32 %v5127, 0.0
    %v5801 = vmax.f32 %v5129, 0.0
    %v5802 = vmax.f32 %v5288, 0.0
    %v5803 = vmax.f32 %v5290, 0.0
    %v5804 = vld [vmem:[%s3] sm:$0xff]
    %v5805 = vld [vmem:[%s4] sm:$0xff]
    %5807 = vset.pattern.permute.xlu0 2
    %5808 = vperm.xlu0 %5807, %v5805
    %v5809 = vpop.permute.xlu0 %5808
    %5811 = vmatprep.subr.mxu0 %v5773
    %5812 = vmatpush1.msra.mxu0 %v5772
    %5813 = vmatprep.subr.mxu0 %v5741
    %5814 = vmatpush1.msra.mxu0 %v5740
    %5815 = vmatprep.subr.mxu0 %v5709
    %5816 = vmatpush1.msra.mxu0 %v5708
    %5817 = vmatprep.subr.mxu0 %v5677
    %5818 = vmatpush1.msra.mxu0 %v5676
    %5819 = vmatprep.subr.mxu0 %v5645
    %5820 = vmatpush1.msra.mxu0 %v5644
    %5821 = vmatprep.subr.mxu0 %v5613
    %5822 = vmatpush1.msra.mxu0 %v5612
    %5823 = vmatprep.subr.mxu0 %v5581
    %5824 = vmatpush1.msra.mxu0 %v5580
    %5825 = vmatprep.subr.mxu0 %v5549
    %5826 = vmatpush1.msra.mxu0 %v5548
    %5827 = vmatprep.subr.mxu0 %v5517
    %5828 = vmatpush1.msra.mxu0 %v5516
    %5829 = vmatprep.subr.mxu0 %v5485
    %5830 = vmatpush1.msra.mxu0 %v5484
    %5831 = vmatprep.subr.mxu0 %v5453
    %5832 = vmatpush1.msra.mxu0 %v5452
    %5833 = vmatprep.subr.mxu0 %v5421
    %5834 = vmatpush1.msra.mxu0 %v5420
    %5835 = vmatprep.subr.mxu0 %v5389
    %5836 = vmatpush1.msra.mxu0 %v5388
    %5837 = vmatprep.subr.mxu0 %v5357
    %5838 = vmatpush1.msra.mxu0 %v5356
    %5839 = vmatprep.subr.mxu0 %v5325
    %5840 = vmatpush1.msra.mxu0 %v5324
    %5841 = vmatprep.subr.mxu0 %v5293
    %5842 = vmatpush1.msra.mxu0 %v5292
    %5843 = vmatprep.subr.mxu0 0.0
    %5844 = vmatpush2.msra.mxu0 0.0
    %5845 = vmatprep.subr.mxu0 0.0
    %5846 = vmatpush2.msra.mxu0 0.0
    %5847 = vmatprep.subr.mxu0 0.0
    %5848 = vmatpush2.msra.mxu0 0.0
    %5849 = vmatprep.subr.mxu0 0.0
    %5850 = vmatpush2.msra.mxu0 0.0
    %5851 = vmatprep.subr.mxu0 0.0
    %5852 = vmatpush2.msra.mxu0 0.0
    %5853 = vmatprep.subr.mxu0 0.0
    %5854 = vmatpush2.msra.mxu0 0.0
    %5855 = vmatprep.subr.mxu0 0.0
    %5856 = vmatpush2.msra.mxu0 0.0
    %5857 = vmatprep.subr.mxu0 0.0
    %5858 = vmatpush2.msra.mxu0 0.0
    %5859 = vmatprep.subr.mxu0 0.0
    %5860 = vmatpush2.msra.mxu0 0.0
    %5861 = vmatprep.subr.mxu0 0.0
    %5862 = vmatpush2.msra.mxu0 0.0
    %5863 = vmatprep.subr.mxu0 0.0
    %5864 = vmatpush2.msra.mxu0 0.0
    %5865 = vmatprep.subr.mxu0 0.0
    %5866 = vmatpush2.msra.mxu0 0.0
    %5867 = vmatprep.subr.mxu0 0.0
    %5868 = vmatpush2.msra.mxu0 0.0
    %5869 = vmatprep.subr.mxu0 0.0
    %5870 = vmatpush2.msra.mxu0 0.0
    %5871 = vmatprep.subr.mxu0 0.0
    %5872 = vmatpush2.msra.mxu0 0.0
    %5873 = vmatprep.subr.mxu0 0.0
    %5874 = vmatpush2.msra.mxu0 0.0
    %5875 = vmatprep.mubr.f32.mxu0 0.0
    %5876 = vmatmul.mubr.f32.gmra.mxu0 %v5804
    %v5877 = vpop.f32.mrf.mxu0
    %v5878 = vadd.f32 %v5809, %v5877
    %v5879 = vpop.f32.mrf.mxu0
    %v5880 = vadd.f32 %v5809, %v5879
    %5881 = vdwg.mxu0
    %5882 = vmatprep.subr.mxu0 %v5775
    %5883 = vmatpush1.msra.mxu0 %v5774
    %5884 = vmatprep.subr.mxu0 %v5743
    %5885 = vmatpush1.msra.mxu0 %v5742
    %5886 = vmatprep.subr.mxu0 %v5711
    %5887 = vmatpush1.msra.mxu0 %v5710
    %5888 = vmatprep.subr.mxu0 %v5679
    %5889 = vmatpush1.msra.mxu0 %v5678
    %5890 = vmatprep.subr.mxu0 %v5647
    %5891 = vmatpush1.msra.mxu0 %v5646
    %5892 = vmatprep.subr.mxu0 %v5615
    %5893 = vmatpush1.msra.mxu0 %v5614
    %5894 = vmatprep.subr.mxu0 %v5583
    %5895 = vmatpush1.msra.mxu0 %v5582
    %5896 = vmatprep.subr.mxu0 %v5551
    %5897 = vmatpush1.msra.mxu0 %v5550
    %5898 = vmatprep.subr.mxu0 %v5519
    %5899 = vmatpush1.msra.mxu0 %v5518
    %5900 = vmatprep.subr.mxu0 %v5487
    %5901 = vmatpush1.msra.mxu0 %v5486
    %5902 = vmatprep.subr.mxu0 %v5455
    %5903 = vmatpush1.msra.mxu0 %v5454
    %5904 = vmatprep.subr.mxu0 %v5423
    %5905 = vmatpush1.msra.mxu0 %v5422
    %5906 = vmatprep.subr.mxu0 %v5391
    %5907 = vmatpush1.msra.mxu0 %v5390
    %5908 = vmatprep.subr.mxu0 %v5359
    %5909 = vmatpush1.msra.mxu0 %v5358
    %5910 = vmatprep.subr.mxu0 %v5327
    %5911 = vmatpush1.msra.mxu0 %v5326
    %5912 = vmatprep.subr.mxu0 %v5295
    %5913 = vmatpush1.msra.mxu0 %v5294
    %5914 = vmatprep.subr.mxu0 0.0
    %5915 = vmatpush2.msra.mxu0 0.0
    %5916 = vmatprep.subr.mxu0 0.0
    %5917 = vmatpush2.msra.mxu0 0.0
    %5918 = vmatprep.subr.mxu0 0.0
    %5919 = vmatpush2.msra.mxu0 0.0
    %5920 = vmatprep.subr.mxu0 0.0
    %5921 = vmatpush2.msra.mxu0 0.0
    %5922 = vmatprep.subr.mxu0 0.0
    %5923 = vmatpush2.msra.mxu0 0.0
    %5924 = vmatprep.subr.mxu0 0.0
    %5925 = vmatpush2.msra.mxu0 0.0
    %5926 = vmatprep.subr.mxu0 0.0
    %5927 = vmatpush2.msra.mxu0 0.0
    %5928 = vmatprep.subr.mxu0 0.0
    %5929 = vmatpush2.msra.mxu0 0.0
    %5930 = vmatprep.subr.mxu0 0.0
    %5931 = vmatpush2.msra.mxu0 0.0
    %5932 = vmatprep.subr.mxu0 0.0
    %5933 = vmatpush2.msra.mxu0 0.0
    %5934 = vmatprep.subr.mxu0 0.0
    %5935 = vmatpush2.msra.mxu0 0.0
    %5936 = vmatprep.subr.mxu0 0.0
    %5937 = vmatpush2.msra.mxu0 0.0
    %5938 = vmatprep.subr.mxu0 0.0
    %5939 = vmatpush2.msra.mxu0 0.0
    %5940 = vmatprep.subr.mxu0 0.0
    %5941 = vmatpush2.msra.mxu0 0.0
    %5942 = vmatprep.subr.mxu0 0.0
    %5943 = vmatpush2.msra.mxu0 0.0
    %5944 = vmatprep.subr.mxu0 0.0
    %5945 = vmatpush2.msra.mxu0 0.0
    %5946 = vmatprep.mubr.f32.mxu0 0.0
    %5947 = vmatmul.mubr.f32.gmra.mxu0 %v5804
    %v5948 = vpop.f32.mrf.mxu0
    %v5949 = vadd.f32 %v5809, %v5948
    %v5950 = vpop.f32.mrf.mxu0
    %v5951 = vadd.f32 %v5809, %v5950
    %5952 = vdwg.mxu0
    %5953 = vmatprep.subr.mxu0 %v5777
    %5954 = vmatpush1.msra.mxu0 %v5776
    %5955 = vmatprep.subr.mxu0 %v5745
    %5956 = vmatpush1.msra.mxu0 %v5744
    %5957 = vmatprep.subr.mxu0 %v5713
    %5958 = vmatpush1.msra.mxu0 %v5712
    %5959 = vmatprep.subr.mxu0 %v5681
    %5960 = vmatpush1.msra.mxu0 %v5680
    %5961 = vmatprep.subr.mxu0 %v5649
    %5962 = vmatpush1.msra.mxu0 %v5648
    %5963 = vmatprep.subr.mxu0 %v5617
    %5964 = vmatpush1.msra.mxu0 %v5616
    %5965 = vmatprep.subr.mxu0 %v5585
    %5966 = vmatpush1.msra.mxu0 %v5584
    %5967 = vmatprep.subr.mxu0 %v5553
    %5968 = vmatpush1.msra.mxu0 %v5552
    %5969 = vmatprep.subr.mxu0 %v5521
    %5970 = vmatpush1.msra.mxu0 %v5520
    %5971 = vmatprep.subr.mxu0 %v5489
    %5972 = vmatpush1.msra.mxu0 %v5488
    %5973 = vmatprep.subr.mxu0 %v5457
    %5974 = vmatpush1.msra.mxu0 %v5456
    %5975 = vmatprep.subr.mxu0 %v5425
    %5976 = vmatpush1.msra.mxu0 %v5424
    %5977 = vmatprep.subr.mxu0 %v5393
    %5978 = vmatpush1.msra.mxu0 %v5392
    %5979 = vmatprep.subr.mxu0 %v5361
    %5980 = vmatpush1.msra.mxu0 %v5360
    %5981 = vmatprep.subr.mxu0 %v5329
    %5982 = vmatpush1.msra.mxu0 %v5328
    %5983 = vmatprep.subr.mxu0 %v5297
    %5984 = vmatpush1.msra.mxu0 %v5296
    %5985 = vmatprep.subr.mxu0 0.0
    %5986 = vmatpush2.msra.mxu0 0.0
    %5987 = vmatprep.subr.mxu0 0.0
    %5988 = vmatpush2.msra.mxu0 0.0
    %5989 = vmatprep.subr.mxu0 0.0
    %5990 = vmatpush2.msra.mxu0 0.0
    %5991 = vmatprep.subr.mxu0 0.0
    %5992 = vmatpush2.msra.mxu0 0.0
    %5993 = vmatprep.subr.mxu0 0.0
    %5994 = vmatpush2.msra.mxu0 0.0
    %5995 = vmatprep.subr.mxu0 0.0
    %5996 = vmatpush2.msra.mxu0 0.0
    %5997 = vmatprep.subr.mxu0 0.0
    %5998 = vmatpush2.msra.mxu0 0.0
    %5999 = vmatprep.subr.mxu0 0.0
    %6000 = vmatpush2.msra.mxu0 0.0
    %6001 = vmatprep.subr.mxu0 0.0
    %6002 = vmatpush2.msra.mxu0 0.0
    %6003 = vmatprep.subr.mxu0 0.0
    %6004 = vmatpush2.msra.mxu0 0.0
    %6005 = vmatprep.subr.mxu0 0.0
    %6006 = vmatpush2.msra.mxu0 0.0
    %6007 = vmatprep.subr.mxu0 0.0
    %6008 = vmatpush2.msra.mxu0 0.0
    %6009 = vmatprep.subr.mxu0 0.0
    %6010 = vmatpush2.msra.mxu0 0.0
    %6011 = vmatprep.subr.mxu0 0.0
    %6012 = vmatpush2.msra.mxu0 0.0
    %6013 = vmatprep.subr.mxu0 0.0
    %6014 = vmatpush2.msra.mxu0 0.0
    %6015 = vmatprep.subr.mxu0 0.0
    %6016 = vmatpush2.msra.mxu0 0.0
    %6017 = vmatprep.mubr.f32.mxu0 0.0
    %6018 = vmatmul.mubr.f32.gmra.mxu0 %v5804
    %v6019 = vpop.f32.mrf.mxu0
    %v6020 = vadd.f32 %v5809, %v6019
    %v6021 = vpop.f32.mrf.mxu0
    %v6022 = vadd.f32 %v5809, %v6021
    %6023 = vdwg.mxu0
    %6024 = vmatprep.subr.mxu0 %v5779
    %6025 = vmatpush1.msra.mxu0 %v5778
    %6026 = vmatprep.subr.mxu0 %v5747
    %6027 = vmatpush1.msra.mxu0 %v5746
    %6028 = vmatprep.subr.mxu0 %v5715
    %6029 = vmatpush1.msra.mxu0 %v5714
    %6030 = vmatprep.subr.mxu0 %v5683
    %6031 = vmatpush1.msra.mxu0 %v5682
    %6032 = vmatprep.subr.mxu0 %v5651
    %6033 = vmatpush1.msra.mxu0 %v5650
    %6034 = vmatprep.subr.mxu0 %v5619
    %6035 = vmatpush1.msra.mxu0 %v5618
    %6036 = vmatprep.subr.mxu0 %v5587
    %6037 = vmatpush1.msra.mxu0 %v5586
    %6038 = vmatprep.subr.mxu0 %v5555
    %6039 = vmatpush1.msra.mxu0 %v5554
    %6040 = vmatprep.subr.mxu0 %v5523
    %6041 = vmatpush1.msra.mxu0 %v5522
    %6042 = vmatprep.subr.mxu0 %v5491
    %6043 = vmatpush1.msra.mxu0 %v5490
    %6044 = vmatprep.subr.mxu0 %v5459
    %6045 = vmatpush1.msra.mxu0 %v5458
    %6046 = vmatprep.subr.mxu0 %v5427
    %6047 = vmatpush1.msra.mxu0 %v5426
    %6048 = vmatprep.subr.mxu0 %v5395
    %6049 = vmatpush1.msra.mxu0 %v5394
    %6050 = vmatprep.subr.mxu0 %v5363
    %6051 = vmatpush1.msra.mxu0 %v5362
    %6052 = vmatprep.subr.mxu0 %v5331
    %6053 = vmatpush1.msra.mxu0 %v5330
    %6054 = vmatprep.subr.mxu0 %v5299
    %6055 = vmatpush1.msra.mxu0 %v5298
    %6056 = vmatprep.subr.mxu0 0.0
    %6057 = vmatpush2.msra.mxu0 0.0
    %6058 = vmatprep.subr.mxu0 0.0
    %6059 = vmatpush2.msra.mxu0 0.0
    %6060 = vmatprep.subr.mxu0 0.0
    %6061 = vmatpush2.msra.mxu0 0.0
    %6062 = vmatprep.subr.mxu0 0.0
    %6063 = vmatpush2.msra.mxu0 0.0
    %6064 = vmatprep.subr.mxu0 0.0
    %6065 = vmatpush2.msra.mxu0 0.0
    %6066 = vmatprep.subr.mxu0 0.0
    %6067 = vmatpush2.msra.mxu0 0.0
    %6068 = vmatprep.subr.mxu0 0.0
    %6069 = vmatpush2.msra.mxu0 0.0
    %6070 = vmatprep.subr.mxu0 0.0
    %6071 = vmatpush2.msra.mxu0 0.0
    %6072 = vmatprep.subr.mxu0 0.0
    %6073 = vmatpush2.msra.mxu0 0.0
    %6074 = vmatprep.subr.mxu0 0.0
    %6075 = vmatpush2.msra.mxu0 0.0
    %6076 = vmatprep.subr.mxu0 0.0
    %6077 = vmatpush2.msra.mxu0 0.0
    %6078 = vmatprep.subr.mxu0 0.0
    %6079 = vmatpush2.msra.mxu0 0.0
    %6080 = vmatprep.subr.mxu0 0.0
    %6081 = vmatpush2.msra.mxu0 0.0
    %6082 = vmatprep.subr.mxu0 0.0
    %6083 = vmatpush2.msra.mxu0 0.0
    %6084 = vmatprep.subr.mxu0 0.0
    %6085 = vmatpush2.msra.mxu0 0.0
    %6086 = vmatprep.subr.mxu0 0.0
    %6087 = vmatpush2.msra.mxu0 0.0
    %6088 = vmatprep.mubr.f32.mxu0 0.0
    %6089 = vmatmul.mubr.f32.gmra.mxu0 %v5804
    %v6090 = vpop.f32.mrf.mxu0
    %v6091 = vadd.f32 %v5809, %v6090
    %v6092 = vpop.f32.mrf.mxu0
    %v6093 = vadd.f32 %v5809, %v6092
    %6094 = vdwg.mxu0
    %6095 = vmatprep.subr.mxu0 %v5781
    %6096 = vmatpush1.msra.mxu0 %v5780
    %6097 = vmatprep.subr.mxu0 %v5749
    %6098 = vmatpush1.msra.mxu0 %v5748
    %6099 = vmatprep.subr.mxu0 %v5717
    %6100 = vmatpush1.msra.mxu0 %v5716
    %6101 = vmatprep.subr.mxu0 %v5685
    %6102 = vmatpush1.msra.mxu0 %v5684
    %6103 = vmatprep.subr.mxu0 %v5653
    %6104 = vmatpush1.msra.mxu0 %v5652
    %6105 = vmatprep.subr.mxu0 %v5621
    %6106 = vmatpush1.msra.mxu0 %v5620
    %6107 = vmatprep.subr.mxu0 %v5589
    %6108 = vmatpush1.msra.mxu0 %v5588
    %6109 = vmatprep.subr.mxu0 %v5557
    %6110 = vmatpush1.msra.mxu0 %v5556
    %6111 = vmatprep.subr.mxu0 %v5525
    %6112 = vmatpush1.msra.mxu0 %v5524
    %6113 = vmatprep.subr.mxu0 %v5493
    %6114 = vmatpush1.msra.mxu0 %v5492
    %6115 = vmatprep.subr.mxu0 %v5461
    %6116 = vmatpush1.msra.mxu0 %v5460
    %6117 = vmatprep.subr.mxu0 %v5429
    %6118 = vmatpush1.msra.mxu0 %v5428
    %6119 = vmatprep.subr.mxu0 %v5397
    %6120 = vmatpush1.msra.mxu0 %v5396
    %6121 = vmatprep.subr.mxu0 %v5365
    %6122 = vmatpush1.msra.mxu0 %v5364
    %6123 = vmatprep.subr.mxu0 %v5333
    %6124 = vmatpush1.msra.mxu0 %v5332
    %6125 = vmatprep.subr.mxu0 %v5301
    %6126 = vmatpush1.msra.mxu0 %v5300
    %6127 = vmatprep.subr.mxu0 0.0
    %6128 = vmatpush2.msra.mxu0 0.0
    %6129 = vmatprep.subr.mxu0 0.0
    %6130 = vmatpush2.msra.mxu0 0.0
    %6131 = vmatprep.subr.mxu0 0.0
    %6132 = vmatpush2.msra.mxu0 0.0
    %6133 = vmatprep.subr.mxu0 0.0
    %6134 = vmatpush2.msra.mxu0 0.0
    %6135 = vmatprep.subr.mxu0 0.0
    %6136 = vmatpush2.msra.mxu0 0.0
    %6137 = vmatprep.subr.mxu0 0.0
    %6138 = vmatpush2.msra.mxu0 0.0
    %6139 = vmatprep.subr.mxu0 0.0
    %6140 = vmatpush2.msra.mxu0 0.0
    %6141 = vmatprep.subr.mxu0 0.0
    %6142 = vmatpush2.msra.mxu0 0.0
    %6143 = vmatprep.subr.mxu0 0.0
    %6144 = vmatpush2.msra.mxu0 0.0
    %6145 = vmatprep.subr.mxu0 0.0
    %6146 = vmatpush2.msra.mxu0 0.0
    %6147 = vmatprep.subr.mxu0 0.0
    %6148 = vmatpush2.msra.mxu0 0.0
    %6149 = vmatprep.subr.mxu0 0.0
    %6150 = vmatpush2.msra.mxu0 0.0
    %6151 = vmatprep.subr.mxu0 0.0
    %6152 = vmatpush2.msra.mxu0 0.0
    %6153 = vmatprep.subr.mxu0 0.0
    %6154 = vmatpush2.msra.mxu0 0.0
    %6155 = vmatprep.subr.mxu0 0.0
    %6156 = vmatpush2.msra.mxu0 0.0
    %6157 = vmatprep.subr.mxu0 0.0
    %6158 = vmatpush2.msra.mxu0 0.0
    %6159 = vmatprep.mubr.f32.mxu0 0.0
    %6160 = vmatmul.mubr.f32.gmra.mxu0 %v5804
    %v6161 = vpop.f32.mrf.mxu0
    %v6162 = vadd.f32 %v5809, %v6161
    %v6163 = vpop.f32.mrf.mxu0
    %v6164 = vadd.f32 %v5809, %v6163
    %6165 = vdwg.mxu0
    %6166 = vmatprep.subr.mxu0 %v5783
    %6167 = vmatpush1.msra.mxu0 %v5782
    %6168 = vmatprep.subr.mxu0 %v5751
    %6169 = vmatpush1.msra.mxu0 %v5750
    %6170 = vmatprep.subr.mxu0 %v5719
    %6171 = vmatpush1.msra.mxu0 %v5718
    %6172 = vmatprep.subr.mxu0 %v5687
    %6173 = vmatpush1.msra.mxu0 %v5686
    %6174 = vmatprep.subr.mxu0 %v5655
    %6175 = vmatpush1.msra.mxu0 %v5654
    %6176 = vmatprep.subr.mxu0 %v5623
    %6177 = vmatpush1.msra.mxu0 %v5622
    %6178 = vmatprep.subr.mxu0 %v5591
    %6179 = vmatpush1.msra.mxu0 %v5590
    %6180 = vmatprep.subr.mxu0 %v5559
    %6181 = vmatpush1.msra.mxu0 %v5558
    %6182 = vmatprep.subr.mxu0 %v5527
    %6183 = vmatpush1.msra.mxu0 %v5526
    %6184 = vmatprep.subr.mxu0 %v5495
    %6185 = vmatpush1.msra.mxu0 %v5494
    %6186 = vmatprep.subr.mxu0 %v5463
    %6187 = vmatpush1.msra.mxu0 %v5462
    %6188 = vmatprep.subr.mxu0 %v5431
    %6189 = vmatpush1.msra.mxu0 %v5430
    %6190 = vmatprep.subr.mxu0 %v5399
    %6191 = vmatpush1.msra.mxu0 %v5398
    %6192 = vmatprep.subr.mxu0 %v5367
    %6193 = vmatpush1.msra.mxu0 %v5366
    %6194 = vmatprep.subr.mxu0 %v5335
    %6195 = vmatpush1.msra.mxu0 %v5334
    %6196 = vmatprep.subr.mxu0 %v5303
    %6197 = vmatpush1.msra.mxu0 %v5302
    %6198 = vmatprep.subr.mxu0 0.0
    %6199 = vmatpush2.msra.mxu0 0.0
    %6200 = vmatprep.subr.mxu0 0.0
    %6201 = vmatpush2.msra.mxu0 0.0
    %6202 = vmatprep.subr.mxu0 0.0
    %6203 = vmatpush2.msra.mxu0 0.0
    %6204 = vmatprep.subr.mxu0 0.0
    %6205 = vmatpush2.msra.mxu0 0.0
    %6206 = vmatprep.subr.mxu0 0.0
    %6207 = vmatpush2.msra.mxu0 0.0
    %6208 = vmatprep.subr.mxu0 0.0
    %6209 = vmatpush2.msra.mxu0 0.0
    %6210 = vmatprep.subr.mxu0 0.0
    %6211 = vmatpush2.msra.mxu0 0.0
    %6212 = vmatprep.subr.mxu0 0.0
    %6213 = vmatpush2.msra.mxu0 0.0
    %6214 = vmatprep.subr.mxu0 0.0
    %6215 = vmatpush2.msra.mxu0 0.0
    %6216 = vmatprep.subr.mxu0 0.0
    %6217 = vmatpush2.msra.mxu0 0.0
    %6218 = vmatprep.subr.mxu0 0.0
    %6219 = vmatpush2.msra.mxu0 0.0
    %6220 = vmatprep.subr.mxu0 0.0
    %6221 = vmatpush2.msra.mxu0 0.0
    %6222 = vmatprep.subr.mxu0 0.0
    %6223 = vmatpush2.msra.mxu0 0.0
    %6224 = vmatprep.subr.mxu0 0.0
    %6225 = vmatpush2.msra.mxu0 0.0
    %6226 = vmatprep.subr.mxu0 0.0
    %6227 = vmatpush2.msra.mxu0 0.0
    %6228 = vmatprep.subr.mxu0 0.0
    %6229 = vmatpush2.msra.mxu0 0.0
    %6230 = vmatprep.mubr.f32.mxu0 0.0
    %6231 = vmatmul.mubr.f32.gmra.mxu0 %v5804
    %v6232 = vpop.f32.mrf.mxu0
    %v6233 = vadd.f32 %v5809, %v6232
    %v6234 = vpop.f32.mrf.mxu0
    %v6235 = vadd.f32 %v5809, %v6234
    %6236 = vdwg.mxu0
    %6237 = vmatprep.subr.mxu0 %v5785
    %6238 = vmatpush1.msra.mxu0 %v5784
    %6239 = vmatprep.subr.mxu0 %v5753
    %6240 = vmatpush1.msra.mxu0 %v5752
    %6241 = vmatprep.subr.mxu0 %v5721
    %6242 = vmatpush1.msra.mxu0 %v5720
    %6243 = vmatprep.subr.mxu0 %v5689
    %6244 = vmatpush1.msra.mxu0 %v5688
    %6245 = vmatprep.subr.mxu0 %v5657
    %6246 = vmatpush1.msra.mxu0 %v5656
    %6247 = vmatprep.subr.mxu0 %v5625
    %6248 = vmatpush1.msra.mxu0 %v5624
    %6249 = vmatprep.subr.mxu0 %v5593
    %6250 = vmatpush1.msra.mxu0 %v5592
    %6251 = vmatprep.subr.mxu0 %v5561
    %6252 = vmatpush1.msra.mxu0 %v5560
    %6253 = vmatprep.subr.mxu0 %v5529
    %6254 = vmatpush1.msra.mxu0 %v5528
    %6255 = vmatprep.subr.mxu0 %v5497
    %6256 = vmatpush1.msra.mxu0 %v5496
    %6257 = vmatprep.subr.mxu0 %v5465
    %6258 = vmatpush1.msra.mxu0 %v5464
    %6259 = vmatprep.subr.mxu0 %v5433
    %6260 = vmatpush1.msra.mxu0 %v5432
    %6261 = vmatprep.subr.mxu0 %v5401
    %6262 = vmatpush1.msra.mxu0 %v5400
    %6263 = vmatprep.subr.mxu0 %v5369
    %6264 = vmatpush1.msra.mxu0 %v5368
    %6265 = vmatprep.subr.mxu0 %v5337
    %6266 = vmatpush1.msra.mxu0 %v5336
    %6267 = vmatprep.subr.mxu0 %v5305
    %6268 = vmatpush1.msra.mxu0 %v5304
    %6269 = vmatprep.subr.mxu0 0.0
    %6270 = vmatpush2.msra.mxu0 0.0
    %6271 = vmatprep.subr.mxu0 0.0
    %6272 = vmatpush2.msra.mxu0 0.0
    %6273 = vmatprep.subr.mxu0 0.0
    %6274 = vmatpush2.msra.mxu0 0.0
    %6275 = vmatprep.subr.mxu0 0.0
    %6276 = vmatpush2.msra.mxu0 0.0
    %6277 = vmatprep.subr.mxu0 0.0
    %6278 = vmatpush2.msra.mxu0 0.0
    %6279 = vmatprep.subr.mxu0 0.0
    %6280 = vmatpush2.msra.mxu0 0.0
    %6281 = vmatprep.subr.mxu0 0.0
    %6282 = vmatpush2.msra.mxu0 0.0
    %6283 = vmatprep.subr.mxu0 0.0
    %6284 = vmatpush2.msra.mxu0 0.0
    %6285 = vmatprep.subr.mxu0 0.0
    %6286 = vmatpush2.msra.mxu0 0.0
    %6287 = vmatprep.subr.mxu0 0.0
    %6288 = vmatpush2.msra.mxu0 0.0
    %6289 = vmatprep.subr.mxu0 0.0
    %6290 = vmatpush2.msra.mxu0 0.0
    %6291 = vmatprep.subr.mxu0 0.0
    %6292 = vmatpush2.msra.mxu0 0.0
    %6293 = vmatprep.subr.mxu0 0.0
    %6294 = vmatpush2.msra.mxu0 0.0
    %6295 = vmatprep.subr.mxu0 0.0
    %6296 = vmatpush2.msra.mxu0 0.0
    %6297 = vmatprep.subr.mxu0 0.0
    %6298 = vmatpush2.msra.mxu0 0.0
    %6299 = vmatprep.subr.mxu0 0.0
    %6300 = vmatpush2.msra.mxu0 0.0
    %6301 = vmatprep.mubr.f32.mxu0 0.0
    %6302 = vmatmul.mubr.f32.gmra.mxu0 %v5804
    %v6303 = vpop.f32.mrf.mxu0
    %v6304 = vadd.f32 %v5809, %v6303
    %v6305 = vpop.f32.mrf.mxu0
    %v6306 = vadd.f32 %v5809, %v6305
    %6307 = vdwg.mxu0
    %6308 = vmatprep.subr.mxu0 %v5787
    %6309 = vmatpush1.msra.mxu0 %v5786
    %6310 = vmatprep.subr.mxu0 %v5755
    %6311 = vmatpush1.msra.mxu0 %v5754
    %6312 = vmatprep.subr.mxu0 %v5723
    %6313 = vmatpush1.msra.mxu0 %v5722
    %6314 = vmatprep.subr.mxu0 %v5691
    %6315 = vmatpush1.msra.mxu0 %v5690
    %6316 = vmatprep.subr.mxu0 %v5659
    %6317 = vmatpush1.msra.mxu0 %v5658
    %6318 = vmatprep.subr.mxu0 %v5627
    %6319 = vmatpush1.msra.mxu0 %v5626
    %6320 = vmatprep.subr.mxu0 %v5595
    %6321 = vmatpush1.msra.mxu0 %v5594
    %6322 = vmatprep.subr.mxu0 %v5563
    %6323 = vmatpush1.msra.mxu0 %v5562
    %6324 = vmatprep.subr.mxu0 %v5531
    %6325 = vmatpush1.msra.mxu0 %v5530
    %6326 = vmatprep.subr.mxu0 %v5499
    %6327 = vmatpush1.msra.mxu0 %v5498
    %6328 = vmatprep.subr.mxu0 %v5467
    %6329 = vmatpush1.msra.mxu0 %v5466
    %6330 = vmatprep.subr.mxu0 %v5435
    %6331 = vmatpush1.msra.mxu0 %v5434
    %6332 = vmatprep.subr.mxu0 %v5403
    %6333 = vmatpush1.msra.mxu0 %v5402
    %6334 = vmatprep.subr.mxu0 %v5371
    %6335 = vmatpush1.msra.mxu0 %v5370
    %6336 = vmatprep.subr.mxu0 %v5339
    %6337 = vmatpush1.msra.mxu0 %v5338
    %6338 = vmatprep.subr.mxu0 %v5307
    %6339 = vmatpush1.msra.mxu0 %v5306
    %6340 = vmatprep.subr.mxu0 0.0
    %6341 = vmatpush2.msra.mxu0 0.0
    %6342 = vmatprep.subr.mxu0 0.0
    %6343 = vmatpush2.msra.mxu0 0.0
    %6344 = vmatprep.subr.mxu0 0.0
    %6345 = vmatpush2.msra.mxu0 0.0
    %6346 = vmatprep.subr.mxu0 0.0
    %6347 = vmatpush2.msra.mxu0 0.0
    %6348 = vmatprep.subr.mxu0 0.0
    %6349 = vmatpush2.msra.mxu0 0.0
    %6350 = vmatprep.subr.mxu0 0.0
    %6351 = vmatpush2.msra.mxu0 0.0
    %6352 = vmatprep.subr.mxu0 0.0
    %6353 = vmatpush2.msra.mxu0 0.0
    %6354 = vmatprep.subr.mxu0 0.0
    %6355 = vmatpush2.msra.mxu0 0.0
    %6356 = vmatprep.subr.mxu0 0.0
    %6357 = vmatpush2.msra.mxu0 0.0
    %6358 = vmatprep.subr.mxu0 0.0
    %6359 = vmatpush2.msra.mxu0 0.0
    %6360 = vmatprep.subr.mxu0 0.0
    %6361 = vmatpush2.msra.mxu0 0.0
    %6362 = vmatprep.subr.mxu0 0.0
    %6363 = vmatpush2.msra.mxu0 0.0
    %6364 = vmatprep.subr.mxu0 0.0
    %6365 = vmatpush2.msra.mxu0 0.0
    %6366 = vmatprep.subr.mxu0 0.0
    %6367 = vmatpush2.msra.mxu0 0.0
    %6368 = vmatprep.subr.mxu0 0.0
    %6369 = vmatpush2.msra.mxu0 0.0
    %6370 = vmatprep.subr.mxu0 0.0
    %6371 = vmatpush2.msra.mxu0 0.0
    %6372 = vmatprep.mubr.f32.mxu0 0.0
    %6373 = vmatmul.mubr.f32.gmra.mxu0 %v5804
    %v6374 = vpop.f32.mrf.mxu0
    %v6375 = vadd.f32 %v5809, %v6374
    %v6376 = vpop.f32.mrf.mxu0
    %v6377 = vadd.f32 %v5809, %v6376
    %6378 = vdwg.mxu0
    %6379 = vmatprep.subr.mxu0 %v5789
    %6380 = vmatpush1.msra.mxu0 %v5788
    %6381 = vmatprep.subr.mxu0 %v5757
    %6382 = vmatpush1.msra.mxu0 %v5756
    %6383 = vmatprep.subr.mxu0 %v5725
    %6384 = vmatpush1.msra.mxu0 %v5724
    %6385 = vmatprep.subr.mxu0 %v5693
    %6386 = vmatpush1.msra.mxu0 %v5692
    %6387 = vmatprep.subr.mxu0 %v5661
    %6388 = vmatpush1.msra.mxu0 %v5660
    %6389 = vmatprep.subr.mxu0 %v5629
    %6390 = vmatpush1.msra.mxu0 %v5628
    %6391 = vmatprep.subr.mxu0 %v5597
    %6392 = vmatpush1.msra.mxu0 %v5596
    %6393 = vmatprep.subr.mxu0 %v5565
    %6394 = vmatpush1.msra.mxu0 %v5564
    %6395 = vmatprep.subr.mxu0 %v5533
    %6396 = vmatpush1.msra.mxu0 %v5532
    %6397 = vmatprep.subr.mxu0 %v5501
    %6398 = vmatpush1.msra.mxu0 %v5500
    %6399 = vmatprep.subr.mxu0 %v5469
    %6400 = vmatpush1.msra.mxu0 %v5468
    %6401 = vmatprep.subr.mxu0 %v5437
    %6402 = vmatpush1.msra.mxu0 %v5436
    %6403 = vmatprep.subr.mxu0 %v5405
    %6404 = vmatpush1.msra.mxu0 %v5404
    %6405 = vmatprep.subr.mxu0 %v5373
    %6406 = vmatpush1.msra.mxu0 %v5372
    %6407 = vmatprep.subr.mxu0 %v5341
    %6408 = vmatpush1.msra.mxu0 %v5340
    %6409 = vmatprep.subr.mxu0 %v5309
    %6410 = vmatpush1.msra.mxu0 %v5308
    %6411 = vmatprep.subr.mxu0 0.0
    %6412 = vmatpush2.msra.mxu0 0.0
    %6413 = vmatprep.subr.mxu0 0.0
    %6414 = vmatpush2.msra.mxu0 0.0
    %6415 = vmatprep.subr.mxu0 0.0
    %6416 = vmatpush2.msra.mxu0 0.0
    %6417 = vmatprep.subr.mxu0 0.0
    %6418 = vmatpush2.msra.mxu0 0.0
    %6419 = vmatprep.subr.mxu0 0.0
    %6420 = vmatpush2.msra.mxu0 0.0
    %6421 = vmatprep.subr.mxu0 0.0
    %6422 = vmatpush2.msra.mxu0 0.0
    %6423 = vmatprep.subr.mxu0 0.0
    %6424 = vmatpush2.msra.mxu0 0.0
    %6425 = vmatprep.subr.mxu0 0.0
    %6426 = vmatpush2.msra.mxu0 0.0
    %6427 = vmatprep.subr.mxu0 0.0
    %6428 = vmatpush2.msra.mxu0 0.0
    %6429 = vmatprep.subr.mxu0 0.0
    %6430 = vmatpush2.msra.mxu0 0.0
    %6431 = vmatprep.subr.mxu0 0.0
    %6432 = vmatpush2.msra.mxu0 0.0
    %6433 = vmatprep.subr.mxu0 0.0
    %6434 = vmatpush2.msra.mxu0 0.0
    %6435 = vmatprep.subr.mxu0 0.0
    %6436 = vmatpush2.msra.mxu0 0.0
    %6437 = vmatprep.subr.mxu0 0.0
    %6438 = vmatpush2.msra.mxu0 0.0
    %6439 = vmatprep.subr.mxu0 0.0
    %6440 = vmatpush2.msra.mxu0 0.0
    %6441 = vmatprep.subr.mxu0 0.0
    %6442 = vmatpush2.msra.mxu0 0.0
    %6443 = vmatprep.mubr.f32.mxu0 0.0
    %6444 = vmatmul.mubr.f32.gmra.mxu0 %v5804
    %v6445 = vpop.f32.mrf.mxu0
    %v6446 = vadd.f32 %v5809, %v6445
    %v6447 = vpop.f32.mrf.mxu0
    %v6448 = vadd.f32 %v5809, %v6447
    %6449 = vdwg.mxu0
    %6450 = vmatprep.subr.mxu0 %v5791
    %6451 = vmatpush1.msra.mxu0 %v5790
    %6452 = vmatprep.subr.mxu0 %v5759
    %6453 = vmatpush1.msra.mxu0 %v5758
    %6454 = vmatprep.subr.mxu0 %v5727
    %6455 = vmatpush1.msra.mxu0 %v5726
    %6456 = vmatprep.subr.mxu0 %v5695
    %6457 = vmatpush1.msra.mxu0 %v5694
    %6458 = vmatprep.subr.mxu0 %v5663
    %6459 = vmatpush1.msra.mxu0 %v5662
    %6460 = vmatprep.subr.mxu0 %v5631
    %6461 = vmatpush1.msra.mxu0 %v5630
    %6462 = vmatprep.subr.mxu0 %v5599
    %6463 = vmatpush1.msra.mxu0 %v5598
    %6464 = vmatprep.subr.mxu0 %v5567
    %6465 = vmatpush1.msra.mxu0 %v5566
    %6466 = vmatprep.subr.mxu0 %v5535
    %6467 = vmatpush1.msra.mxu0 %v5534
    %6468 = vmatprep.subr.mxu0 %v5503
    %6469 = vmatpush1.msra.mxu0 %v5502
    %6470 = vmatprep.subr.mxu0 %v5471
    %6471 = vmatpush1.msra.mxu0 %v5470
    %6472 = vmatprep.subr.mxu0 %v5439
    %6473 = vmatpush1.msra.mxu0 %v5438
    %6474 = vmatprep.subr.mxu0 %v5407
    %6475 = vmatpush1.msra.mxu0 %v5406
    %6476 = vmatprep.subr.mxu0 %v5375
    %6477 = vmatpush1.msra.mxu0 %v5374
    %6478 = vmatprep.subr.mxu0 %v5343
    %6479 = vmatpush1.msra.mxu0 %v5342
    %6480 = vmatprep.subr.mxu0 %v5311
    %6481 = vmatpush1.msra.mxu0 %v5310
    %6482 = vmatprep.subr.mxu0 0.0
    %6483 = vmatpush2.msra.mxu0 0.0
    %6484 = vmatprep.subr.mxu0 0.0
    %6485 = vmatpush2.msra.mxu0 0.0
    %6486 = vmatprep.subr.mxu0 0.0
    %6487 = vmatpush2.msra.mxu0 0.0
    %6488 = vmatprep.subr.mxu0 0.0
    %6489 = vmatpush2.msra.mxu0 0.0
    %6490 = vmatprep.subr.mxu0 0.0
    %6491 = vmatpush2.msra.mxu0 0.0
    %6492 = vmatprep.subr.mxu0 0.0
    %6493 = vmatpush2.msra.mxu0 0.0
    %6494 = vmatprep.subr.mxu0 0.0
    %6495 = vmatpush2.msra.mxu0 0.0
    %6496 = vmatprep.subr.mxu0 0.0
    %6497 = vmatpush2.msra.mxu0 0.0
    %6498 = vmatprep.subr.mxu0 0.0
    %6499 = vmatpush2.msra.mxu0 0.0
    %6500 = vmatprep.subr.mxu0 0.0
    %6501 = vmatpush2.msra.mxu0 0.0
    %6502 = vmatprep.subr.mxu0 0.0
    %6503 = vmatpush2.msra.mxu0 0.0
    %6504 = vmatprep.subr.mxu0 0.0
    %6505 = vmatpush2.msra.mxu0 0.0
    %6506 = vmatprep.subr.mxu0 0.0
    %6507 = vmatpush2.msra.mxu0 0.0
    %6508 = vmatprep.subr.mxu0 0.0
    %6509 = vmatpush2.msra.mxu0 0.0
    %6510 = vmatprep.subr.mxu0 0.0
    %6511 = vmatpush2.msra.mxu0 0.0
    %6512 = vmatprep.subr.mxu0 0.0
    %6513 = vmatpush2.msra.mxu0 0.0
    %6514 = vmatprep.mubr.f32.mxu0 0.0
    %6515 = vmatmul.mubr.f32.gmra.mxu0 %v5804
    %v6516 = vpop.f32.mrf.mxu0
    %v6517 = vadd.f32 %v5809, %v6516
    %v6518 = vpop.f32.mrf.mxu0
    %v6519 = vadd.f32 %v5809, %v6518
    %6520 = vdwg.mxu0
    %6521 = vmatprep.subr.mxu0 %v5793
    %6522 = vmatpush1.msra.mxu0 %v5792
    %6523 = vmatprep.subr.mxu0 %v5761
    %6524 = vmatpush1.msra.mxu0 %v5760
    %6525 = vmatprep.subr.mxu0 %v5729
    %6526 = vmatpush1.msra.mxu0 %v5728
    %6527 = vmatprep.subr.mxu0 %v5697
    %6528 = vmatpush1.msra.mxu0 %v5696
    %6529 = vmatprep.subr.mxu0 %v5665
    %6530 = vmatpush1.msra.mxu0 %v5664
    %6531 = vmatprep.subr.mxu0 %v5633
    %6532 = vmatpush1.msra.mxu0 %v5632
    %6533 = vmatprep.subr.mxu0 %v5601
    %6534 = vmatpush1.msra.mxu0 %v5600
    %6535 = vmatprep.subr.mxu0 %v5569
    %6536 = vmatpush1.msra.mxu0 %v5568
    %6537 = vmatprep.subr.mxu0 %v5537
    %6538 = vmatpush1.msra.mxu0 %v5536
    %6539 = vmatprep.subr.mxu0 %v5505
    %6540 = vmatpush1.msra.mxu0 %v5504
    %6541 = vmatprep.subr.mxu0 %v5473
    %6542 = vmatpush1.msra.mxu0 %v5472
    %6543 = vmatprep.subr.mxu0 %v5441
    %6544 = vmatpush1.msra.mxu0 %v5440
    %6545 = vmatprep.subr.mxu0 %v5409
    %6546 = vmatpush1.msra.mxu0 %v5408
    %6547 = vmatprep.subr.mxu0 %v5377
    %6548 = vmatpush1.msra.mxu0 %v5376
    %6549 = vmatprep.subr.mxu0 %v5345
    %6550 = vmatpush1.msra.mxu0 %v5344
    %6551 = vmatprep.subr.mxu0 %v5313
    %6552 = vmatpush1.msra.mxu0 %v5312
    %6553 = vmatprep.subr.mxu0 0.0
    %6554 = vmatpush2.msra.mxu0 0.0
    %6555 = vmatprep.subr.mxu0 0.0
    %6556 = vmatpush2.msra.mxu0 0.0
    %6557 = vmatprep.subr.mxu0 0.0
    %6558 = vmatpush2.msra.mxu0 0.0
    %6559 = vmatprep.subr.mxu0 0.0
    %6560 = vmatpush2.msra.mxu0 0.0
    %6561 = vmatprep.subr.mxu0 0.0
    %6562 = vmatpush2.msra.mxu0 0.0
    %6563 = vmatprep.subr.mxu0 0.0
    %6564 = vmatpush2.msra.mxu0 0.0
    %6565 = vmatprep.subr.mxu0 0.0
    %6566 = vmatpush2.msra.mxu0 0.0
    %6567 = vmatprep.subr.mxu0 0.0
    %6568 = vmatpush2.msra.mxu0 0.0
    %6569 = vmatprep.subr.mxu0 0.0
    %6570 = vmatpush2.msra.mxu0 0.0
    %6571 = vmatprep.subr.mxu0 0.0
    %6572 = vmatpush2.msra.mxu0 0.0
    %6573 = vmatprep.subr.mxu0 0.0
    %6574 = vmatpush2.msra.mxu0 0.0
    %6575 = vmatprep.subr.mxu0 0.0
    %6576 = vmatpush2.msra.mxu0 0.0
    %6577 = vmatprep.subr.mxu0 0.0
    %6578 = vmatpush2.msra.mxu0 0.0
    %6579 = vmatprep.subr.mxu0 0.0
    %6580 = vmatpush2.msra.mxu0 0.0
    %6581 = vmatprep.subr.mxu0 0.0
    %6582 = vmatpush2.msra.mxu0 0.0
    %6583 = vmatprep.subr.mxu0 0.0
    %6584 = vmatpush2.msra.mxu0 0.0
    %6585 = vmatprep.mubr.f32.mxu0 0.0
    %6586 = vmatmul.mubr.f32.gmra.mxu0 %v5804
    %v6587 = vpop.f32.mrf.mxu0
    %v6588 = vadd.f32 %v5809, %v6587
    %v6589 = vpop.f32.mrf.mxu0
    %v6590 = vadd.f32 %v5809, %v6589
    %6591 = vdwg.mxu0
    %6592 = vmatprep.subr.mxu0 %v5795
    %6593 = vmatpush1.msra.mxu0 %v5794
    %6594 = vmatprep.subr.mxu0 %v5763
    %6595 = vmatpush1.msra.mxu0 %v5762
    %6596 = vmatprep.subr.mxu0 %v5731
    %6597 = vmatpush1.msra.mxu0 %v5730
    %6598 = vmatprep.subr.mxu0 %v5699
    %6599 = vmatpush1.msra.mxu0 %v5698
    %6600 = vmatprep.subr.mxu0 %v5667
    %6601 = vmatpush1.msra.mxu0 %v5666
    %6602 = vmatprep.subr.mxu0 %v5635
    %6603 = vmatpush1.msra.mxu0 %v5634
    %6604 = vmatprep.subr.mxu0 %v5603
    %6605 = vmatpush1.msra.mxu0 %v5602
    %6606 = vmatprep.subr.mxu0 %v5571
    %6607 = vmatpush1.msra.mxu0 %v5570
    %6608 = vmatprep.subr.mxu0 %v5539
    %6609 = vmatpush1.msra.mxu0 %v5538
    %6610 = vmatprep.subr.mxu0 %v5507
    %6611 = vmatpush1.msra.mxu0 %v5506
    %6612 = vmatprep.subr.mxu0 %v5475
    %6613 = vmatpush1.msra.mxu0 %v5474
    %6614 = vmatprep.subr.mxu0 %v5443
    %6615 = vmatpush1.msra.mxu0 %v5442
    %6616 = vmatprep.subr.mxu0 %v5411
    %6617 = vmatpush1.msra.mxu0 %v5410
    %6618 = vmatprep.subr.mxu0 %v5379
    %6619 = vmatpush1.msra.mxu0 %v5378
    %6620 = vmatprep.subr.mxu0 %v5347
    %6621 = vmatpush1.msra.mxu0 %v5346
    %6622 = vmatprep.subr.mxu0 %v5315
    %6623 = vmatpush1.msra.mxu0 %v5314
    %6624 = vmatprep.subr.mxu0 0.0
    %6625 = vmatpush2.msra.mxu0 0.0
    %6626 = vmatprep.subr.mxu0 0.0
    %6627 = vmatpush2.msra.mxu0 0.0
    %6628 = vmatprep.subr.mxu0 0.0
    %6629 = vmatpush2.msra.mxu0 0.0
    %6630 = vmatprep.subr.mxu0 0.0
    %6631 = vmatpush2.msra.mxu0 0.0
    %6632 = vmatprep.subr.mxu0 0.0
    %6633 = vmatpush2.msra.mxu0 0.0
    %6634 = vmatprep.subr.mxu0 0.0
    %6635 = vmatpush2.msra.mxu0 0.0
    %6636 = vmatprep.subr.mxu0 0.0
    %6637 = vmatpush2.msra.mxu0 0.0
    %6638 = vmatprep.subr.mxu0 0.0
    %6639 = vmatpush2.msra.mxu0 0.0
    %6640 = vmatprep.subr.mxu0 0.0
    %6641 = vmatpush2.msra.mxu0 0.0
    %6642 = vmatprep.subr.mxu0 0.0
    %6643 = vmatpush2.msra.mxu0 0.0
    %6644 = vmatprep.subr.mxu0 0.0
    %6645 = vmatpush2.msra.mxu0 0.0
    %6646 = vmatprep.subr.mxu0 0.0
    %6647 = vmatpush2.msra.mxu0 0.0
    %6648 = vmatprep.subr.mxu0 0.0
    %6649 = vmatpush2.msra.mxu0 0.0
    %6650 = vmatprep.subr.mxu0 0.0
    %6651 = vmatpush2.msra.mxu0 0.0
    %6652 = vmatprep.subr.mxu0 0.0
    %6653 = vmatpush2.msra.mxu0 0.0
    %6654 = vmatprep.subr.mxu0 0.0
    %6655 = vmatpush2.msra.mxu0 0.0
    %6656 = vmatprep.mubr.f32.mxu0 0.0
    %6657 = vmatmul.mubr.f32.gmra.mxu0 %v5804
    %v6658 = vpop.f32.mrf.mxu0
    %v6659 = vadd.f32 %v5809, %v6658
    %v6660 = vpop.f32.mrf.mxu0
    %v6661 = vadd.f32 %v5809, %v6660
    %6662 = vdwg.mxu0
    %6663 = vmatprep.subr.mxu0 %v5797
    %6664 = vmatpush1.msra.mxu0 %v5796
    %6665 = vmatprep.subr.mxu0 %v5765
    %6666 = vmatpush1.msra.mxu0 %v5764
    %6667 = vmatprep.subr.mxu0 %v5733
    %6668 = vmatpush1.msra.mxu0 %v5732
    %6669 = vmatprep.subr.mxu0 %v5701
    %6670 = vmatpush1.msra.mxu0 %v5700
    %6671 = vmatprep.subr.mxu0 %v5669
    %6672 = vmatpush1.msra.mxu0 %v5668
    %6673 = vmatprep.subr.mxu0 %v5637
    %6674 = vmatpush1.msra.mxu0 %v5636
    %6675 = vmatprep.subr.mxu0 %v5605
    %6676 = vmatpush1.msra.mxu0 %v5604
    %6677 = vmatprep.subr.mxu0 %v5573
    %6678 = vmatpush1.msra.mxu0 %v5572
    %6679 = vmatprep.subr.mxu0 %v5541
    %6680 = vmatpush1.msra.mxu0 %v5540
    %6681 = vmatprep.subr.mxu0 %v5509
    %6682 = vmatpush1.msra.mxu0 %v5508
    %6683 = vmatprep.subr.mxu0 %v5477
    %6684 = vmatpush1.msra.mxu0 %v5476
    %6685 = vmatprep.subr.mxu0 %v5445
    %6686 = vmatpush1.msra.mxu0 %v5444
    %6687 = vmatprep.subr.mxu0 %v5413
    %6688 = vmatpush1.msra.mxu0 %v5412
    %6689 = vmatprep.subr.mxu0 %v5381
    %6690 = vmatpush1.msra.mxu0 %v5380
    %6691 = vmatprep.subr.mxu0 %v5349
    %6692 = vmatpush1.msra.mxu0 %v5348
    %6693 = vmatprep.subr.mxu0 %v5317
    %6694 = vmatpush1.msra.mxu0 %v5316
    %6695 = vmatprep.subr.mxu0 0.0
    %6696 = vmatpush2.msra.mxu0 0.0
    %6697 = vmatprep.subr.mxu0 0.0
    %6698 = vmatpush2.msra.mxu0 0.0
    %6699 = vmatprep.subr.mxu0 0.0
    %6700 = vmatpush2.msra.mxu0 0.0
    %6701 = vmatprep.subr.mxu0 0.0
    %6702 = vmatpush2.msra.mxu0 0.0
    %6703 = vmatprep.subr.mxu0 0.0
    %6704 = vmatpush2.msra.mxu0 0.0
    %6705 = vmatprep.subr.mxu0 0.0
    %6706 = vmatpush2.msra.mxu0 0.0
    %6707 = vmatprep.subr.mxu0 0.0
    %6708 = vmatpush2.msra.mxu0 0.0
    %6709 = vmatprep.subr.mxu0 0.0
    %6710 = vmatpush2.msra.mxu0 0.0
    %6711 = vmatprep.subr.mxu0 0.0
    %6712 = vmatpush2.msra.mxu0 0.0
    %6713 = vmatprep.subr.mxu0 0.0
    %6714 = vmatpush2.msra.mxu0 0.0
    %6715 = vmatprep.subr.mxu0 0.0
    %6716 = vmatpush2.msra.mxu0 0.0
    %6717 = vmatprep.subr.mxu0 0.0
    %6718 = vmatpush2.msra.mxu0 0.0
    %6719 = vmatprep.subr.mxu0 0.0
    %6720 = vmatpush2.msra.mxu0 0.0
    %6721 = vmatprep.subr.mxu0 0.0
    %6722 = vmatpush2.msra.mxu0 0.0
    %6723 = vmatprep.subr.mxu0 0.0
    %6724 = vmatpush2.msra.mxu0 0.0
    %6725 = vmatprep.subr.mxu0 0.0
    %6726 = vmatpush2.msra.mxu0 0.0
    %6727 = vmatprep.mubr.f32.mxu0 0.0
    %6728 = vmatmul.mubr.f32.gmra.mxu0 %v5804
    %v6729 = vpop.f32.mrf.mxu0
    %v6730 = vadd.f32 %v5809, %v6729
    %v6731 = vpop.f32.mrf.mxu0
    %v6732 = vadd.f32 %v5809, %v6731
    %6733 = vdwg.mxu0
    %6734 = vmatprep.subr.mxu0 %v5799
    %6735 = vmatpush1.msra.mxu0 %v5798
    %6736 = vmatprep.subr.mxu0 %v5767
    %6737 = vmatpush1.msra.mxu0 %v5766
    %6738 = vmatprep.subr.mxu0 %v5735
    %6739 = vmatpush1.msra.mxu0 %v5734
    %6740 = vmatprep.subr.mxu0 %v5703
    %6741 = vmatpush1.msra.mxu0 %v5702
    %6742 = vmatprep.subr.mxu0 %v5671
    %6743 = vmatpush1.msra.mxu0 %v5670
    %6744 = vmatprep.subr.mxu0 %v5639
    %6745 = vmatpush1.msra.mxu0 %v5638
    %6746 = vmatprep.subr.mxu0 %v5607
    %6747 = vmatpush1.msra.mxu0 %v5606
    %6748 = vmatprep.subr.mxu0 %v5575
    %6749 = vmatpush1.msra.mxu0 %v5574
    %6750 = vmatprep.subr.mxu0 %v5543
    %6751 = vmatpush1.msra.mxu0 %v5542
    %6752 = vmatprep.subr.mxu0 %v5511
    %6753 = vmatpush1.msra.mxu0 %v5510
    %6754 = vmatprep.subr.mxu0 %v5479
    %6755 = vmatpush1.msra.mxu0 %v5478
    %6756 = vmatprep.subr.mxu0 %v5447
    %6757 = vmatpush1.msra.mxu0 %v5446
    %6758 = vmatprep.subr.mxu0 %v5415
    %6759 = vmatpush1.msra.mxu0 %v5414
    %6760 = vmatprep.subr.mxu0 %v5383
    %6761 = vmatpush1.msra.mxu0 %v5382
    %6762 = vmatprep.subr.mxu0 %v5351
    %6763 = vmatpush1.msra.mxu0 %v5350
    %6764 = vmatprep.subr.mxu0 %v5319
    %6765 = vmatpush1.msra.mxu0 %v5318
    %6766 = vmatprep.subr.mxu0 0.0
    %6767 = vmatpush2.msra.mxu0 0.0
    %6768 = vmatprep.subr.mxu0 0.0
    %6769 = vmatpush2.msra.mxu0 0.0
    %6770 = vmatprep.subr.mxu0 0.0
    %6771 = vmatpush2.msra.mxu0 0.0
    %6772 = vmatprep.subr.mxu0 0.0
    %6773 = vmatpush2.msra.mxu0 0.0
    %6774 = vmatprep.subr.mxu0 0.0
    %6775 = vmatpush2.msra.mxu0 0.0
    %6776 = vmatprep.subr.mxu0 0.0
    %6777 = vmatpush2.msra.mxu0 0.0
    %6778 = vmatprep.subr.mxu0 0.0
    %6779 = vmatpush2.msra.mxu0 0.0
    %6780 = vmatprep.subr.mxu0 0.0
    %6781 = vmatpush2.msra.mxu0 0.0
    %6782 = vmatprep.subr.mxu0 0.0
    %6783 = vmatpush2.msra.mxu0 0.0
    %6784 = vmatprep.subr.mxu0 0.0
    %6785 = vmatpush2.msra.mxu0 0.0
    %6786 = vmatprep.subr.mxu0 0.0
    %6787 = vmatpush2.msra.mxu0 0.0
    %6788 = vmatprep.subr.mxu0 0.0
    %6789 = vmatpush2.msra.mxu0 0.0
    %6790 = vmatprep.subr.mxu0 0.0
    %6791 = vmatpush2.msra.mxu0 0.0
    %6792 = vmatprep.subr.mxu0 0.0
    %6793 = vmatpush2.msra.mxu0 0.0
    %6794 = vmatprep.subr.mxu0 0.0
    %6795 = vmatpush2.msra.mxu0 0.0
    %6796 = vmatprep.subr.mxu0 0.0
    %6797 = vmatpush2.msra.mxu0 0.0
    %6798 = vmatprep.mubr.f32.mxu0 0.0
    %6799 = vmatmul.mubr.f32.gmra.mxu0 %v5804
    %v6800 = vpop.f32.mrf.mxu0
    %v6801 = vadd.f32 %v5809, %v6800
    %v6802 = vpop.f32.mrf.mxu0
    %v6803 = vadd.f32 %v5809, %v6802
    %6804 = vdwg.mxu0
    %6805 = vmatprep.subr.mxu0 %v5801
    %6806 = vmatpush1.msra.mxu0 %v5800
    %6807 = vmatprep.subr.mxu0 %v5769
    %6808 = vmatpush1.msra.mxu0 %v5768
    %6809 = vmatprep.subr.mxu0 %v5737
    %6810 = vmatpush1.msra.mxu0 %v5736
    %6811 = vmatprep.subr.mxu0 %v5705
    %6812 = vmatpush1.msra.mxu0 %v5704
    %6813 = vmatprep.subr.mxu0 %v5673
    %6814 = vmatpush1.msra.mxu0 %v5672
    %6815 = vmatprep.subr.mxu0 %v5641
    %6816 = vmatpush1.msra.mxu0 %v5640
    %6817 = vmatprep.subr.mxu0 %v5609
    %6818 = vmatpush1.msra.mxu0 %v5608
    %6819 = vmatprep.subr.mxu0 %v5577
    %6820 = vmatpush1.msra.mxu0 %v5576
    %6821 = vmatprep.subr.mxu0 %v5545
    %6822 = vmatpush1.msra.mxu0 %v5544
    %6823 = vmatprep.subr.mxu0 %v5513
    %6824 = vmatpush1.msra.mxu0 %v5512
    %6825 = vmatprep.subr.mxu0 %v5481
    %6826 = vmatpush1.msra.mxu0 %v5480
    %6827 = vmatprep.subr.mxu0 %v5449
    %6828 = vmatpush1.msra.mxu0 %v5448
    %6829 = vmatprep.subr.mxu0 %v5417
    %6830 = vmatpush1.msra.mxu0 %v5416
    %6831 = vmatprep.subr.mxu0 %v5385
    %6832 = vmatpush1.msra.mxu0 %v5384
    %6833 = vmatprep.subr.mxu0 %v5353
    %6834 = vmatpush1.msra.mxu0 %v5352
    %6835 = vmatprep.subr.mxu0 %v5321
    %6836 = vmatpush1.msra.mxu0 %v5320
    %6837 = vmatprep.subr.mxu0 0.0
    %6838 = vmatpush2.msra.mxu0 0.0
    %6839 = vmatprep.subr.mxu0 0.0
    %6840 = vmatpush2.msra.mxu0 0.0
    %6841 = vmatprep.subr.mxu0 0.0
    %6842 = vmatpush2.msra.mxu0 0.0
    %6843 = vmatprep.subr.mxu0 0.0
    %6844 = vmatpush2.msra.mxu0 0.0
    %6845 = vmatprep.subr.mxu0 0.0
    %6846 = vmatpush2.msra.mxu0 0.0
    %6847 = vmatprep.subr.mxu0 0.0
    %6848 = vmatpush2.msra.mxu0 0.0
    %6849 = vmatprep.subr.mxu0 0.0
    %6850 = vmatpush2.msra.mxu0 0.0
    %6851 = vmatprep.subr.mxu0 0.0
    %6852 = vmatpush2.msra.mxu0 0.0
    %6853 = vmatprep.subr.mxu0 0.0
    %6854 = vmatpush2.msra.mxu0 0.0
    %6855 = vmatprep.subr.mxu0 0.0
    %6856 = vmatpush2.msra.mxu0 0.0
    %6857 = vmatprep.subr.mxu0 0.0
    %6858 = vmatpush2.msra.mxu0 0.0
    %6859 = vmatprep.subr.mxu0 0.0
    %6860 = vmatpush2.msra.mxu0 0.0
    %6861 = vmatprep.subr.mxu0 0.0
    %6862 = vmatpush2.msra.mxu0 0.0
    %6863 = vmatprep.subr.mxu0 0.0
    %6864 = vmatpush2.msra.mxu0 0.0
    %6865 = vmatprep.subr.mxu0 0.0
    %6866 = vmatpush2.msra.mxu0 0.0
    %6867 = vmatprep.subr.mxu0 0.0
    %6868 = vmatpush2.msra.mxu0 0.0
    %6869 = vmatprep.mubr.f32.mxu0 0.0
    %6870 = vmatmul.mubr.f32.gmra.mxu0 %v5804
    %v6871 = vpop.f32.mrf.mxu0
    %v6872 = vadd.f32 %v5809, %v6871
    %v6873 = vpop.f32.mrf.mxu0
    %v6874 = vadd.f32 %v5809, %v6873
    %6875 = vdwg.mxu0
    %6876 = vmatprep.subr.mxu0 %v5803
    %6877 = vmatpush1.msra.mxu0 %v5802
    %6878 = vmatprep.subr.mxu0 %v5771
    %6879 = vmatpush1.msra.mxu0 %v5770
    %6880 = vmatprep.subr.mxu0 %v5739
    %6881 = vmatpush1.msra.mxu0 %v5738
    %6882 = vmatprep.subr.mxu0 %v5707
    %6883 = vmatpush1.msra.mxu0 %v5706
    %6884 = vmatprep.subr.mxu0 %v5675
    %6885 = vmatpush1.msra.mxu0 %v5674
    %6886 = vmatprep.subr.mxu0 %v5643
    %6887 = vmatpush1.msra.mxu0 %v5642
    %6888 = vmatprep.subr.mxu0 %v5611
    %6889 = vmatpush1.msra.mxu0 %v5610
    %6890 = vmatprep.subr.mxu0 %v5579
    %6891 = vmatpush1.msra.mxu0 %v5578
    %6892 = vmatprep.subr.mxu0 %v5547
    %6893 = vmatpush1.msra.mxu0 %v5546
    %6894 = vmatprep.subr.mxu0 %v5515
    %6895 = vmatpush1.msra.mxu0 %v5514
    %6896 = vmatprep.subr.mxu0 %v5483
    %6897 = vmatpush1.msra.mxu0 %v5482
    %6898 = vmatprep.subr.mxu0 %v5451
    %6899 = vmatpush1.msra.mxu0 %v5450
    %6900 = vmatprep.subr.mxu0 %v5419
    %6901 = vmatpush1.msra.mxu0 %v5418
    %6902 = vmatprep.subr.mxu0 %v5387
    %6903 = vmatpush1.msra.mxu0 %v5386
    %6904 = vmatprep.subr.mxu0 %v5355
    %6905 = vmatpush1.msra.mxu0 %v5354
    %6906 = vmatprep.subr.mxu0 %v5323
    %6907 = vmatpush1.msra.mxu0 %v5322
    %6908 = vmatprep.subr.mxu0 0.0
    %6909 = vmatpush2.msra.mxu0 0.0
    %6910 = vmatprep.subr.mxu0 0.0
    %6911 = vmatpush2.msra.mxu0 0.0
    %6912 = vmatprep.subr.mxu0 0.0
    %6913 = vmatpush2.msra.mxu0 0.0
    %6914 = vmatprep.subr.mxu0 0.0
    %6915 = vmatpush2.msra.mxu0 0.0
    %6916 = vmatprep.subr.mxu0 0.0
    %6917 = vmatpush2.msra.mxu0 0.0
    %6918 = vmatprep.subr.mxu0 0.0
    %6919 = vmatpush2.msra.mxu0 0.0
    %6920 = vmatprep.subr.mxu0 0.0
    %6921 = vmatpush2.msra.mxu0 0.0
    %6922 = vmatprep.subr.mxu0 0.0
    %6923 = vmatpush2.msra.mxu0 0.0
    %6924 = vmatprep.subr.mxu0 0.0
    %6925 = vmatpush2.msra.mxu0 0.0
    %6926 = vmatprep.subr.mxu0 0.0
    %6927 = vmatpush2.msra.mxu0 0.0
    %6928 = vmatprep.subr.mxu0 0.0
    %6929 = vmatpush2.msra.mxu0 0.0
    %6930 = vmatprep.subr.mxu0 0.0
    %6931 = vmatpush2.msra.mxu0 0.0
    %6932 = vmatprep.subr.mxu0 0.0
    %6933 = vmatpush2.msra.mxu0 0.0
    %6934 = vmatprep.subr.mxu0 0.0
    %6935 = vmatpush2.msra.mxu0 0.0
    %6936 = vmatprep.subr.mxu0 0.0
    %6937 = vmatpush2.msra.mxu0 0.0
    %6938 = vmatprep.subr.mxu0 0.0
    %6939 = vmatpush2.msra.mxu0 0.0
    %6940 = vmatprep.mubr.f32.mxu0 0.0
    %6941 = vmatmul.mubr.f32.gmra.mxu0 %v5804
    %v6942 = vpop.f32.mrf.mxu0
    %v6943 = vadd.f32 %v5809, %v6942
    %v6944 = vpop.f32.mrf.mxu0
    %v6945 = vadd.f32 %v5809, %v6944
    %6946 = vdwg.mxu0
    %6947 = vst [vmem:[#allocation2] sm:$0xff] %v5878
    %6948 = vst [vmem:[#allocation2 + $0x8] sm:$0xff] %v5880
    %6949 = vst [vmem:[#allocation2 + $0x10] sm:$0xff] %v5949
    %6950 = vst [vmem:[#allocation2 + $0x18] sm:$0xff] %v5951
    %6951 = vst [vmem:[#allocation2 + $0x20] sm:$0xff] %v6020
    %6952 = vst [vmem:[#allocation2 + $0x28] sm:$0xff] %v6022
    %6953 = vst [vmem:[#allocation2 + $0x30] sm:$0xff] %v6091
    %6954 = vst [vmem:[#allocation2 + $0x38] sm:$0xff] %v6093
    %6955 = vst [vmem:[#allocation2 + $0x40] sm:$0xff] %v6162
    %6956 = vst [vmem:[#allocation2 + $0x48] sm:$0xff] %v6164
    %6957 = vst [vmem:[#allocation2 + $0x50] sm:$0xff] %v6233
    %6958 = vst [vmem:[#allocation2 + $0x58] sm:$0xff] %v6235
    %6959 = vst [vmem:[#allocation2 + $0x60] sm:$0xff] %v6304
    %6960 = vst [vmem:[#allocation2 + $0x68] sm:$0xff] %v6306
    %6961 = vst [vmem:[#allocation2 + $0x70] sm:$0xff] %v6375
    %6962 = vst [vmem:[#allocation2 + $0x78] sm:$0xff] %v6377
    %6963 = vst [vmem:[#allocation2 + $0x80] sm:$0xff] %v6446
    %6964 = vst [vmem:[#allocation2 + $0x88] sm:$0xff] %v6448
    %6965 = vst [vmem:[#allocation2 + $0x90] sm:$0xff] %v6517
    %6966 = vst [vmem:[#allocation2 + $0x98] sm:$0xff] %v6519
    %6967 = vst [vmem:[#allocation2 + $0xa0] sm:$0xff] %v6588
    %6968 = vst [vmem:[#allocation2 + $0xa8] sm:$0xff] %v6590
    %6969 = vst [vmem:[#allocation2 + $0xb0] sm:$0xff] %v6659
    %6970 = vst [vmem:[#allocation2 + $0xb8] sm:$0xff] %v6661
    %6971 = vst [vmem:[#allocation2 + $0xc0] sm:$0xff] %v6730
    %6972 = vst [vmem:[#allocation2 + $0xc8] sm:$0xff] %v6732
    %6973 = vst [vmem:[#allocation2 + $0xd0] sm:$0xff] %v6801
    %6974 = vst [vmem:[#allocation2 + $0xd8] sm:$0xff] %v6803
    %6975 = vst [vmem:[#allocation2 + $0xe0] sm:$0xff] %v6872
    %6976 = vst [vmem:[#allocation2 + $0xe8] sm:$0xff] %v6874
    %6977 = vst [vmem:[#allocation2 + $0xf0] sm:$0xff] %v6943
    %6978 = vst [vmem:[#allocation2 + $0xf8] sm:$0xff] %v6945
    // Predicated region
    $region22: #{_net_forward_padded.1} parent=1 // pred_check
      _
    $region23: #{_net_forward_padded.1} parent=1 // pred_check_branch
      %6980 = sbr.rel (0) target = $region25
    $region24: #{_net_forward_padded.1} parent=1 // pred_region
      %s6982 = ssub.s32 4096, 4096
      %6983 = vsyncadd [#allocation3], %s6982
      %s6985 = sshll.u32 [#allocation2], 4
      %s6986 = int_to_ptr.vmem [resolvable:$true] %s6985
      %6988 = dma.vmem_to_hbm [thread:$0]  %s6986, 4096, %s5, [#allocation3]
    $region25: #{_net_forward_padded.1} parent=1 // pred_fallthru
      _
    // Predicated region
    $region26: #{_net_forward_padded.1} parent=1 // pred_check
      _
    $region27: #{_net_forward_padded.1} parent=1 // pred_check_branch
      %6990 = sbr.rel (0) target = $region29
    $region28: #{_net_forward_padded.1} parent=1 // pred_region
      %6991 = dma.done [#allocation3], 4096
    $region29: #{_net_forward_padded.1} parent=1 // pred_fallthru
      _
    %6992 = vsyncpa [#allocation3], 1

</llo_original>
